<compile_context>
chip_gen: v7x
topology: tpu7x:2x2x1
jax: 0.10.0
libtpu: 0.0.40
codegen_flags: <defaults>
</compile_context>

<pallas_src>
import functools

import jax
import jax.numpy as jnp
from jax.experimental import pallas as pl
from jax.experimental.pallas import tpu as pltpu


def _round_up(v, m):
    return (v + m - 1) // m * m


def _tensorcores_per_device():
    """Best-effort TensorCores-per-device (megacore chips expose 2)."""
    try:
        d = jax.devices()[0]
        n = getattr(d, "num_cores", None)
        if isinstance(n, int) and n >= 1:
            return int(n)
        kind = str(getattr(d, "device_kind", "")).lower()
        if "v7" in kind or "v4" in kind:  # megacore: 2 TensorCores per device
            return 2
    except Exception:
        pass
    return 1


def _make_mlp_kernel(num_hidden_units, activation, input_dim):
    """Builds a kernel with arg list:
       (xT_ref, w_in, b_in, [w_h, b_h] * num_hidden_units, w_out, b_out, out_ref)

    Transposed layout:
      xT_ref : (input_dim, T)          out_ref : (out_dim, T)
      w_*    : (out_features, in_features)   b_* : (out_features, 1)
    The whole MLP (matmuls + bias adds + activations) runs inside the kernel.
    """
    use_fma_input = input_dim <= 4          # tiny K -> VPU FMAs, keep MXU free
    hi = jax.lax.Precision.HIGHEST          # f32-exact MXU passes; ~free at H<=32

    def kernel(*refs):
        x_ref = refs[0]
        out_ref = refs[-1]
        params = refs[1:-1]

        x = x_ref[...]                                  # (input_dim, T), f32

        # ---- input layer + activation -------------------------------------
        w_in_ref, b_in_ref = params[0], params[1]       # (H, input_dim), (H, 1)
        if use_fma_input:
            w_in = w_in_ref[...]
            y = w_in[:, 0:1] * x[0:1, :]                # (H,1)*(1,T) -> (H,T)
            for k in range(1, input_dim):
                y = y + w_in[:, k:k + 1] * x[k:k + 1, :]
            y = y + b_in_ref[...]                       # (H,1) lane-broadcast
        else:
            y = jnp.dot(w_in_ref[...], x, precision=hi,
                        preferred_element_type=jnp.float32) + b_in_ref[...]
        y = activation(y)                               # (H, T)

        # ---- hidden block (unrolled; num_hidden_units is static) ----------
        # TODO(synk): on v7x, splitting T into two independent lane halves and
        # interleaving the two chains can hide MXU<->EUP latency; not applied
        # here to keep a single measured-correct path on all chips.
        for i in range(num_hidden_units):
            w, b = params[2 + 2 * i], params[3 + 2 * i]  # (H, H), (H, 1)
            y = activation(
                jnp.dot(w[...], y, precision=hi,
                        preferred_element_type=jnp.float32) + b[...]
            )

        # ---- output layer (no activation), lane-dense (out_dim, T) store --
        # TODO(synk): CoreEnergyModel itself defines no _output_layer; a
        #             Linear(H, 1) energy head (canonical subclass choice) is used.
        w_out, b_out = params[-2], params[-1]            # (out_dim, H), (out_dim, 1)
        out_ref[...] = (
            jnp.dot(w_out[...], y, precision=hi,
                    preferred_element_type=jnp.float32) + b_out[...]
        ).astype(out_ref.dtype)

    return kernel


def core_energy_model_forward(x, params, *, num_hidden_units, activation=jnp.tanh,
                              batch_tile=None, tile_cap=2048):
    """x: (B, input_dim) float32.
       params: flat list [w_in, b_in, w_h0, b_h0, ..., w_out, b_out] with
       weights in PyTorch layout (out_features, in_features), biases (out, 1)."""
    B, input_dim = x.shape
    out_dim = params[-2].shape[0]

    if batch_tile is None:
        # One grid step per TensorCore: grid=(1,) on v5e/v6e (single TC),
        # two balanced tiles on v7x megacore; cap the lane width.
        cores = _tensorcores_per_device()
        tile = _round_up(pl.cdiv(_round_up(B, 128), max(1, cores)), 128)
    else:
        tile = _round_up(batch_tile, 128)
    tile = max(128, min(tile, _round_up(tile_cap, 128)))
    b_pad = _round_up(B, tile)
    num_tiles = b_pad // tile

    x_t = x.astype(jnp.float32).T                        # (input_dim, B)
    if b_pad != B:
        x_t = jnp.pad(x_t, ((0, 0), (0, b_pad - B)))     # padded cols are GIGO

    kernel = _make_mlp_kernel(num_hidden_units, activation, input_dim)

    # Batch tiled over the grid; every weight/bias is a full, grid-invariant
    # block (index_map always (0, 0)) that stays VMEM-resident.
    x_spec = pl.BlockSpec((input_dim, tile), lambda i: (0, i))
    param_specs = [pl.BlockSpec(p.shape, lambda i: (0, 0)) for p in params]
    out_spec = pl.BlockSpec((out_dim, tile), lambda i: (0, i))

    out_t = pl.pallas_call(
        kernel,
        out_shape=jax.ShapeDtypeStruct((out_dim, b_pad), jnp.float32),
        grid_spec=pltpu.PrefetchScalarGridSpec(
            num_scalar_prefetch=0,
            grid=(num_tiles,),
            in_specs=[x_spec] + param_specs,
            out_specs=out_spec,
        ),
        compiler_params=pltpu.CompilerParams(
            dimension_semantics=("parallel",)   # shards tiles across v7x TCs
        ),
    )(x_t, *params)

    if out_dim == 1:
        # Row-slice + reshape: no transpose kernel on the output path.
        return out_t[0, :B].reshape(B, 1)
    return out_t[:, :B].T                                # (B, out_dim)


def init_params(key, input_dim, num_hidden_units, num_hidden_neurons, out_dim=1):
    """Deterministic init mimicking torch.nn.Linear (uniform +/- 1/sqrt(fan_in)).
    Weights in PyTorch layout (out, in); biases as (out, 1)."""
    dims = [(input_dim, num_hidden_neurons)]
    dims += [(num_hidden_neurons, num_hidden_neurons)] * num_hidden_units
    dims += [(num_hidden_neurons, out_dim)]

    params = []
    for (fan_in, fan_out) in dims:
        key, kw, kb = jax.random.split(key, 3)
        bound = 1.0 / jnp.sqrt(jnp.float32(fan_in))
        w = jax.random.uniform(kw, (fan_out, fan_in), jnp.float32, -bound, bound)
        b = jax.random.uniform(kb, (fan_out, 1), jnp.float32, -bound, bound)
        params += [w, b]
    return params


def reference_forward(x, params, num_hidden_units, activation=jnp.tanh):
    hi = jax.lax.Precision.HIGHEST
    y = activation(jnp.dot(x, params[0].T, precision=hi) + params[1].T)
    for i in range(num_hidden_units):
        y = activation(jnp.dot(y, params[2 + 2 * i].T, precision=hi)
                       + params[3 + 2 * i].T)
    return jnp.dot(y, params[-2].T, precision=hi) + params[-1].T


if __name__ == "__main__":
    # Shapes consistent with the module: input_dim=2 (EBM 2-D samples),
    # num_hidden_units=3 hidden Linear layers, num_hidden_neurons=32.
    batch = 1024
    input_dim = 2
    num_hidden_units = 3
    num_hidden_neurons = 32
    activation = jnp.tanh  # activation_func

    key = jax.random.PRNGKey(0)
    kx, kp = jax.random.split(key)
    x = jax.random.normal(kx, (batch, input_dim), jnp.float32)
    params = init_params(kp, input_dim, num_hidden_units, num_hidden_neurons)

    fwd = jax.jit(
        functools.partial(
            core_energy_model_forward,
            num_hidden_units=num_hidden_units,
            activation=activation,
        )
    )
    out = fwd(x, params)
    jax.block_until_ready(out)

    ref = reference_forward(x, params, num_hidden_units, activation)
    assert out.shape == (batch, 1)
    assert jnp.allclose(out, ref, atol=1e-4, rtol=1e-4), "mismatch vs reference"

    print("KERNEL_OK")
</pallas_src>

<mosaic_0001>
module attributes {stable_mosaic.version = 11 : i64} {
  func.func @kernel(%arg0: i32, %arg1: memref<2x1024xf32, #tpu.memory_space<vmem>>, %arg2: memref<32x2xf32, #tpu.memory_space<vmem>>, %arg3: memref<32x1xf32, #tpu.memory_space<vmem>>, %arg4: memref<32x32xf32, #tpu.memory_space<vmem>>, %arg5: memref<32x1xf32, #tpu.memory_space<vmem>>, %arg6: memref<32x32xf32, #tpu.memory_space<vmem>>, %arg7: memref<32x1xf32, #tpu.memory_space<vmem>>, %arg8: memref<32x32xf32, #tpu.memory_space<vmem>>, %arg9: memref<32x1xf32, #tpu.memory_space<vmem>>, %arg10: memref<1x32xf32, #tpu.memory_space<vmem>>, %arg11: memref<1x1xf32, #tpu.memory_space<vmem>>, %arg12: memref<1x1024xf32, #tpu.memory_space<vmem>>) attributes {dimension_semantics = [#tpu.dimension_semantics<parallel>], iteration_bounds = array<i64: 1>, scalar_prefetch = 0 : i64, scratch_operands = 0 : i64, tpu.core_type = #tpu.core_type<tc>, window_params = [{transform_indices = @transform_0, window_bounds = array<i64: 2, 1024>}, {pipeline_mode = #tpu.pipeline_mode<synchronous>, transform_indices = @transform_1, window_bounds = array<i64: 32, 2>}, {pipeline_mode = #tpu.pipeline_mode<synchronous>, transform_indices = @transform_2, window_bounds = array<i64: 32, 1>}, {pipeline_mode = #tpu.pipeline_mode<synchronous>, transform_indices = @transform_3, window_bounds = array<i64: 32, 32>}, {pipeline_mode = #tpu.pipeline_mode<synchronous>, transform_indices = @transform_4, window_bounds = array<i64: 32, 1>}, {pipeline_mode = #tpu.pipeline_mode<synchronous>, transform_indices = @transform_5, window_bounds = array<i64: 32, 32>}, {pipeline_mode = #tpu.pipeline_mode<synchronous>, transform_indices = @transform_6, window_bounds = array<i64: 32, 1>}, {pipeline_mode = #tpu.pipeline_mode<synchronous>, transform_indices = @transform_7, window_bounds = array<i64: 32, 32>}, {pipeline_mode = #tpu.pipeline_mode<synchronous>, transform_indices = @transform_8, window_bounds = array<i64: 32, 1>}, {pipeline_mode = #tpu.pipeline_mode<synchronous>, transform_indices = @transform_9, window_bounds = array<i64: 1, 32>}, {pipeline_mode = #tpu.pipeline_mode<synchronous>, transform_indices = @transform_10, window_bounds = array<i64: 1, 1>}, {transform_indices = @transform_11, window_bounds = array<i64: 1, 1024>}]} {
    %c0 = arith.constant 0 : index
    %c0_0 = arith.constant 0 : index
    %0 = vector.load %arg1[%c0, %c0_0] : memref<2x1024xf32, #tpu.memory_space<vmem>>, vector<2x1024xf32>
    %c0_1 = arith.constant 0 : index
    %c0_2 = arith.constant 0 : index
    %1 = vector.load %arg2[%c0_1, %c0_2] : memref<32x2xf32, #tpu.memory_space<vmem>>, vector<32x2xf32>
    %2 = vector.extract_strided_slice %1 {offsets = [0, 0], sizes = [32, 1], strides = [1, 1]} : vector<32x2xf32> to vector<32x1xf32>
    %3 = vector.extract_strided_slice %0 {offsets = [0, 0], sizes = [1, 1024], strides = [1, 1]} : vector<2x1024xf32> to vector<1x1024xf32>
    %4 = vector.broadcast %2 : vector<32x1xf32> to vector<32x1024xf32>
    %5 = vector.broadcast %3 : vector<1x1024xf32> to vector<32x1024xf32>
    %6 = arith.mulf %4, %5 : vector<32x1024xf32>
    %7 = vector.extract_strided_slice %1 {offsets = [0, 1], sizes = [32, 1], strides = [1, 1]} : vector<32x2xf32> to vector<32x1xf32>
    %8 = vector.extract_strided_slice %0 {offsets = [1, 0], sizes = [1, 1024], strides = [1, 1]} : vector<2x1024xf32> to vector<1x1024xf32>
    %9 = vector.broadcast %7 : vector<32x1xf32> to vector<32x1024xf32>
    %10 = vector.broadcast %8 : vector<1x1024xf32> to vector<32x1024xf32>
    %11 = arith.mulf %9, %10 : vector<32x1024xf32>
    %12 = arith.addf %6, %11 : vector<32x1024xf32>
    %c0_3 = arith.constant 0 : index
    %c0_4 = arith.constant 0 : index
    %13 = vector.load %arg3[%c0_3, %c0_4] : memref<32x1xf32, #tpu.memory_space<vmem>>, vector<32x1xf32>
    %14 = vector.broadcast %13 : vector<32x1xf32> to vector<32x1024xf32>
    %15 = arith.addf %12, %14 : vector<32x1024xf32>
    %16 = math.tanh %15 : vector<32x1024xf32>
    %c0_5 = arith.constant 0 : index
    %c0_6 = arith.constant 0 : index
    %17 = vector.load %arg4[%c0_5, %c0_6] : memref<32x32xf32, #tpu.memory_space<vmem>>, vector<32x32xf32>
    %cst = arith.constant dense<0.000000e+00> : vector<32x1024xf32>
    %18 = tpu.matmul %17, %16, %cst {dimension_numbers = #tpu.dot_dimension_numbers<[1], [0], [0], [1], [0, 0, 1, 1], [], []>, precision = #tpu.contract_precision<fp32>} : vector<32x32xf32>, vector<32x1024xf32>, vector<32x1024xf32> -> vector<32x1024xf32>
    %c0_7 = arith.constant 0 : index
    %c0_8 = arith.constant 0 : index
    %19 = vector.load %arg5[%c0_7, %c0_8] : memref<32x1xf32, #tpu.memory_space<vmem>>, vector<32x1xf32>
    %20 = vector.broadcast %19 : vector<32x1xf32> to vector<32x1024xf32>
    %21 = arith.addf %18, %20 : vector<32x1024xf32>
    %22 = math.tanh %21 : vector<32x1024xf32>
    %c0_9 = arith.constant 0 : index
    %c0_10 = arith.constant 0 : index
    %23 = vector.load %arg6[%c0_9, %c0_10] : memref<32x32xf32, #tpu.memory_space<vmem>>, vector<32x32xf32>
    %cst_11 = arith.constant dense<0.000000e+00> : vector<32x1024xf32>
    %24 = tpu.matmul %23, %22, %cst_11 {dimension_numbers = #tpu.dot_dimension_numbers<[1], [0], [0], [1], [0, 0, 1, 1], [], []>, precision = #tpu.contract_precision<fp32>} : vector<32x32xf32>, vector<32x1024xf32>, vector<32x1024xf32> -> vector<32x1024xf32>
    %c0_12 = arith.constant 0 : index
    %c0_13 = arith.constant 0 : index
    %25 = vector.load %arg7[%c0_12, %c0_13] : memref<32x1xf32, #tpu.memory_space<vmem>>, vector<32x1xf32>
    %26 = vector.broadcast %25 : vector<32x1xf32> to vector<32x1024xf32>
    %27 = arith.addf %24, %26 : vector<32x1024xf32>
    %28 = math.tanh %27 : vector<32x1024xf32>
    %c0_14 = arith.constant 0 : index
    %c0_15 = arith.constant 0 : index
    %29 = vector.load %arg8[%c0_14, %c0_15] : memref<32x32xf32, #tpu.memory_space<vmem>>, vector<32x32xf32>
    %cst_16 = arith.constant dense<0.000000e+00> : vector<32x1024xf32>
    %30 = tpu.matmul %29, %28, %cst_16 {dimension_numbers = #tpu.dot_dimension_numbers<[1], [0], [0], [1], [0, 0, 1, 1], [], []>, precision = #tpu.contract_precision<fp32>} : vector<32x32xf32>, vector<32x1024xf32>, vector<32x1024xf32> -> vector<32x1024xf32>
    %c0_17 = arith.constant 0 : index
    %c0_18 = arith.constant 0 : index
    %31 = vector.load %arg9[%c0_17, %c0_18] : memref<32x1xf32, #tpu.memory_space<vmem>>, vector<32x1xf32>
    %32 = vector.broadcast %31 : vector<32x1xf32> to vector<32x1024xf32>
    %33 = arith.addf %30, %32 : vector<32x1024xf32>
    %34 = math.tanh %33 : vector<32x1024xf32>
    %c0_19 = arith.constant 0 : index
    %c0_20 = arith.constant 0 : index
    %35 = vector.load %arg10[%c0_19, %c0_20] : memref<1x32xf32, #tpu.memory_space<vmem>>, vector<1x32xf32>
    %cst_21 = arith.constant dense<0.000000e+00> : vector<1x1024xf32>
    %36 = tpu.matmul %35, %34, %cst_21 {dimension_numbers = #tpu.dot_dimension_numbers<[1], [0], [0], [1], [0, 0, 1, 1], [], []>, precision = #tpu.contract_precision<fp32>} : vector<1x32xf32>, vector<32x1024xf32>, vector<1x1024xf32> -> vector<1x1024xf32>
    %c0_22 = arith.constant 0 : index
    %c0_23 = arith.constant 0 : index
    %37 = vector.load %arg11[%c0_22, %c0_23] : memref<1x1xf32, #tpu.memory_space<vmem>>, vector<1x1xf32>
    %38 = vector.broadcast %37 : vector<1x1xf32> to vector<1x1024xf32>
    %39 = arith.addf %36, %38 : vector<1x1024xf32>
    %c0_24 = arith.constant 0 : index
    %c0_25 = arith.constant 0 : index
    %40 = vector.load %arg12[%c0_24, %c0_25] : memref<1x1024xf32, #tpu.memory_space<vmem>>, vector<1x1024xf32>
    tpu.vector_store %arg12[%c0_24, %c0_25], %39 {strides = array<i32>} : memref<1x1024xf32, #tpu.memory_space<vmem>>, vector<1x1024xf32>,
    return
  }
  func.func @transform_0(%arg0: i32) -> (i32, i32) {
    %c0_i32 = arith.constant 0 : i32
    %c0_i32_0 = arith.constant 0 : i32
    return %c0_i32, %arg0 : i32, i32
  }
  func.func @transform_1(%arg0: i32) -> (i32, i32) {
    %c0_i32 = arith.constant 0 : i32
    %c0_i32_0 = arith.constant 0 : i32
    %c0_i32_1 = arith.constant 0 : i32
    return %c0_i32, %c0_i32_0 : i32, i32
  }
  func.func @transform_2(%arg0: i32) -> (i32, i32) {
    %c0_i32 = arith.constant 0 : i32
    %c0_i32_0 = arith.constant 0 : i32
    %c0_i32_1 = arith.constant 0 : i32
    return %c0_i32, %c0_i32_0 : i32, i32
  }
  func.func @transform_3(%arg0: i32) -> (i32, i32) {
    %c0_i32 = arith.constant 0 : i32
    %c0_i32_0 = arith.constant 0 : i32
    %c0_i32_1 = arith.constant 0 : i32
    return %c0_i32, %c0_i32_0 : i32, i32
  }
  func.func @transform_4(%arg0: i32) -> (i32, i32) {
    %c0_i32 = arith.constant 0 : i32
    %c0_i32_0 = arith.constant 0 : i32
    %c0_i32_1 = arith.constant 0 : i32
    return %c0_i32, %c0_i32_0 : i32, i32
  }
  func.func @transform_5(%arg0: i32) -> (i32, i32) {
    %c0_i32 = arith.constant 0 : i32
    %c0_i32_0 = arith.constant 0 : i32
    %c0_i32_1 = arith.constant 0 : i32
    return %c0_i32, %c0_i32_0 : i32, i32
  }
  func.func @transform_6(%arg0: i32) -> (i32, i32) {
    %c0_i32 = arith.constant 0 : i32
    %c0_i32_0 = arith.constant 0 : i32
    %c0_i32_1 = arith.constant 0 : i32
    return %c0_i32, %c0_i32_0 : i32, i32
  }
  func.func @transform_7(%arg0: i32) -> (i32, i32) {
    %c0_i32 = arith.constant 0 : i32
    %c0_i32_0 = arith.constant 0 : i32
    %c0_i32_1 = arith.constant 0 : i32
    return %c0_i32, %c0_i32_0 : i32, i32
  }
  func.func @transform_8(%arg0: i32) -> (i32, i32) {
    %c0_i32 = arith.constant 0 : i32
    %c0_i32_0 = arith.constant 0 : i32
    %c0_i32_1 = arith.constant 0 : i32
    return %c0_i32, %c0_i32_0 : i32, i32
  }
  func.func @transform_9(%arg0: i32) -> (i32, i32) {
    %c0_i32 = arith.constant 0 : i32
    %c0_i32_0 = arith.constant 0 : i32
    %c0_i32_1 = arith.constant 0 : i32
    return %c0_i32, %c0_i32_0 : i32, i32
  }
  func.func @transform_10(%arg0: i32) -> (i32, i32) {
    %c0_i32 = arith.constant 0 : i32
    %c0_i32_0 = arith.constant 0 : i32
    %c0_i32_1 = arith.constant 0 : i32
    return %c0_i32, %c0_i32_0 : i32, i32
  }
  func.func @transform_11(%arg0: i32) -> (i32, i32) {
    %c0_i32 = arith.constant 0 : i32
    %c0_i32_0 = arith.constant 0 : i32
    return %c0_i32, %arg0 : i32, i32
  }
}

</mosaic_0001>

<llo_original>
// kernel: core_energy_model_forward.1
$region0: #{core_energy_model_forward.1}
  #allocation0 [shape = 'u32[]', space=smem, size = 0x4, offset = 0x4, fixed_abs, tag = 'smem constant byte address 0x4 - core index']
  #allocation1 [shape = 'u32[144,128]{1,0:T(1,128)}', space=vmem, size = 0x12000, scoped, tag = 'internal scratch']
  #allocation2 [shape = 'f32[1,1]{1,0:T(1,128)S(1)}', space=vmem, size = 0x200, scoped, tag = 'scoped memory for core_energy_model_forward.1']
  %s0 = inlined_call_operand.vmem [shape: f32[2,1024], index: 0, kind: input, shape index: {}]
  %s1 = inlined_call_operand.vmem [shape: f32[32,2], index: 1, kind: input, shape index: {}]
  %s2 = inlined_call_operand.vmem [shape: f32[32,1], index: 2, kind: input, shape index: {}]
  %s3 = inlined_call_operand.vmem [shape: f32[32,32], index: 3, kind: input, shape index: {}]
  %s4 = inlined_call_operand.vmem [shape: f32[32,1], index: 4, kind: input, shape index: {}]
  %s5 = inlined_call_operand.vmem [shape: f32[32,32], index: 5, kind: input, shape index: {}]
  %s6 = inlined_call_operand.vmem [shape: f32[32,1], index: 6, kind: input, shape index: {}]
  %s7 = inlined_call_operand.vmem [shape: f32[32,32], index: 7, kind: input, shape index: {}]
  %s8 = inlined_call_operand.vmem [shape: f32[32,1], index: 8, kind: input, shape index: {}]
  %s9 = inlined_call_operand.vmem [shape: f32[1,32], index: 9, kind: input, shape index: {}]
  %s10 = inlined_call_operand.<no memory space> [shape: f32[1,1], index: 10, kind: input, shape index: {}]
  %s11 = inlined_call_operand.hbm [shape: f32[1,1024], index: 11, kind: output, shape index: {}]
  %s12 = sld [smem:[#allocation0]]
  $region54: #{core_energy_model_forward.1} parent=0
    _
  %s14 = ssub.s32 1, %s12
  %s15 = scalar_select 0, %s14, %s12
  %v16 = vstv %s10
  %17 = vst [vmem:[#allocation2] sm:$0x1] %v16
  $region1: #{core_energy_model_forward.1} parent=0
    #allocation3 [shape = 'u8[4096]{0}', space=vmem, size = 0x1000, scoped, tag = 'output window, operand 0, single buffered']
    #allocation4 [shape = 's32[1]{0}', space=sflag, size = 0x4, scoped, tag = 'scoped memory for core_energy_model_forward.1']
    %18 = vsyncpa [#allocation4], 0
    // Predicated region
    $region2: #{core_energy_model_forward.1} parent=1 // pred_check
      _
    $region3: #{core_energy_model_forward.1} parent=1 // pred_check_branch
      %20 = sbr.rel (0) target = $region5
    $region4: #{core_energy_model_forward.1} parent=1 // pred_region
      _
    $region5: #{core_energy_model_forward.1} parent=1 // pred_fallthru
      _
    // Predicated region
    $region6: #{core_energy_model_forward.1} parent=1 // pred_check
      _
    $region7: #{core_energy_model_forward.1} parent=1 // pred_check_branch
      %22 = sbr.rel (0) target = $region9
    $region8: #{core_energy_model_forward.1} parent=1 // pred_region
      _
    $region9: #{core_energy_model_forward.1} parent=1 // pred_fallthru
      _
    // Predicated region
    $region10: #{core_energy_model_forward.1} parent=1 // pred_check
      _
    $region11: #{core_energy_model_forward.1} parent=1 // pred_check_branch
      %24 = sbr.rel (0) target = $region13
    $region12: #{core_energy_model_forward.1} parent=1 // pred_region
      _
    $region13: #{core_energy_model_forward.1} parent=1 // pred_fallthru
      _
    // Predicated region
    $region14: #{core_energy_model_forward.1} parent=1 // pred_check
      _
    $region15: #{core_energy_model_forward.1} parent=1 // pred_check_branch
      %26 = sbr.rel (0) target = $region17
    $region16: #{core_energy_model_forward.1} parent=1 // pred_region
      _
    $region17: #{core_energy_model_forward.1} parent=1 // pred_fallthru
      _
    // Predicated region
    $region18: #{core_energy_model_forward.1} parent=1 // pred_check
      _
    $region19: #{core_energy_model_forward.1} parent=1 // pred_check_branch
      %28 = sbr.rel (0) target = $region21
    $region20: #{core_energy_model_forward.1} parent=1 // pred_region
      _
    $region21: #{core_energy_model_forward.1} parent=1 // pred_fallthru
      _
    // Predicated region
    $region22: #{core_energy_model_forward.1} parent=1 // pred_check
      _
    $region23: #{core_energy_model_forward.1} parent=1 // pred_check_branch
      %30 = sbr.rel (0) target = $region25
    $region24: #{core_energy_model_forward.1} parent=1 // pred_region
      _
    $region25: #{core_energy_model_forward.1} parent=1 // pred_fallthru
      _
    // Predicated region
    $region26: #{core_energy_model_forward.1} parent=1 // pred_check
      _
    $region27: #{core_energy_model_forward.1} parent=1 // pred_check_branch
      %32 = sbr.rel (0) target = $region29
    $region28: #{core_energy_model_forward.1} parent=1 // pred_region
      _
    $region29: #{core_energy_model_forward.1} parent=1 // pred_fallthru
      _
    // Predicated region
    $region30: #{core_energy_model_forward.1} parent=1 // pred_check
      _
    $region31: #{core_energy_model_forward.1} parent=1 // pred_check_branch
      %34 = sbr.rel (0) target = $region33
    $region32: #{core_energy_model_forward.1} parent=1 // pred_region
      _
    $region33: #{core_energy_model_forward.1} parent=1 // pred_fallthru
      _
    // Predicated region
    $region34: #{core_energy_model_forward.1} parent=1 // pred_check
      _
    $region35: #{core_energy_model_forward.1} parent=1 // pred_check_branch
      %36 = sbr.rel (0) target = $region37
    $region36: #{core_energy_model_forward.1} parent=1 // pred_region
      _
    $region37: #{core_energy_model_forward.1} parent=1 // pred_fallthru
      _
    // Predicated region
    $region38: #{core_energy_model_forward.1} parent=1 // pred_check
      _
    $region39: #{core_energy_model_forward.1} parent=1 // pred_check_branch
      %38 = sbr.rel (0) target = $region41
    $region40: #{core_energy_model_forward.1} parent=1 // pred_region
      _
    $region41: #{core_energy_model_forward.1} parent=1 // pred_fallthru
      _
    // Predicated region
    $region42: #{core_energy_model_forward.1} parent=1 // pred_check
      _
    $region43: #{core_energy_model_forward.1} parent=1 // pred_check_branch
      %40 = sbr.rel (0) target = $region45
    $region44: #{core_energy_model_forward.1} parent=1 // pred_region
      _
    $region45: #{core_energy_model_forward.1} parent=1 // pred_fallthru
      _
    %v41 = vld [vmem:[%s0] sm:$0xff]
    %v42 = vld [vmem:[%s0 + $0x8] sm:$0xff]
    %v43 = vld [vmem:[%s1] sm:$0xff]
    %v44 = vld [vmem:[%s1 + $0x8] sm:$0xff]
    %v45 = vld [vmem:[%s1 + $0x10] sm:$0xff]
    %v46 = vld [vmem:[%s1 + $0x18] sm:$0xff]
    %48 = vset.pattern.permute.xlu0 0
    %49 = vperm.xlu0 %48, %v43
    %v50 = vpop.permute.xlu0 %49
    %53 = vset.pattern.permute.xlu0 0
    %54 = vperm.xlu0 %53, %v44
    %v55 = vpop.permute.xlu0 %54
    %58 = vset.pattern.permute.xlu0 0
    %59 = vperm.xlu0 %58, %v45
    %v60 = vpop.permute.xlu0 %59
    %63 = vset.pattern.permute.xlu0 0
    %64 = vperm.xlu0 %63, %v46
    %v65 = vpop.permute.xlu0 %64
    %v69 = vlaneseq
    %v70 = vshrl.u32 %v69, 7
    %v71 = vsub.s32 0, %v70
    %v72 = vrot.slane %v41, %v71
    %v73 = vlaneseq
    %v74 = vshrl.u32 %v73, 7
    %v75 = vsub.s32 2, %v74
    %v76 = vrot.slane %v41, %v75
    %v77 = vlaneseq
    %v78 = vshrl.u32 %v77, 7
    %v79 = vsub.s32 4, %v78
    %v80 = vrot.slane %v41, %v79
    %v81 = vlaneseq
    %v82 = vshrl.u32 %v81, 7
    %v83 = vsub.s32 6, %v82
    %v84 = vrot.slane %v41, %v83
    %v85 = vlaneseq
    %v86 = vshrl.u32 %v85, 7
    %v87 = vsub.s32 0, %v86
    %v88 = vrot.slane %v42, %v87
    %v89 = vlaneseq
    %v90 = vshrl.u32 %v89, 7
    %v91 = vsub.s32 2, %v90
    %v92 = vrot.slane %v42, %v91
    %v93 = vlaneseq
    %v94 = vshrl.u32 %v93, 7
    %v95 = vsub.s32 4, %v94
    %v96 = vrot.slane %v42, %v95
    %v97 = vlaneseq
    %v98 = vshrl.u32 %v97, 7
    %v99 = vsub.s32 6, %v98
    %v100 = vrot.slane %v42, %v99
    %v109 = vlaneseq
    %v110 = vshrl.u32 %v109, 7
    %v111 = vsub.s32 0, %v110
    %v112 = vrot.slane %v72, %v111
    %v113 = vlaneseq
    %v114 = vshrl.u32 %v113, 7
    %v115 = vsub.s32 0, %v114
    %v116 = vrot.slane %v76, %v115
    %v117 = vlaneseq
    %v118 = vshrl.u32 %v117, 7
    %v119 = vsub.s32 0, %v118
    %v120 = vrot.slane %v80, %v119
    %v121 = vlaneseq
    %v122 = vshrl.u32 %v121, 7
    %v123 = vsub.s32 0, %v122
    %v124 = vrot.slane %v84, %v123
    %v125 = vlaneseq
    %v126 = vshrl.u32 %v125, 7
    %v127 = vsub.s32 0, %v126
    %v128 = vrot.slane %v88, %v127
    %v129 = vlaneseq
    %v130 = vshrl.u32 %v129, 7
    %v131 = vsub.s32 0, %v130
    %v132 = vrot.slane %v92, %v131
    %v133 = vlaneseq
    %v134 = vshrl.u32 %v133, 7
    %v135 = vsub.s32 0, %v134
    %v136 = vrot.slane %v96, %v135
    %v137 = vlaneseq
    %v138 = vshrl.u32 %v137, 7
    %v139 = vsub.s32 0, %v138
    %v140 = vrot.slane %v100, %v139
    %v141 = vmul.f32 %v50, %v112
    %v142 = vmul.f32 %v50, %v116
    %v143 = vmul.f32 %v50, %v120
    %v144 = vmul.f32 %v50, %v124
    %v145 = vmul.f32 %v50, %v128
    %v146 = vmul.f32 %v50, %v132
    %v147 = vmul.f32 %v50, %v136
    %v148 = vmul.f32 %v50, %v140
    %v149 = vmul.f32 %v55, %v112
    %v150 = vmul.f32 %v55, %v116
    %v151 = vmul.f32 %v55, %v120
    %v152 = vmul.f32 %v55, %v124
    %v153 = vmul.f32 %v55, %v128
    %v154 = vmul.f32 %v55, %v132
    %v155 = vmul.f32 %v55, %v136
    %v156 = vmul.f32 %v55, %v140
    %v157 = vmul.f32 %v60, %v112
    %v158 = vmul.f32 %v60, %v116
    %v159 = vmul.f32 %v60, %v120
    %v160 = vmul.f32 %v60, %v124
    %v161 = vmul.f32 %v60, %v128
    %v162 = vmul.f32 %v60, %v132
    %v163 = vmul.f32 %v60, %v136
    %v164 = vmul.f32 %v60, %v140
    %v165 = vmul.f32 %v65, %v112
    %v166 = vmul.f32 %v65, %v116
    %v167 = vmul.f32 %v65, %v120
    %v168 = vmul.f32 %v65, %v124
    %v169 = vmul.f32 %v65, %v128
    %v170 = vmul.f32 %v65, %v132
    %v171 = vmul.f32 %v65, %v136
    %v172 = vmul.f32 %v65, %v140
    %173 = vset.pattern.permute.xlu0 1
    %174 = vperm.xlu0 %173, %v43
    %v175 = vpop.permute.xlu0 %174
    %177 = vset.pattern.permute.xlu0 1
    %178 = vperm.xlu0 %177, %v44
    %v179 = vpop.permute.xlu0 %178
    %181 = vset.pattern.permute.xlu0 1
    %182 = vperm.xlu0 %181, %v45
    %v183 = vpop.permute.xlu0 %182
    %185 = vset.pattern.permute.xlu0 1
    %186 = vperm.xlu0 %185, %v46
    %v187 = vpop.permute.xlu0 %186
    %v189 = vlaneseq
    %v190 = vshrl.u32 %v189, 7
    %v191 = vsub.s32 1, %v190
    %v192 = vrot.slane %v41, %v191
    %v193 = vlaneseq
    %v194 = vshrl.u32 %v193, 7
    %v195 = vsub.s32 3, %v194
    %v196 = vrot.slane %v41, %v195
    %v197 = vlaneseq
    %v198 = vshrl.u32 %v197, 7
    %v199 = vsub.s32 5, %v198
    %v200 = vrot.slane %v41, %v199
    %v201 = vlaneseq
    %v202 = vshrl.u32 %v201, 7
    %v203 = vsub.s32 7, %v202
    %v204 = vrot.slane %v41, %v203
    %v205 = vlaneseq
    %v206 = vshrl.u32 %v205, 7
    %v207 = vsub.s32 1, %v206
    %v208 = vrot.slane %v42, %v207
    %v209 = vlaneseq
    %v210 = vshrl.u32 %v209, 7
    %v211 = vsub.s32 3, %v210
    %v212 = vrot.slane %v42, %v211
    %v213 = vlaneseq
    %v214 = vshrl.u32 %v213, 7
    %v215 = vsub.s32 5, %v214
    %v216 = vrot.slane %v42, %v215
    %v217 = vlaneseq
    %v218 = vshrl.u32 %v217, 7
    %v219 = vsub.s32 7, %v218
    %v220 = vrot.slane %v42, %v219
    %v229 = vlaneseq
    %v230 = vshrl.u32 %v229, 7
    %v231 = vsub.s32 1, %v230
    %v232 = vrot.slane %v192, %v231
    %v233 = vlaneseq
    %v234 = vshrl.u32 %v233, 7
    %v235 = vsub.s32 1, %v234
    %v236 = vrot.slane %v196, %v235
    %v237 = vlaneseq
    %v238 = vshrl.u32 %v237, 7
    %v239 = vsub.s32 1, %v238
    %v240 = vrot.slane %v200, %v239
    %v241 = vlaneseq
    %v242 = vshrl.u32 %v241, 7
    %v243 = vsub.s32 1, %v242
    %v244 = vrot.slane %v204, %v243
    %v245 = vlaneseq
    %v246 = vshrl.u32 %v245, 7
    %v247 = vsub.s32 1, %v246
    %v248 = vrot.slane %v208, %v247
    %v249 = vlaneseq
    %v250 = vshrl.u32 %v249, 7
    %v251 = vsub.s32 1, %v250
    %v252 = vrot.slane %v212, %v251
    %v253 = vlaneseq
    %v254 = vshrl.u32 %v253, 7
    %v255 = vsub.s32 1, %v254
    %v256 = vrot.slane %v216, %v255
    %v257 = vlaneseq
    %v258 = vshrl.u32 %v257, 7
    %v259 = vsub.s32 1, %v258
    %v260 = vrot.slane %v220, %v259
    %v261 = vmul.f32 %v175, %v232
    %v262 = vmul.f32 %v175, %v236
    %v263 = vmul.f32 %v175, %v240
    %v264 = vmul.f32 %v175, %v244
    %v265 = vmul.f32 %v175, %v248
    %v266 = vmul.f32 %v175, %v252
    %v267 = vmul.f32 %v175, %v256
    %v268 = vmul.f32 %v175, %v260
    %v269 = vmul.f32 %v179, %v232
    %v270 = vmul.f32 %v179, %v236
    %v271 = vmul.f32 %v179, %v240
    %v272 = vmul.f32 %v179, %v244
    %v273 = vmul.f32 %v179, %v248
    %v274 = vmul.f32 %v179, %v252
    %v275 = vmul.f32 %v179, %v256
    %v276 = vmul.f32 %v179, %v260
    %v277 = vmul.f32 %v183, %v232
    %v278 = vmul.f32 %v183, %v236
    %v279 = vmul.f32 %v183, %v240
    %v280 = vmul.f32 %v183, %v244
    %v281 = vmul.f32 %v183, %v248
    %v282 = vmul.f32 %v183, %v252
    %v283 = vmul.f32 %v183, %v256
    %v284 = vmul.f32 %v183, %v260
    %v285 = vmul.f32 %v187, %v232
    %v286 = vmul.f32 %v187, %v236
    %v287 = vmul.f32 %v187, %v240
    %v288 = vmul.f32 %v187, %v244
    %v289 = vmul.f32 %v187, %v248
    %v290 = vmul.f32 %v187, %v252
    %v291 = vmul.f32 %v187, %v256
    %v292 = vmul.f32 %v187, %v260
    %v293 = vadd.f32 %v141, %v261
    %v294 = vadd.f32 %v142, %v262
    %v295 = vadd.f32 %v143, %v263
    %v296 = vadd.f32 %v144, %v264
    %v297 = vadd.f32 %v145, %v265
    %v298 = vadd.f32 %v146, %v266
    %v299 = vadd.f32 %v147, %v267
    %v300 = vadd.f32 %v148, %v268
    %v301 = vadd.f32 %v149, %v269
    %v302 = vadd.f32 %v150, %v270
    %v303 = vadd.f32 %v151, %v271
    %v304 = vadd.f32 %v152, %v272
    %v305 = vadd.f32 %v153, %v273
    %v306 = vadd.f32 %v154, %v274
    %v307 = vadd.f32 %v155, %v275
    %v308 = vadd.f32 %v156, %v276
    %v309 = vadd.f32 %v157, %v277
    %v310 = vadd.f32 %v158, %v278
    %v311 = vadd.f32 %v159, %v279
    %v312 = vadd.f32 %v160, %v280
    %v313 = vadd.f32 %v161, %v281
    %v314 = vadd.f32 %v162, %v282
    %v315 = vadd.f32 %v163, %v283
    %v316 = vadd.f32 %v164, %v284
    %v317 = vadd.f32 %v165, %v285
    %v318 = vadd.f32 %v166, %v286
    %v319 = vadd.f32 %v167, %v287
    %v320 = vadd.f32 %v168, %v288
    %v321 = vadd.f32 %v169, %v289
    %v322 = vadd.f32 %v170, %v290
    %v323 = vadd.f32 %v171, %v291
    %v324 = vadd.f32 %v172, %v292
    %v325 = vld [vmem:[%s2] sm:$0xff]
    %v326 = vld [vmem:[%s2 + $0x8] sm:$0xff]
    %v327 = vld [vmem:[%s2 + $0x10] sm:$0xff]
    %v328 = vld [vmem:[%s2 + $0x18] sm:$0xff]
    %330 = vset.pattern.permute.xlu0 0
    %331 = vperm.xlu0 %330, %v325
    %v332 = vpop.permute.xlu0 %331
    %335 = vset.pattern.permute.xlu0 0
    %336 = vperm.xlu0 %335, %v326
    %v337 = vpop.permute.xlu0 %336
    %340 = vset.pattern.permute.xlu0 0
    %341 = vperm.xlu0 %340, %v327
    %v342 = vpop.permute.xlu0 %341
    %345 = vset.pattern.permute.xlu0 0
    %346 = vperm.xlu0 %345, %v328
    %v347 = vpop.permute.xlu0 %346
    %v349 = vadd.f32 %v293, %v332
    %v350 = vadd.f32 %v294, %v332
    %v351 = vadd.f32 %v295, %v332
    %v352 = vadd.f32 %v296, %v332
    %v353 = vadd.f32 %v297, %v332
    %v354 = vadd.f32 %v298, %v332
    %v355 = vadd.f32 %v299, %v332
    %v356 = vadd.f32 %v300, %v332
    %v357 = vadd.f32 %v301, %v337
    %v358 = vadd.f32 %v302, %v337
    %v359 = vadd.f32 %v303, %v337
    %v360 = vadd.f32 %v304, %v337
    %v361 = vadd.f32 %v305, %v337
    %v362 = vadd.f32 %v306, %v337
    %v363 = vadd.f32 %v307, %v337
    %v364 = vadd.f32 %v308, %v337
    %v365 = vadd.f32 %v309, %v342
    %v366 = vadd.f32 %v310, %v342
    %v367 = vadd.f32 %v311, %v342
    %v368 = vadd.f32 %v312, %v342
    %v369 = vadd.f32 %v313, %v342
    %v370 = vadd.f32 %v314, %v342
    %v371 = vadd.f32 %v315, %v342
    %v372 = vadd.f32 %v316, %v342
    %v373 = vadd.f32 %v317, %v347
    %v374 = vadd.f32 %v318, %v347
    %v375 = vadd.f32 %v319, %v347
    %v376 = vadd.f32 %v320, %v347
    %v377 = vadd.f32 %v321, %v347
    %v378 = vadd.f32 %v322, %v347
    %v379 = vadd.f32 %v323, %v347
    %v380 = vadd.f32 %v324, %v347
    %v381 = vtanh.pop %v349
    %v382 = vtanh.pop %v350
    %v383 = vtanh.pop %v351
    %v384 = vtanh.pop %v352
    %v385 = vtanh.pop %v353
    %v386 = vtanh.pop %v354
    %v387 = vtanh.pop %v355
    %v388 = vtanh.pop %v356
    %v389 = vtanh.pop %v357
    %v390 = vtanh.pop %v358
    %v391 = vtanh.pop %v359
    %v392 = vtanh.pop %v360
    %v393 = vtanh.pop %v361
    %v394 = vtanh.pop %v362
    %v395 = vtanh.pop %v363
    %v396 = vtanh.pop %v364
    %v397 = vtanh.pop %v365
    %v398 = vtanh.pop %v366
    %v399 = vtanh.pop %v367
    %v400 = vtanh.pop %v368
    %v401 = vtanh.pop %v369
    %v402 = vtanh.pop %v370
    %v403 = vtanh.pop %v371
    %v404 = vtanh.pop %v372
    %v405 = vtanh.pop %v373
    %v406 = vtanh.pop %v374
    %v407 = vtanh.pop %v375
    %v408 = vtanh.pop %v376
    %v409 = vtanh.pop %v377
    %v410 = vtanh.pop %v378
    %v411 = vtanh.pop %v379
    %v412 = vtanh.pop %v380
    %v413 = vld [vmem:[%s3] sm:$0xff]
    %v414 = vld [vmem:[%s3 + $0x8] sm:$0xff]
    %v415 = vld [vmem:[%s3 + $0x10] sm:$0xff]
    %v416 = vld [vmem:[%s3 + $0x18] sm:$0xff]
    %v417 = vld [vmem:[%s4] sm:$0xff]
    %v418 = vld [vmem:[%s4 + $0x8] sm:$0xff]
    %v419 = vld [vmem:[%s4 + $0x10] sm:$0xff]
    %v420 = vld [vmem:[%s4 + $0x18] sm:$0xff]
    %422 = vset.pattern.permute.xlu0 0
    %423 = vperm.xlu0 %422, %v417
    %v424 = vpop.permute.xlu0 %423
    %427 = vset.pattern.permute.xlu0 0
    %428 = vperm.xlu0 %427, %v418
    %v429 = vpop.permute.xlu0 %428
    %432 = vset.pattern.permute.xlu0 0
    %433 = vperm.xlu0 %432, %v419
    %v434 = vpop.permute.xlu0 %433
    %437 = vset.pattern.permute.xlu0 0
    %438 = vperm.xlu0 %437, %v420
    %v439 = vpop.permute.xlu0 %438
    %vm441 = vcmask 261120
    %v443 = vsel %vm441, %v413, 0
    %v446 = vsel %vm441, %v414, 0
    %v449 = vsel %vm441, %v415, 0
    %v452 = vsel %vm441, %v416, 0
    %v454 = vand.u32 %v382, 4294901760
    %455 = vmatprep.subr.mxu0 %v454
    %v456 = vand.u32 %v381, 4294901760
    %457 = vmatpush1.msra.mxu0 %v456
    %v458 = vand.u32 %v390, 4294901760
    %459 = vmatprep.subr.mxu0 %v458
    %v460 = vand.u32 %v389, 4294901760
    %461 = vmatpush1.msra.mxu0 %v460
    %v462 = vand.u32 %v398, 4294901760
    %463 = vmatprep.subr.mxu0 %v462
    %v464 = vand.u32 %v397, 4294901760
    %465 = vmatpush1.msra.mxu0 %v464
    %v466 = vand.u32 %v406, 4294901760
    %467 = vmatprep.subr.mxu0 %v466
    %v468 = vand.u32 %v405, 4294901760
    %469 = vmatpush1.msra.mxu0 %v468
    %470 = vmatprep.subr.mxu0 0.0
    %471 = vmatpush1.msra.mxu0 0.0
    %472 = vmatprep.subr.mxu0 0.0
    %473 = vmatpush1.msra.mxu0 0.0
    %474 = vmatprep.subr.mxu0 0.0
    %475 = vmatpush1.msra.mxu0 0.0
    %476 = vmatprep.subr.mxu0 0.0
    %477 = vmatpush1.msra.mxu0 0.0
    %478 = vmatprep.subr.mxu0 0.0
    %479 = vmatpush1.msra.mxu0 0.0
    %480 = vmatprep.subr.mxu0 0.0
    %481 = vmatpush1.msra.mxu0 0.0
    %482 = vmatprep.subr.mxu0 0.0
    %483 = vmatpush1.msra.mxu0 0.0
    %484 = vmatprep.subr.mxu0 0.0
    %485 = vmatpush1.msra.mxu0 0.0
    %486 = vmatprep.subr.mxu0 0.0
    %487 = vmatpush1.msra.mxu0 0.0
    %488 = vmatprep.subr.mxu0 0.0
    %489 = vmatpush1.msra.mxu0 0.0
    %490 = vmatprep.subr.mxu0 0.0
    %491 = vmatpush1.msra.mxu0 0.0
    %492 = vmatprep.subr.mxu0 0.0
    %493 = vmatpush1.msra.mxu0 0.0
    %494 = vmatprep.subr.mxu0 0.0
    %495 = vmatpush1.msra.mxu0 0.0
    %496 = vmatprep.subr.mxu0 0.0
    %497 = vmatpush1.msra.mxu0 0.0
    %498 = vmatprep.subr.mxu0 0.0
    %499 = vmatpush1.msra.mxu0 0.0
    %500 = vmatprep.subr.mxu0 0.0
    %501 = vmatpush1.msra.mxu0 0.0
    %502 = vmatprep.subr.mxu0 0.0
    %503 = vmatpush1.msra.mxu0 0.0
    %504 = vmatprep.subr.mxu0 0.0
    %505 = vmatpush1.msra.mxu0 0.0
    %506 = vmatprep.subr.mxu0 0.0
    %507 = vmatpush1.msra.mxu0 0.0
    %508 = vmatprep.subr.mxu0 0.0
    %509 = vmatpush1.msra.mxu0 0.0
    %510 = vmatprep.subr.mxu0 0.0
    %511 = vmatpush1.msra.mxu0 0.0
    %512 = vmatprep.subr.mxu0 0.0
    %513 = vmatpush1.msra.mxu0 0.0
    %514 = vmatprep.subr.mxu0 0.0
    %515 = vmatpush1.msra.mxu0 0.0
    %516 = vmatprep.subr.mxu0 0.0
    %517 = vmatpush1.msra.mxu0 0.0
    %518 = vmatprep.subr.mxu0 0.0
    %519 = vmatpush1.msra.mxu0 0.0
    %520 = vmatprep.subr.mxu0 0.0
    %521 = vmatpush1.msra.mxu0 0.0
    %522 = vmatprep.subr.mxu0 0.0
    %523 = vmatpush1.msra.mxu0 0.0
    %524 = vmatprep.subr.mxu0 0.0
    %525 = vmatpush1.msra.mxu0 0.0
    %526 = vmatprep.mubr.f32.mxu0 0.0
    %v527 = vand.u32 %v443, 4294901760
    %v528 = vsub.f32 %v443, %v527
    %v529 = vand.u32 %v528, 4294901760
    %v530 = vsub.f32 %v528, %v529
    %v531 = vand.u32 %v530, 4294901760
    %532 = vmatmul.mubr.f32.gmra.mrb[0].mxu0 %v531
    %v533 = vpop.f32.mrb[0].mxu0
    %v534 = vadd.f32 %v424, %v533
    %v535 = vpop.f32.mrb[0].mxu0
    %v536 = vadd.f32 %v424, %v535
    %537 = vmatprep.mubr.f32.mxu0 0.0
    %v538 = vand.u32 %v446, 4294901760
    %v539 = vsub.f32 %v446, %v538
    %v540 = vand.u32 %v539, 4294901760
    %v541 = vsub.f32 %v539, %v540
    %v542 = vand.u32 %v541, 4294901760
    %543 = vmatmul.mubr.f32.gmra.mrb[0].mxu0 %v542
    %v544 = vpop.f32.mrb[0].mxu0
    %v545 = vadd.f32 %v429, %v544
    %v546 = vpop.f32.mrb[0].mxu0
    %v547 = vadd.f32 %v429, %v546
    %548 = vmatprep.mubr.f32.mxu0 0.0
    %v549 = vand.u32 %v449, 4294901760
    %v550 = vsub.f32 %v449, %v549
    %v551 = vand.u32 %v550, 4294901760
    %v552 = vsub.f32 %v550, %v551
    %v553 = vand.u32 %v552, 4294901760
    %554 = vmatmul.mubr.f32.gmra.mrb[0].mxu0 %v553
    %v555 = vpop.f32.mrb[0].mxu0
    %v556 = vadd.f32 %v434, %v555
    %v557 = vpop.f32.mrb[0].mxu0
    %v558 = vadd.f32 %v434, %v557
    %559 = vmatprep.mubr.f32.mxu0 0.0
    %v560 = vand.u32 %v452, 4294901760
    %v561 = vsub.f32 %v452, %v560
    %v562 = vand.u32 %v561, 4294901760
    %v563 = vsub.f32 %v561, %v562
    %v564 = vand.u32 %v563, 4294901760
    %565 = vmatmul.mubr.f32.gmra.mrb[0].mxu0 %v564
    %v566 = vpop.f32.mrb[0].mxu0
    %v567 = vadd.f32 %v439, %v566
    %v568 = vpop.f32.mrb[0].mxu0
    %v569 = vadd.f32 %v439, %v568
    %570 = vdwg.mxu0
    %v571 = vand.u32 %v382, 4294901760
    %v572 = vsub.f32 %v382, %v571
    %v573 = vand.u32 %v572, 4294901760
    %v574 = vsub.f32 %v572, %v573
    %v575 = vand.u32 %v574, 4294901760
    %576 = vmatprep.subr.mxu0 %v575
    %v577 = vand.u32 %v381, 4294901760
    %v578 = vsub.f32 %v381, %v577
    %v579 = vand.u32 %v578, 4294901760
    %v580 = vsub.f32 %v578, %v579
    %v581 = vand.u32 %v580, 4294901760
    %582 = vmatpush1.msra.mxu0 %v581
    %v583 = vand.u32 %v390, 4294901760
    %v584 = vsub.f32 %v390, %v583
    %v585 = vand.u32 %v584, 4294901760
    %v586 = vsub.f32 %v584, %v585
    %v587 = vand.u32 %v586, 4294901760
    %588 = vmatprep.subr.mxu0 %v587
    %v589 = vand.u32 %v389, 4294901760
    %v590 = vsub.f32 %v389, %v589
    %v591 = vand.u32 %v590, 4294901760
    %v592 = vsub.f32 %v590, %v591
    %v593 = vand.u32 %v592, 4294901760
    %594 = vmatpush1.msra.mxu0 %v593
    %v595 = vand.u32 %v398, 4294901760
    %v596 = vsub.f32 %v398, %v595
    %v597 = vand.u32 %v596, 4294901760
    %v598 = vsub.f32 %v596, %v597
    %v599 = vand.u32 %v598, 4294901760
    %600 = vmatprep.subr.mxu0 %v599
    %v601 = vand.u32 %v397, 4294901760
    %v602 = vsub.f32 %v397, %v601
    %v603 = vand.u32 %v602, 4294901760
    %v604 = vsub.f32 %v602, %v603
    %v605 = vand.u32 %v604, 4294901760
    %606 = vmatpush1.msra.mxu0 %v605
    %v607 = vand.u32 %v406, 4294901760
    %v608 = vsub.f32 %v406, %v607
    %v609 = vand.u32 %v608, 4294901760
    %v610 = vsub.f32 %v608, %v609
    %v611 = vand.u32 %v610, 4294901760
    %612 = vmatprep.subr.mxu0 %v611
    %v613 = vand.u32 %v405, 4294901760
    %v614 = vsub.f32 %v405, %v613
    %v615 = vand.u32 %v614, 4294901760
    %v616 = vsub.f32 %v614, %v615
    %v617 = vand.u32 %v616, 4294901760
    %618 = vmatpush1.msra.mxu0 %v617
    %619 = vmatprep.subr.mxu0 0.0
    %620 = vmatpush1.msra.mxu0 0.0
    %621 = vmatprep.subr.mxu0 0.0
    %622 = vmatpush1.msra.mxu0 0.0
    %623 = vmatprep.subr.mxu0 0.0
    %624 = vmatpush1.msra.mxu0 0.0
    %625 = vmatprep.subr.mxu0 0.0
    %626 = vmatpush1.msra.mxu0 0.0
    %627 = vmatprep.subr.mxu0 0.0
    %628 = vmatpush1.msra.mxu0 0.0
    %629 = vmatprep.subr.mxu0 0.0
    %630 = vmatpush1.msra.mxu0 0.0
    %631 = vmatprep.subr.mxu0 0.0
    %632 = vmatpush1.msra.mxu0 0.0
    %633 = vmatprep.subr.mxu0 0.0
    %634 = vmatpush1.msra.mxu0 0.0
    %635 = vmatprep.subr.mxu0 0.0
    %636 = vmatpush1.msra.mxu0 0.0
    %637 = vmatprep.subr.mxu0 0.0
    %638 = vmatpush1.msra.mxu0 0.0
    %639 = vmatprep.subr.mxu0 0.0
    %640 = vmatpush1.msra.mxu0 0.0
    %641 = vmatprep.subr.mxu0 0.0
    %642 = vmatpush1.msra.mxu0 0.0
    %643 = vmatprep.subr.mxu0 0.0
    %644 = vmatpush1.msra.mxu0 0.0
    %645 = vmatprep.subr.mxu0 0.0
    %646 = vmatpush1.msra.mxu0 0.0
    %647 = vmatprep.subr.mxu0 0.0
    %648 = vmatpush1.msra.mxu0 0.0
    %649 = vmatprep.subr.mxu0 0.0
    %650 = vmatpush1.msra.mxu0 0.0
    %651 = vmatprep.subr.mxu0 0.0
    %652 = vmatpush1.msra.mxu0 0.0
    %653 = vmatprep.subr.mxu0 0.0
    %654 = vmatpush1.msra.mxu0 0.0
    %655 = vmatprep.subr.mxu0 0.0
    %656 = vmatpush1.msra.mxu0 0.0
    %657 = vmatprep.subr.mxu0 0.0
    %658 = vmatpush1.msra.mxu0 0.0
    %659 = vmatprep.subr.mxu0 0.0
    %660 = vmatpush1.msra.mxu0 0.0
    %661 = vmatprep.subr.mxu0 0.0
    %662 = vmatpush1.msra.mxu0 0.0
    %663 = vmatprep.subr.mxu0 0.0
    %664 = vmatpush1.msra.mxu0 0.0
    %665 = vmatprep.subr.mxu0 0.0
    %666 = vmatpush1.msra.mxu0 0.0
    %667 = vmatprep.subr.mxu0 0.0
    %668 = vmatpush1.msra.mxu0 0.0
    %669 = vmatprep.subr.mxu0 0.0
    %670 = vmatpush1.msra.mxu0 0.0
    %671 = vmatprep.subr.mxu0 0.0
    %672 = vmatpush1.msra.mxu0 0.0
    %673 = vmatprep.subr.mxu0 0.0
    %674 = vmatpush1.msra.mxu0 0.0
    %675 = vmatprep.mubr.f32.mxu0 0.0
    %v676 = vand.u32 %v443, 4294901760
    %677 = vmatmul.mubr.f32.gmra.mrb[0].mxu0 %v676
    %v678 = vpop.f32.mrb[0].mxu0
    %v679 = vadd.f32 %v534, %v678
    %v680 = vpop.f32.mrb[0].mxu0
    %v681 = vadd.f32 %v536, %v680
    %682 = vmatprep.mubr.f32.mxu0 0.0
    %v683 = vand.u32 %v446, 4294901760
    %684 = vmatmul.mubr.f32.gmra.mrb[0].mxu0 %v683
    %v685 = vpop.f32.mrb[0].mxu0
    %v686 = vadd.f32 %v545, %v685
    %v687 = vpop.f32.mrb[0].mxu0
    %v688 = vadd.f32 %v547, %v687
    %689 = vmatprep.mubr.f32.mxu0 0.0
    %v690 = vand.u32 %v449, 4294901760
    %691 = vmatmul.mubr.f32.gmra.mrb[0].mxu0 %v690
    %v692 = vpop.f32.mrb[0].mxu0
    %v693 = vadd.f32 %v556, %v692
    %v694 = vpop.f32.mrb[0].mxu0
    %v695 = vadd.f32 %v558, %v694
    %696 = vmatprep.mubr.f32.mxu0 0.0
    %v697 = vand.u32 %v452, 4294901760
    %698 = vmatmul.mubr.f32.gmra.mrb[0].mxu0 %v697
    %v699 = vpop.f32.mrb[0].mxu0
    %v700 = vadd.f32 %v567, %v699
    %v701 = vpop.f32.mrb[0].mxu0
    %v702 = vadd.f32 %v569, %v701
    %703 = vdwg.mxu0
    %v704 = vand.u32 %v382, 4294901760
    %v705 = vsub.f32 %v382, %v704
    %706 = vmatprep.subr.mxu0 %v705
    %v707 = vand.u32 %v381, 4294901760
    %v708 = vsub.f32 %v381, %v707
    %709 = vmatpush1.msra.mxu0 %v708
    %v710 = vand.u32 %v390, 4294901760
    %v711 = vsub.f32 %v390, %v710
    %712 = vmatprep.subr.mxu0 %v711
    %v713 = vand.u32 %v389, 4294901760
    %v714 = vsub.f32 %v389, %v713
    %715 = vmatpush1.msra.mxu0 %v714
    %v716 = vand.u32 %v398, 4294901760
    %v717 = vsub.f32 %v398, %v716
    %718 = vmatprep.subr.mxu0 %v717
    %v719 = vand.u32 %v397, 4294901760
    %v720 = vsub.f32 %v397, %v719
    %721 = vmatpush1.msra.mxu0 %v720
    %v722 = vand.u32 %v406, 4294901760
    %v723 = vsub.f32 %v406, %v722
    %724 = vmatprep.subr.mxu0 %v723
    %v725 = vand.u32 %v405, 4294901760
    %v726 = vsub.f32 %v405, %v725
    %727 = vmatpush1.msra.mxu0 %v726
    %728 = vmatprep.subr.mxu0 0.0
    %729 = vmatpush1.msra.mxu0 0.0
    %730 = vmatprep.subr.mxu0 0.0
    %731 = vmatpush1.msra.mxu0 0.0
    %732 = vmatprep.subr.mxu0 0.0
    %733 = vmatpush1.msra.mxu0 0.0
    %734 = vmatprep.subr.mxu0 0.0
    %735 = vmatpush1.msra.mxu0 0.0
    %736 = vmatprep.subr.mxu0 0.0
    %737 = vmatpush1.msra.mxu0 0.0
    %738 = vmatprep.subr.mxu0 0.0
    %739 = vmatpush1.msra.mxu0 0.0
    %740 = vmatprep.subr.mxu0 0.0
    %741 = vmatpush1.msra.mxu0 0.0
    %742 = vmatprep.subr.mxu0 0.0
    %743 = vmatpush1.msra.mxu0 0.0
    %744 = vmatprep.subr.mxu0 0.0
    %745 = vmatpush1.msra.mxu0 0.0
    %746 = vmatprep.subr.mxu0 0.0
    %747 = vmatpush1.msra.mxu0 0.0
    %748 = vmatprep.subr.mxu0 0.0
    %749 = vmatpush1.msra.mxu0 0.0
    %750 = vmatprep.subr.mxu0 0.0
    %751 = vmatpush1.msra.mxu0 0.0
    %752 = vmatprep.subr.mxu0 0.0
    %753 = vmatpush1.msra.mxu0 0.0
    %754 = vmatprep.subr.mxu0 0.0
    %755 = vmatpush1.msra.mxu0 0.0
    %756 = vmatprep.subr.mxu0 0.0
    %757 = vmatpush1.msra.mxu0 0.0
    %758 = vmatprep.subr.mxu0 0.0
    %759 = vmatpush1.msra.mxu0 0.0
    %760 = vmatprep.subr.mxu0 0.0
    %761 = vmatpush1.msra.mxu0 0.0
    %762 = vmatprep.subr.mxu0 0.0
    %763 = vmatpush1.msra.mxu0 0.0
    %764 = vmatprep.subr.mxu0 0.0
    %765 = vmatpush1.msra.mxu0 0.0
    %766 = vmatprep.subr.mxu0 0.0
    %767 = vmatpush1.msra.mxu0 0.0
    %768 = vmatprep.subr.mxu0 0.0
    %769 = vmatpush1.msra.mxu0 0.0
    %770 = vmatprep.subr.mxu0 0.0
    %771 = vmatpush1.msra.mxu0 0.0
    %772 = vmatprep.subr.mxu0 0.0
    %773 = vmatpush1.msra.mxu0 0.0
    %774 = vmatprep.subr.mxu0 0.0
    %775 = vmatpush1.msra.mxu0 0.0
    %776 = vmatprep.subr.mxu0 0.0
    %777 = vmatpush1.msra.mxu0 0.0
    %778 = vmatprep.subr.mxu0 0.0
    %779 = vmatpush1.msra.mxu0 0.0
    %780 = vmatprep.subr.mxu0 0.0
    %781 = vmatpush1.msra.mxu0 0.0
    %782 = vmatprep.subr.mxu0 0.0
    %783 = vmatpush1.msra.mxu0 0.0
    %784 = vmatprep.mubr.f32.mxu0 0.0
    %v785 = vand.u32 %v443, 4294901760
    %v786 = vsub.f32 %v443, %v785
    %787 = vmatmul.mubr.f32.gmra.mrb[0].mxu0 %v786
    %v788 = vpop.f32.mrb[0].mxu0
    %v789 = vadd.f32 %v679, %v788
    %v790 = vpop.f32.mrb[0].mxu0
    %v791 = vadd.f32 %v681, %v790
    %792 = vmatprep.mubr.f32.mxu0 0.0
    %v793 = vand.u32 %v446, 4294901760
    %v794 = vsub.f32 %v446, %v793
    %795 = vmatmul.mubr.f32.gmra.mrb[0].mxu0 %v794
    %v796 = vpop.f32.mrb[0].mxu0
    %v797 = vadd.f32 %v686, %v796
    %v798 = vpop.f32.mrb[0].mxu0
    %v799 = vadd.f32 %v688, %v798
    %800 = vmatprep.mubr.f32.mxu0 0.0
    %v801 = vand.u32 %v449, 4294901760
    %v802 = vsub.f32 %v449, %v801
    %803 = vmatmul.mubr.f32.gmra.mrb[0].mxu0 %v802
    %v804 = vpop.f32.mrb[0].mxu0
    %v805 = vadd.f32 %v693, %v804
    %v806 = vpop.f32.mrb[0].mxu0
    %v807 = vadd.f32 %v695, %v806
    %808 = vmatprep.mubr.f32.mxu0 0.0
    %v809 = vand.u32 %v452, 4294901760
    %v810 = vsub.f32 %v452, %v809
    %811 = vmatmul.mubr.f32.gmra.mrb[0].mxu0 %v810
    %v812 = vpop.f32.mrb[0].mxu0
    %v813 = vadd.f32 %v700, %v812
    %v814 = vpop.f32.mrb[0].mxu0
    %v815 = vadd.f32 %v702, %v814
    %816 = vdwg.mxu0
    %v817 = vand.u32 %v382, 4294901760
    %818 = vmatprep.subr.mxu0 %v817
    %v819 = vand.u32 %v381, 4294901760
    %820 = vmatpush1.msra.mxu0 %v819
    %v821 = vand.u32 %v390, 4294901760
    %822 = vmatprep.subr.mxu0 %v821
    %v823 = vand.u32 %v389, 4294901760
    %824 = vmatpush1.msra.mxu0 %v823
    %v825 = vand.u32 %v398, 4294901760
    %826 = vmatprep.subr.mxu0 %v825
    %v827 = vand.u32 %v397, 4294901760
    %828 = vmatpush1.msra.mxu0 %v827
    %v829 = vand.u32 %v406, 4294901760
    %830 = vmatprep.subr.mxu0 %v829
    %v831 = vand.u32 %v405, 4294901760
    %832 = vmatpush1.msra.mxu0 %v831
    %833 = vmatprep.subr.mxu0 0.0
    %834 = vmatpush1.msra.mxu0 0.0
    %835 = vmatprep.subr.mxu0 0.0
    %836 = vmatpush1.msra.mxu0 0.0
    %837 = vmatprep.subr.mxu0 0.0
    %838 = vmatpush1.msra.mxu0 0.0
    %839 = vmatprep.subr.mxu0 0.0
    %840 = vmatpush1.msra.mxu0 0.0
    %841 = vmatprep.subr.mxu0 0.0
    %842 = vmatpush1.msra.mxu0 0.0
    %843 = vmatprep.subr.mxu0 0.0
    %844 = vmatpush1.msra.mxu0 0.0
    %845 = vmatprep.subr.mxu0 0.0
    %846 = vmatpush1.msra.mxu0 0.0
    %847 = vmatprep.subr.mxu0 0.0
    %848 = vmatpush1.msra.mxu0 0.0
    %849 = vmatprep.subr.mxu0 0.0
    %850 = vmatpush1.msra.mxu0 0.0
    %851 = vmatprep.subr.mxu0 0.0
    %852 = vmatpush1.msra.mxu0 0.0
    %853 = vmatprep.subr.mxu0 0.0
    %854 = vmatpush1.msra.mxu0 0.0
    %855 = vmatprep.subr.mxu0 0.0
    %856 = vmatpush1.msra.mxu0 0.0
    %857 = vmatprep.subr.mxu0 0.0
    %858 = vmatpush1.msra.mxu0 0.0
    %859 = vmatprep.subr.mxu0 0.0
    %860 = vmatpush1.msra.mxu0 0.0
    %861 = vmatprep.subr.mxu0 0.0
    %862 = vmatpush1.msra.mxu0 0.0
    %863 = vmatprep.subr.mxu0 0.0
    %864 = vmatpush1.msra.mxu0 0.0
    %865 = vmatprep.subr.mxu0 0.0
    %866 = vmatpush1.msra.mxu0 0.0
    %867 = vmatprep.subr.mxu0 0.0
    %868 = vmatpush1.msra.mxu0 0.0
    %869 = vmatprep.subr.mxu0 0.0
    %870 = vmatpush1.msra.mxu0 0.0
    %871 = vmatprep.subr.mxu0 0.0
    %872 = vmatpush1.msra.mxu0 0.0
    %873 = vmatprep.subr.mxu0 0.0
    %874 = vmatpush1.msra.mxu0 0.0
    %875 = vmatprep.subr.mxu0 0.0
    %876 = vmatpush1.msra.mxu0 0.0
    %877 = vmatprep.subr.mxu0 0.0
    %878 = vmatpush1.msra.mxu0 0.0
    %879 = vmatprep.subr.mxu0 0.0
    %880 = vmatpush1.msra.mxu0 0.0
    %881 = vmatprep.subr.mxu0 0.0
    %882 = vmatpush1.msra.mxu0 0.0
    %883 = vmatprep.subr.mxu0 0.0
    %884 = vmatpush1.msra.mxu0 0.0
    %885 = vmatprep.subr.mxu0 0.0
    %886 = vmatpush1.msra.mxu0 0.0
    %887 = vmatprep.subr.mxu0 0.0
    %888 = vmatpush1.msra.mxu0 0.0
    %889 = vmatprep.mubr.f32.mxu0 0.0
    %v890 = vand.u32 %v443, 4294901760
    %v891 = vsub.f32 %v443, %v890
    %v892 = vand.u32 %v891, 4294901760
    %893 = vmatmul.mubr.f32.gmra.mrb[0].mxu0 %v892
    %v894 = vpop.f32.mrb[0].mxu0
    %v895 = vadd.f32 %v789, %v894
    %v896 = vpop.f32.mrb[0].mxu0
    %v897 = vadd.f32 %v791, %v896
    %898 = vmatprep.mubr.f32.mxu0 0.0
    %v899 = vand.u32 %v446, 4294901760
    %v900 = vsub.f32 %v446, %v899
    %v901 = vand.u32 %v900, 4294901760
    %902 = vmatmul.mubr.f32.gmra.mrb[0].mxu0 %v901
    %v903 = vpop.f32.mrb[0].mxu0
    %v904 = vadd.f32 %v797, %v903
    %v905 = vpop.f32.mrb[0].mxu0
    %v906 = vadd.f32 %v799, %v905
    %907 = vmatprep.mubr.f32.mxu0 0.0
    %v908 = vand.u32 %v449, 4294901760
    %v909 = vsub.f32 %v449, %v908
    %v910 = vand.u32 %v909, 4294901760
    %911 = vmatmul.mubr.f32.gmra.mrb[0].mxu0 %v910
    %v912 = vpop.f32.mrb[0].mxu0
    %v913 = vadd.f32 %v805, %v912
    %v914 = vpop.f32.mrb[0].mxu0
    %v915 = vadd.f32 %v807, %v914
    %916 = vmatprep.mubr.f32.mxu0 0.0
    %v917 = vand.u32 %v452, 4294901760
    %v918 = vsub.f32 %v452, %v917
    %v919 = vand.u32 %v918, 4294901760
    %920 = vmatmul.mubr.f32.gmra.mrb[0].mxu0 %v919
    %v921 = vpop.f32.mrb[0].mxu0
    %v922 = vadd.f32 %v813, %v921
    %v923 = vpop.f32.mrb[0].mxu0
    %v924 = vadd.f32 %v815, %v923
    %925 = vdwg.mxu0
    %v926 = vand.u32 %v382, 4294901760
    %v927 = vsub.f32 %v382, %v926
    %v928 = vand.u32 %v927, 4294901760
    %929 = vmatprep.subr.mxu0 %v928
    %v930 = vand.u32 %v381, 4294901760
    %v931 = vsub.f32 %v381, %v930
    %v932 = vand.u32 %v931, 4294901760
    %933 = vmatpush1.msra.mxu0 %v932
    %v934 = vand.u32 %v390, 4294901760
    %v935 = vsub.f32 %v390, %v934
    %v936 = vand.u32 %v935, 4294901760
    %937 = vmatprep.subr.mxu0 %v936
    %v938 = vand.u32 %v389, 4294901760
    %v939 = vsub.f32 %v389, %v938
    %v940 = vand.u32 %v939, 4294901760
    %941 = vmatpush1.msra.mxu0 %v940
    %v942 = vand.u32 %v398, 4294901760
    %v943 = vsub.f32 %v398, %v942
    %v944 = vand.u32 %v943, 4294901760
    %945 = vmatprep.subr.mxu0 %v944
    %v946 = vand.u32 %v397, 4294901760
    %v947 = vsub.f32 %v397, %v946
    %v948 = vand.u32 %v947, 4294901760
    %949 = vmatpush1.msra.mxu0 %v948
    %v950 = vand.u32 %v406, 4294901760
    %v951 = vsub.f32 %v406, %v950
    %v952 = vand.u32 %v951, 4294901760
    %953 = vmatprep.subr.mxu0 %v952
    %v954 = vand.u32 %v405, 4294901760
    %v955 = vsub.f32 %v405, %v954
    %v956 = vand.u32 %v955, 4294901760
    %957 = vmatpush1.msra.mxu0 %v956
    %958 = vmatprep.subr.mxu0 0.0
    %959 = vmatpush1.msra.mxu0 0.0
    %960 = vmatprep.subr.mxu0 0.0
    %961 = vmatpush1.msra.mxu0 0.0
    %962 = vmatprep.subr.mxu0 0.0
    %963 = vmatpush1.msra.mxu0 0.0
    %964 = vmatprep.subr.mxu0 0.0
    %965 = vmatpush1.msra.mxu0 0.0
    %966 = vmatprep.subr.mxu0 0.0
    %967 = vmatpush1.msra.mxu0 0.0
    %968 = vmatprep.subr.mxu0 0.0
    %969 = vmatpush1.msra.mxu0 0.0
    %970 = vmatprep.subr.mxu0 0.0
    %971 = vmatpush1.msra.mxu0 0.0
    %972 = vmatprep.subr.mxu0 0.0
    %973 = vmatpush1.msra.mxu0 0.0
    %974 = vmatprep.subr.mxu0 0.0
    %975 = vmatpush1.msra.mxu0 0.0
    %976 = vmatprep.subr.mxu0 0.0
    %977 = vmatpush1.msra.mxu0 0.0
    %978 = vmatprep.subr.mxu0 0.0
    %979 = vmatpush1.msra.mxu0 0.0
    %980 = vmatprep.subr.mxu0 0.0
    %981 = vmatpush1.msra.mxu0 0.0
    %982 = vmatprep.subr.mxu0 0.0
    %983 = vmatpush1.msra.mxu0 0.0
    %984 = vmatprep.subr.mxu0 0.0
    %985 = vmatpush1.msra.mxu0 0.0
    %986 = vmatprep.subr.mxu0 0.0
    %987 = vmatpush1.msra.mxu0 0.0
    %988 = vmatprep.subr.mxu0 0.0
    %989 = vmatpush1.msra.mxu0 0.0
    %990 = vmatprep.subr.mxu0 0.0
    %991 = vmatpush1.msra.mxu0 0.0
    %992 = vmatprep.subr.mxu0 0.0
    %993 = vmatpush1.msra.mxu0 0.0
    %994 = vmatprep.subr.mxu0 0.0
    %995 = vmatpush1.msra.mxu0 0.0
    %996 = vmatprep.subr.mxu0 0.0
    %997 = vmatpush1.msra.mxu0 0.0
    %998 = vmatprep.subr.mxu0 0.0
    %999 = vmatpush1.msra.mxu0 0.0
    %1000 = vmatprep.subr.mxu0 0.0
    %1001 = vmatpush1.msra.mxu0 0.0
    %1002 = vmatprep.subr.mxu0 0.0
    %1003 = vmatpush1.msra.mxu0 0.0
    %1004 = vmatprep.subr.mxu0 0.0
    %1005 = vmatpush1.msra.mxu0 0.0
    %1006 = vmatprep.subr.mxu0 0.0
    %1007 = vmatpush1.msra.mxu0 0.0
    %1008 = vmatprep.subr.mxu0 0.0
    %1009 = vmatpush1.msra.mxu0 0.0
    %1010 = vmatprep.subr.mxu0 0.0
    %1011 = vmatpush1.msra.mxu0 0.0
    %1012 = vmatprep.subr.mxu0 0.0
    %1013 = vmatpush1.msra.mxu0 0.0
    %1014 = vmatprep.mubr.f32.mxu0 0.0
    %v1015 = vand.u32 %v443, 4294901760
    %1016 = vmatmul.mubr.f32.gmra.mrb[0].mxu0 %v1015
    %v1017 = vpop.f32.mrb[0].mxu0
    %v1018 = vadd.f32 %v895, %v1017
    %v1019 = vpop.f32.mrb[0].mxu0
    %v1020 = vadd.f32 %v897, %v1019
    %1021 = vmatprep.mubr.f32.mxu0 0.0
    %v1022 = vand.u32 %v446, 4294901760
    %1023 = vmatmul.mubr.f32.gmra.mrb[0].mxu0 %v1022
    %v1024 = vpop.f32.mrb[0].mxu0
    %v1025 = vadd.f32 %v904, %v1024
    %v1026 = vpop.f32.mrb[0].mxu0
    %v1027 = vadd.f32 %v906, %v1026
    %1028 = vmatprep.mubr.f32.mxu0 0.0
    %v1029 = vand.u32 %v449, 4294901760
    %1030 = vmatmul.mubr.f32.gmra.mrb[0].mxu0 %v1029
    %v1031 = vpop.f32.mrb[0].mxu0
    %v1032 = vadd.f32 %v913, %v1031
    %v1033 = vpop.f32.mrb[0].mxu0
    %v1034 = vadd.f32 %v915, %v1033
    %1035 = vmatprep.mubr.f32.mxu0 0.0
    %v1036 = vand.u32 %v452, 4294901760
    %1037 = vmatmul.mubr.f32.gmra.mrb[0].mxu0 %v1036
    %v1038 = vpop.f32.mrb[0].mxu0
    %v1039 = vadd.f32 %v922, %v1038
    %v1040 = vpop.f32.mrb[0].mxu0
    %v1041 = vadd.f32 %v924, %v1040
    %1042 = vdwg.mxu0
    %v1043 = vand.u32 %v382, 4294901760
    %1044 = vmatprep.subr.mxu0 %v1043
    %v1045 = vand.u32 %v381, 4294901760
    %1046 = vmatpush1.msra.mxu0 %v1045
    %v1047 = vand.u32 %v390, 4294901760
    %1048 = vmatprep.subr.mxu0 %v1047
    %v1049 = vand.u32 %v389, 4294901760
    %1050 = vmatpush1.msra.mxu0 %v1049
    %v1051 = vand.u32 %v398, 4294901760
    %1052 = vmatprep.subr.mxu0 %v1051
    %v1053 = vand.u32 %v397, 4294901760
    %1054 = vmatpush1.msra.mxu0 %v1053
    %v1055 = vand.u32 %v406, 4294901760
    %1056 = vmatprep.subr.mxu0 %v1055
    %v1057 = vand.u32 %v405, 4294901760
    %1058 = vmatpush1.msra.mxu0 %v1057
    %1059 = vmatprep.subr.mxu0 0.0
    %1060 = vmatpush1.msra.mxu0 0.0
    %1061 = vmatprep.subr.mxu0 0.0
    %1062 = vmatpush1.msra.mxu0 0.0
    %1063 = vmatprep.subr.mxu0 0.0
    %1064 = vmatpush1.msra.mxu0 0.0
    %1065 = vmatprep.subr.mxu0 0.0
    %1066 = vmatpush1.msra.mxu0 0.0
    %1067 = vmatprep.subr.mxu0 0.0
    %1068 = vmatpush1.msra.mxu0 0.0
    %1069 = vmatprep.subr.mxu0 0.0
    %1070 = vmatpush1.msra.mxu0 0.0
    %1071 = vmatprep.subr.mxu0 0.0
    %1072 = vmatpush1.msra.mxu0 0.0
    %1073 = vmatprep.subr.mxu0 0.0
    %1074 = vmatpush1.msra.mxu0 0.0
    %1075 = vmatprep.subr.mxu0 0.0
    %1076 = vmatpush1.msra.mxu0 0.0
    %1077 = vmatprep.subr.mxu0 0.0
    %1078 = vmatpush1.msra.mxu0 0.0
    %1079 = vmatprep.subr.mxu0 0.0
    %1080 = vmatpush1.msra.mxu0 0.0
    %1081 = vmatprep.subr.mxu0 0.0
    %1082 = vmatpush1.msra.mxu0 0.0
    %1083 = vmatprep.subr.mxu0 0.0
    %1084 = vmatpush1.msra.mxu0 0.0
    %1085 = vmatprep.subr.mxu0 0.0
    %1086 = vmatpush1.msra.mxu0 0.0
    %1087 = vmatprep.subr.mxu0 0.0
    %1088 = vmatpush1.msra.mxu0 0.0
    %1089 = vmatprep.subr.mxu0 0.0
    %1090 = vmatpush1.msra.mxu0 0.0
    %1091 = vmatprep.subr.mxu0 0.0
    %1092 = vmatpush1.msra.mxu0 0.0
    %1093 = vmatprep.subr.mxu0 0.0
    %1094 = vmatpush1.msra.mxu0 0.0
    %1095 = vmatprep.subr.mxu0 0.0
    %1096 = vmatpush1.msra.mxu0 0.0
    %1097 = vmatprep.subr.mxu0 0.0
    %1098 = vmatpush1.msra.mxu0 0.0
    %1099 = vmatprep.subr.mxu0 0.0
    %1100 = vmatpush1.msra.mxu0 0.0
    %1101 = vmatprep.subr.mxu0 0.0
    %1102 = vmatpush1.msra.mxu0 0.0
    %1103 = vmatprep.subr.mxu0 0.0
    %1104 = vmatpush1.msra.mxu0 0.0
    %1105 = vmatprep.subr.mxu0 0.0
    %1106 = vmatpush1.msra.mxu0 0.0
    %1107 = vmatprep.subr.mxu0 0.0
    %1108 = vmatpush1.msra.mxu0 0.0
    %1109 = vmatprep.subr.mxu0 0.0
    %1110 = vmatpush1.msra.mxu0 0.0
    %1111 = vmatprep.subr.mxu0 0.0
    %1112 = vmatpush1.msra.mxu0 0.0
    %1113 = vmatprep.subr.mxu0 0.0
    %1114 = vmatpush1.msra.mxu0 0.0
    %1115 = vmatprep.mubr.f32.mxu0 0.0
    %v1116 = vand.u32 %v443, 4294901760
    %1117 = vmatmul.mubr.f32.gmra.mrb[0].mxu0 %v1116
    %v1118 = vpop.f32.mrb[0].mxu0
    %v1119 = vadd.f32 %v1018, %v1118
    %v1120 = vpop.f32.mrb[0].mxu0
    %v1121 = vadd.f32 %v1020, %v1120
    %1122 = vmatprep.mubr.f32.mxu0 0.0
    %v1123 = vand.u32 %v446, 4294901760
    %1124 = vmatmul.mubr.f32.gmra.mrb[0].mxu0 %v1123
    %v1125 = vpop.f32.mrb[0].mxu0
    %v1126 = vadd.f32 %v1025, %v1125
    %v1127 = vpop.f32.mrb[0].mxu0
    %v1128 = vadd.f32 %v1027, %v1127
    %1129 = vmatprep.mubr.f32.mxu0 0.0
    %v1130 = vand.u32 %v449, 4294901760
    %1131 = vmatmul.mubr.f32.gmra.mrb[0].mxu0 %v1130
    %v1132 = vpop.f32.mrb[0].mxu0
    %v1133 = vadd.f32 %v1032, %v1132
    %v1134 = vpop.f32.mrb[0].mxu0
    %v1135 = vadd.f32 %v1034, %v1134
    %1136 = vmatprep.mubr.f32.mxu0 0.0
    %v1137 = vand.u32 %v452, 4294901760
    %1138 = vmatmul.mubr.f32.gmra.mrb[0].mxu0 %v1137
    %v1139 = vpop.f32.mrb[0].mxu0
    %v1140 = vadd.f32 %v1039, %v1139
    %v1141 = vpop.f32.mrb[0].mxu0
    %v1142 = vadd.f32 %v1041, %v1141
    %1143 = vdwg.mxu0
    %v1144 = vand.u32 %v384, 4294901760
    %1145 = vmatprep.subr.mxu0 %v1144
    %v1146 = vand.u32 %v383, 4294901760
    %1147 = vmatpush1.msra.mxu0 %v1146
    %v1148 = vand.u32 %v392, 4294901760
    %1149 = vmatprep.subr.mxu0 %v1148
    %v1150 = vand.u32 %v391, 4294901760
    %1151 = vmatpush1.msra.mxu0 %v1150
    %v1152 = vand.u32 %v400, 4294901760
    %1153 = vmatprep.subr.mxu0 %v1152
    %v1154 = vand.u32 %v399, 4294901760
    %1155 = vmatpush1.msra.mxu0 %v1154
    %v1156 = vand.u32 %v408, 4294901760
    %1157 = vmatprep.subr.mxu0 %v1156
    %v1158 = vand.u32 %v407, 4294901760
    %1159 = vmatpush1.msra.mxu0 %v1158
    %1160 = vmatprep.subr.mxu0 0.0
    %1161 = vmatpush1.msra.mxu0 0.0
    %1162 = vmatprep.subr.mxu0 0.0
    %1163 = vmatpush1.msra.mxu0 0.0
    %1164 = vmatprep.subr.mxu0 0.0
    %1165 = vmatpush1.msra.mxu0 0.0
    %1166 = vmatprep.subr.mxu0 0.0
    %1167 = vmatpush1.msra.mxu0 0.0
    %1168 = vmatprep.subr.mxu0 0.0
    %1169 = vmatpush1.msra.mxu0 0.0
    %1170 = vmatprep.subr.mxu0 0.0
    %1171 = vmatpush1.msra.mxu0 0.0
    %1172 = vmatprep.subr.mxu0 0.0
    %1173 = vmatpush1.msra.mxu0 0.0
    %1174 = vmatprep.subr.mxu0 0.0
    %1175 = vmatpush1.msra.mxu0 0.0
    %1176 = vmatprep.subr.mxu0 0.0
    %1177 = vmatpush1.msra.mxu0 0.0
    %1178 = vmatprep.subr.mxu0 0.0
    %1179 = vmatpush1.msra.mxu0 0.0
    %1180 = vmatprep.subr.mxu0 0.0
    %1181 = vmatpush1.msra.mxu0 0.0
    %1182 = vmatprep.subr.mxu0 0.0
    %1183 = vmatpush1.msra.mxu0 0.0
    %1184 = vmatprep.subr.mxu0 0.0
    %1185 = vmatpush1.msra.mxu0 0.0
    %1186 = vmatprep.subr.mxu0 0.0
    %1187 = vmatpush1.msra.mxu0 0.0
    %1188 = vmatprep.subr.mxu0 0.0
    %1189 = vmatpush1.msra.mxu0 0.0
    %1190 = vmatprep.subr.mxu0 0.0
    %1191 = vmatpush1.msra.mxu0 0.0
    %1192 = vmatprep.subr.mxu0 0.0
    %1193 = vmatpush1.msra.mxu0 0.0
    %1194 = vmatprep.subr.mxu0 0.0
    %1195 = vmatpush1.msra.mxu0 0.0
    %1196 = vmatprep.subr.mxu0 0.0
    %1197 = vmatpush1.msra.mxu0 0.0
    %1198 = vmatprep.subr.mxu0 0.0
    %1199 = vmatpush1.msra.mxu0 0.0
    %1200 = vmatprep.subr.mxu0 0.0
    %1201 = vmatpush1.msra.mxu0 0.0
    %1202 = vmatprep.subr.mxu0 0.0
    %1203 = vmatpush1.msra.mxu0 0.0
    %1204 = vmatprep.subr.mxu0 0.0
    %1205 = vmatpush1.msra.mxu0 0.0
    %1206 = vmatprep.subr.mxu0 0.0
    %1207 = vmatpush1.msra.mxu0 0.0
    %1208 = vmatprep.subr.mxu0 0.0
    %1209 = vmatpush1.msra.mxu0 0.0
    %1210 = vmatprep.subr.mxu0 0.0
    %1211 = vmatpush1.msra.mxu0 0.0
    %1212 = vmatprep.subr.mxu0 0.0
    %1213 = vmatpush1.msra.mxu0 0.0
    %1214 = vmatprep.subr.mxu0 0.0
    %1215 = vmatpush1.msra.mxu0 0.0
    %1216 = vmatprep.mubr.f32.mxu0 0.0
    %v1217 = vand.u32 %v443, 4294901760
    %v1218 = vsub.f32 %v443, %v1217
    %v1219 = vand.u32 %v1218, 4294901760
    %v1220 = vsub.f32 %v1218, %v1219
    %v1221 = vand.u32 %v1220, 4294901760
    %1222 = vmatmul.mubr.f32.gmra.mrb[0].mxu0 %v1221
    %v1223 = vpop.f32.mrb[0].mxu0
    %v1224 = vadd.f32 %v424, %v1223
    %v1225 = vpop.f32.mrb[0].mxu0
    %v1226 = vadd.f32 %v424, %v1225
    %1227 = vmatprep.mubr.f32.mxu0 0.0
    %v1228 = vand.u32 %v446, 4294901760
    %v1229 = vsub.f32 %v446, %v1228
    %v1230 = vand.u32 %v1229, 4294901760
    %v1231 = vsub.f32 %v1229, %v1230
    %v1232 = vand.u32 %v1231, 4294901760
    %1233 = vmatmul.mubr.f32.gmra.mrb[0].mxu0 %v1232
    %v1234 = vpop.f32.mrb[0].mxu0
    %v1235 = vadd.f32 %v429, %v1234
    %v1236 = vpop.f32.mrb[0].mxu0
    %v1237 = vadd.f32 %v429, %v1236
    %1238 = vmatprep.mubr.f32.mxu0 0.0
    %v1239 = vand.u32 %v449, 4294901760
    %v1240 = vsub.f32 %v449, %v1239
    %v1241 = vand.u32 %v1240, 4294901760
    %v1242 = vsub.f32 %v1240, %v1241
    %v1243 = vand.u32 %v1242, 4294901760
    %1244 = vmatmul.mubr.f32.gmra.mrb[0].mxu0 %v1243
    %v1245 = vpop.f32.mrb[0].mxu0
    %v1246 = vadd.f32 %v434, %v1245
    %v1247 = vpop.f32.mrb[0].mxu0
    %v1248 = vadd.f32 %v434, %v1247
    %1249 = vmatprep.mubr.f32.mxu0 0.0
    %v1250 = vand.u32 %v452, 4294901760
    %v1251 = vsub.f32 %v452, %v1250
    %v1252 = vand.u32 %v1251, 4294901760
    %v1253 = vsub.f32 %v1251, %v1252
    %v1254 = vand.u32 %v1253, 4294901760
    %1255 = vmatmul.mubr.f32.gmra.mrb[0].mxu0 %v1254
    %v1256 = vpop.f32.mrb[0].mxu0
    %v1257 = vadd.f32 %v439, %v1256
    %v1258 = vpop.f32.mrb[0].mxu0
    %v1259 = vadd.f32 %v439, %v1258
    %1260 = vdwg.mxu0
    %v1261 = vand.u32 %v384, 4294901760
    %v1262 = vsub.f32 %v384, %v1261
    %v1263 = vand.u32 %v1262, 4294901760
    %v1264 = vsub.f32 %v1262, %v1263
    %v1265 = vand.u32 %v1264, 4294901760
    %1266 = vmatprep.subr.mxu0 %v1265
    %v1267 = vand.u32 %v383, 4294901760
    %v1268 = vsub.f32 %v383, %v1267
    %v1269 = vand.u32 %v1268, 4294901760
    %v1270 = vsub.f32 %v1268, %v1269
    %v1271 = vand.u32 %v1270, 4294901760
    %1272 = vmatpush1.msra.mxu0 %v1271
    %v1273 = vand.u32 %v392, 4294901760
    %v1274 = vsub.f32 %v392, %v1273
    %v1275 = vand.u32 %v1274, 4294901760
    %v1276 = vsub.f32 %v1274, %v1275
    %v1277 = vand.u32 %v1276, 4294901760
    %1278 = vmatprep.subr.mxu0 %v1277
    %v1279 = vand.u32 %v391, 4294901760
    %v1280 = vsub.f32 %v391, %v1279
    %v1281 = vand.u32 %v1280, 4294901760
    %v1282 = vsub.f32 %v1280, %v1281
    %v1283 = vand.u32 %v1282, 4294901760
    %1284 = vmatpush1.msra.mxu0 %v1283
    %v1285 = vand.u32 %v400, 4294901760
    %v1286 = vsub.f32 %v400, %v1285
    %v1287 = vand.u32 %v1286, 4294901760
    %v1288 = vsub.f32 %v1286, %v1287
    %v1289 = vand.u32 %v1288, 4294901760
    %1290 = vmatprep.subr.mxu0 %v1289
    %v1291 = vand.u32 %v399, 4294901760
    %v1292 = vsub.f32 %v399, %v1291
    %v1293 = vand.u32 %v1292, 4294901760
    %v1294 = vsub.f32 %v1292, %v1293
    %v1295 = vand.u32 %v1294, 4294901760
    %1296 = vmatpush1.msra.mxu0 %v1295
    %v1297 = vand.u32 %v408, 4294901760
    %v1298 = vsub.f32 %v408, %v1297
    %v1299 = vand.u32 %v1298, 4294901760
    %v1300 = vsub.f32 %v1298, %v1299
    %v1301 = vand.u32 %v1300, 4294901760
    %1302 = vmatprep.subr.mxu0 %v1301
    %v1303 = vand.u32 %v407, 4294901760
    %v1304 = vsub.f32 %v407, %v1303
    %v1305 = vand.u32 %v1304, 4294901760
    %v1306 = vsub.f32 %v1304, %v1305
    %v1307 = vand.u32 %v1306, 4294901760
    %1308 = vmatpush1.msra.mxu0 %v1307
    %1309 = vmatprep.subr.mxu0 0.0
    %1310 = vmatpush1.msra.mxu0 0.0
    %1311 = vmatprep.subr.mxu0 0.0
    %1312 = vmatpush1.msra.mxu0 0.0
    %1313 = vmatprep.subr.mxu0 0.0
    %1314 = vmatpush1.msra.mxu0 0.0
    %1315 = vmatprep.subr.mxu0 0.0
    %1316 = vmatpush1.msra.mxu0 0.0
    %1317 = vmatprep.subr.mxu0 0.0
    %1318 = vmatpush1.msra.mxu0 0.0
    %1319 = vmatprep.subr.mxu0 0.0
    %1320 = vmatpush1.msra.mxu0 0.0
    %1321 = vmatprep.subr.mxu0 0.0
    %1322 = vmatpush1.msra.mxu0 0.0
    %1323 = vmatprep.subr.mxu0 0.0
    %1324 = vmatpush1.msra.mxu0 0.0
    %1325 = vmatprep.subr.mxu0 0.0
    %1326 = vmatpush1.msra.mxu0 0.0
    %1327 = vmatprep.subr.mxu0 0.0
    %1328 = vmatpush1.msra.mxu0 0.0
    %1329 = vmatprep.subr.mxu0 0.0
    %1330 = vmatpush1.msra.mxu0 0.0
    %1331 = vmatprep.subr.mxu0 0.0
    %1332 = vmatpush1.msra.mxu0 0.0
    %1333 = vmatprep.subr.mxu0 0.0
    %1334 = vmatpush1.msra.mxu0 0.0
    %1335 = vmatprep.subr.mxu0 0.0
    %1336 = vmatpush1.msra.mxu0 0.0
    %1337 = vmatprep.subr.mxu0 0.0
    %1338 = vmatpush1.msra.mxu0 0.0
    %1339 = vmatprep.subr.mxu0 0.0
    %1340 = vmatpush1.msra.mxu0 0.0
    %1341 = vmatprep.subr.mxu0 0.0
    %1342 = vmatpush1.msra.mxu0 0.0
    %1343 = vmatprep.subr.mxu0 0.0
    %1344 = vmatpush1.msra.mxu0 0.0
    %1345 = vmatprep.subr.mxu0 0.0
    %1346 = vmatpush1.msra.mxu0 0.0
    %1347 = vmatprep.subr.mxu0 0.0
    %1348 = vmatpush1.msra.mxu0 0.0
    %1349 = vmatprep.subr.mxu0 0.0
    %1350 = vmatpush1.msra.mxu0 0.0
    %1351 = vmatprep.subr.mxu0 0.0
    %1352 = vmatpush1.msra.mxu0 0.0
    %1353 = vmatprep.subr.mxu0 0.0
    %1354 = vmatpush1.msra.mxu0 0.0
    %1355 = vmatprep.subr.mxu0 0.0
    %1356 = vmatpush1.msra.mxu0 0.0
    %1357 = vmatprep.subr.mxu0 0.0
    %1358 = vmatpush1.msra.mxu0 0.0
    %1359 = vmatprep.subr.mxu0 0.0
    %1360 = vmatpush1.msra.mxu0 0.0
    %1361 = vmatprep.subr.mxu0 0.0
    %1362 = vmatpush1.msra.mxu0 0.0
    %1363 = vmatprep.subr.mxu0 0.0
    %1364 = vmatpush1.msra.mxu0 0.0
    %1365 = vmatprep.mubr.f32.mxu0 0.0
    %v1366 = vand.u32 %v443, 4294901760
    %1367 = vmatmul.mubr.f32.gmra.mrb[0].mxu0 %v1366
    %v1368 = vpop.f32.mrb[0].mxu0
    %v1369 = vadd.f32 %v1224, %v1368
    %v1370 = vpop.f32.mrb[0].mxu0
    %v1371 = vadd.f32 %v1226, %v1370
    %1372 = vmatprep.mubr.f32.mxu0 0.0
    %v1373 = vand.u32 %v446, 4294901760
    %1374 = vmatmul.mubr.f32.gmra.mrb[0].mxu0 %v1373
    %v1375 = vpop.f32.mrb[0].mxu0
    %v1376 = vadd.f32 %v1235, %v1375
    %v1377 = vpop.f32.mrb[0].mxu0
    %v1378 = vadd.f32 %v1237, %v1377
    %1379 = vmatprep.mubr.f32.mxu0 0.0
    %v1380 = vand.u32 %v449, 4294901760
    %1381 = vmatmul.mubr.f32.gmra.mrb[0].mxu0 %v1380
    %v1382 = vpop.f32.mrb[0].mxu0
    %v1383 = vadd.f32 %v1246, %v1382
    %v1384 = vpop.f32.mrb[0].mxu0
    %v1385 = vadd.f32 %v1248, %v1384
    %1386 = vmatprep.mubr.f32.mxu0 0.0
    %v1387 = vand.u32 %v452, 4294901760
    %1388 = vmatmul.mubr.f32.gmra.mrb[0].mxu0 %v1387
    %v1389 = vpop.f32.mrb[0].mxu0
    %v1390 = vadd.f32 %v1257, %v1389
    %v1391 = vpop.f32.mrb[0].mxu0
    %v1392 = vadd.f32 %v1259, %v1391
    %1393 = vdwg.mxu0
    %v1394 = vand.u32 %v384, 4294901760
    %v1395 = vsub.f32 %v384, %v1394
    %1396 = vmatprep.subr.mxu0 %v1395
    %v1397 = vand.u32 %v383, 4294901760
    %v1398 = vsub.f32 %v383, %v1397
    %1399 = vmatpush1.msra.mxu0 %v1398
    %v1400 = vand.u32 %v392, 4294901760
    %v1401 = vsub.f32 %v392, %v1400
    %1402 = vmatprep.subr.mxu0 %v1401
    %v1403 = vand.u32 %v391, 4294901760
    %v1404 = vsub.f32 %v391, %v1403
    %1405 = vmatpush1.msra.mxu0 %v1404
    %v1406 = vand.u32 %v400, 4294901760
    %v1407 = vsub.f32 %v400, %v1406
    %1408 = vmatprep.subr.mxu0 %v1407
    %v1409 = vand.u32 %v399, 4294901760
    %v1410 = vsub.f32 %v399, %v1409
    %1411 = vmatpush1.msra.mxu0 %v1410
    %v1412 = vand.u32 %v408, 4294901760
    %v1413 = vsub.f32 %v408, %v1412
    %1414 = vmatprep.subr.mxu0 %v1413
    %v1415 = vand.u32 %v407, 4294901760
    %v1416 = vsub.f32 %v407, %v1415
    %1417 = vmatpush1.msra.mxu0 %v1416
    %1418 = vmatprep.subr.mxu0 0.0
    %1419 = vmatpush1.msra.mxu0 0.0
    %1420 = vmatprep.subr.mxu0 0.0
    %1421 = vmatpush1.msra.mxu0 0.0
    %1422 = vmatprep.subr.mxu0 0.0
    %1423 = vmatpush1.msra.mxu0 0.0
    %1424 = vmatprep.subr.mxu0 0.0
    %1425 = vmatpush1.msra.mxu0 0.0
    %1426 = vmatprep.subr.mxu0 0.0
    %1427 = vmatpush1.msra.mxu0 0.0
    %1428 = vmatprep.subr.mxu0 0.0
    %1429 = vmatpush1.msra.mxu0 0.0
    %1430 = vmatprep.subr.mxu0 0.0
    %1431 = vmatpush1.msra.mxu0 0.0
    %1432 = vmatprep.subr.mxu0 0.0
    %1433 = vmatpush1.msra.mxu0 0.0
    %1434 = vmatprep.subr.mxu0 0.0
    %1435 = vmatpush1.msra.mxu0 0.0
    %1436 = vmatprep.subr.mxu0 0.0
    %1437 = vmatpush1.msra.mxu0 0.0
    %1438 = vmatprep.subr.mxu0 0.0
    %1439 = vmatpush1.msra.mxu0 0.0
    %1440 = vmatprep.subr.mxu0 0.0
    %1441 = vmatpush1.msra.mxu0 0.0
    %1442 = vmatprep.subr.mxu0 0.0
    %1443 = vmatpush1.msra.mxu0 0.0
    %1444 = vmatprep.subr.mxu0 0.0
    %1445 = vmatpush1.msra.mxu0 0.0
    %1446 = vmatprep.subr.mxu0 0.0
    %1447 = vmatpush1.msra.mxu0 0.0
    %1448 = vmatprep.subr.mxu0 0.0
    %1449 = vmatpush1.msra.mxu0 0.0
    %1450 = vmatprep.subr.mxu0 0.0
    %1451 = vmatpush1.msra.mxu0 0.0
    %1452 = vmatprep.subr.mxu0 0.0
    %1453 = vmatpush1.msra.mxu0 0.0
    %1454 = vmatprep.subr.mxu0 0.0
    %1455 = vmatpush1.msra.mxu0 0.0
    %1456 = vmatprep.subr.mxu0 0.0
    %1457 = vmatpush1.msra.mxu0 0.0
    %1458 = vmatprep.subr.mxu0 0.0
    %1459 = vmatpush1.msra.mxu0 0.0
    %1460 = vmatprep.subr.mxu0 0.0
    %1461 = vmatpush1.msra.mxu0 0.0
    %1462 = vmatprep.subr.mxu0 0.0
    %1463 = vmatpush1.msra.mxu0 0.0
    %1464 = vmatprep.subr.mxu0 0.0
    %1465 = vmatpush1.msra.mxu0 0.0
    %1466 = vmatprep.subr.mxu0 0.0
    %1467 = vmatpush1.msra.mxu0 0.0
    %1468 = vmatprep.subr.mxu0 0.0
    %1469 = vmatpush1.msra.mxu0 0.0
    %1470 = vmatprep.subr.mxu0 0.0
    %1471 = vmatpush1.msra.mxu0 0.0
    %1472 = vmatprep.subr.mxu0 0.0
    %1473 = vmatpush1.msra.mxu0 0.0
    %1474 = vmatprep.mubr.f32.mxu0 0.0
    %v1475 = vand.u32 %v443, 4294901760
    %v1476 = vsub.f32 %v443, %v1475
    %1477 = vmatmul.mubr.f32.gmra.mrb[0].mxu0 %v1476
    %v1478 = vpop.f32.mrb[0].mxu0
    %v1479 = vadd.f32 %v1369, %v1478
    %v1480 = vpop.f32.mrb[0].mxu0
    %v1481 = vadd.f32 %v1371, %v1480
    %1482 = vmatprep.mubr.f32.mxu0 0.0
    %v1483 = vand.u32 %v446, 4294901760
    %v1484 = vsub.f32 %v446, %v1483
    %1485 = vmatmul.mubr.f32.gmra.mrb[0].mxu0 %v1484
    %v1486 = vpop.f32.mrb[0].mxu0
    %v1487 = vadd.f32 %v1376, %v1486
    %v1488 = vpop.f32.mrb[0].mxu0
    %v1489 = vadd.f32 %v1378, %v1488
    %1490 = vmatprep.mubr.f32.mxu0 0.0
    %v1491 = vand.u32 %v449, 4294901760
    %v1492 = vsub.f32 %v449, %v1491
    %1493 = vmatmul.mubr.f32.gmra.mrb[0].mxu0 %v1492
    %v1494 = vpop.f32.mrb[0].mxu0
    %v1495 = vadd.f32 %v1383, %v1494
    %v1496 = vpop.f32.mrb[0].mxu0
    %v1497 = vadd.f32 %v1385, %v1496
    %1498 = vmatprep.mubr.f32.mxu0 0.0
    %v1499 = vand.u32 %v452, 4294901760
    %v1500 = vsub.f32 %v452, %v1499
    %1501 = vmatmul.mubr.f32.gmra.mrb[0].mxu0 %v1500
    %v1502 = vpop.f32.mrb[0].mxu0
    %v1503 = vadd.f32 %v1390, %v1502
    %v1504 = vpop.f32.mrb[0].mxu0
    %v1505 = vadd.f32 %v1392, %v1504
    %1506 = vdwg.mxu0
    %v1507 = vand.u32 %v384, 4294901760
    %1508 = vmatprep.subr.mxu0 %v1507
    %v1509 = vand.u32 %v383, 4294901760
    %1510 = vmatpush1.msra.mxu0 %v1509
    %v1511 = vand.u32 %v392, 4294901760
    %1512 = vmatprep.subr.mxu0 %v1511
    %v1513 = vand.u32 %v391, 4294901760
    %1514 = vmatpush1.msra.mxu0 %v1513
    %v1515 = vand.u32 %v400, 4294901760
    %1516 = vmatprep.subr.mxu0 %v1515
    %v1517 = vand.u32 %v399, 4294901760
    %1518 = vmatpush1.msra.mxu0 %v1517
    %v1519 = vand.u32 %v408, 4294901760
    %1520 = vmatprep.subr.mxu0 %v1519
    %v1521 = vand.u32 %v407, 4294901760
    %1522 = vmatpush1.msra.mxu0 %v1521
    %1523 = vmatprep.subr.mxu0 0.0
    %1524 = vmatpush1.msra.mxu0 0.0
    %1525 = vmatprep.subr.mxu0 0.0
    %1526 = vmatpush1.msra.mxu0 0.0
    %1527 = vmatprep.subr.mxu0 0.0
    %1528 = vmatpush1.msra.mxu0 0.0
    %1529 = vmatprep.subr.mxu0 0.0
    %1530 = vmatpush1.msra.mxu0 0.0
    %1531 = vmatprep.subr.mxu0 0.0
    %1532 = vmatpush1.msra.mxu0 0.0
    %1533 = vmatprep.subr.mxu0 0.0
    %1534 = vmatpush1.msra.mxu0 0.0
    %1535 = vmatprep.subr.mxu0 0.0
    %1536 = vmatpush1.msra.mxu0 0.0
    %1537 = vmatprep.subr.mxu0 0.0
    %1538 = vmatpush1.msra.mxu0 0.0
    %1539 = vmatprep.subr.mxu0 0.0
    %1540 = vmatpush1.msra.mxu0 0.0
    %1541 = vmatprep.subr.mxu0 0.0
    %1542 = vmatpush1.msra.mxu0 0.0
    %1543 = vmatprep.subr.mxu0 0.0
    %1544 = vmatpush1.msra.mxu0 0.0
    %1545 = vmatprep.subr.mxu0 0.0
    %1546 = vmatpush1.msra.mxu0 0.0
    %1547 = vmatprep.subr.mxu0 0.0
    %1548 = vmatpush1.msra.mxu0 0.0
    %1549 = vmatprep.subr.mxu0 0.0
    %1550 = vmatpush1.msra.mxu0 0.0
    %1551 = vmatprep.subr.mxu0 0.0
    %1552 = vmatpush1.msra.mxu0 0.0
    %1553 = vmatprep.subr.mxu0 0.0
    %1554 = vmatpush1.msra.mxu0 0.0
    %1555 = vmatprep.subr.mxu0 0.0
    %1556 = vmatpush1.msra.mxu0 0.0
    %1557 = vmatprep.subr.mxu0 0.0
    %1558 = vmatpush1.msra.mxu0 0.0
    %1559 = vmatprep.subr.mxu0 0.0
    %1560 = vmatpush1.msra.mxu0 0.0
    %1561 = vmatprep.subr.mxu0 0.0
    %1562 = vmatpush1.msra.mxu0 0.0
    %1563 = vmatprep.subr.mxu0 0.0
    %1564 = vmatpush1.msra.mxu0 0.0
    %1565 = vmatprep.subr.mxu0 0.0
    %1566 = vmatpush1.msra.mxu0 0.0
    %1567 = vmatprep.subr.mxu0 0.0
    %1568 = vmatpush1.msra.mxu0 0.0
    %1569 = vmatprep.subr.mxu0 0.0
    %1570 = vmatpush1.msra.mxu0 0.0
    %1571 = vmatprep.subr.mxu0 0.0
    %1572 = vmatpush1.msra.mxu0 0.0
    %1573 = vmatprep.subr.mxu0 0.0
    %1574 = vmatpush1.msra.mxu0 0.0
    %1575 = vmatprep.subr.mxu0 0.0
    %1576 = vmatpush1.msra.mxu0 0.0
    %1577 = vmatprep.subr.mxu0 0.0
    %1578 = vmatpush1.msra.mxu0 0.0
    %1579 = vmatprep.mubr.f32.mxu0 0.0
    %v1580 = vand.u32 %v443, 4294901760
    %v1581 = vsub.f32 %v443, %v1580
    %v1582 = vand.u32 %v1581, 4294901760
    %1583 = vmatmul.mubr.f32.gmra.mrb[0].mxu0 %v1582
    %v1584 = vpop.f32.mrb[0].mxu0
    %v1585 = vadd.f32 %v1479, %v1584
    %v1586 = vpop.f32.mrb[0].mxu0
    %v1587 = vadd.f32 %v1481, %v1586
    %1588 = vmatprep.mubr.f32.mxu0 0.0
    %v1589 = vand.u32 %v446, 4294901760
    %v1590 = vsub.f32 %v446, %v1589
    %v1591 = vand.u32 %v1590, 4294901760
    %1592 = vmatmul.mubr.f32.gmra.mrb[0].mxu0 %v1591
    %v1593 = vpop.f32.mrb[0].mxu0
    %v1594 = vadd.f32 %v1487, %v1593
    %v1595 = vpop.f32.mrb[0].mxu0
    %v1596 = vadd.f32 %v1489, %v1595
    %1597 = vmatprep.mubr.f32.mxu0 0.0
    %v1598 = vand.u32 %v449, 4294901760
    %v1599 = vsub.f32 %v449, %v1598
    %v1600 = vand.u32 %v1599, 4294901760
    %1601 = vmatmul.mubr.f32.gmra.mrb[0].mxu0 %v1600
    %v1602 = vpop.f32.mrb[0].mxu0
    %v1603 = vadd.f32 %v1495, %v1602
    %v1604 = vpop.f32.mrb[0].mxu0
    %v1605 = vadd.f32 %v1497, %v1604
    %1606 = vmatprep.mubr.f32.mxu0 0.0
    %v1607 = vand.u32 %v452, 4294901760
    %v1608 = vsub.f32 %v452, %v1607
    %v1609 = vand.u32 %v1608, 4294901760
    %1610 = vmatmul.mubr.f32.gmra.mrb[0].mxu0 %v1609
    %v1611 = vpop.f32.mrb[0].mxu0
    %v1612 = vadd.f32 %v1503, %v1611
    %v1613 = vpop.f32.mrb[0].mxu0
    %v1614 = vadd.f32 %v1505, %v1613
    %1615 = vdwg.mxu0
    %v1616 = vand.u32 %v384, 4294901760
    %v1617 = vsub.f32 %v384, %v1616
    %v1618 = vand.u32 %v1617, 4294901760
    %1619 = vmatprep.subr.mxu0 %v1618
    %v1620 = vand.u32 %v383, 4294901760
    %v1621 = vsub.f32 %v383, %v1620
    %v1622 = vand.u32 %v1621, 4294901760
    %1623 = vmatpush1.msra.mxu0 %v1622
    %v1624 = vand.u32 %v392, 4294901760
    %v1625 = vsub.f32 %v392, %v1624
    %v1626 = vand.u32 %v1625, 4294901760
    %1627 = vmatprep.subr.mxu0 %v1626
    %v1628 = vand.u32 %v391, 4294901760
    %v1629 = vsub.f32 %v391, %v1628
    %v1630 = vand.u32 %v1629, 4294901760
    %1631 = vmatpush1.msra.mxu0 %v1630
    %v1632 = vand.u32 %v400, 4294901760
    %v1633 = vsub.f32 %v400, %v1632
    %v1634 = vand.u32 %v1633, 4294901760
    %1635 = vmatprep.subr.mxu0 %v1634
    %v1636 = vand.u32 %v399, 4294901760
    %v1637 = vsub.f32 %v399, %v1636
    %v1638 = vand.u32 %v1637, 4294901760
    %1639 = vmatpush1.msra.mxu0 %v1638
    %v1640 = vand.u32 %v408, 4294901760
    %v1641 = vsub.f32 %v408, %v1640
    %v1642 = vand.u32 %v1641, 4294901760
    %1643 = vmatprep.subr.mxu0 %v1642
    %v1644 = vand.u32 %v407, 4294901760
    %v1645 = vsub.f32 %v407, %v1644
    %v1646 = vand.u32 %v1645, 4294901760
    %1647 = vmatpush1.msra.mxu0 %v1646
    %1648 = vmatprep.subr.mxu0 0.0
    %1649 = vmatpush1.msra.mxu0 0.0
    %1650 = vmatprep.subr.mxu0 0.0
    %1651 = vmatpush1.msra.mxu0 0.0
    %1652 = vmatprep.subr.mxu0 0.0
    %1653 = vmatpush1.msra.mxu0 0.0
    %1654 = vmatprep.subr.mxu0 0.0
    %1655 = vmatpush1.msra.mxu0 0.0
    %1656 = vmatprep.subr.mxu0 0.0
    %1657 = vmatpush1.msra.mxu0 0.0
    %1658 = vmatprep.subr.mxu0 0.0
    %1659 = vmatpush1.msra.mxu0 0.0
    %1660 = vmatprep.subr.mxu0 0.0
    %1661 = vmatpush1.msra.mxu0 0.0
    %1662 = vmatprep.subr.mxu0 0.0
    %1663 = vmatpush1.msra.mxu0 0.0
    %1664 = vmatprep.subr.mxu0 0.0
    %1665 = vmatpush1.msra.mxu0 0.0
    %1666 = vmatprep.subr.mxu0 0.0
    %1667 = vmatpush1.msra.mxu0 0.0
    %1668 = vmatprep.subr.mxu0 0.0
    %1669 = vmatpush1.msra.mxu0 0.0
    %1670 = vmatprep.subr.mxu0 0.0
    %1671 = vmatpush1.msra.mxu0 0.0
    %1672 = vmatprep.subr.mxu0 0.0
    %1673 = vmatpush1.msra.mxu0 0.0
    %1674 = vmatprep.subr.mxu0 0.0
    %1675 = vmatpush1.msra.mxu0 0.0
    %1676 = vmatprep.subr.mxu0 0.0
    %1677 = vmatpush1.msra.mxu0 0.0
    %1678 = vmatprep.subr.mxu0 0.0
    %1679 = vmatpush1.msra.mxu0 0.0
    %1680 = vmatprep.subr.mxu0 0.0
    %1681 = vmatpush1.msra.mxu0 0.0
    %1682 = vmatprep.subr.mxu0 0.0
    %1683 = vmatpush1.msra.mxu0 0.0
    %1684 = vmatprep.subr.mxu0 0.0
    %1685 = vmatpush1.msra.mxu0 0.0
    %1686 = vmatprep.subr.mxu0 0.0
    %1687 = vmatpush1.msra.mxu0 0.0
    %1688 = vmatprep.subr.mxu0 0.0
    %1689 = vmatpush1.msra.mxu0 0.0
    %1690 = vmatprep.subr.mxu0 0.0
    %1691 = vmatpush1.msra.mxu0 0.0
    %1692 = vmatprep.subr.mxu0 0.0
    %1693 = vmatpush1.msra.mxu0 0.0
    %1694 = vmatprep.subr.mxu0 0.0
    %1695 = vmatpush1.msra.mxu0 0.0
    %1696 = vmatprep.subr.mxu0 0.0
    %1697 = vmatpush1.msra.mxu0 0.0
    %1698 = vmatprep.subr.mxu0 0.0
    %1699 = vmatpush1.msra.mxu0 0.0
    %1700 = vmatprep.subr.mxu0 0.0
    %1701 = vmatpush1.msra.mxu0 0.0
    %1702 = vmatprep.subr.mxu0 0.0
    %1703 = vmatpush1.msra.mxu0 0.0
    %1704 = vmatprep.mubr.f32.mxu0 0.0
    %v1705 = vand.u32 %v443, 4294901760
    %1706 = vmatmul.mubr.f32.gmra.mrb[0].mxu0 %v1705
    %v1707 = vpop.f32.mrb[0].mxu0
    %v1708 = vadd.f32 %v1585, %v1707
    %v1709 = vpop.f32.mrb[0].mxu0
    %v1710 = vadd.f32 %v1587, %v1709
    %1711 = vmatprep.mubr.f32.mxu0 0.0
    %v1712 = vand.u32 %v446, 4294901760
    %1713 = vmatmul.mubr.f32.gmra.mrb[0].mxu0 %v1712
    %v1714 = vpop.f32.mrb[0].mxu0
    %v1715 = vadd.f32 %v1594, %v1714
    %v1716 = vpop.f32.mrb[0].mxu0
    %v1717 = vadd.f32 %v1596, %v1716
    %1718 = vmatprep.mubr.f32.mxu0 0.0
    %v1719 = vand.u32 %v449, 4294901760
    %1720 = vmatmul.mubr.f32.gmra.mrb[0].mxu0 %v1719
    %v1721 = vpop.f32.mrb[0].mxu0
    %v1722 = vadd.f32 %v1603, %v1721
    %v1723 = vpop.f32.mrb[0].mxu0
    %v1724 = vadd.f32 %v1605, %v1723
    %1725 = vmatprep.mubr.f32.mxu0 0.0
    %v1726 = vand.u32 %v452, 4294901760
    %1727 = vmatmul.mubr.f32.gmra.mrb[0].mxu0 %v1726
    %v1728 = vpop.f32.mrb[0].mxu0
    %v1729 = vadd.f32 %v1612, %v1728
    %v1730 = vpop.f32.mrb[0].mxu0
    %v1731 = vadd.f32 %v1614, %v1730
    %1732 = vdwg.mxu0
    %v1733 = vand.u32 %v384, 4294901760
    %1734 = vmatprep.subr.mxu0 %v1733
    %v1735 = vand.u32 %v383, 4294901760
    %1736 = vmatpush1.msra.mxu0 %v1735
    %v1737 = vand.u32 %v392, 4294901760
    %1738 = vmatprep.subr.mxu0 %v1737
    %v1739 = vand.u32 %v391, 4294901760
    %1740 = vmatpush1.msra.mxu0 %v1739
    %v1741 = vand.u32 %v400, 4294901760
    %1742 = vmatprep.subr.mxu0 %v1741
    %v1743 = vand.u32 %v399, 4294901760
    %1744 = vmatpush1.msra.mxu0 %v1743
    %v1745 = vand.u32 %v408, 4294901760
    %1746 = vmatprep.subr.mxu0 %v1745
    %v1747 = vand.u32 %v407, 4294901760
    %1748 = vmatpush1.msra.mxu0 %v1747
    %1749 = vmatprep.subr.mxu0 0.0
    %1750 = vmatpush1.msra.mxu0 0.0
    %1751 = vmatprep.subr.mxu0 0.0
    %1752 = vmatpush1.msra.mxu0 0.0
    %1753 = vmatprep.subr.mxu0 0.0
    %1754 = vmatpush1.msra.mxu0 0.0
    %1755 = vmatprep.subr.mxu0 0.0
    %1756 = vmatpush1.msra.mxu0 0.0
    %1757 = vmatprep.subr.mxu0 0.0
    %1758 = vmatpush1.msra.mxu0 0.0
    %1759 = vmatprep.subr.mxu0 0.0
    %1760 = vmatpush1.msra.mxu0 0.0
    %1761 = vmatprep.subr.mxu0 0.0
    %1762 = vmatpush1.msra.mxu0 0.0
    %1763 = vmatprep.subr.mxu0 0.0
    %1764 = vmatpush1.msra.mxu0 0.0
    %1765 = vmatprep.subr.mxu0 0.0
    %1766 = vmatpush1.msra.mxu0 0.0
    %1767 = vmatprep.subr.mxu0 0.0
    %1768 = vmatpush1.msra.mxu0 0.0
    %1769 = vmatprep.subr.mxu0 0.0
    %1770 = vmatpush1.msra.mxu0 0.0
    %1771 = vmatprep.subr.mxu0 0.0
    %1772 = vmatpush1.msra.mxu0 0.0
    %1773 = vmatprep.subr.mxu0 0.0
    %1774 = vmatpush1.msra.mxu0 0.0
    %1775 = vmatprep.subr.mxu0 0.0
    %1776 = vmatpush1.msra.mxu0 0.0
    %1777 = vmatprep.subr.mxu0 0.0
    %1778 = vmatpush1.msra.mxu0 0.0
    %1779 = vmatprep.subr.mxu0 0.0
    %1780 = vmatpush1.msra.mxu0 0.0
    %1781 = vmatprep.subr.mxu0 0.0
    %1782 = vmatpush1.msra.mxu0 0.0
    %1783 = vmatprep.subr.mxu0 0.0
    %1784 = vmatpush1.msra.mxu0 0.0
    %1785 = vmatprep.subr.mxu0 0.0
    %1786 = vmatpush1.msra.mxu0 0.0
    %1787 = vmatprep.subr.mxu0 0.0
    %1788 = vmatpush1.msra.mxu0 0.0
    %1789 = vmatprep.subr.mxu0 0.0
    %1790 = vmatpush1.msra.mxu0 0.0
    %1791 = vmatprep.subr.mxu0 0.0
    %1792 = vmatpush1.msra.mxu0 0.0
    %1793 = vmatprep.subr.mxu0 0.0
    %1794 = vmatpush1.msra.mxu0 0.0
    %1795 = vmatprep.subr.mxu0 0.0
    %1796 = vmatpush1.msra.mxu0 0.0
    %1797 = vmatprep.subr.mxu0 0.0
    %1798 = vmatpush1.msra.mxu0 0.0
    %1799 = vmatprep.subr.mxu0 0.0
    %1800 = vmatpush1.msra.mxu0 0.0
    %1801 = vmatprep.subr.mxu0 0.0
    %1802 = vmatpush1.msra.mxu0 0.0
    %1803 = vmatprep.subr.mxu0 0.0
    %1804 = vmatpush1.msra.mxu0 0.0
    %1805 = vmatprep.mubr.f32.mxu0 0.0
    %v1806 = vand.u32 %v443, 4294901760
    %1807 = vmatmul.mubr.f32.gmra.mrb[0].mxu0 %v1806
    %v1808 = vpop.f32.mrb[0].mxu0
    %v1809 = vadd.f32 %v1708, %v1808
    %v1810 = vpop.f32.mrb[0].mxu0
    %v1811 = vadd.f32 %v1710, %v1810
    %1812 = vmatprep.mubr.f32.mxu0 0.0
    %v1813 = vand.u32 %v446, 4294901760
    %1814 = vmatmul.mubr.f32.gmra.mrb[0].mxu0 %v1813
    %v1815 = vpop.f32.mrb[0].mxu0
    %v1816 = vadd.f32 %v1715, %v1815
    %v1817 = vpop.f32.mrb[0].mxu0
    %v1818 = vadd.f32 %v1717, %v1817
    %1819 = vmatprep.mubr.f32.mxu0 0.0
    %v1820 = vand.u32 %v449, 4294901760
    %1821 = vmatmul.mubr.f32.gmra.mrb[0].mxu0 %v1820
    %v1822 = vpop.f32.mrb[0].mxu0
    %v1823 = vadd.f32 %v1722, %v1822
    %v1824 = vpop.f32.mrb[0].mxu0
    %v1825 = vadd.f32 %v1724, %v1824
    %1826 = vmatprep.mubr.f32.mxu0 0.0
    %v1827 = vand.u32 %v452, 4294901760
    %1828 = vmatmul.mubr.f32.gmra.mrb[0].mxu0 %v1827
    %v1829 = vpop.f32.mrb[0].mxu0
    %v1830 = vadd.f32 %v1729, %v1829
    %v1831 = vpop.f32.mrb[0].mxu0
    %v1832 = vadd.f32 %v1731, %v1831
    %1833 = vdwg.mxu0
    %v1834 = vand.u32 %v386, 4294901760
    %1835 = vmatprep.subr.mxu0 %v1834
    %v1836 = vand.u32 %v385, 4294901760
    %1837 = vmatpush1.msra.mxu0 %v1836
    %v1838 = vand.u32 %v394, 4294901760
    %1839 = vmatprep.subr.mxu0 %v1838
    %v1840 = vand.u32 %v393, 4294901760
    %1841 = vmatpush1.msra.mxu0 %v1840
    %v1842 = vand.u32 %v402, 4294901760
    %1843 = vmatprep.subr.mxu0 %v1842
    %v1844 = vand.u32 %v401, 4294901760
    %1845 = vmatpush1.msra.mxu0 %v1844
    %v1846 = vand.u32 %v410, 4294901760
    %1847 = vmatprep.subr.mxu0 %v1846
    %v1848 = vand.u32 %v409, 4294901760
    %1849 = vmatpush1.msra.mxu0 %v1848
    %1850 = vmatprep.subr.mxu0 0.0
    %1851 = vmatpush1.msra.mxu0 0.0
    %1852 = vmatprep.subr.mxu0 0.0
    %1853 = vmatpush1.msra.mxu0 0.0
    %1854 = vmatprep.subr.mxu0 0.0
    %1855 = vmatpush1.msra.mxu0 0.0
    %1856 = vmatprep.subr.mxu0 0.0
    %1857 = vmatpush1.msra.mxu0 0.0
    %1858 = vmatprep.subr.mxu0 0.0
    %1859 = vmatpush1.msra.mxu0 0.0
    %1860 = vmatprep.subr.mxu0 0.0
    %1861 = vmatpush1.msra.mxu0 0.0
    %1862 = vmatprep.subr.mxu0 0.0
    %1863 = vmatpush1.msra.mxu0 0.0
    %1864 = vmatprep.subr.mxu0 0.0
    %1865 = vmatpush1.msra.mxu0 0.0
    %1866 = vmatprep.subr.mxu0 0.0
    %1867 = vmatpush1.msra.mxu0 0.0
    %1868 = vmatprep.subr.mxu0 0.0
    %1869 = vmatpush1.msra.mxu0 0.0
    %1870 = vmatprep.subr.mxu0 0.0
    %1871 = vmatpush1.msra.mxu0 0.0
    %1872 = vmatprep.subr.mxu0 0.0
    %1873 = vmatpush1.msra.mxu0 0.0
    %1874 = vmatprep.subr.mxu0 0.0
    %1875 = vmatpush1.msra.mxu0 0.0
    %1876 = vmatprep.subr.mxu0 0.0
    %1877 = vmatpush1.msra.mxu0 0.0
    %1878 = vmatprep.subr.mxu0 0.0
    %1879 = vmatpush1.msra.mxu0 0.0
    %1880 = vmatprep.subr.mxu0 0.0
    %1881 = vmatpush1.msra.mxu0 0.0
    %1882 = vmatprep.subr.mxu0 0.0
    %1883 = vmatpush1.msra.mxu0 0.0
    %1884 = vmatprep.subr.mxu0 0.0
    %1885 = vmatpush1.msra.mxu0 0.0
    %1886 = vmatprep.subr.mxu0 0.0
    %1887 = vmatpush1.msra.mxu0 0.0
    %1888 = vmatprep.subr.mxu0 0.0
    %1889 = vmatpush1.msra.mxu0 0.0
    %1890 = vmatprep.subr.mxu0 0.0
    %1891 = vmatpush1.msra.mxu0 0.0
    %1892 = vmatprep.subr.mxu0 0.0
    %1893 = vmatpush1.msra.mxu0 0.0
    %1894 = vmatprep.subr.mxu0 0.0
    %1895 = vmatpush1.msra.mxu0 0.0
    %1896 = vmatprep.subr.mxu0 0.0
    %1897 = vmatpush1.msra.mxu0 0.0
    %1898 = vmatprep.subr.mxu0 0.0
    %1899 = vmatpush1.msra.mxu0 0.0
    %1900 = vmatprep.subr.mxu0 0.0
    %1901 = vmatpush1.msra.mxu0 0.0
    %1902 = vmatprep.subr.mxu0 0.0
    %1903 = vmatpush1.msra.mxu0 0.0
    %1904 = vmatprep.subr.mxu0 0.0
    %1905 = vmatpush1.msra.mxu0 0.0
    %1906 = vmatprep.mubr.f32.mxu0 0.0
    %v1907 = vand.u32 %v443, 4294901760
    %v1908 = vsub.f32 %v443, %v1907
    %v1909 = vand.u32 %v1908, 4294901760
    %v1910 = vsub.f32 %v1908, %v1909
    %v1911 = vand.u32 %v1910, 4294901760
    %1912 = vmatmul.mubr.f32.gmra.mrb[0].mxu0 %v1911
    %v1913 = vpop.f32.mrb[0].mxu0
    %v1914 = vadd.f32 %v424, %v1913
    %v1915 = vpop.f32.mrb[0].mxu0
    %v1916 = vadd.f32 %v424, %v1915
    %1917 = vmatprep.mubr.f32.mxu0 0.0
    %v1918 = vand.u32 %v446, 4294901760
    %v1919 = vsub.f32 %v446, %v1918
    %v1920 = vand.u32 %v1919, 4294901760
    %v1921 = vsub.f32 %v1919, %v1920
    %v1922 = vand.u32 %v1921, 4294901760
    %1923 = vmatmul.mubr.f32.gmra.mrb[0].mxu0 %v1922
    %v1924 = vpop.f32.mrb[0].mxu0
    %v1925 = vadd.f32 %v429, %v1924
    %v1926 = vpop.f32.mrb[0].mxu0
    %v1927 = vadd.f32 %v429, %v1926
    %1928 = vmatprep.mubr.f32.mxu0 0.0
    %v1929 = vand.u32 %v449, 4294901760
    %v1930 = vsub.f32 %v449, %v1929
    %v1931 = vand.u32 %v1930, 4294901760
    %v1932 = vsub.f32 %v1930, %v1931
    %v1933 = vand.u32 %v1932, 4294901760
    %1934 = vmatmul.mubr.f32.gmra.mrb[0].mxu0 %v1933
    %v1935 = vpop.f32.mrb[0].mxu0
    %v1936 = vadd.f32 %v434, %v1935
    %v1937 = vpop.f32.mrb[0].mxu0
    %v1938 = vadd.f32 %v434, %v1937
    %1939 = vmatprep.mubr.f32.mxu0 0.0
    %v1940 = vand.u32 %v452, 4294901760
    %v1941 = vsub.f32 %v452, %v1940
    %v1942 = vand.u32 %v1941, 4294901760
    %v1943 = vsub.f32 %v1941, %v1942
    %v1944 = vand.u32 %v1943, 4294901760
    %1945 = vmatmul.mubr.f32.gmra.mrb[0].mxu0 %v1944
    %v1946 = vpop.f32.mrb[0].mxu0
    %v1947 = vadd.f32 %v439, %v1946
    %v1948 = vpop.f32.mrb[0].mxu0
    %v1949 = vadd.f32 %v439, %v1948
    %1950 = vdwg.mxu0
    %v1951 = vand.u32 %v386, 4294901760
    %v1952 = vsub.f32 %v386, %v1951
    %v1953 = vand.u32 %v1952, 4294901760
    %v1954 = vsub.f32 %v1952, %v1953
    %v1955 = vand.u32 %v1954, 4294901760
    %1956 = vmatprep.subr.mxu0 %v1955
    %v1957 = vand.u32 %v385, 4294901760
    %v1958 = vsub.f32 %v385, %v1957
    %v1959 = vand.u32 %v1958, 4294901760
    %v1960 = vsub.f32 %v1958, %v1959
    %v1961 = vand.u32 %v1960, 4294901760
    %1962 = vmatpush1.msra.mxu0 %v1961
    %v1963 = vand.u32 %v394, 4294901760
    %v1964 = vsub.f32 %v394, %v1963
    %v1965 = vand.u32 %v1964, 4294901760
    %v1966 = vsub.f32 %v1964, %v1965
    %v1967 = vand.u32 %v1966, 4294901760
    %1968 = vmatprep.subr.mxu0 %v1967
    %v1969 = vand.u32 %v393, 4294901760
    %v1970 = vsub.f32 %v393, %v1969
    %v1971 = vand.u32 %v1970, 4294901760
    %v1972 = vsub.f32 %v1970, %v1971
    %v1973 = vand.u32 %v1972, 4294901760
    %1974 = vmatpush1.msra.mxu0 %v1973
    %v1975 = vand.u32 %v402, 4294901760
    %v1976 = vsub.f32 %v402, %v1975
    %v1977 = vand.u32 %v1976, 4294901760
    %v1978 = vsub.f32 %v1976, %v1977
    %v1979 = vand.u32 %v1978, 4294901760
    %1980 = vmatprep.subr.mxu0 %v1979
    %v1981 = vand.u32 %v401, 4294901760
    %v1982 = vsub.f32 %v401, %v1981
    %v1983 = vand.u32 %v1982, 4294901760
    %v1984 = vsub.f32 %v1982, %v1983
    %v1985 = vand.u32 %v1984, 4294901760
    %1986 = vmatpush1.msra.mxu0 %v1985
    %v1987 = vand.u32 %v410, 4294901760
    %v1988 = vsub.f32 %v410, %v1987
    %v1989 = vand.u32 %v1988, 4294901760
    %v1990 = vsub.f32 %v1988, %v1989
    %v1991 = vand.u32 %v1990, 4294901760
    %1992 = vmatprep.subr.mxu0 %v1991
    %v1993 = vand.u32 %v409, 4294901760
    %v1994 = vsub.f32 %v409, %v1993
    %v1995 = vand.u32 %v1994, 4294901760
    %v1996 = vsub.f32 %v1994, %v1995
    %v1997 = vand.u32 %v1996, 4294901760
    %1998 = vmatpush1.msra.mxu0 %v1997
    %1999 = vmatprep.subr.mxu0 0.0
    %2000 = vmatpush1.msra.mxu0 0.0
    %2001 = vmatprep.subr.mxu0 0.0
    %2002 = vmatpush1.msra.mxu0 0.0
    %2003 = vmatprep.subr.mxu0 0.0
    %2004 = vmatpush1.msra.mxu0 0.0
    %2005 = vmatprep.subr.mxu0 0.0
    %2006 = vmatpush1.msra.mxu0 0.0
    %2007 = vmatprep.subr.mxu0 0.0
    %2008 = vmatpush1.msra.mxu0 0.0
    %2009 = vmatprep.subr.mxu0 0.0
    %2010 = vmatpush1.msra.mxu0 0.0
    %2011 = vmatprep.subr.mxu0 0.0
    %2012 = vmatpush1.msra.mxu0 0.0
    %2013 = vmatprep.subr.mxu0 0.0
    %2014 = vmatpush1.msra.mxu0 0.0
    %2015 = vmatprep.subr.mxu0 0.0
    %2016 = vmatpush1.msra.mxu0 0.0
    %2017 = vmatprep.subr.mxu0 0.0
    %2018 = vmatpush1.msra.mxu0 0.0
    %2019 = vmatprep.subr.mxu0 0.0
    %2020 = vmatpush1.msra.mxu0 0.0
    %2021 = vmatprep.subr.mxu0 0.0
    %2022 = vmatpush1.msra.mxu0 0.0
    %2023 = vmatprep.subr.mxu0 0.0
    %2024 = vmatpush1.msra.mxu0 0.0
    %2025 = vmatprep.subr.mxu0 0.0
    %2026 = vmatpush1.msra.mxu0 0.0
    %2027 = vmatprep.subr.mxu0 0.0
    %2028 = vmatpush1.msra.mxu0 0.0
    %2029 = vmatprep.subr.mxu0 0.0
    %2030 = vmatpush1.msra.mxu0 0.0
    %2031 = vmatprep.subr.mxu0 0.0
    %2032 = vmatpush1.msra.mxu0 0.0
    %2033 = vmatprep.subr.mxu0 0.0
    %2034 = vmatpush1.msra.mxu0 0.0
    %2035 = vmatprep.subr.mxu0 0.0
    %2036 = vmatpush1.msra.mxu0 0.0
    %2037 = vmatprep.subr.mxu0 0.0
    %2038 = vmatpush1.msra.mxu0 0.0
    %2039 = vmatprep.subr.mxu0 0.0
    %2040 = vmatpush1.msra.mxu0 0.0
    %2041 = vmatprep.subr.mxu0 0.0
    %2042 = vmatpush1.msra.mxu0 0.0
    %2043 = vmatprep.subr.mxu0 0.0
    %2044 = vmatpush1.msra.mxu0 0.0
    %2045 = vmatprep.subr.mxu0 0.0
    %2046 = vmatpush1.msra.mxu0 0.0
    %2047 = vmatprep.subr.mxu0 0.0
    %2048 = vmatpush1.msra.mxu0 0.0
    %2049 = vmatprep.subr.mxu0 0.0
    %2050 = vmatpush1.msra.mxu0 0.0
    %2051 = vmatprep.subr.mxu0 0.0
    %2052 = vmatpush1.msra.mxu0 0.0
    %2053 = vmatprep.subr.mxu0 0.0
    %2054 = vmatpush1.msra.mxu0 0.0
    %2055 = vmatprep.mubr.f32.mxu0 0.0
    %v2056 = vand.u32 %v443, 4294901760
    %2057 = vmatmul.mubr.f32.gmra.mrb[0].mxu0 %v2056
    %v2058 = vpop.f32.mrb[0].mxu0
    %v2059 = vadd.f32 %v1914, %v2058
    %v2060 = vpop.f32.mrb[0].mxu0
    %v2061 = vadd.f32 %v1916, %v2060
    %2062 = vmatprep.mubr.f32.mxu0 0.0
    %v2063 = vand.u32 %v446, 4294901760
    %2064 = vmatmul.mubr.f32.gmra.mrb[0].mxu0 %v2063
    %v2065 = vpop.f32.mrb[0].mxu0
    %v2066 = vadd.f32 %v1925, %v2065
    %v2067 = vpop.f32.mrb[0].mxu0
    %v2068 = vadd.f32 %v1927, %v2067
    %2069 = vmatprep.mubr.f32.mxu0 0.0
    %v2070 = vand.u32 %v449, 4294901760
    %2071 = vmatmul.mubr.f32.gmra.mrb[0].mxu0 %v2070
    %v2072 = vpop.f32.mrb[0].mxu0
    %v2073 = vadd.f32 %v1936, %v2072
    %v2074 = vpop.f32.mrb[0].mxu0
    %v2075 = vadd.f32 %v1938, %v2074
    %2076 = vmatprep.mubr.f32.mxu0 0.0
    %v2077 = vand.u32 %v452, 4294901760
    %2078 = vmatmul.mubr.f32.gmra.mrb[0].mxu0 %v2077
    %v2079 = vpop.f32.mrb[0].mxu0
    %v2080 = vadd.f32 %v1947, %v2079
    %v2081 = vpop.f32.mrb[0].mxu0
    %v2082 = vadd.f32 %v1949, %v2081
    %2083 = vdwg.mxu0
    %v2084 = vand.u32 %v386, 4294901760
    %v2085 = vsub.f32 %v386, %v2084
    %2086 = vmatprep.subr.mxu0 %v2085
    %v2087 = vand.u32 %v385, 4294901760
    %v2088 = vsub.f32 %v385, %v2087
    %2089 = vmatpush1.msra.mxu0 %v2088
    %v2090 = vand.u32 %v394, 4294901760
    %v2091 = vsub.f32 %v394, %v2090
    %2092 = vmatprep.subr.mxu0 %v2091
    %v2093 = vand.u32 %v393, 4294901760
    %v2094 = vsub.f32 %v393, %v2093
    %2095 = vmatpush1.msra.mxu0 %v2094
    %v2096 = vand.u32 %v402, 4294901760
    %v2097 = vsub.f32 %v402, %v2096
    %2098 = vmatprep.subr.mxu0 %v2097
    %v2099 = vand.u32 %v401, 4294901760
    %v2100 = vsub.f32 %v401, %v2099
    %2101 = vmatpush1.msra.mxu0 %v2100
    %v2102 = vand.u32 %v410, 4294901760
    %v2103 = vsub.f32 %v410, %v2102
    %2104 = vmatprep.subr.mxu0 %v2103
    %v2105 = vand.u32 %v409, 4294901760
    %v2106 = vsub.f32 %v409, %v2105
    %2107 = vmatpush1.msra.mxu0 %v2106
    %2108 = vmatprep.subr.mxu0 0.0
    %2109 = vmatpush1.msra.mxu0 0.0
    %2110 = vmatprep.subr.mxu0 0.0
    %2111 = vmatpush1.msra.mxu0 0.0
    %2112 = vmatprep.subr.mxu0 0.0
    %2113 = vmatpush1.msra.mxu0 0.0
    %2114 = vmatprep.subr.mxu0 0.0
    %2115 = vmatpush1.msra.mxu0 0.0
    %2116 = vmatprep.subr.mxu0 0.0
    %2117 = vmatpush1.msra.mxu0 0.0
    %2118 = vmatprep.subr.mxu0 0.0
    %2119 = vmatpush1.msra.mxu0 0.0
    %2120 = vmatprep.subr.mxu0 0.0
    %2121 = vmatpush1.msra.mxu0 0.0
    %2122 = vmatprep.subr.mxu0 0.0
    %2123 = vmatpush1.msra.mxu0 0.0
    %2124 = vmatprep.subr.mxu0 0.0
    %2125 = vmatpush1.msra.mxu0 0.0
    %2126 = vmatprep.subr.mxu0 0.0
    %2127 = vmatpush1.msra.mxu0 0.0
    %2128 = vmatprep.subr.mxu0 0.0
    %2129 = vmatpush1.msra.mxu0 0.0
    %2130 = vmatprep.subr.mxu0 0.0
    %2131 = vmatpush1.msra.mxu0 0.0
    %2132 = vmatprep.subr.mxu0 0.0
    %2133 = vmatpush1.msra.mxu0 0.0
    %2134 = vmatprep.subr.mxu0 0.0
    %2135 = vmatpush1.msra.mxu0 0.0
    %2136 = vmatprep.subr.mxu0 0.0
    %2137 = vmatpush1.msra.mxu0 0.0
    %2138 = vmatprep.subr.mxu0 0.0
    %2139 = vmatpush1.msra.mxu0 0.0
    %2140 = vmatprep.subr.mxu0 0.0
    %2141 = vmatpush1.msra.mxu0 0.0
    %2142 = vmatprep.subr.mxu0 0.0
    %2143 = vmatpush1.msra.mxu0 0.0
    %2144 = vmatprep.subr.mxu0 0.0
    %2145 = vmatpush1.msra.mxu0 0.0
    %2146 = vmatprep.subr.mxu0 0.0
    %2147 = vmatpush1.msra.mxu0 0.0
    %2148 = vmatprep.subr.mxu0 0.0
    %2149 = vmatpush1.msra.mxu0 0.0
    %2150 = vmatprep.subr.mxu0 0.0
    %2151 = vmatpush1.msra.mxu0 0.0
    %2152 = vmatprep.subr.mxu0 0.0
    %2153 = vmatpush1.msra.mxu0 0.0
    %2154 = vmatprep.subr.mxu0 0.0
    %2155 = vmatpush1.msra.mxu0 0.0
    %2156 = vmatprep.subr.mxu0 0.0
    %2157 = vmatpush1.msra.mxu0 0.0
    %2158 = vmatprep.subr.mxu0 0.0
    %2159 = vmatpush1.msra.mxu0 0.0
    %2160 = vmatprep.subr.mxu0 0.0
    %2161 = vmatpush1.msra.mxu0 0.0
    %2162 = vmatprep.subr.mxu0 0.0
    %2163 = vmatpush1.msra.mxu0 0.0
    %2164 = vmatprep.mubr.f32.mxu0 0.0
    %v2165 = vand.u32 %v443, 4294901760
    %v2166 = vsub.f32 %v443, %v2165
    %2167 = vmatmul.mubr.f32.gmra.mrb[0].mxu0 %v2166
    %v2168 = vpop.f32.mrb[0].mxu0
    %v2169 = vadd.f32 %v2059, %v2168
    %v2170 = vpop.f32.mrb[0].mxu0
    %v2171 = vadd.f32 %v2061, %v2170
    %2172 = vmatprep.mubr.f32.mxu0 0.0
    %v2173 = vand.u32 %v446, 4294901760
    %v2174 = vsub.f32 %v446, %v2173
    %2175 = vmatmul.mubr.f32.gmra.mrb[0].mxu0 %v2174
    %v2176 = vpop.f32.mrb[0].mxu0
    %v2177 = vadd.f32 %v2066, %v2176
    %v2178 = vpop.f32.mrb[0].mxu0
    %v2179 = vadd.f32 %v2068, %v2178
    %2180 = vmatprep.mubr.f32.mxu0 0.0
    %v2181 = vand.u32 %v449, 4294901760
    %v2182 = vsub.f32 %v449, %v2181
    %2183 = vmatmul.mubr.f32.gmra.mrb[0].mxu0 %v2182
    %v2184 = vpop.f32.mrb[0].mxu0
    %v2185 = vadd.f32 %v2073, %v2184
    %v2186 = vpop.f32.mrb[0].mxu0
    %v2187 = vadd.f32 %v2075, %v2186
    %2188 = vmatprep.mubr.f32.mxu0 0.0
    %v2189 = vand.u32 %v452, 4294901760
    %v2190 = vsub.f32 %v452, %v2189
    %2191 = vmatmul.mubr.f32.gmra.mrb[0].mxu0 %v2190
    %v2192 = vpop.f32.mrb[0].mxu0
    %v2193 = vadd.f32 %v2080, %v2192
    %v2194 = vpop.f32.mrb[0].mxu0
    %v2195 = vadd.f32 %v2082, %v2194
    %2196 = vdwg.mxu0
    %v2197 = vand.u32 %v386, 4294901760
    %2198 = vmatprep.subr.mxu0 %v2197
    %v2199 = vand.u32 %v385, 4294901760
    %2200 = vmatpush1.msra.mxu0 %v2199
    %v2201 = vand.u32 %v394, 4294901760
    %2202 = vmatprep.subr.mxu0 %v2201
    %v2203 = vand.u32 %v393, 4294901760
    %2204 = vmatpush1.msra.mxu0 %v2203
    %v2205 = vand.u32 %v402, 4294901760
    %2206 = vmatprep.subr.mxu0 %v2205
    %v2207 = vand.u32 %v401, 4294901760
    %2208 = vmatpush1.msra.mxu0 %v2207
    %v2209 = vand.u32 %v410, 4294901760
    %2210 = vmatprep.subr.mxu0 %v2209
    %v2211 = vand.u32 %v409, 4294901760
    %2212 = vmatpush1.msra.mxu0 %v2211
    %2213 = vmatprep.subr.mxu0 0.0
    %2214 = vmatpush1.msra.mxu0 0.0
    %2215 = vmatprep.subr.mxu0 0.0
    %2216 = vmatpush1.msra.mxu0 0.0
    %2217 = vmatprep.subr.mxu0 0.0
    %2218 = vmatpush1.msra.mxu0 0.0
    %2219 = vmatprep.subr.mxu0 0.0
    %2220 = vmatpush1.msra.mxu0 0.0
    %2221 = vmatprep.subr.mxu0 0.0
    %2222 = vmatpush1.msra.mxu0 0.0
    %2223 = vmatprep.subr.mxu0 0.0
    %2224 = vmatpush1.msra.mxu0 0.0
    %2225 = vmatprep.subr.mxu0 0.0
    %2226 = vmatpush1.msra.mxu0 0.0
    %2227 = vmatprep.subr.mxu0 0.0
    %2228 = vmatpush1.msra.mxu0 0.0
    %2229 = vmatprep.subr.mxu0 0.0
    %2230 = vmatpush1.msra.mxu0 0.0
    %2231 = vmatprep.subr.mxu0 0.0
    %2232 = vmatpush1.msra.mxu0 0.0
    %2233 = vmatprep.subr.mxu0 0.0
    %2234 = vmatpush1.msra.mxu0 0.0
    %2235 = vmatprep.subr.mxu0 0.0
    %2236 = vmatpush1.msra.mxu0 0.0
    %2237 = vmatprep.subr.mxu0 0.0
    %2238 = vmatpush1.msra.mxu0 0.0
    %2239 = vmatprep.subr.mxu0 0.0
    %2240 = vmatpush1.msra.mxu0 0.0
    %2241 = vmatprep.subr.mxu0 0.0
    %2242 = vmatpush1.msra.mxu0 0.0
    %2243 = vmatprep.subr.mxu0 0.0
    %2244 = vmatpush1.msra.mxu0 0.0
    %2245 = vmatprep.subr.mxu0 0.0
    %2246 = vmatpush1.msra.mxu0 0.0
    %2247 = vmatprep.subr.mxu0 0.0
    %2248 = vmatpush1.msra.mxu0 0.0
    %2249 = vmatprep.subr.mxu0 0.0
    %2250 = vmatpush1.msra.mxu0 0.0
    %2251 = vmatprep.subr.mxu0 0.0
    %2252 = vmatpush1.msra.mxu0 0.0
    %2253 = vmatprep.subr.mxu0 0.0
    %2254 = vmatpush1.msra.mxu0 0.0
    %2255 = vmatprep.subr.mxu0 0.0
    %2256 = vmatpush1.msra.mxu0 0.0
    %2257 = vmatprep.subr.mxu0 0.0
    %2258 = vmatpush1.msra.mxu0 0.0
    %2259 = vmatprep.subr.mxu0 0.0
    %2260 = vmatpush1.msra.mxu0 0.0
    %2261 = vmatprep.subr.mxu0 0.0
    %2262 = vmatpush1.msra.mxu0 0.0
    %2263 = vmatprep.subr.mxu0 0.0
    %2264 = vmatpush1.msra.mxu0 0.0
    %2265 = vmatprep.subr.mxu0 0.0
    %2266 = vmatpush1.msra.mxu0 0.0
    %2267 = vmatprep.subr.mxu0 0.0
    %2268 = vmatpush1.msra.mxu0 0.0
    %2269 = vmatprep.mubr.f32.mxu0 0.0
    %v2270 = vand.u32 %v443, 4294901760
    %v2271 = vsub.f32 %v443, %v2270
    %v2272 = vand.u32 %v2271, 4294901760
    %2273 = vmatmul.mubr.f32.gmra.mrb[0].mxu0 %v2272
    %v2274 = vpop.f32.mrb[0].mxu0
    %v2275 = vadd.f32 %v2169, %v2274
    %v2276 = vpop.f32.mrb[0].mxu0
    %v2277 = vadd.f32 %v2171, %v2276
    %2278 = vmatprep.mubr.f32.mxu0 0.0
    %v2279 = vand.u32 %v446, 4294901760
    %v2280 = vsub.f32 %v446, %v2279
    %v2281 = vand.u32 %v2280, 4294901760
    %2282 = vmatmul.mubr.f32.gmra.mrb[0].mxu0 %v2281
    %v2283 = vpop.f32.mrb[0].mxu0
    %v2284 = vadd.f32 %v2177, %v2283
    %v2285 = vpop.f32.mrb[0].mxu0
    %v2286 = vadd.f32 %v2179, %v2285
    %2287 = vmatprep.mubr.f32.mxu0 0.0
    %v2288 = vand.u32 %v449, 4294901760
    %v2289 = vsub.f32 %v449, %v2288
    %v2290 = vand.u32 %v2289, 4294901760
    %2291 = vmatmul.mubr.f32.gmra.mrb[0].mxu0 %v2290
    %v2292 = vpop.f32.mrb[0].mxu0
    %v2293 = vadd.f32 %v2185, %v2292
    %v2294 = vpop.f32.mrb[0].mxu0
    %v2295 = vadd.f32 %v2187, %v2294
    %2296 = vmatprep.mubr.f32.mxu0 0.0
    %v2297 = vand.u32 %v452, 4294901760
    %v2298 = vsub.f32 %v452, %v2297
    %v2299 = vand.u32 %v2298, 4294901760
    %2300 = vmatmul.mubr.f32.gmra.mrb[0].mxu0 %v2299
    %v2301 = vpop.f32.mrb[0].mxu0
    %v2302 = vadd.f32 %v2193, %v2301
    %v2303 = vpop.f32.mrb[0].mxu0
    %v2304 = vadd.f32 %v2195, %v2303
    %2305 = vdwg.mxu0
    %v2306 = vand.u32 %v386, 4294901760
    %v2307 = vsub.f32 %v386, %v2306
    %v2308 = vand.u32 %v2307, 4294901760
    %2309 = vmatprep.subr.mxu0 %v2308
    %v2310 = vand.u32 %v385, 4294901760
    %v2311 = vsub.f32 %v385, %v2310
    %v2312 = vand.u32 %v2311, 4294901760
    %2313 = vmatpush1.msra.mxu0 %v2312
    %v2314 = vand.u32 %v394, 4294901760
    %v2315 = vsub.f32 %v394, %v2314
    %v2316 = vand.u32 %v2315, 4294901760
    %2317 = vmatprep.subr.mxu0 %v2316
    %v2318 = vand.u32 %v393, 4294901760
    %v2319 = vsub.f32 %v393, %v2318
    %v2320 = vand.u32 %v2319, 4294901760
    %2321 = vmatpush1.msra.mxu0 %v2320
    %v2322 = vand.u32 %v402, 4294901760
    %v2323 = vsub.f32 %v402, %v2322
    %v2324 = vand.u32 %v2323, 4294901760
    %2325 = vmatprep.subr.mxu0 %v2324
    %v2326 = vand.u32 %v401, 4294901760
    %v2327 = vsub.f32 %v401, %v2326
    %v2328 = vand.u32 %v2327, 4294901760
    %2329 = vmatpush1.msra.mxu0 %v2328
    %v2330 = vand.u32 %v410, 4294901760
    %v2331 = vsub.f32 %v410, %v2330
    %v2332 = vand.u32 %v2331, 4294901760
    %2333 = vmatprep.subr.mxu0 %v2332
    %v2334 = vand.u32 %v409, 4294901760
    %v2335 = vsub.f32 %v409, %v2334
    %v2336 = vand.u32 %v2335, 4294901760
    %2337 = vmatpush1.msra.mxu0 %v2336
    %2338 = vmatprep.subr.mxu0 0.0
    %2339 = vmatpush1.msra.mxu0 0.0
    %2340 = vmatprep.subr.mxu0 0.0
    %2341 = vmatpush1.msra.mxu0 0.0
    %2342 = vmatprep.subr.mxu0 0.0
    %2343 = vmatpush1.msra.mxu0 0.0
    %2344 = vmatprep.subr.mxu0 0.0
    %2345 = vmatpush1.msra.mxu0 0.0
    %2346 = vmatprep.subr.mxu0 0.0
    %2347 = vmatpush1.msra.mxu0 0.0
    %2348 = vmatprep.subr.mxu0 0.0
    %2349 = vmatpush1.msra.mxu0 0.0
    %2350 = vmatprep.subr.mxu0 0.0
    %2351 = vmatpush1.msra.mxu0 0.0
    %2352 = vmatprep.subr.mxu0 0.0
    %2353 = vmatpush1.msra.mxu0 0.0
    %2354 = vmatprep.subr.mxu0 0.0
    %2355 = vmatpush1.msra.mxu0 0.0
    %2356 = vmatprep.subr.mxu0 0.0
    %2357 = vmatpush1.msra.mxu0 0.0
    %2358 = vmatprep.subr.mxu0 0.0
    %2359 = vmatpush1.msra.mxu0 0.0
    %2360 = vmatprep.subr.mxu0 0.0
    %2361 = vmatpush1.msra.mxu0 0.0
    %2362 = vmatprep.subr.mxu0 0.0
    %2363 = vmatpush1.msra.mxu0 0.0
    %2364 = vmatprep.subr.mxu0 0.0
    %2365 = vmatpush1.msra.mxu0 0.0
    %2366 = vmatprep.subr.mxu0 0.0
    %2367 = vmatpush1.msra.mxu0 0.0
    %2368 = vmatprep.subr.mxu0 0.0
    %2369 = vmatpush1.msra.mxu0 0.0
    %2370 = vmatprep.subr.mxu0 0.0
    %2371 = vmatpush1.msra.mxu0 0.0
    %2372 = vmatprep.subr.mxu0 0.0
    %2373 = vmatpush1.msra.mxu0 0.0
    %2374 = vmatprep.subr.mxu0 0.0
    %2375 = vmatpush1.msra.mxu0 0.0
    %2376 = vmatprep.subr.mxu0 0.0
    %2377 = vmatpush1.msra.mxu0 0.0
    %2378 = vmatprep.subr.mxu0 0.0
    %2379 = vmatpush1.msra.mxu0 0.0
    %2380 = vmatprep.subr.mxu0 0.0
    %2381 = vmatpush1.msra.mxu0 0.0
    %2382 = vmatprep.subr.mxu0 0.0
    %2383 = vmatpush1.msra.mxu0 0.0
    %2384 = vmatprep.subr.mxu0 0.0
    %2385 = vmatpush1.msra.mxu0 0.0
    %2386 = vmatprep.subr.mxu0 0.0
    %2387 = vmatpush1.msra.mxu0 0.0
    %2388 = vmatprep.subr.mxu0 0.0
    %2389 = vmatpush1.msra.mxu0 0.0
    %2390 = vmatprep.subr.mxu0 0.0
    %2391 = vmatpush1.msra.mxu0 0.0
    %2392 = vmatprep.subr.mxu0 0.0
    %2393 = vmatpush1.msra.mxu0 0.0
    %2394 = vmatprep.mubr.f32.mxu0 0.0
    %v2395 = vand.u32 %v443, 4294901760
    %2396 = vmatmul.mubr.f32.gmra.mrb[0].mxu0 %v2395
    %v2397 = vpop.f32.mrb[0].mxu0
    %v2398 = vadd.f32 %v2275, %v2397
    %v2399 = vpop.f32.mrb[0].mxu0
    %v2400 = vadd.f32 %v2277, %v2399
    %2401 = vmatprep.mubr.f32.mxu0 0.0
    %v2402 = vand.u32 %v446, 4294901760
    %2403 = vmatmul.mubr.f32.gmra.mrb[0].mxu0 %v2402
    %v2404 = vpop.f32.mrb[0].mxu0
    %v2405 = vadd.f32 %v2284, %v2404
    %v2406 = vpop.f32.mrb[0].mxu0
    %v2407 = vadd.f32 %v2286, %v2406
    %2408 = vmatprep.mubr.f32.mxu0 0.0
    %v2409 = vand.u32 %v449, 4294901760
    %2410 = vmatmul.mubr.f32.gmra.mrb[0].mxu0 %v2409
    %v2411 = vpop.f32.mrb[0].mxu0
    %v2412 = vadd.f32 %v2293, %v2411
    %v2413 = vpop.f32.mrb[0].mxu0
    %v2414 = vadd.f32 %v2295, %v2413
    %2415 = vmatprep.mubr.f32.mxu0 0.0
    %v2416 = vand.u32 %v452, 4294901760
    %2417 = vmatmul.mubr.f32.gmra.mrb[0].mxu0 %v2416
    %v2418 = vpop.f32.mrb[0].mxu0
    %v2419 = vadd.f32 %v2302, %v2418
    %v2420 = vpop.f32.mrb[0].mxu0
    %v2421 = vadd.f32 %v2304, %v2420
    %2422 = vdwg.mxu0
    %v2423 = vand.u32 %v386, 4294901760
    %2424 = vmatprep.subr.mxu0 %v2423
    %v2425 = vand.u32 %v385, 4294901760
    %2426 = vmatpush1.msra.mxu0 %v2425
    %v2427 = vand.u32 %v394, 4294901760
    %2428 = vmatprep.subr.mxu0 %v2427
    %v2429 = vand.u32 %v393, 4294901760
    %2430 = vmatpush1.msra.mxu0 %v2429
    %v2431 = vand.u32 %v402, 4294901760
    %2432 = vmatprep.subr.mxu0 %v2431
    %v2433 = vand.u32 %v401, 4294901760
    %2434 = vmatpush1.msra.mxu0 %v2433
    %v2435 = vand.u32 %v410, 4294901760
    %2436 = vmatprep.subr.mxu0 %v2435
    %v2437 = vand.u32 %v409, 4294901760
    %2438 = vmatpush1.msra.mxu0 %v2437
    %2439 = vmatprep.subr.mxu0 0.0
    %2440 = vmatpush1.msra.mxu0 0.0
    %2441 = vmatprep.subr.mxu0 0.0
    %2442 = vmatpush1.msra.mxu0 0.0
    %2443 = vmatprep.subr.mxu0 0.0
    %2444 = vmatpush1.msra.mxu0 0.0
    %2445 = vmatprep.subr.mxu0 0.0
    %2446 = vmatpush1.msra.mxu0 0.0
    %2447 = vmatprep.subr.mxu0 0.0
    %2448 = vmatpush1.msra.mxu0 0.0
    %2449 = vmatprep.subr.mxu0 0.0
    %2450 = vmatpush1.msra.mxu0 0.0
    %2451 = vmatprep.subr.mxu0 0.0
    %2452 = vmatpush1.msra.mxu0 0.0
    %2453 = vmatprep.subr.mxu0 0.0
    %2454 = vmatpush1.msra.mxu0 0.0
    %2455 = vmatprep.subr.mxu0 0.0
    %2456 = vmatpush1.msra.mxu0 0.0
    %2457 = vmatprep.subr.mxu0 0.0
    %2458 = vmatpush1.msra.mxu0 0.0
    %2459 = vmatprep.subr.mxu0 0.0
    %2460 = vmatpush1.msra.mxu0 0.0
    %2461 = vmatprep.subr.mxu0 0.0
    %2462 = vmatpush1.msra.mxu0 0.0
    %2463 = vmatprep.subr.mxu0 0.0
    %2464 = vmatpush1.msra.mxu0 0.0
    %2465 = vmatprep.subr.mxu0 0.0
    %2466 = vmatpush1.msra.mxu0 0.0
    %2467 = vmatprep.subr.mxu0 0.0
    %2468 = vmatpush1.msra.mxu0 0.0
    %2469 = vmatprep.subr.mxu0 0.0
    %2470 = vmatpush1.msra.mxu0 0.0
    %2471 = vmatprep.subr.mxu0 0.0
    %2472 = vmatpush1.msra.mxu0 0.0
    %2473 = vmatprep.subr.mxu0 0.0
    %2474 = vmatpush1.msra.mxu0 0.0
    %2475 = vmatprep.subr.mxu0 0.0
    %2476 = vmatpush1.msra.mxu0 0.0
    %2477 = vmatprep.subr.mxu0 0.0
    %2478 = vmatpush1.msra.mxu0 0.0
    %2479 = vmatprep.subr.mxu0 0.0
    %2480 = vmatpush1.msra.mxu0 0.0
    %2481 = vmatprep.subr.mxu0 0.0
    %2482 = vmatpush1.msra.mxu0 0.0
    %2483 = vmatprep.subr.mxu0 0.0
    %2484 = vmatpush1.msra.mxu0 0.0
    %2485 = vmatprep.subr.mxu0 0.0
    %2486 = vmatpush1.msra.mxu0 0.0
    %2487 = vmatprep.subr.mxu0 0.0
    %2488 = vmatpush1.msra.mxu0 0.0
    %2489 = vmatprep.subr.mxu0 0.0
    %2490 = vmatpush1.msra.mxu0 0.0
    %2491 = vmatprep.subr.mxu0 0.0
    %2492 = vmatpush1.msra.mxu0 0.0
    %2493 = vmatprep.subr.mxu0 0.0
    %2494 = vmatpush1.msra.mxu0 0.0
    %2495 = vmatprep.mubr.f32.mxu0 0.0
    %v2496 = vand.u32 %v443, 4294901760
    %2497 = vmatmul.mubr.f32.gmra.mrb[0].mxu0 %v2496
    %v2498 = vpop.f32.mrb[0].mxu0
    %v2499 = vadd.f32 %v2398, %v2498
    %v2500 = vpop.f32.mrb[0].mxu0
    %v2501 = vadd.f32 %v2400, %v2500
    %2502 = vmatprep.mubr.f32.mxu0 0.0
    %v2503 = vand.u32 %v446, 4294901760
    %2504 = vmatmul.mubr.f32.gmra.mrb[0].mxu0 %v2503
    %v2505 = vpop.f32.mrb[0].mxu0
    %v2506 = vadd.f32 %v2405, %v2505
    %v2507 = vpop.f32.mrb[0].mxu0
    %v2508 = vadd.f32 %v2407, %v2507
    %2509 = vmatprep.mubr.f32.mxu0 0.0
    %v2510 = vand.u32 %v449, 4294901760
    %2511 = vmatmul.mubr.f32.gmra.mrb[0].mxu0 %v2510
    %v2512 = vpop.f32.mrb[0].mxu0
    %v2513 = vadd.f32 %v2412, %v2512
    %v2514 = vpop.f32.mrb[0].mxu0
    %v2515 = vadd.f32 %v2414, %v2514
    %2516 = vmatprep.mubr.f32.mxu0 0.0
    %v2517 = vand.u32 %v452, 4294901760
    %2518 = vmatmul.mubr.f32.gmra.mrb[0].mxu0 %v2517
    %v2519 = vpop.f32.mrb[0].mxu0
    %v2520 = vadd.f32 %v2419, %v2519
    %v2521 = vpop.f32.mrb[0].mxu0
    %v2522 = vadd.f32 %v2421, %v2521
    %2523 = vdwg.mxu0
    %v2524 = vand.u32 %v388, 4294901760
    %2525 = vmatprep.subr.mxu0 %v2524
    %v2526 = vand.u32 %v387, 4294901760
    %2527 = vmatpush1.msra.mxu0 %v2526
    %v2528 = vand.u32 %v396, 4294901760
    %2529 = vmatprep.subr.mxu0 %v2528
    %v2530 = vand.u32 %v395, 4294901760
    %2531 = vmatpush1.msra.mxu0 %v2530
    %v2532 = vand.u32 %v404, 4294901760
    %2533 = vmatprep.subr.mxu0 %v2532
    %v2534 = vand.u32 %v403, 4294901760
    %2535 = vmatpush1.msra.mxu0 %v2534
    %v2536 = vand.u32 %v412, 4294901760
    %2537 = vmatprep.subr.mxu0 %v2536
    %v2538 = vand.u32 %v411, 4294901760
    %2539 = vmatpush1.msra.mxu0 %v2538
    %2540 = vmatprep.subr.mxu0 0.0
    %2541 = vmatpush1.msra.mxu0 0.0
    %2542 = vmatprep.subr.mxu0 0.0
    %2543 = vmatpush1.msra.mxu0 0.0
    %2544 = vmatprep.subr.mxu0 0.0
    %2545 = vmatpush1.msra.mxu0 0.0
    %2546 = vmatprep.subr.mxu0 0.0
    %2547 = vmatpush1.msra.mxu0 0.0
    %2548 = vmatprep.subr.mxu0 0.0
    %2549 = vmatpush1.msra.mxu0 0.0
    %2550 = vmatprep.subr.mxu0 0.0
    %2551 = vmatpush1.msra.mxu0 0.0
    %2552 = vmatprep.subr.mxu0 0.0
    %2553 = vmatpush1.msra.mxu0 0.0
    %2554 = vmatprep.subr.mxu0 0.0
    %2555 = vmatpush1.msra.mxu0 0.0
    %2556 = vmatprep.subr.mxu0 0.0
    %2557 = vmatpush1.msra.mxu0 0.0
    %2558 = vmatprep.subr.mxu0 0.0
    %2559 = vmatpush1.msra.mxu0 0.0
    %2560 = vmatprep.subr.mxu0 0.0
    %2561 = vmatpush1.msra.mxu0 0.0
    %2562 = vmatprep.subr.mxu0 0.0
    %2563 = vmatpush1.msra.mxu0 0.0
    %2564 = vmatprep.subr.mxu0 0.0
    %2565 = vmatpush1.msra.mxu0 0.0
    %2566 = vmatprep.subr.mxu0 0.0
    %2567 = vmatpush1.msra.mxu0 0.0
    %2568 = vmatprep.subr.mxu0 0.0
    %2569 = vmatpush1.msra.mxu0 0.0
    %2570 = vmatprep.subr.mxu0 0.0
    %2571 = vmatpush1.msra.mxu0 0.0
    %2572 = vmatprep.subr.mxu0 0.0
    %2573 = vmatpush1.msra.mxu0 0.0
    %2574 = vmatprep.subr.mxu0 0.0
    %2575 = vmatpush1.msra.mxu0 0.0
    %2576 = vmatprep.subr.mxu0 0.0
    %2577 = vmatpush1.msra.mxu0 0.0
    %2578 = vmatprep.subr.mxu0 0.0
    %2579 = vmatpush1.msra.mxu0 0.0
    %2580 = vmatprep.subr.mxu0 0.0
    %2581 = vmatpush1.msra.mxu0 0.0
    %2582 = vmatprep.subr.mxu0 0.0
    %2583 = vmatpush1.msra.mxu0 0.0
    %2584 = vmatprep.subr.mxu0 0.0
    %2585 = vmatpush1.msra.mxu0 0.0
    %2586 = vmatprep.subr.mxu0 0.0
    %2587 = vmatpush1.msra.mxu0 0.0
    %2588 = vmatprep.subr.mxu0 0.0
    %2589 = vmatpush1.msra.mxu0 0.0
    %2590 = vmatprep.subr.mxu0 0.0
    %2591 = vmatpush1.msra.mxu0 0.0
    %2592 = vmatprep.subr.mxu0 0.0
    %2593 = vmatpush1.msra.mxu0 0.0
    %2594 = vmatprep.subr.mxu0 0.0
    %2595 = vmatpush1.msra.mxu0 0.0
    %2596 = vmatprep.mubr.f32.mxu0 0.0
    %v2597 = vand.u32 %v443, 4294901760
    %v2598 = vsub.f32 %v443, %v2597
    %v2599 = vand.u32 %v2598, 4294901760
    %v2600 = vsub.f32 %v2598, %v2599
    %v2601 = vand.u32 %v2600, 4294901760
    %2602 = vmatmul.mubr.f32.gmra.mrb[0].mxu0 %v2601
    %v2603 = vpop.f32.mrb[0].mxu0
    %v2604 = vadd.f32 %v424, %v2603
    %v2605 = vpop.f32.mrb[0].mxu0
    %v2606 = vadd.f32 %v424, %v2605
    %2607 = vmatprep.mubr.f32.mxu0 0.0
    %v2608 = vand.u32 %v446, 4294901760
    %v2609 = vsub.f32 %v446, %v2608
    %v2610 = vand.u32 %v2609, 4294901760
    %v2611 = vsub.f32 %v2609, %v2610
    %v2612 = vand.u32 %v2611, 4294901760
    %2613 = vmatmul.mubr.f32.gmra.mrb[0].mxu0 %v2612
    %v2614 = vpop.f32.mrb[0].mxu0
    %v2615 = vadd.f32 %v429, %v2614
    %v2616 = vpop.f32.mrb[0].mxu0
    %v2617 = vadd.f32 %v429, %v2616
    %2618 = vmatprep.mubr.f32.mxu0 0.0
    %v2619 = vand.u32 %v449, 4294901760
    %v2620 = vsub.f32 %v449, %v2619
    %v2621 = vand.u32 %v2620, 4294901760
    %v2622 = vsub.f32 %v2620, %v2621
    %v2623 = vand.u32 %v2622, 4294901760
    %2624 = vmatmul.mubr.f32.gmra.mrb[0].mxu0 %v2623
    %v2625 = vpop.f32.mrb[0].mxu0
    %v2626 = vadd.f32 %v434, %v2625
    %v2627 = vpop.f32.mrb[0].mxu0
    %v2628 = vadd.f32 %v434, %v2627
    %2629 = vmatprep.mubr.f32.mxu0 0.0
    %v2630 = vand.u32 %v452, 4294901760
    %v2631 = vsub.f32 %v452, %v2630
    %v2632 = vand.u32 %v2631, 4294901760
    %v2633 = vsub.f32 %v2631, %v2632
    %v2634 = vand.u32 %v2633, 4294901760
    %2635 = vmatmul.mubr.f32.gmra.mrb[0].mxu0 %v2634
    %v2636 = vpop.f32.mrb[0].mxu0
    %v2637 = vadd.f32 %v439, %v2636
    %v2638 = vpop.f32.mrb[0].mxu0
    %v2639 = vadd.f32 %v439, %v2638
    %2640 = vdwg.mxu0
    %v2641 = vand.u32 %v388, 4294901760
    %v2642 = vsub.f32 %v388, %v2641
    %v2643 = vand.u32 %v2642, 4294901760
    %v2644 = vsub.f32 %v2642, %v2643
    %v2645 = vand.u32 %v2644, 4294901760
    %2646 = vmatprep.subr.mxu0 %v2645
    %v2647 = vand.u32 %v387, 4294901760
    %v2648 = vsub.f32 %v387, %v2647
    %v2649 = vand.u32 %v2648, 4294901760
    %v2650 = vsub.f32 %v2648, %v2649
    %v2651 = vand.u32 %v2650, 4294901760
    %2652 = vmatpush1.msra.mxu0 %v2651
    %v2653 = vand.u32 %v396, 4294901760
    %v2654 = vsub.f32 %v396, %v2653
    %v2655 = vand.u32 %v2654, 4294901760
    %v2656 = vsub.f32 %v2654, %v2655
    %v2657 = vand.u32 %v2656, 4294901760
    %2658 = vmatprep.subr.mxu0 %v2657
    %v2659 = vand.u32 %v395, 4294901760
    %v2660 = vsub.f32 %v395, %v2659
    %v2661 = vand.u32 %v2660, 4294901760
    %v2662 = vsub.f32 %v2660, %v2661
    %v2663 = vand.u32 %v2662, 4294901760
    %2664 = vmatpush1.msra.mxu0 %v2663
    %v2665 = vand.u32 %v404, 4294901760
    %v2666 = vsub.f32 %v404, %v2665
    %v2667 = vand.u32 %v2666, 4294901760
    %v2668 = vsub.f32 %v2666, %v2667
    %v2669 = vand.u32 %v2668, 4294901760
    %2670 = vmatprep.subr.mxu0 %v2669
    %v2671 = vand.u32 %v403, 4294901760
    %v2672 = vsub.f32 %v403, %v2671
    %v2673 = vand.u32 %v2672, 4294901760
    %v2674 = vsub.f32 %v2672, %v2673
    %v2675 = vand.u32 %v2674, 4294901760
    %2676 = vmatpush1.msra.mxu0 %v2675
    %v2677 = vand.u32 %v412, 4294901760
    %v2678 = vsub.f32 %v412, %v2677
    %v2679 = vand.u32 %v2678, 4294901760
    %v2680 = vsub.f32 %v2678, %v2679
    %v2681 = vand.u32 %v2680, 4294901760
    %2682 = vmatprep.subr.mxu0 %v2681
    %v2683 = vand.u32 %v411, 4294901760
    %v2684 = vsub.f32 %v411, %v2683
    %v2685 = vand.u32 %v2684, 4294901760
    %v2686 = vsub.f32 %v2684, %v2685
    %v2687 = vand.u32 %v2686, 4294901760
    %2688 = vmatpush1.msra.mxu0 %v2687
    %2689 = vmatprep.subr.mxu0 0.0
    %2690 = vmatpush1.msra.mxu0 0.0
    %2691 = vmatprep.subr.mxu0 0.0
    %2692 = vmatpush1.msra.mxu0 0.0
    %2693 = vmatprep.subr.mxu0 0.0
    %2694 = vmatpush1.msra.mxu0 0.0
    %2695 = vmatprep.subr.mxu0 0.0
    %2696 = vmatpush1.msra.mxu0 0.0
    %2697 = vmatprep.subr.mxu0 0.0
    %2698 = vmatpush1.msra.mxu0 0.0
    %2699 = vmatprep.subr.mxu0 0.0
    %2700 = vmatpush1.msra.mxu0 0.0
    %2701 = vmatprep.subr.mxu0 0.0
    %2702 = vmatpush1.msra.mxu0 0.0
    %2703 = vmatprep.subr.mxu0 0.0
    %2704 = vmatpush1.msra.mxu0 0.0
    %2705 = vmatprep.subr.mxu0 0.0
    %2706 = vmatpush1.msra.mxu0 0.0
    %2707 = vmatprep.subr.mxu0 0.0
    %2708 = vmatpush1.msra.mxu0 0.0
    %2709 = vmatprep.subr.mxu0 0.0
    %2710 = vmatpush1.msra.mxu0 0.0
    %2711 = vmatprep.subr.mxu0 0.0
    %2712 = vmatpush1.msra.mxu0 0.0
    %2713 = vmatprep.subr.mxu0 0.0
    %2714 = vmatpush1.msra.mxu0 0.0
    %2715 = vmatprep.subr.mxu0 0.0
    %2716 = vmatpush1.msra.mxu0 0.0
    %2717 = vmatprep.subr.mxu0 0.0
    %2718 = vmatpush1.msra.mxu0 0.0
    %2719 = vmatprep.subr.mxu0 0.0
    %2720 = vmatpush1.msra.mxu0 0.0
    %2721 = vmatprep.subr.mxu0 0.0
    %2722 = vmatpush1.msra.mxu0 0.0
    %2723 = vmatprep.subr.mxu0 0.0
    %2724 = vmatpush1.msra.mxu0 0.0
    %2725 = vmatprep.subr.mxu0 0.0
    %2726 = vmatpush1.msra.mxu0 0.0
    %2727 = vmatprep.subr.mxu0 0.0
    %2728 = vmatpush1.msra.mxu0 0.0
    %2729 = vmatprep.subr.mxu0 0.0
    %2730 = vmatpush1.msra.mxu0 0.0
    %2731 = vmatprep.subr.mxu0 0.0
    %2732 = vmatpush1.msra.mxu0 0.0
    %2733 = vmatprep.subr.mxu0 0.0
    %2734 = vmatpush1.msra.mxu0 0.0
    %2735 = vmatprep.subr.mxu0 0.0
    %2736 = vmatpush1.msra.mxu0 0.0
    %2737 = vmatprep.subr.mxu0 0.0
    %2738 = vmatpush1.msra.mxu0 0.0
    %2739 = vmatprep.subr.mxu0 0.0
    %2740 = vmatpush1.msra.mxu0 0.0
    %2741 = vmatprep.subr.mxu0 0.0
    %2742 = vmatpush1.msra.mxu0 0.0
    %2743 = vmatprep.subr.mxu0 0.0
    %2744 = vmatpush1.msra.mxu0 0.0
    %2745 = vmatprep.mubr.f32.mxu0 0.0
    %v2746 = vand.u32 %v443, 4294901760
    %2747 = vmatmul.mubr.f32.gmra.mrb[0].mxu0 %v2746
    %v2748 = vpop.f32.mrb[0].mxu0
    %v2749 = vadd.f32 %v2604, %v2748
    %v2750 = vpop.f32.mrb[0].mxu0
    %v2751 = vadd.f32 %v2606, %v2750
    %2752 = vmatprep.mubr.f32.mxu0 0.0
    %v2753 = vand.u32 %v446, 4294901760
    %2754 = vmatmul.mubr.f32.gmra.mrb[0].mxu0 %v2753
    %v2755 = vpop.f32.mrb[0].mxu0
    %v2756 = vadd.f32 %v2615, %v2755
    %v2757 = vpop.f32.mrb[0].mxu0
    %v2758 = vadd.f32 %v2617, %v2757
    %2759 = vmatprep.mubr.f32.mxu0 0.0
    %v2760 = vand.u32 %v449, 4294901760
    %2761 = vmatmul.mubr.f32.gmra.mrb[0].mxu0 %v2760
    %v2762 = vpop.f32.mrb[0].mxu0
    %v2763 = vadd.f32 %v2626, %v2762
    %v2764 = vpop.f32.mrb[0].mxu0
    %v2765 = vadd.f32 %v2628, %v2764
    %2766 = vmatprep.mubr.f32.mxu0 0.0
    %v2767 = vand.u32 %v452, 4294901760
    %2768 = vmatmul.mubr.f32.gmra.mrb[0].mxu0 %v2767
    %v2769 = vpop.f32.mrb[0].mxu0
    %v2770 = vadd.f32 %v2637, %v2769
    %v2771 = vpop.f32.mrb[0].mxu0
    %v2772 = vadd.f32 %v2639, %v2771
    %2773 = vdwg.mxu0
    %v2774 = vand.u32 %v388, 4294901760
    %v2775 = vsub.f32 %v388, %v2774
    %2776 = vmatprep.subr.mxu0 %v2775
    %v2777 = vand.u32 %v387, 4294901760
    %v2778 = vsub.f32 %v387, %v2777
    %2779 = vmatpush1.msra.mxu0 %v2778
    %v2780 = vand.u32 %v396, 4294901760
    %v2781 = vsub.f32 %v396, %v2780
    %2782 = vmatprep.subr.mxu0 %v2781
    %v2783 = vand.u32 %v395, 4294901760
    %v2784 = vsub.f32 %v395, %v2783
    %2785 = vmatpush1.msra.mxu0 %v2784
    %v2786 = vand.u32 %v404, 4294901760
    %v2787 = vsub.f32 %v404, %v2786
    %2788 = vmatprep.subr.mxu0 %v2787
    %v2789 = vand.u32 %v403, 4294901760
    %v2790 = vsub.f32 %v403, %v2789
    %2791 = vmatpush1.msra.mxu0 %v2790
    %v2792 = vand.u32 %v412, 4294901760
    %v2793 = vsub.f32 %v412, %v2792
    %2794 = vmatprep.subr.mxu0 %v2793
    %v2795 = vand.u32 %v411, 4294901760
    %v2796 = vsub.f32 %v411, %v2795
    %2797 = vmatpush1.msra.mxu0 %v2796
    %2798 = vmatprep.subr.mxu0 0.0
    %2799 = vmatpush1.msra.mxu0 0.0
    %2800 = vmatprep.subr.mxu0 0.0
    %2801 = vmatpush1.msra.mxu0 0.0
    %2802 = vmatprep.subr.mxu0 0.0
    %2803 = vmatpush1.msra.mxu0 0.0
    %2804 = vmatprep.subr.mxu0 0.0
    %2805 = vmatpush1.msra.mxu0 0.0
    %2806 = vmatprep.subr.mxu0 0.0
    %2807 = vmatpush1.msra.mxu0 0.0
    %2808 = vmatprep.subr.mxu0 0.0
    %2809 = vmatpush1.msra.mxu0 0.0
    %2810 = vmatprep.subr.mxu0 0.0
    %2811 = vmatpush1.msra.mxu0 0.0
    %2812 = vmatprep.subr.mxu0 0.0
    %2813 = vmatpush1.msra.mxu0 0.0
    %2814 = vmatprep.subr.mxu0 0.0
    %2815 = vmatpush1.msra.mxu0 0.0
    %2816 = vmatprep.subr.mxu0 0.0
    %2817 = vmatpush1.msra.mxu0 0.0
    %2818 = vmatprep.subr.mxu0 0.0
    %2819 = vmatpush1.msra.mxu0 0.0
    %2820 = vmatprep.subr.mxu0 0.0
    %2821 = vmatpush1.msra.mxu0 0.0
    %2822 = vmatprep.subr.mxu0 0.0
    %2823 = vmatpush1.msra.mxu0 0.0
    %2824 = vmatprep.subr.mxu0 0.0
    %2825 = vmatpush1.msra.mxu0 0.0
    %2826 = vmatprep.subr.mxu0 0.0
    %2827 = vmatpush1.msra.mxu0 0.0
    %2828 = vmatprep.subr.mxu0 0.0
    %2829 = vmatpush1.msra.mxu0 0.0
    %2830 = vmatprep.subr.mxu0 0.0
    %2831 = vmatpush1.msra.mxu0 0.0
    %2832 = vmatprep.subr.mxu0 0.0
    %2833 = vmatpush1.msra.mxu0 0.0
    %2834 = vmatprep.subr.mxu0 0.0
    %2835 = vmatpush1.msra.mxu0 0.0
    %2836 = vmatprep.subr.mxu0 0.0
    %2837 = vmatpush1.msra.mxu0 0.0
    %2838 = vmatprep.subr.mxu0 0.0
    %2839 = vmatpush1.msra.mxu0 0.0
    %2840 = vmatprep.subr.mxu0 0.0
    %2841 = vmatpush1.msra.mxu0 0.0
    %2842 = vmatprep.subr.mxu0 0.0
    %2843 = vmatpush1.msra.mxu0 0.0
    %2844 = vmatprep.subr.mxu0 0.0
    %2845 = vmatpush1.msra.mxu0 0.0
    %2846 = vmatprep.subr.mxu0 0.0
    %2847 = vmatpush1.msra.mxu0 0.0
    %2848 = vmatprep.subr.mxu0 0.0
    %2849 = vmatpush1.msra.mxu0 0.0
    %2850 = vmatprep.subr.mxu0 0.0
    %2851 = vmatpush1.msra.mxu0 0.0
    %2852 = vmatprep.subr.mxu0 0.0
    %2853 = vmatpush1.msra.mxu0 0.0
    %2854 = vmatprep.mubr.f32.mxu0 0.0
    %v2855 = vand.u32 %v443, 4294901760
    %v2856 = vsub.f32 %v443, %v2855
    %2857 = vmatmul.mubr.f32.gmra.mrb[0].mxu0 %v2856
    %v2858 = vpop.f32.mrb[0].mxu0
    %v2859 = vadd.f32 %v2749, %v2858
    %v2860 = vpop.f32.mrb[0].mxu0
    %v2861 = vadd.f32 %v2751, %v2860
    %2862 = vmatprep.mubr.f32.mxu0 0.0
    %v2863 = vand.u32 %v446, 4294901760
    %v2864 = vsub.f32 %v446, %v2863
    %2865 = vmatmul.mubr.f32.gmra.mrb[0].mxu0 %v2864
    %v2866 = vpop.f32.mrb[0].mxu0
    %v2867 = vadd.f32 %v2756, %v2866
    %v2868 = vpop.f32.mrb[0].mxu0
    %v2869 = vadd.f32 %v2758, %v2868
    %2870 = vmatprep.mubr.f32.mxu0 0.0
    %v2871 = vand.u32 %v449, 4294901760
    %v2872 = vsub.f32 %v449, %v2871
    %2873 = vmatmul.mubr.f32.gmra.mrb[0].mxu0 %v2872
    %v2874 = vpop.f32.mrb[0].mxu0
    %v2875 = vadd.f32 %v2763, %v2874
    %v2876 = vpop.f32.mrb[0].mxu0
    %v2877 = vadd.f32 %v2765, %v2876
    %2878 = vmatprep.mubr.f32.mxu0 0.0
    %v2879 = vand.u32 %v452, 4294901760
    %v2880 = vsub.f32 %v452, %v2879
    %2881 = vmatmul.mubr.f32.gmra.mrb[0].mxu0 %v2880
    %v2882 = vpop.f32.mrb[0].mxu0
    %v2883 = vadd.f32 %v2770, %v2882
    %v2884 = vpop.f32.mrb[0].mxu0
    %v2885 = vadd.f32 %v2772, %v2884
    %2886 = vdwg.mxu0
    %v2887 = vand.u32 %v388, 4294901760
    %2888 = vmatprep.subr.mxu0 %v2887
    %v2889 = vand.u32 %v387, 4294901760
    %2890 = vmatpush1.msra.mxu0 %v2889
    %v2891 = vand.u32 %v396, 4294901760
    %2892 = vmatprep.subr.mxu0 %v2891
    %v2893 = vand.u32 %v395, 4294901760
    %2894 = vmatpush1.msra.mxu0 %v2893
    %v2895 = vand.u32 %v404, 4294901760
    %2896 = vmatprep.subr.mxu0 %v2895
    %v2897 = vand.u32 %v403, 4294901760
    %2898 = vmatpush1.msra.mxu0 %v2897
    %v2899 = vand.u32 %v412, 4294901760
    %2900 = vmatprep.subr.mxu0 %v2899
    %v2901 = vand.u32 %v411, 4294901760
    %2902 = vmatpush1.msra.mxu0 %v2901
    %2903 = vmatprep.subr.mxu0 0.0
    %2904 = vmatpush1.msra.mxu0 0.0
    %2905 = vmatprep.subr.mxu0 0.0
    %2906 = vmatpush1.msra.mxu0 0.0
    %2907 = vmatprep.subr.mxu0 0.0
    %2908 = vmatpush1.msra.mxu0 0.0
    %2909 = vmatprep.subr.mxu0 0.0
    %2910 = vmatpush1.msra.mxu0 0.0
    %2911 = vmatprep.subr.mxu0 0.0
    %2912 = vmatpush1.msra.mxu0 0.0
    %2913 = vmatprep.subr.mxu0 0.0
    %2914 = vmatpush1.msra.mxu0 0.0
    %2915 = vmatprep.subr.mxu0 0.0
    %2916 = vmatpush1.msra.mxu0 0.0
    %2917 = vmatprep.subr.mxu0 0.0
    %2918 = vmatpush1.msra.mxu0 0.0
    %2919 = vmatprep.subr.mxu0 0.0
    %2920 = vmatpush1.msra.mxu0 0.0
    %2921 = vmatprep.subr.mxu0 0.0
    %2922 = vmatpush1.msra.mxu0 0.0
    %2923 = vmatprep.subr.mxu0 0.0
    %2924 = vmatpush1.msra.mxu0 0.0
    %2925 = vmatprep.subr.mxu0 0.0
    %2926 = vmatpush1.msra.mxu0 0.0
    %2927 = vmatprep.subr.mxu0 0.0
    %2928 = vmatpush1.msra.mxu0 0.0
    %2929 = vmatprep.subr.mxu0 0.0
    %2930 = vmatpush1.msra.mxu0 0.0
    %2931 = vmatprep.subr.mxu0 0.0
    %2932 = vmatpush1.msra.mxu0 0.0
    %2933 = vmatprep.subr.mxu0 0.0
    %2934 = vmatpush1.msra.mxu0 0.0
    %2935 = vmatprep.subr.mxu0 0.0
    %2936 = vmatpush1.msra.mxu0 0.0
    %2937 = vmatprep.subr.mxu0 0.0
    %2938 = vmatpush1.msra.mxu0 0.0
    %2939 = vmatprep.subr.mxu0 0.0
    %2940 = vmatpush1.msra.mxu0 0.0
    %2941 = vmatprep.subr.mxu0 0.0
    %2942 = vmatpush1.msra.mxu0 0.0
    %2943 = vmatprep.subr.mxu0 0.0
    %2944 = vmatpush1.msra.mxu0 0.0
    %2945 = vmatprep.subr.mxu0 0.0
    %2946 = vmatpush1.msra.mxu0 0.0
    %2947 = vmatprep.subr.mxu0 0.0
    %2948 = vmatpush1.msra.mxu0 0.0
    %2949 = vmatprep.subr.mxu0 0.0
    %2950 = vmatpush1.msra.mxu0 0.0
    %2951 = vmatprep.subr.mxu0 0.0
    %2952 = vmatpush1.msra.mxu0 0.0
    %2953 = vmatprep.subr.mxu0 0.0
    %2954 = vmatpush1.msra.mxu0 0.0
    %2955 = vmatprep.subr.mxu0 0.0
    %2956 = vmatpush1.msra.mxu0 0.0
    %2957 = vmatprep.subr.mxu0 0.0
    %2958 = vmatpush1.msra.mxu0 0.0
    %2959 = vmatprep.mubr.f32.mxu0 0.0
    %v2960 = vand.u32 %v443, 4294901760
    %v2961 = vsub.f32 %v443, %v2960
    %v2962 = vand.u32 %v2961, 4294901760
    %2963 = vmatmul.mubr.f32.gmra.mrb[0].mxu0 %v2962
    %v2964 = vpop.f32.mrb[0].mxu0
    %v2965 = vadd.f32 %v2859, %v2964
    %v2966 = vpop.f32.mrb[0].mxu0
    %v2967 = vadd.f32 %v2861, %v2966
    %2968 = vmatprep.mubr.f32.mxu0 0.0
    %v2969 = vand.u32 %v446, 4294901760
    %v2970 = vsub.f32 %v446, %v2969
    %v2971 = vand.u32 %v2970, 4294901760
    %2972 = vmatmul.mubr.f32.gmra.mrb[0].mxu0 %v2971
    %v2973 = vpop.f32.mrb[0].mxu0
    %v2974 = vadd.f32 %v2867, %v2973
    %v2975 = vpop.f32.mrb[0].mxu0
    %v2976 = vadd.f32 %v2869, %v2975
    %2977 = vmatprep.mubr.f32.mxu0 0.0
    %v2978 = vand.u32 %v449, 4294901760
    %v2979 = vsub.f32 %v449, %v2978
    %v2980 = vand.u32 %v2979, 4294901760
    %2981 = vmatmul.mubr.f32.gmra.mrb[0].mxu0 %v2980
    %v2982 = vpop.f32.mrb[0].mxu0
    %v2983 = vadd.f32 %v2875, %v2982
    %v2984 = vpop.f32.mrb[0].mxu0
    %v2985 = vadd.f32 %v2877, %v2984
    %2986 = vmatprep.mubr.f32.mxu0 0.0
    %v2987 = vand.u32 %v452, 4294901760
    %v2988 = vsub.f32 %v452, %v2987
    %v2989 = vand.u32 %v2988, 4294901760
    %2990 = vmatmul.mubr.f32.gmra.mrb[0].mxu0 %v2989
    %v2991 = vpop.f32.mrb[0].mxu0
    %v2992 = vadd.f32 %v2883, %v2991
    %v2993 = vpop.f32.mrb[0].mxu0
    %v2994 = vadd.f32 %v2885, %v2993
    %2995 = vdwg.mxu0
    %v2996 = vand.u32 %v388, 4294901760
    %v2997 = vsub.f32 %v388, %v2996
    %v2998 = vand.u32 %v2997, 4294901760
    %2999 = vmatprep.subr.mxu0 %v2998
    %v3000 = vand.u32 %v387, 4294901760
    %v3001 = vsub.f32 %v387, %v3000
    %v3002 = vand.u32 %v3001, 4294901760
    %3003 = vmatpush1.msra.mxu0 %v3002
    %v3004 = vand.u32 %v396, 4294901760
    %v3005 = vsub.f32 %v396, %v3004
    %v3006 = vand.u32 %v3005, 4294901760
    %3007 = vmatprep.subr.mxu0 %v3006
    %v3008 = vand.u32 %v395, 4294901760
    %v3009 = vsub.f32 %v395, %v3008
    %v3010 = vand.u32 %v3009, 4294901760
    %3011 = vmatpush1.msra.mxu0 %v3010
    %v3012 = vand.u32 %v404, 4294901760
    %v3013 = vsub.f32 %v404, %v3012
    %v3014 = vand.u32 %v3013, 4294901760
    %3015 = vmatprep.subr.mxu0 %v3014
    %v3016 = vand.u32 %v403, 4294901760
    %v3017 = vsub.f32 %v403, %v3016
    %v3018 = vand.u32 %v3017, 4294901760
    %3019 = vmatpush1.msra.mxu0 %v3018
    %v3020 = vand.u32 %v412, 4294901760
    %v3021 = vsub.f32 %v412, %v3020
    %v3022 = vand.u32 %v3021, 4294901760
    %3023 = vmatprep.subr.mxu0 %v3022
    %v3024 = vand.u32 %v411, 4294901760
    %v3025 = vsub.f32 %v411, %v3024
    %v3026 = vand.u32 %v3025, 4294901760
    %3027 = vmatpush1.msra.mxu0 %v3026
    %3028 = vmatprep.subr.mxu0 0.0
    %3029 = vmatpush1.msra.mxu0 0.0
    %3030 = vmatprep.subr.mxu0 0.0
    %3031 = vmatpush1.msra.mxu0 0.0
    %3032 = vmatprep.subr.mxu0 0.0
    %3033 = vmatpush1.msra.mxu0 0.0
    %3034 = vmatprep.subr.mxu0 0.0
    %3035 = vmatpush1.msra.mxu0 0.0
    %3036 = vmatprep.subr.mxu0 0.0
    %3037 = vmatpush1.msra.mxu0 0.0
    %3038 = vmatprep.subr.mxu0 0.0
    %3039 = vmatpush1.msra.mxu0 0.0
    %3040 = vmatprep.subr.mxu0 0.0
    %3041 = vmatpush1.msra.mxu0 0.0
    %3042 = vmatprep.subr.mxu0 0.0
    %3043 = vmatpush1.msra.mxu0 0.0
    %3044 = vmatprep.subr.mxu0 0.0
    %3045 = vmatpush1.msra.mxu0 0.0
    %3046 = vmatprep.subr.mxu0 0.0
    %3047 = vmatpush1.msra.mxu0 0.0
    %3048 = vmatprep.subr.mxu0 0.0
    %3049 = vmatpush1.msra.mxu0 0.0
    %3050 = vmatprep.subr.mxu0 0.0
    %3051 = vmatpush1.msra.mxu0 0.0
    %3052 = vmatprep.subr.mxu0 0.0
    %3053 = vmatpush1.msra.mxu0 0.0
    %3054 = vmatprep.subr.mxu0 0.0
    %3055 = vmatpush1.msra.mxu0 0.0
    %3056 = vmatprep.subr.mxu0 0.0
    %3057 = vmatpush1.msra.mxu0 0.0
    %3058 = vmatprep.subr.mxu0 0.0
    %3059 = vmatpush1.msra.mxu0 0.0
    %3060 = vmatprep.subr.mxu0 0.0
    %3061 = vmatpush1.msra.mxu0 0.0
    %3062 = vmatprep.subr.mxu0 0.0
    %3063 = vmatpush1.msra.mxu0 0.0
    %3064 = vmatprep.subr.mxu0 0.0
    %3065 = vmatpush1.msra.mxu0 0.0
    %3066 = vmatprep.subr.mxu0 0.0
    %3067 = vmatpush1.msra.mxu0 0.0
    %3068 = vmatprep.subr.mxu0 0.0
    %3069 = vmatpush1.msra.mxu0 0.0
    %3070 = vmatprep.subr.mxu0 0.0
    %3071 = vmatpush1.msra.mxu0 0.0
    %3072 = vmatprep.subr.mxu0 0.0
    %3073 = vmatpush1.msra.mxu0 0.0
    %3074 = vmatprep.subr.mxu0 0.0
    %3075 = vmatpush1.msra.mxu0 0.0
    %3076 = vmatprep.subr.mxu0 0.0
    %3077 = vmatpush1.msra.mxu0 0.0
    %3078 = vmatprep.subr.mxu0 0.0
    %3079 = vmatpush1.msra.mxu0 0.0
    %3080 = vmatprep.subr.mxu0 0.0
    %3081 = vmatpush1.msra.mxu0 0.0
    %3082 = vmatprep.subr.mxu0 0.0
    %3083 = vmatpush1.msra.mxu0 0.0
    %3084 = vmatprep.mubr.f32.mxu0 0.0
    %v3085 = vand.u32 %v443, 4294901760
    %3086 = vmatmul.mubr.f32.gmra.mrb[0].mxu0 %v3085
    %v3087 = vpop.f32.mrb[0].mxu0
    %v3088 = vadd.f32 %v2965, %v3087
    %v3089 = vpop.f32.mrb[0].mxu0
    %v3090 = vadd.f32 %v2967, %v3089
    %3091 = vmatprep.mubr.f32.mxu0 0.0
    %v3092 = vand.u32 %v446, 4294901760
    %3093 = vmatmul.mubr.f32.gmra.mrb[0].mxu0 %v3092
    %v3094 = vpop.f32.mrb[0].mxu0
    %v3095 = vadd.f32 %v2974, %v3094
    %v3096 = vpop.f32.mrb[0].mxu0
    %v3097 = vadd.f32 %v2976, %v3096
    %3098 = vmatprep.mubr.f32.mxu0 0.0
    %v3099 = vand.u32 %v449, 4294901760
    %3100 = vmatmul.mubr.f32.gmra.mrb[0].mxu0 %v3099
    %v3101 = vpop.f32.mrb[0].mxu0
    %v3102 = vadd.f32 %v2983, %v3101
    %v3103 = vpop.f32.mrb[0].mxu0
    %v3104 = vadd.f32 %v2985, %v3103
    %3105 = vmatprep.mubr.f32.mxu0 0.0
    %v3106 = vand.u32 %v452, 4294901760
    %3107 = vmatmul.mubr.f32.gmra.mrb[0].mxu0 %v3106
    %v3108 = vpop.f32.mrb[0].mxu0
    %v3109 = vadd.f32 %v2992, %v3108
    %v3110 = vpop.f32.mrb[0].mxu0
    %v3111 = vadd.f32 %v2994, %v3110
    %3112 = vdwg.mxu0
    %v3113 = vand.u32 %v388, 4294901760
    %3114 = vmatprep.subr.mxu0 %v3113
    %v3115 = vand.u32 %v387, 4294901760
    %3116 = vmatpush1.msra.mxu0 %v3115
    %v3117 = vand.u32 %v396, 4294901760
    %3118 = vmatprep.subr.mxu0 %v3117
    %v3119 = vand.u32 %v395, 4294901760
    %3120 = vmatpush1.msra.mxu0 %v3119
    %v3121 = vand.u32 %v404, 4294901760
    %3122 = vmatprep.subr.mxu0 %v3121
    %v3123 = vand.u32 %v403, 4294901760
    %3124 = vmatpush1.msra.mxu0 %v3123
    %v3125 = vand.u32 %v412, 4294901760
    %3126 = vmatprep.subr.mxu0 %v3125
    %v3127 = vand.u32 %v411, 4294901760
    %3128 = vmatpush1.msra.mxu0 %v3127
    %3129 = vmatprep.subr.mxu0 0.0
    %3130 = vmatpush1.msra.mxu0 0.0
    %3131 = vmatprep.subr.mxu0 0.0
    %3132 = vmatpush1.msra.mxu0 0.0
    %3133 = vmatprep.subr.mxu0 0.0
    %3134 = vmatpush1.msra.mxu0 0.0
    %3135 = vmatprep.subr.mxu0 0.0
    %3136 = vmatpush1.msra.mxu0 0.0
    %3137 = vmatprep.subr.mxu0 0.0
    %3138 = vmatpush1.msra.mxu0 0.0
    %3139 = vmatprep.subr.mxu0 0.0
    %3140 = vmatpush1.msra.mxu0 0.0
    %3141 = vmatprep.subr.mxu0 0.0
    %3142 = vmatpush1.msra.mxu0 0.0
    %3143 = vmatprep.subr.mxu0 0.0
    %3144 = vmatpush1.msra.mxu0 0.0
    %3145 = vmatprep.subr.mxu0 0.0
    %3146 = vmatpush1.msra.mxu0 0.0
    %3147 = vmatprep.subr.mxu0 0.0
    %3148 = vmatpush1.msra.mxu0 0.0
    %3149 = vmatprep.subr.mxu0 0.0
    %3150 = vmatpush1.msra.mxu0 0.0
    %3151 = vmatprep.subr.mxu0 0.0
    %3152 = vmatpush1.msra.mxu0 0.0
    %3153 = vmatprep.subr.mxu0 0.0
    %3154 = vmatpush1.msra.mxu0 0.0
    %3155 = vmatprep.subr.mxu0 0.0
    %3156 = vmatpush1.msra.mxu0 0.0
    %3157 = vmatprep.subr.mxu0 0.0
    %3158 = vmatpush1.msra.mxu0 0.0
    %3159 = vmatprep.subr.mxu0 0.0
    %3160 = vmatpush1.msra.mxu0 0.0
    %3161 = vmatprep.subr.mxu0 0.0
    %3162 = vmatpush1.msra.mxu0 0.0
    %3163 = vmatprep.subr.mxu0 0.0
    %3164 = vmatpush1.msra.mxu0 0.0
    %3165 = vmatprep.subr.mxu0 0.0
    %3166 = vmatpush1.msra.mxu0 0.0
    %3167 = vmatprep.subr.mxu0 0.0
    %3168 = vmatpush1.msra.mxu0 0.0
    %3169 = vmatprep.subr.mxu0 0.0
    %3170 = vmatpush1.msra.mxu0 0.0
    %3171 = vmatprep.subr.mxu0 0.0
    %3172 = vmatpush1.msra.mxu0 0.0
    %3173 = vmatprep.subr.mxu0 0.0
    %3174 = vmatpush1.msra.mxu0 0.0
    %3175 = vmatprep.subr.mxu0 0.0
    %3176 = vmatpush1.msra.mxu0 0.0
    %3177 = vmatprep.subr.mxu0 0.0
    %3178 = vmatpush1.msra.mxu0 0.0
    %3179 = vmatprep.subr.mxu0 0.0
    %3180 = vmatpush1.msra.mxu0 0.0
    %3181 = vmatprep.subr.mxu0 0.0
    %3182 = vmatpush1.msra.mxu0 0.0
    %3183 = vmatprep.subr.mxu0 0.0
    %3184 = vmatpush1.msra.mxu0 0.0
    %3185 = vmatprep.mubr.f32.mxu0 0.0
    %v3186 = vand.u32 %v443, 4294901760
    %3187 = vmatmul.mubr.f32.gmra.mrb[0].mxu0 %v3186
    %v3188 = vpop.f32.mrb[0].mxu0
    %v3189 = vadd.f32 %v3088, %v3188
    %v3190 = vpop.f32.mrb[0].mxu0
    %v3191 = vadd.f32 %v3090, %v3190
    %3192 = vmatprep.mubr.f32.mxu0 0.0
    %v3193 = vand.u32 %v446, 4294901760
    %3194 = vmatmul.mubr.f32.gmra.mrb[0].mxu0 %v3193
    %v3195 = vpop.f32.mrb[0].mxu0
    %v3196 = vadd.f32 %v3095, %v3195
    %v3197 = vpop.f32.mrb[0].mxu0
    %v3198 = vadd.f32 %v3097, %v3197
    %3199 = vmatprep.mubr.f32.mxu0 0.0
    %v3200 = vand.u32 %v449, 4294901760
    %3201 = vmatmul.mubr.f32.gmra.mrb[0].mxu0 %v3200
    %v3202 = vpop.f32.mrb[0].mxu0
    %v3203 = vadd.f32 %v3102, %v3202
    %v3204 = vpop.f32.mrb[0].mxu0
    %v3205 = vadd.f32 %v3104, %v3204
    %3206 = vmatprep.mubr.f32.mxu0 0.0
    %v3207 = vand.u32 %v452, 4294901760
    %3208 = vmatmul.mubr.f32.gmra.mrb[0].mxu0 %v3207
    %v3209 = vpop.f32.mrb[0].mxu0
    %v3210 = vadd.f32 %v3109, %v3209
    %v3211 = vpop.f32.mrb[0].mxu0
    %v3212 = vadd.f32 %v3111, %v3211
    %3213 = vdwg.mxu0
    %v3214 = vtanh.pop %v1119
    %v3215 = vtanh.pop %v1121
    %v3216 = vtanh.pop %v1809
    %v3217 = vtanh.pop %v1811
    %v3218 = vtanh.pop %v2499
    %v3219 = vtanh.pop %v2501
    %v3220 = vtanh.pop %v3189
    %v3221 = vtanh.pop %v3191
    %v3222 = vtanh.pop %v1126
    %v3223 = vtanh.pop %v1128
    %v3224 = vtanh.pop %v1816
    %v3225 = vtanh.pop %v1818
    %v3226 = vtanh.pop %v2506
    %v3227 = vtanh.pop %v2508
    %v3228 = vtanh.pop %v3196
    %v3229 = vtanh.pop %v3198
    %v3230 = vtanh.pop %v1133
    %v3231 = vtanh.pop %v1135
    %v3232 = vtanh.pop %v1823
    %v3233 = vtanh.pop %v1825
    %v3234 = vtanh.pop %v2513
    %v3235 = vtanh.pop %v2515
    %v3236 = vtanh.pop %v3203
    %v3237 = vtanh.pop %v3205
    %v3238 = vtanh.pop %v1140
    %v3239 = vtanh.pop %v1142
    %v3240 = vtanh.pop %v1830
    %v3241 = vtanh.pop %v1832
    %v3242 = vtanh.pop %v2520
    %v3243 = vtanh.pop %v2522
    %v3244 = vtanh.pop %v3210
    %v3245 = vtanh.pop %v3212
    %v3246 = vld [vmem:[%s5] sm:$0xff]
    %v3247 = vld [vmem:[%s5 + $0x8] sm:$0xff]
    %v3248 = vld [vmem:[%s5 + $0x10] sm:$0xff]
    %v3249 = vld [vmem:[%s5 + $0x18] sm:$0xff]
    %v3250 = vld [vmem:[%s6] sm:$0xff]
    %v3251 = vld [vmem:[%s6 + $0x8] sm:$0xff]
    %v3252 = vld [vmem:[%s6 + $0x10] sm:$0xff]
    %v3253 = vld [vmem:[%s6 + $0x18] sm:$0xff]
    %3255 = vset.pattern.permute.xlu0 0
    %3256 = vperm.xlu0 %3255, %v3250
    %v3257 = vpop.permute.xlu0 %3256
    %3260 = vset.pattern.permute.xlu0 0
    %3261 = vperm.xlu0 %3260, %v3251
    %v3262 = vpop.permute.xlu0 %3261
    %3265 = vset.pattern.permute.xlu0 0
    %3266 = vperm.xlu0 %3265, %v3252
    %v3267 = vpop.permute.xlu0 %3266
    %3270 = vset.pattern.permute.xlu0 0
    %3271 = vperm.xlu0 %3270, %v3253
    %v3272 = vpop.permute.xlu0 %3271
    %v3275 = vsel %vm441, %v3246, 0
    %v3278 = vsel %vm441, %v3247, 0
    %v3281 = vsel %vm441, %v3248, 0
    %v3284 = vsel %vm441, %v3249, 0
    %v3286 = vand.u32 %v3215, 4294901760
    %3287 = vmatprep.subr.mxu0 %v3286
    %v3288 = vand.u32 %v3214, 4294901760
    %3289 = vmatpush1.msra.mxu0 %v3288
    %v3290 = vand.u32 %v3223, 4294901760
    %3291 = vmatprep.subr.mxu0 %v3290
    %v3292 = vand.u32 %v3222, 4294901760
    %3293 = vmatpush1.msra.mxu0 %v3292
    %v3294 = vand.u32 %v3231, 4294901760
    %3295 = vmatprep.subr.mxu0 %v3294
    %v3296 = vand.u32 %v3230, 4294901760
    %3297 = vmatpush1.msra.mxu0 %v3296
    %v3298 = vand.u32 %v3239, 4294901760
    %3299 = vmatprep.subr.mxu0 %v3298
    %v3300 = vand.u32 %v3238, 4294901760
    %3301 = vmatpush1.msra.mxu0 %v3300
    %3302 = vmatprep.subr.mxu0 0.0
    %3303 = vmatpush1.msra.mxu0 0.0
    %3304 = vmatprep.subr.mxu0 0.0
    %3305 = vmatpush1.msra.mxu0 0.0
    %3306 = vmatprep.subr.mxu0 0.0
    %3307 = vmatpush1.msra.mxu0 0.0
    %3308 = vmatprep.subr.mxu0 0.0
    %3309 = vmatpush1.msra.mxu0 0.0
    %3310 = vmatprep.subr.mxu0 0.0
    %3311 = vmatpush1.msra.mxu0 0.0
    %3312 = vmatprep.subr.mxu0 0.0
    %3313 = vmatpush1.msra.mxu0 0.0
    %3314 = vmatprep.subr.mxu0 0.0
    %3315 = vmatpush1.msra.mxu0 0.0
    %3316 = vmatprep.subr.mxu0 0.0
    %3317 = vmatpush1.msra.mxu0 0.0
    %3318 = vmatprep.subr.mxu0 0.0
    %3319 = vmatpush1.msra.mxu0 0.0
    %3320 = vmatprep.subr.mxu0 0.0
    %3321 = vmatpush1.msra.mxu0 0.0
    %3322 = vmatprep.subr.mxu0 0.0
    %3323 = vmatpush1.msra.mxu0 0.0
    %3324 = vmatprep.subr.mxu0 0.0
    %3325 = vmatpush1.msra.mxu0 0.0
    %3326 = vmatprep.subr.mxu0 0.0
    %3327 = vmatpush1.msra.mxu0 0.0
    %3328 = vmatprep.subr.mxu0 0.0
    %3329 = vmatpush1.msra.mxu0 0.0
    %3330 = vmatprep.subr.mxu0 0.0
    %3331 = vmatpush1.msra.mxu0 0.0
    %3332 = vmatprep.subr.mxu0 0.0
    %3333 = vmatpush1.msra.mxu0 0.0
    %3334 = vmatprep.subr.mxu0 0.0
    %3335 = vmatpush1.msra.mxu0 0.0
    %3336 = vmatprep.subr.mxu0 0.0
    %3337 = vmatpush1.msra.mxu0 0.0
    %3338 = vmatprep.subr.mxu0 0.0
    %3339 = vmatpush1.msra.mxu0 0.0
    %3340 = vmatprep.subr.mxu0 0.0
    %3341 = vmatpush1.msra.mxu0 0.0
    %3342 = vmatprep.subr.mxu0 0.0
    %3343 = vmatpush1.msra.mxu0 0.0
    %3344 = vmatprep.subr.mxu0 0.0
    %3345 = vmatpush1.msra.mxu0 0.0
    %3346 = vmatprep.subr.mxu0 0.0
    %3347 = vmatpush1.msra.mxu0 0.0
    %3348 = vmatprep.subr.mxu0 0.0
    %3349 = vmatpush1.msra.mxu0 0.0
    %3350 = vmatprep.subr.mxu0 0.0
    %3351 = vmatpush1.msra.mxu0 0.0
    %3352 = vmatprep.subr.mxu0 0.0
    %3353 = vmatpush1.msra.mxu0 0.0
    %3354 = vmatprep.subr.mxu0 0.0
    %3355 = vmatpush1.msra.mxu0 0.0
    %3356 = vmatprep.subr.mxu0 0.0
    %3357 = vmatpush1.msra.mxu0 0.0
    %3358 = vmatprep.mubr.f32.mxu0 0.0
    %v3359 = vand.u32 %v3275, 4294901760
    %v3360 = vsub.f32 %v3275, %v3359
    %v3361 = vand.u32 %v3360, 4294901760
    %v3362 = vsub.f32 %v3360, %v3361
    %v3363 = vand.u32 %v3362, 4294901760
    %3364 = vmatmul.mubr.f32.gmra.mrb[0].mxu0 %v3363
    %v3365 = vpop.f32.mrb[0].mxu0
    %v3366 = vadd.f32 %v3257, %v3365
    %v3367 = vpop.f32.mrb[0].mxu0
    %v3368 = vadd.f32 %v3257, %v3367
    %3369 = vmatprep.mubr.f32.mxu0 0.0
    %v3370 = vand.u32 %v3278, 4294901760
    %v3371 = vsub.f32 %v3278, %v3370
    %v3372 = vand.u32 %v3371, 4294901760
    %v3373 = vsub.f32 %v3371, %v3372
    %v3374 = vand.u32 %v3373, 4294901760
    %3375 = vmatmul.mubr.f32.gmra.mrb[0].mxu0 %v3374
    %v3376 = vpop.f32.mrb[0].mxu0
    %v3377 = vadd.f32 %v3262, %v3376
    %v3378 = vpop.f32.mrb[0].mxu0
    %v3379 = vadd.f32 %v3262, %v3378
    %3380 = vmatprep.mubr.f32.mxu0 0.0
    %v3381 = vand.u32 %v3281, 4294901760
    %v3382 = vsub.f32 %v3281, %v3381
    %v3383 = vand.u32 %v3382, 4294901760
    %v3384 = vsub.f32 %v3382, %v3383
    %v3385 = vand.u32 %v3384, 4294901760
    %3386 = vmatmul.mubr.f32.gmra.mrb[0].mxu0 %v3385
    %v3387 = vpop.f32.mrb[0].mxu0
    %v3388 = vadd.f32 %v3267, %v3387
    %v3389 = vpop.f32.mrb[0].mxu0
    %v3390 = vadd.f32 %v3267, %v3389
    %3391 = vmatprep.mubr.f32.mxu0 0.0
    %v3392 = vand.u32 %v3284, 4294901760
    %v3393 = vsub.f32 %v3284, %v3392
    %v3394 = vand.u32 %v3393, 4294901760
    %v3395 = vsub.f32 %v3393, %v3394
    %v3396 = vand.u32 %v3395, 4294901760
    %3397 = vmatmul.mubr.f32.gmra.mrb[0].mxu0 %v3396
    %v3398 = vpop.f32.mrb[0].mxu0
    %v3399 = vadd.f32 %v3272, %v3398
    %v3400 = vpop.f32.mrb[0].mxu0
    %v3401 = vadd.f32 %v3272, %v3400
    %3402 = vdwg.mxu0
    %v3403 = vand.u32 %v3215, 4294901760
    %v3404 = vsub.f32 %v3215, %v3403
    %v3405 = vand.u32 %v3404, 4294901760
    %v3406 = vsub.f32 %v3404, %v3405
    %v3407 = vand.u32 %v3406, 4294901760
    %3408 = vmatprep.subr.mxu0 %v3407
    %v3409 = vand.u32 %v3214, 4294901760
    %v3410 = vsub.f32 %v3214, %v3409
    %v3411 = vand.u32 %v3410, 4294901760
    %v3412 = vsub.f32 %v3410, %v3411
    %v3413 = vand.u32 %v3412, 4294901760
    %3414 = vmatpush1.msra.mxu0 %v3413
    %v3415 = vand.u32 %v3223, 4294901760
    %v3416 = vsub.f32 %v3223, %v3415
    %v3417 = vand.u32 %v3416, 4294901760
    %v3418 = vsub.f32 %v3416, %v3417
    %v3419 = vand.u32 %v3418, 4294901760
    %3420 = vmatprep.subr.mxu0 %v3419
    %v3421 = vand.u32 %v3222, 4294901760
    %v3422 = vsub.f32 %v3222, %v3421
    %v3423 = vand.u32 %v3422, 4294901760
    %v3424 = vsub.f32 %v3422, %v3423
    %v3425 = vand.u32 %v3424, 4294901760
    %3426 = vmatpush1.msra.mxu0 %v3425
    %v3427 = vand.u32 %v3231, 4294901760
    %v3428 = vsub.f32 %v3231, %v3427
    %v3429 = vand.u32 %v3428, 4294901760
    %v3430 = vsub.f32 %v3428, %v3429
    %v3431 = vand.u32 %v3430, 4294901760
    %3432 = vmatprep.subr.mxu0 %v3431
    %v3433 = vand.u32 %v3230, 4294901760
    %v3434 = vsub.f32 %v3230, %v3433
    %v3435 = vand.u32 %v3434, 4294901760
    %v3436 = vsub.f32 %v3434, %v3435
    %v3437 = vand.u32 %v3436, 4294901760
    %3438 = vmatpush1.msra.mxu0 %v3437
    %v3439 = vand.u32 %v3239, 4294901760
    %v3440 = vsub.f32 %v3239, %v3439
    %v3441 = vand.u32 %v3440, 4294901760
    %v3442 = vsub.f32 %v3440, %v3441
    %v3443 = vand.u32 %v3442, 4294901760
    %3444 = vmatprep.subr.mxu0 %v3443
    %v3445 = vand.u32 %v3238, 4294901760
    %v3446 = vsub.f32 %v3238, %v3445
    %v3447 = vand.u32 %v3446, 4294901760
    %v3448 = vsub.f32 %v3446, %v3447
    %v3449 = vand.u32 %v3448, 4294901760
    %3450 = vmatpush1.msra.mxu0 %v3449
    %3451 = vmatprep.subr.mxu0 0.0
    %3452 = vmatpush1.msra.mxu0 0.0
    %3453 = vmatprep.subr.mxu0 0.0
    %3454 = vmatpush1.msra.mxu0 0.0
    %3455 = vmatprep.subr.mxu0 0.0
    %3456 = vmatpush1.msra.mxu0 0.0
    %3457 = vmatprep.subr.mxu0 0.0
    %3458 = vmatpush1.msra.mxu0 0.0
    %3459 = vmatprep.subr.mxu0 0.0
    %3460 = vmatpush1.msra.mxu0 0.0
    %3461 = vmatprep.subr.mxu0 0.0
    %3462 = vmatpush1.msra.mxu0 0.0
    %3463 = vmatprep.subr.mxu0 0.0
    %3464 = vmatpush1.msra.mxu0 0.0
    %3465 = vmatprep.subr.mxu0 0.0
    %3466 = vmatpush1.msra.mxu0 0.0
    %3467 = vmatprep.subr.mxu0 0.0
    %3468 = vmatpush1.msra.mxu0 0.0
    %3469 = vmatprep.subr.mxu0 0.0
    %3470 = vmatpush1.msra.mxu0 0.0
    %3471 = vmatprep.subr.mxu0 0.0
    %3472 = vmatpush1.msra.mxu0 0.0
    %3473 = vmatprep.subr.mxu0 0.0
    %3474 = vmatpush1.msra.mxu0 0.0
    %3475 = vmatprep.subr.mxu0 0.0
    %3476 = vmatpush1.msra.mxu0 0.0
    %3477 = vmatprep.subr.mxu0 0.0
    %3478 = vmatpush1.msra.mxu0 0.0
    %3479 = vmatprep.subr.mxu0 0.0
    %3480 = vmatpush1.msra.mxu0 0.0
    %3481 = vmatprep.subr.mxu0 0.0
    %3482 = vmatpush1.msra.mxu0 0.0
    %3483 = vmatprep.subr.mxu0 0.0
    %3484 = vmatpush1.msra.mxu0 0.0
    %3485 = vmatprep.subr.mxu0 0.0
    %3486 = vmatpush1.msra.mxu0 0.0
    %3487 = vmatprep.subr.mxu0 0.0
    %3488 = vmatpush1.msra.mxu0 0.0
    %3489 = vmatprep.subr.mxu0 0.0
    %3490 = vmatpush1.msra.mxu0 0.0
    %3491 = vmatprep.subr.mxu0 0.0
    %3492 = vmatpush1.msra.mxu0 0.0
    %3493 = vmatprep.subr.mxu0 0.0
    %3494 = vmatpush1.msra.mxu0 0.0
    %3495 = vmatprep.subr.mxu0 0.0
    %3496 = vmatpush1.msra.mxu0 0.0
    %3497 = vmatprep.subr.mxu0 0.0
    %3498 = vmatpush1.msra.mxu0 0.0
    %3499 = vmatprep.subr.mxu0 0.0
    %3500 = vmatpush1.msra.mxu0 0.0
    %3501 = vmatprep.subr.mxu0 0.0
    %3502 = vmatpush1.msra.mxu0 0.0
    %3503 = vmatprep.subr.mxu0 0.0
    %3504 = vmatpush1.msra.mxu0 0.0
    %3505 = vmatprep.subr.mxu0 0.0
    %3506 = vmatpush1.msra.mxu0 0.0
    %3507 = vmatprep.mubr.f32.mxu0 0.0
    %v3508 = vand.u32 %v3275, 4294901760
    %3509 = vmatmul.mubr.f32.gmra.mrb[0].mxu0 %v3508
    %v3510 = vpop.f32.mrb[0].mxu0
    %v3511 = vadd.f32 %v3366, %v3510
    %v3512 = vpop.f32.mrb[0].mxu0
    %v3513 = vadd.f32 %v3368, %v3512
    %3514 = vmatprep.mubr.f32.mxu0 0.0
    %v3515 = vand.u32 %v3278, 4294901760
    %3516 = vmatmul.mubr.f32.gmra.mrb[0].mxu0 %v3515
    %v3517 = vpop.f32.mrb[0].mxu0
    %v3518 = vadd.f32 %v3377, %v3517
    %v3519 = vpop.f32.mrb[0].mxu0
    %v3520 = vadd.f32 %v3379, %v3519
    %3521 = vmatprep.mubr.f32.mxu0 0.0
    %v3522 = vand.u32 %v3281, 4294901760
    %3523 = vmatmul.mubr.f32.gmra.mrb[0].mxu0 %v3522
    %v3524 = vpop.f32.mrb[0].mxu0
    %v3525 = vadd.f32 %v3388, %v3524
    %v3526 = vpop.f32.mrb[0].mxu0
    %v3527 = vadd.f32 %v3390, %v3526
    %3528 = vmatprep.mubr.f32.mxu0 0.0
    %v3529 = vand.u32 %v3284, 4294901760
    %3530 = vmatmul.mubr.f32.gmra.mrb[0].mxu0 %v3529
    %v3531 = vpop.f32.mrb[0].mxu0
    %v3532 = vadd.f32 %v3399, %v3531
    %v3533 = vpop.f32.mrb[0].mxu0
    %v3534 = vadd.f32 %v3401, %v3533
    %3535 = vdwg.mxu0
    %v3536 = vand.u32 %v3215, 4294901760
    %v3537 = vsub.f32 %v3215, %v3536
    %3538 = vmatprep.subr.mxu0 %v3537
    %v3539 = vand.u32 %v3214, 4294901760
    %v3540 = vsub.f32 %v3214, %v3539
    %3541 = vmatpush1.msra.mxu0 %v3540
    %v3542 = vand.u32 %v3223, 4294901760
    %v3543 = vsub.f32 %v3223, %v3542
    %3544 = vmatprep.subr.mxu0 %v3543
    %v3545 = vand.u32 %v3222, 4294901760
    %v3546 = vsub.f32 %v3222, %v3545
    %3547 = vmatpush1.msra.mxu0 %v3546
    %v3548 = vand.u32 %v3231, 4294901760
    %v3549 = vsub.f32 %v3231, %v3548
    %3550 = vmatprep.subr.mxu0 %v3549
    %v3551 = vand.u32 %v3230, 4294901760
    %v3552 = vsub.f32 %v3230, %v3551
    %3553 = vmatpush1.msra.mxu0 %v3552
    %v3554 = vand.u32 %v3239, 4294901760
    %v3555 = vsub.f32 %v3239, %v3554
    %3556 = vmatprep.subr.mxu0 %v3555
    %v3557 = vand.u32 %v3238, 4294901760
    %v3558 = vsub.f32 %v3238, %v3557
    %3559 = vmatpush1.msra.mxu0 %v3558
    %3560 = vmatprep.subr.mxu0 0.0
    %3561 = vmatpush1.msra.mxu0 0.0
    %3562 = vmatprep.subr.mxu0 0.0
    %3563 = vmatpush1.msra.mxu0 0.0
    %3564 = vmatprep.subr.mxu0 0.0
    %3565 = vmatpush1.msra.mxu0 0.0
    %3566 = vmatprep.subr.mxu0 0.0
    %3567 = vmatpush1.msra.mxu0 0.0
    %3568 = vmatprep.subr.mxu0 0.0
    %3569 = vmatpush1.msra.mxu0 0.0
    %3570 = vmatprep.subr.mxu0 0.0
    %3571 = vmatpush1.msra.mxu0 0.0
    %3572 = vmatprep.subr.mxu0 0.0
    %3573 = vmatpush1.msra.mxu0 0.0
    %3574 = vmatprep.subr.mxu0 0.0
    %3575 = vmatpush1.msra.mxu0 0.0
    %3576 = vmatprep.subr.mxu0 0.0
    %3577 = vmatpush1.msra.mxu0 0.0
    %3578 = vmatprep.subr.mxu0 0.0
    %3579 = vmatpush1.msra.mxu0 0.0
    %3580 = vmatprep.subr.mxu0 0.0
    %3581 = vmatpush1.msra.mxu0 0.0
    %3582 = vmatprep.subr.mxu0 0.0
    %3583 = vmatpush1.msra.mxu0 0.0
    %3584 = vmatprep.subr.mxu0 0.0
    %3585 = vmatpush1.msra.mxu0 0.0
    %3586 = vmatprep.subr.mxu0 0.0
    %3587 = vmatpush1.msra.mxu0 0.0
    %3588 = vmatprep.subr.mxu0 0.0
    %3589 = vmatpush1.msra.mxu0 0.0
    %3590 = vmatprep.subr.mxu0 0.0
    %3591 = vmatpush1.msra.mxu0 0.0
    %3592 = vmatprep.subr.mxu0 0.0
    %3593 = vmatpush1.msra.mxu0 0.0
    %3594 = vmatprep.subr.mxu0 0.0
    %3595 = vmatpush1.msra.mxu0 0.0
    %3596 = vmatprep.subr.mxu0 0.0
    %3597 = vmatpush1.msra.mxu0 0.0
    %3598 = vmatprep.subr.mxu0 0.0
    %3599 = vmatpush1.msra.mxu0 0.0
    %3600 = vmatprep.subr.mxu0 0.0
    %3601 = vmatpush1.msra.mxu0 0.0
    %3602 = vmatprep.subr.mxu0 0.0
    %3603 = vmatpush1.msra.mxu0 0.0
    %3604 = vmatprep.subr.mxu0 0.0
    %3605 = vmatpush1.msra.mxu0 0.0
    %3606 = vmatprep.subr.mxu0 0.0
    %3607 = vmatpush1.msra.mxu0 0.0
    %3608 = vmatprep.subr.mxu0 0.0
    %3609 = vmatpush1.msra.mxu0 0.0
    %3610 = vmatprep.subr.mxu0 0.0
    %3611 = vmatpush1.msra.mxu0 0.0
    %3612 = vmatprep.subr.mxu0 0.0
    %3613 = vmatpush1.msra.mxu0 0.0
    %3614 = vmatprep.subr.mxu0 0.0
    %3615 = vmatpush1.msra.mxu0 0.0
    %3616 = vmatprep.mubr.f32.mxu0 0.0
    %v3617 = vand.u32 %v3275, 4294901760
    %v3618 = vsub.f32 %v3275, %v3617
    %3619 = vmatmul.mubr.f32.gmra.mrb[0].mxu0 %v3618
    %v3620 = vpop.f32.mrb[0].mxu0
    %v3621 = vadd.f32 %v3511, %v3620
    %v3622 = vpop.f32.mrb[0].mxu0
    %v3623 = vadd.f32 %v3513, %v3622
    %3624 = vmatprep.mubr.f32.mxu0 0.0
    %v3625 = vand.u32 %v3278, 4294901760
    %v3626 = vsub.f32 %v3278, %v3625
    %3627 = vmatmul.mubr.f32.gmra.mrb[0].mxu0 %v3626
    %v3628 = vpop.f32.mrb[0].mxu0
    %v3629 = vadd.f32 %v3518, %v3628
    %v3630 = vpop.f32.mrb[0].mxu0
    %v3631 = vadd.f32 %v3520, %v3630
    %3632 = vmatprep.mubr.f32.mxu0 0.0
    %v3633 = vand.u32 %v3281, 4294901760
    %v3634 = vsub.f32 %v3281, %v3633
    %3635 = vmatmul.mubr.f32.gmra.mrb[0].mxu0 %v3634
    %v3636 = vpop.f32.mrb[0].mxu0
    %v3637 = vadd.f32 %v3525, %v3636
    %v3638 = vpop.f32.mrb[0].mxu0
    %v3639 = vadd.f32 %v3527, %v3638
    %3640 = vmatprep.mubr.f32.mxu0 0.0
    %v3641 = vand.u32 %v3284, 4294901760
    %v3642 = vsub.f32 %v3284, %v3641
    %3643 = vmatmul.mubr.f32.gmra.mrb[0].mxu0 %v3642
    %v3644 = vpop.f32.mrb[0].mxu0
    %v3645 = vadd.f32 %v3532, %v3644
    %v3646 = vpop.f32.mrb[0].mxu0
    %v3647 = vadd.f32 %v3534, %v3646
    %3648 = vdwg.mxu0
    %v3649 = vand.u32 %v3215, 4294901760
    %3650 = vmatprep.subr.mxu0 %v3649
    %v3651 = vand.u32 %v3214, 4294901760
    %3652 = vmatpush1.msra.mxu0 %v3651
    %v3653 = vand.u32 %v3223, 4294901760
    %3654 = vmatprep.subr.mxu0 %v3653
    %v3655 = vand.u32 %v3222, 4294901760
    %3656 = vmatpush1.msra.mxu0 %v3655
    %v3657 = vand.u32 %v3231, 4294901760
    %3658 = vmatprep.subr.mxu0 %v3657
    %v3659 = vand.u32 %v3230, 4294901760
    %3660 = vmatpush1.msra.mxu0 %v3659
    %v3661 = vand.u32 %v3239, 4294901760
    %3662 = vmatprep.subr.mxu0 %v3661
    %v3663 = vand.u32 %v3238, 4294901760
    %3664 = vmatpush1.msra.mxu0 %v3663
    %3665 = vmatprep.subr.mxu0 0.0
    %3666 = vmatpush1.msra.mxu0 0.0
    %3667 = vmatprep.subr.mxu0 0.0
    %3668 = vmatpush1.msra.mxu0 0.0
    %3669 = vmatprep.subr.mxu0 0.0
    %3670 = vmatpush1.msra.mxu0 0.0
    %3671 = vmatprep.subr.mxu0 0.0
    %3672 = vmatpush1.msra.mxu0 0.0
    %3673 = vmatprep.subr.mxu0 0.0
    %3674 = vmatpush1.msra.mxu0 0.0
    %3675 = vmatprep.subr.mxu0 0.0
    %3676 = vmatpush1.msra.mxu0 0.0
    %3677 = vmatprep.subr.mxu0 0.0
    %3678 = vmatpush1.msra.mxu0 0.0
    %3679 = vmatprep.subr.mxu0 0.0
    %3680 = vmatpush1.msra.mxu0 0.0
    %3681 = vmatprep.subr.mxu0 0.0
    %3682 = vmatpush1.msra.mxu0 0.0
    %3683 = vmatprep.subr.mxu0 0.0
    %3684 = vmatpush1.msra.mxu0 0.0
    %3685 = vmatprep.subr.mxu0 0.0
    %3686 = vmatpush1.msra.mxu0 0.0
    %3687 = vmatprep.subr.mxu0 0.0
    %3688 = vmatpush1.msra.mxu0 0.0
    %3689 = vmatprep.subr.mxu0 0.0
    %3690 = vmatpush1.msra.mxu0 0.0
    %3691 = vmatprep.subr.mxu0 0.0
    %3692 = vmatpush1.msra.mxu0 0.0
    %3693 = vmatprep.subr.mxu0 0.0
    %3694 = vmatpush1.msra.mxu0 0.0
    %3695 = vmatprep.subr.mxu0 0.0
    %3696 = vmatpush1.msra.mxu0 0.0
    %3697 = vmatprep.subr.mxu0 0.0
    %3698 = vmatpush1.msra.mxu0 0.0
    %3699 = vmatprep.subr.mxu0 0.0
    %3700 = vmatpush1.msra.mxu0 0.0
    %3701 = vmatprep.subr.mxu0 0.0
    %3702 = vmatpush1.msra.mxu0 0.0
    %3703 = vmatprep.subr.mxu0 0.0
    %3704 = vmatpush1.msra.mxu0 0.0
    %3705 = vmatprep.subr.mxu0 0.0
    %3706 = vmatpush1.msra.mxu0 0.0
    %3707 = vmatprep.subr.mxu0 0.0
    %3708 = vmatpush1.msra.mxu0 0.0
    %3709 = vmatprep.subr.mxu0 0.0
    %3710 = vmatpush1.msra.mxu0 0.0
    %3711 = vmatprep.subr.mxu0 0.0
    %3712 = vmatpush1.msra.mxu0 0.0
    %3713 = vmatprep.subr.mxu0 0.0
    %3714 = vmatpush1.msra.mxu0 0.0
    %3715 = vmatprep.subr.mxu0 0.0
    %3716 = vmatpush1.msra.mxu0 0.0
    %3717 = vmatprep.subr.mxu0 0.0
    %3718 = vmatpush1.msra.mxu0 0.0
    %3719 = vmatprep.subr.mxu0 0.0
    %3720 = vmatpush1.msra.mxu0 0.0
    %3721 = vmatprep.mubr.f32.mxu0 0.0
    %v3722 = vand.u32 %v3275, 4294901760
    %v3723 = vsub.f32 %v3275, %v3722
    %v3724 = vand.u32 %v3723, 4294901760
    %3725 = vmatmul.mubr.f32.gmra.mrb[0].mxu0 %v3724
    %v3726 = vpop.f32.mrb[0].mxu0
    %v3727 = vadd.f32 %v3621, %v3726
    %v3728 = vpop.f32.mrb[0].mxu0
    %v3729 = vadd.f32 %v3623, %v3728
    %3730 = vmatprep.mubr.f32.mxu0 0.0
    %v3731 = vand.u32 %v3278, 4294901760
    %v3732 = vsub.f32 %v3278, %v3731
    %v3733 = vand.u32 %v3732, 4294901760
    %3734 = vmatmul.mubr.f32.gmra.mrb[0].mxu0 %v3733
    %v3735 = vpop.f32.mrb[0].mxu0
    %v3736 = vadd.f32 %v3629, %v3735
    %v3737 = vpop.f32.mrb[0].mxu0
    %v3738 = vadd.f32 %v3631, %v3737
    %3739 = vmatprep.mubr.f32.mxu0 0.0
    %v3740 = vand.u32 %v3281, 4294901760
    %v3741 = vsub.f32 %v3281, %v3740
    %v3742 = vand.u32 %v3741, 4294901760
    %3743 = vmatmul.mubr.f32.gmra.mrb[0].mxu0 %v3742
    %v3744 = vpop.f32.mrb[0].mxu0
    %v3745 = vadd.f32 %v3637, %v3744
    %v3746 = vpop.f32.mrb[0].mxu0
    %v3747 = vadd.f32 %v3639, %v3746
    %3748 = vmatprep.mubr.f32.mxu0 0.0
    %v3749 = vand.u32 %v3284, 4294901760
    %v3750 = vsub.f32 %v3284, %v3749
    %v3751 = vand.u32 %v3750, 4294901760
    %3752 = vmatmul.mubr.f32.gmra.mrb[0].mxu0 %v3751
    %v3753 = vpop.f32.mrb[0].mxu0
    %v3754 = vadd.f32 %v3645, %v3753
    %v3755 = vpop.f32.mrb[0].mxu0
    %v3756 = vadd.f32 %v3647, %v3755
    %3757 = vdwg.mxu0
    %v3758 = vand.u32 %v3215, 4294901760
    %v3759 = vsub.f32 %v3215, %v3758
    %v3760 = vand.u32 %v3759, 4294901760
    %3761 = vmatprep.subr.mxu0 %v3760
    %v3762 = vand.u32 %v3214, 4294901760
    %v3763 = vsub.f32 %v3214, %v3762
    %v3764 = vand.u32 %v3763, 4294901760
    %3765 = vmatpush1.msra.mxu0 %v3764
    %v3766 = vand.u32 %v3223, 4294901760
    %v3767 = vsub.f32 %v3223, %v3766
    %v3768 = vand.u32 %v3767, 4294901760
    %3769 = vmatprep.subr.mxu0 %v3768
    %v3770 = vand.u32 %v3222, 4294901760
    %v3771 = vsub.f32 %v3222, %v3770
    %v3772 = vand.u32 %v3771, 4294901760
    %3773 = vmatpush1.msra.mxu0 %v3772
    %v3774 = vand.u32 %v3231, 4294901760
    %v3775 = vsub.f32 %v3231, %v3774
    %v3776 = vand.u32 %v3775, 4294901760
    %3777 = vmatprep.subr.mxu0 %v3776
    %v3778 = vand.u32 %v3230, 4294901760
    %v3779 = vsub.f32 %v3230, %v3778
    %v3780 = vand.u32 %v3779, 4294901760
    %3781 = vmatpush1.msra.mxu0 %v3780
    %v3782 = vand.u32 %v3239, 4294901760
    %v3783 = vsub.f32 %v3239, %v3782
    %v3784 = vand.u32 %v3783, 4294901760
    %3785 = vmatprep.subr.mxu0 %v3784
    %v3786 = vand.u32 %v3238, 4294901760
    %v3787 = vsub.f32 %v3238, %v3786
    %v3788 = vand.u32 %v3787, 4294901760
    %3789 = vmatpush1.msra.mxu0 %v3788
    %3790 = vmatprep.subr.mxu0 0.0
    %3791 = vmatpush1.msra.mxu0 0.0
    %3792 = vmatprep.subr.mxu0 0.0
    %3793 = vmatpush1.msra.mxu0 0.0
    %3794 = vmatprep.subr.mxu0 0.0
    %3795 = vmatpush1.msra.mxu0 0.0
    %3796 = vmatprep.subr.mxu0 0.0
    %3797 = vmatpush1.msra.mxu0 0.0
    %3798 = vmatprep.subr.mxu0 0.0
    %3799 = vmatpush1.msra.mxu0 0.0
    %3800 = vmatprep.subr.mxu0 0.0
    %3801 = vmatpush1.msra.mxu0 0.0
    %3802 = vmatprep.subr.mxu0 0.0
    %3803 = vmatpush1.msra.mxu0 0.0
    %3804 = vmatprep.subr.mxu0 0.0
    %3805 = vmatpush1.msra.mxu0 0.0
    %3806 = vmatprep.subr.mxu0 0.0
    %3807 = vmatpush1.msra.mxu0 0.0
    %3808 = vmatprep.subr.mxu0 0.0
    %3809 = vmatpush1.msra.mxu0 0.0
    %3810 = vmatprep.subr.mxu0 0.0
    %3811 = vmatpush1.msra.mxu0 0.0
    %3812 = vmatprep.subr.mxu0 0.0
    %3813 = vmatpush1.msra.mxu0 0.0
    %3814 = vmatprep.subr.mxu0 0.0
    %3815 = vmatpush1.msra.mxu0 0.0
    %3816 = vmatprep.subr.mxu0 0.0
    %3817 = vmatpush1.msra.mxu0 0.0
    %3818 = vmatprep.subr.mxu0 0.0
    %3819 = vmatpush1.msra.mxu0 0.0
    %3820 = vmatprep.subr.mxu0 0.0
    %3821 = vmatpush1.msra.mxu0 0.0
    %3822 = vmatprep.subr.mxu0 0.0
    %3823 = vmatpush1.msra.mxu0 0.0
    %3824 = vmatprep.subr.mxu0 0.0
    %3825 = vmatpush1.msra.mxu0 0.0
    %3826 = vmatprep.subr.mxu0 0.0
    %3827 = vmatpush1.msra.mxu0 0.0
    %3828 = vmatprep.subr.mxu0 0.0
    %3829 = vmatpush1.msra.mxu0 0.0
    %3830 = vmatprep.subr.mxu0 0.0
    %3831 = vmatpush1.msra.mxu0 0.0
    %3832 = vmatprep.subr.mxu0 0.0
    %3833 = vmatpush1.msra.mxu0 0.0
    %3834 = vmatprep.subr.mxu0 0.0
    %3835 = vmatpush1.msra.mxu0 0.0
    %3836 = vmatprep.subr.mxu0 0.0
    %3837 = vmatpush1.msra.mxu0 0.0
    %3838 = vmatprep.subr.mxu0 0.0
    %3839 = vmatpush1.msra.mxu0 0.0
    %3840 = vmatprep.subr.mxu0 0.0
    %3841 = vmatpush1.msra.mxu0 0.0
    %3842 = vmatprep.subr.mxu0 0.0
    %3843 = vmatpush1.msra.mxu0 0.0
    %3844 = vmatprep.subr.mxu0 0.0
    %3845 = vmatpush1.msra.mxu0 0.0
    %3846 = vmatprep.mubr.f32.mxu0 0.0
    %v3847 = vand.u32 %v3275, 4294901760
    %3848 = vmatmul.mubr.f32.gmra.mrb[0].mxu0 %v3847
    %v3849 = vpop.f32.mrb[0].mxu0
    %v3850 = vadd.f32 %v3727, %v3849
    %v3851 = vpop.f32.mrb[0].mxu0
    %v3852 = vadd.f32 %v3729, %v3851
    %3853 = vmatprep.mubr.f32.mxu0 0.0
    %v3854 = vand.u32 %v3278, 4294901760
    %3855 = vmatmul.mubr.f32.gmra.mrb[0].mxu0 %v3854
    %v3856 = vpop.f32.mrb[0].mxu0
    %v3857 = vadd.f32 %v3736, %v3856
    %v3858 = vpop.f32.mrb[0].mxu0
    %v3859 = vadd.f32 %v3738, %v3858
    %3860 = vmatprep.mubr.f32.mxu0 0.0
    %v3861 = vand.u32 %v3281, 4294901760
    %3862 = vmatmul.mubr.f32.gmra.mrb[0].mxu0 %v3861
    %v3863 = vpop.f32.mrb[0].mxu0
    %v3864 = vadd.f32 %v3745, %v3863
    %v3865 = vpop.f32.mrb[0].mxu0
    %v3866 = vadd.f32 %v3747, %v3865
    %3867 = vmatprep.mubr.f32.mxu0 0.0
    %v3868 = vand.u32 %v3284, 4294901760
    %3869 = vmatmul.mubr.f32.gmra.mrb[0].mxu0 %v3868
    %v3870 = vpop.f32.mrb[0].mxu0
    %v3871 = vadd.f32 %v3754, %v3870
    %v3872 = vpop.f32.mrb[0].mxu0
    %v3873 = vadd.f32 %v3756, %v3872
    %3874 = vdwg.mxu0
    %v3875 = vand.u32 %v3215, 4294901760
    %3876 = vmatprep.subr.mxu0 %v3875
    %v3877 = vand.u32 %v3214, 4294901760
    %3878 = vmatpush1.msra.mxu0 %v3877
    %v3879 = vand.u32 %v3223, 4294901760
    %3880 = vmatprep.subr.mxu0 %v3879
    %v3881 = vand.u32 %v3222, 4294901760
    %3882 = vmatpush1.msra.mxu0 %v3881
    %v3883 = vand.u32 %v3231, 4294901760
    %3884 = vmatprep.subr.mxu0 %v3883
    %v3885 = vand.u32 %v3230, 4294901760
    %3886 = vmatpush1.msra.mxu0 %v3885
    %v3887 = vand.u32 %v3239, 4294901760
    %3888 = vmatprep.subr.mxu0 %v3887
    %v3889 = vand.u32 %v3238, 4294901760
    %3890 = vmatpush1.msra.mxu0 %v3889
    %3891 = vmatprep.subr.mxu0 0.0
    %3892 = vmatpush1.msra.mxu0 0.0
    %3893 = vmatprep.subr.mxu0 0.0
    %3894 = vmatpush1.msra.mxu0 0.0
    %3895 = vmatprep.subr.mxu0 0.0
    %3896 = vmatpush1.msra.mxu0 0.0
    %3897 = vmatprep.subr.mxu0 0.0
    %3898 = vmatpush1.msra.mxu0 0.0
    %3899 = vmatprep.subr.mxu0 0.0
    %3900 = vmatpush1.msra.mxu0 0.0
    %3901 = vmatprep.subr.mxu0 0.0
    %3902 = vmatpush1.msra.mxu0 0.0
    %3903 = vmatprep.subr.mxu0 0.0
    %3904 = vmatpush1.msra.mxu0 0.0
    %3905 = vmatprep.subr.mxu0 0.0
    %3906 = vmatpush1.msra.mxu0 0.0
    %3907 = vmatprep.subr.mxu0 0.0
    %3908 = vmatpush1.msra.mxu0 0.0
    %3909 = vmatprep.subr.mxu0 0.0
    %3910 = vmatpush1.msra.mxu0 0.0
    %3911 = vmatprep.subr.mxu0 0.0
    %3912 = vmatpush1.msra.mxu0 0.0
    %3913 = vmatprep.subr.mxu0 0.0
    %3914 = vmatpush1.msra.mxu0 0.0
    %3915 = vmatprep.subr.mxu0 0.0
    %3916 = vmatpush1.msra.mxu0 0.0
    %3917 = vmatprep.subr.mxu0 0.0
    %3918 = vmatpush1.msra.mxu0 0.0
    %3919 = vmatprep.subr.mxu0 0.0
    %3920 = vmatpush1.msra.mxu0 0.0
    %3921 = vmatprep.subr.mxu0 0.0
    %3922 = vmatpush1.msra.mxu0 0.0
    %3923 = vmatprep.subr.mxu0 0.0
    %3924 = vmatpush1.msra.mxu0 0.0
    %3925 = vmatprep.subr.mxu0 0.0
    %3926 = vmatpush1.msra.mxu0 0.0
    %3927 = vmatprep.subr.mxu0 0.0
    %3928 = vmatpush1.msra.mxu0 0.0
    %3929 = vmatprep.subr.mxu0 0.0
    %3930 = vmatpush1.msra.mxu0 0.0
    %3931 = vmatprep.subr.mxu0 0.0
    %3932 = vmatpush1.msra.mxu0 0.0
    %3933 = vmatprep.subr.mxu0 0.0
    %3934 = vmatpush1.msra.mxu0 0.0
    %3935 = vmatprep.subr.mxu0 0.0
    %3936 = vmatpush1.msra.mxu0 0.0
    %3937 = vmatprep.subr.mxu0 0.0
    %3938 = vmatpush1.msra.mxu0 0.0
    %3939 = vmatprep.subr.mxu0 0.0
    %3940 = vmatpush1.msra.mxu0 0.0
    %3941 = vmatprep.subr.mxu0 0.0
    %3942 = vmatpush1.msra.mxu0 0.0
    %3943 = vmatprep.subr.mxu0 0.0
    %3944 = vmatpush1.msra.mxu0 0.0
    %3945 = vmatprep.subr.mxu0 0.0
    %3946 = vmatpush1.msra.mxu0 0.0
    %3947 = vmatprep.mubr.f32.mxu0 0.0
    %v3948 = vand.u32 %v3275, 4294901760
    %3949 = vmatmul.mubr.f32.gmra.mrb[0].mxu0 %v3948
    %v3950 = vpop.f32.mrb[0].mxu0
    %v3951 = vadd.f32 %v3850, %v3950
    %v3952 = vpop.f32.mrb[0].mxu0
    %v3953 = vadd.f32 %v3852, %v3952
    %3954 = vmatprep.mubr.f32.mxu0 0.0
    %v3955 = vand.u32 %v3278, 4294901760
    %3956 = vmatmul.mubr.f32.gmra.mrb[0].mxu0 %v3955
    %v3957 = vpop.f32.mrb[0].mxu0
    %v3958 = vadd.f32 %v3857, %v3957
    %v3959 = vpop.f32.mrb[0].mxu0
    %v3960 = vadd.f32 %v3859, %v3959
    %3961 = vmatprep.mubr.f32.mxu0 0.0
    %v3962 = vand.u32 %v3281, 4294901760
    %3963 = vmatmul.mubr.f32.gmra.mrb[0].mxu0 %v3962
    %v3964 = vpop.f32.mrb[0].mxu0
    %v3965 = vadd.f32 %v3864, %v3964
    %v3966 = vpop.f32.mrb[0].mxu0
    %v3967 = vadd.f32 %v3866, %v3966
    %3968 = vmatprep.mubr.f32.mxu0 0.0
    %v3969 = vand.u32 %v3284, 4294901760
    %3970 = vmatmul.mubr.f32.gmra.mrb[0].mxu0 %v3969
    %v3971 = vpop.f32.mrb[0].mxu0
    %v3972 = vadd.f32 %v3871, %v3971
    %v3973 = vpop.f32.mrb[0].mxu0
    %v3974 = vadd.f32 %v3873, %v3973
    %3975 = vdwg.mxu0
    %v3976 = vand.u32 %v3217, 4294901760
    %3977 = vmatprep.subr.mxu0 %v3976
    %v3978 = vand.u32 %v3216, 4294901760
    %3979 = vmatpush1.msra.mxu0 %v3978
    %v3980 = vand.u32 %v3225, 4294901760
    %3981 = vmatprep.subr.mxu0 %v3980
    %v3982 = vand.u32 %v3224, 4294901760
    %3983 = vmatpush1.msra.mxu0 %v3982
    %v3984 = vand.u32 %v3233, 4294901760
    %3985 = vmatprep.subr.mxu0 %v3984
    %v3986 = vand.u32 %v3232, 4294901760
    %3987 = vmatpush1.msra.mxu0 %v3986
    %v3988 = vand.u32 %v3241, 4294901760
    %3989 = vmatprep.subr.mxu0 %v3988
    %v3990 = vand.u32 %v3240, 4294901760
    %3991 = vmatpush1.msra.mxu0 %v3990
    %3992 = vmatprep.subr.mxu0 0.0
    %3993 = vmatpush1.msra.mxu0 0.0
    %3994 = vmatprep.subr.mxu0 0.0
    %3995 = vmatpush1.msra.mxu0 0.0
    %3996 = vmatprep.subr.mxu0 0.0
    %3997 = vmatpush1.msra.mxu0 0.0
    %3998 = vmatprep.subr.mxu0 0.0
    %3999 = vmatpush1.msra.mxu0 0.0
    %4000 = vmatprep.subr.mxu0 0.0
    %4001 = vmatpush1.msra.mxu0 0.0
    %4002 = vmatprep.subr.mxu0 0.0
    %4003 = vmatpush1.msra.mxu0 0.0
    %4004 = vmatprep.subr.mxu0 0.0
    %4005 = vmatpush1.msra.mxu0 0.0
    %4006 = vmatprep.subr.mxu0 0.0
    %4007 = vmatpush1.msra.mxu0 0.0
    %4008 = vmatprep.subr.mxu0 0.0
    %4009 = vmatpush1.msra.mxu0 0.0
    %4010 = vmatprep.subr.mxu0 0.0
    %4011 = vmatpush1.msra.mxu0 0.0
    %4012 = vmatprep.subr.mxu0 0.0
    %4013 = vmatpush1.msra.mxu0 0.0
    %4014 = vmatprep.subr.mxu0 0.0
    %4015 = vmatpush1.msra.mxu0 0.0
    %4016 = vmatprep.subr.mxu0 0.0
    %4017 = vmatpush1.msra.mxu0 0.0
    %4018 = vmatprep.subr.mxu0 0.0
    %4019 = vmatpush1.msra.mxu0 0.0
    %4020 = vmatprep.subr.mxu0 0.0
    %4021 = vmatpush1.msra.mxu0 0.0
    %4022 = vmatprep.subr.mxu0 0.0
    %4023 = vmatpush1.msra.mxu0 0.0
    %4024 = vmatprep.subr.mxu0 0.0
    %4025 = vmatpush1.msra.mxu0 0.0
    %4026 = vmatprep.subr.mxu0 0.0
    %4027 = vmatpush1.msra.mxu0 0.0
    %4028 = vmatprep.subr.mxu0 0.0
    %4029 = vmatpush1.msra.mxu0 0.0
    %4030 = vmatprep.subr.mxu0 0.0
    %4031 = vmatpush1.msra.mxu0 0.0
    %4032 = vmatprep.subr.mxu0 0.0
    %4033 = vmatpush1.msra.mxu0 0.0
    %4034 = vmatprep.subr.mxu0 0.0
    %4035 = vmatpush1.msra.mxu0 0.0
    %4036 = vmatprep.subr.mxu0 0.0
    %4037 = vmatpush1.msra.mxu0 0.0
    %4038 = vmatprep.subr.mxu0 0.0
    %4039 = vmatpush1.msra.mxu0 0.0
    %4040 = vmatprep.subr.mxu0 0.0
    %4041 = vmatpush1.msra.mxu0 0.0
    %4042 = vmatprep.subr.mxu0 0.0
    %4043 = vmatpush1.msra.mxu0 0.0
    %4044 = vmatprep.subr.mxu0 0.0
    %4045 = vmatpush1.msra.mxu0 0.0
    %4046 = vmatprep.subr.mxu0 0.0
    %4047 = vmatpush1.msra.mxu0 0.0
    %4048 = vmatprep.mubr.f32.mxu0 0.0
    %v4049 = vand.u32 %v3275, 4294901760
    %v4050 = vsub.f32 %v3275, %v4049
    %v4051 = vand.u32 %v4050, 4294901760
    %v4052 = vsub.f32 %v4050, %v4051
    %v4053 = vand.u32 %v4052, 4294901760
    %4054 = vmatmul.mubr.f32.gmra.mrb[0].mxu0 %v4053
    %v4055 = vpop.f32.mrb[0].mxu0
    %v4056 = vadd.f32 %v3257, %v4055
    %v4057 = vpop.f32.mrb[0].mxu0
    %v4058 = vadd.f32 %v3257, %v4057
    %4059 = vmatprep.mubr.f32.mxu0 0.0
    %v4060 = vand.u32 %v3278, 4294901760
    %v4061 = vsub.f32 %v3278, %v4060
    %v4062 = vand.u32 %v4061, 4294901760
    %v4063 = vsub.f32 %v4061, %v4062
    %v4064 = vand.u32 %v4063, 4294901760
    %4065 = vmatmul.mubr.f32.gmra.mrb[0].mxu0 %v4064
    %v4066 = vpop.f32.mrb[0].mxu0
    %v4067 = vadd.f32 %v3262, %v4066
    %v4068 = vpop.f32.mrb[0].mxu0
    %v4069 = vadd.f32 %v3262, %v4068
    %4070 = vmatprep.mubr.f32.mxu0 0.0
    %v4071 = vand.u32 %v3281, 4294901760
    %v4072 = vsub.f32 %v3281, %v4071
    %v4073 = vand.u32 %v4072, 4294901760
    %v4074 = vsub.f32 %v4072, %v4073
    %v4075 = vand.u32 %v4074, 4294901760
    %4076 = vmatmul.mubr.f32.gmra.mrb[0].mxu0 %v4075
    %v4077 = vpop.f32.mrb[0].mxu0
    %v4078 = vadd.f32 %v3267, %v4077
    %v4079 = vpop.f32.mrb[0].mxu0
    %v4080 = vadd.f32 %v3267, %v4079
    %4081 = vmatprep.mubr.f32.mxu0 0.0
    %v4082 = vand.u32 %v3284, 4294901760
    %v4083 = vsub.f32 %v3284, %v4082
    %v4084 = vand.u32 %v4083, 4294901760
    %v4085 = vsub.f32 %v4083, %v4084
    %v4086 = vand.u32 %v4085, 4294901760
    %4087 = vmatmul.mubr.f32.gmra.mrb[0].mxu0 %v4086
    %v4088 = vpop.f32.mrb[0].mxu0
    %v4089 = vadd.f32 %v3272, %v4088
    %v4090 = vpop.f32.mrb[0].mxu0
    %v4091 = vadd.f32 %v3272, %v4090
    %4092 = vdwg.mxu0
    %v4093 = vand.u32 %v3217, 4294901760
    %v4094 = vsub.f32 %v3217, %v4093
    %v4095 = vand.u32 %v4094, 4294901760
    %v4096 = vsub.f32 %v4094, %v4095
    %v4097 = vand.u32 %v4096, 4294901760
    %4098 = vmatprep.subr.mxu0 %v4097
    %v4099 = vand.u32 %v3216, 4294901760
    %v4100 = vsub.f32 %v3216, %v4099
    %v4101 = vand.u32 %v4100, 4294901760
    %v4102 = vsub.f32 %v4100, %v4101
    %v4103 = vand.u32 %v4102, 4294901760
    %4104 = vmatpush1.msra.mxu0 %v4103
    %v4105 = vand.u32 %v3225, 4294901760
    %v4106 = vsub.f32 %v3225, %v4105
    %v4107 = vand.u32 %v4106, 4294901760
    %v4108 = vsub.f32 %v4106, %v4107
    %v4109 = vand.u32 %v4108, 4294901760
    %4110 = vmatprep.subr.mxu0 %v4109
    %v4111 = vand.u32 %v3224, 4294901760
    %v4112 = vsub.f32 %v3224, %v4111
    %v4113 = vand.u32 %v4112, 4294901760
    %v4114 = vsub.f32 %v4112, %v4113
    %v4115 = vand.u32 %v4114, 4294901760
    %4116 = vmatpush1.msra.mxu0 %v4115
    %v4117 = vand.u32 %v3233, 4294901760
    %v4118 = vsub.f32 %v3233, %v4117
    %v4119 = vand.u32 %v4118, 4294901760
    %v4120 = vsub.f32 %v4118, %v4119
    %v4121 = vand.u32 %v4120, 4294901760
    %4122 = vmatprep.subr.mxu0 %v4121
    %v4123 = vand.u32 %v3232, 4294901760
    %v4124 = vsub.f32 %v3232, %v4123
    %v4125 = vand.u32 %v4124, 4294901760
    %v4126 = vsub.f32 %v4124, %v4125
    %v4127 = vand.u32 %v4126, 4294901760
    %4128 = vmatpush1.msra.mxu0 %v4127
    %v4129 = vand.u32 %v3241, 4294901760
    %v4130 = vsub.f32 %v3241, %v4129
    %v4131 = vand.u32 %v4130, 4294901760
    %v4132 = vsub.f32 %v4130, %v4131
    %v4133 = vand.u32 %v4132, 4294901760
    %4134 = vmatprep.subr.mxu0 %v4133
    %v4135 = vand.u32 %v3240, 4294901760
    %v4136 = vsub.f32 %v3240, %v4135
    %v4137 = vand.u32 %v4136, 4294901760
    %v4138 = vsub.f32 %v4136, %v4137
    %v4139 = vand.u32 %v4138, 4294901760
    %4140 = vmatpush1.msra.mxu0 %v4139
    %4141 = vmatprep.subr.mxu0 0.0
    %4142 = vmatpush1.msra.mxu0 0.0
    %4143 = vmatprep.subr.mxu0 0.0
    %4144 = vmatpush1.msra.mxu0 0.0
    %4145 = vmatprep.subr.mxu0 0.0
    %4146 = vmatpush1.msra.mxu0 0.0
    %4147 = vmatprep.subr.mxu0 0.0
    %4148 = vmatpush1.msra.mxu0 0.0
    %4149 = vmatprep.subr.mxu0 0.0
    %4150 = vmatpush1.msra.mxu0 0.0
    %4151 = vmatprep.subr.mxu0 0.0
    %4152 = vmatpush1.msra.mxu0 0.0
    %4153 = vmatprep.subr.mxu0 0.0
    %4154 = vmatpush1.msra.mxu0 0.0
    %4155 = vmatprep.subr.mxu0 0.0
    %4156 = vmatpush1.msra.mxu0 0.0
    %4157 = vmatprep.subr.mxu0 0.0
    %4158 = vmatpush1.msra.mxu0 0.0
    %4159 = vmatprep.subr.mxu0 0.0
    %4160 = vmatpush1.msra.mxu0 0.0
    %4161 = vmatprep.subr.mxu0 0.0
    %4162 = vmatpush1.msra.mxu0 0.0
    %4163 = vmatprep.subr.mxu0 0.0
    %4164 = vmatpush1.msra.mxu0 0.0
    %4165 = vmatprep.subr.mxu0 0.0
    %4166 = vmatpush1.msra.mxu0 0.0
    %4167 = vmatprep.subr.mxu0 0.0
    %4168 = vmatpush1.msra.mxu0 0.0
    %4169 = vmatprep.subr.mxu0 0.0
    %4170 = vmatpush1.msra.mxu0 0.0
    %4171 = vmatprep.subr.mxu0 0.0
    %4172 = vmatpush1.msra.mxu0 0.0
    %4173 = vmatprep.subr.mxu0 0.0
    %4174 = vmatpush1.msra.mxu0 0.0
    %4175 = vmatprep.subr.mxu0 0.0
    %4176 = vmatpush1.msra.mxu0 0.0
    %4177 = vmatprep.subr.mxu0 0.0
    %4178 = vmatpush1.msra.mxu0 0.0
    %4179 = vmatprep.subr.mxu0 0.0
    %4180 = vmatpush1.msra.mxu0 0.0
    %4181 = vmatprep.subr.mxu0 0.0
    %4182 = vmatpush1.msra.mxu0 0.0
    %4183 = vmatprep.subr.mxu0 0.0
    %4184 = vmatpush1.msra.mxu0 0.0
    %4185 = vmatprep.subr.mxu0 0.0
    %4186 = vmatpush1.msra.mxu0 0.0
    %4187 = vmatprep.subr.mxu0 0.0
    %4188 = vmatpush1.msra.mxu0 0.0
    %4189 = vmatprep.subr.mxu0 0.0
    %4190 = vmatpush1.msra.mxu0 0.0
    %4191 = vmatprep.subr.mxu0 0.0
    %4192 = vmatpush1.msra.mxu0 0.0
    %4193 = vmatprep.subr.mxu0 0.0
    %4194 = vmatpush1.msra.mxu0 0.0
    %4195 = vmatprep.subr.mxu0 0.0
    %4196 = vmatpush1.msra.mxu0 0.0
    %4197 = vmatprep.mubr.f32.mxu0 0.0
    %v4198 = vand.u32 %v3275, 4294901760
    %4199 = vmatmul.mubr.f32.gmra.mrb[0].mxu0 %v4198
    %v4200 = vpop.f32.mrb[0].mxu0
    %v4201 = vadd.f32 %v4056, %v4200
    %v4202 = vpop.f32.mrb[0].mxu0
    %v4203 = vadd.f32 %v4058, %v4202
    %4204 = vmatprep.mubr.f32.mxu0 0.0
    %v4205 = vand.u32 %v3278, 4294901760
    %4206 = vmatmul.mubr.f32.gmra.mrb[0].mxu0 %v4205
    %v4207 = vpop.f32.mrb[0].mxu0
    %v4208 = vadd.f32 %v4067, %v4207
    %v4209 = vpop.f32.mrb[0].mxu0
    %v4210 = vadd.f32 %v4069, %v4209
    %4211 = vmatprep.mubr.f32.mxu0 0.0
    %v4212 = vand.u32 %v3281, 4294901760
    %4213 = vmatmul.mubr.f32.gmra.mrb[0].mxu0 %v4212
    %v4214 = vpop.f32.mrb[0].mxu0
    %v4215 = vadd.f32 %v4078, %v4214
    %v4216 = vpop.f32.mrb[0].mxu0
    %v4217 = vadd.f32 %v4080, %v4216
    %4218 = vmatprep.mubr.f32.mxu0 0.0
    %v4219 = vand.u32 %v3284, 4294901760
    %4220 = vmatmul.mubr.f32.gmra.mrb[0].mxu0 %v4219
    %v4221 = vpop.f32.mrb[0].mxu0
    %v4222 = vadd.f32 %v4089, %v4221
    %v4223 = vpop.f32.mrb[0].mxu0
    %v4224 = vadd.f32 %v4091, %v4223
    %4225 = vdwg.mxu0
    %v4226 = vand.u32 %v3217, 4294901760
    %v4227 = vsub.f32 %v3217, %v4226
    %4228 = vmatprep.subr.mxu0 %v4227
    %v4229 = vand.u32 %v3216, 4294901760
    %v4230 = vsub.f32 %v3216, %v4229
    %4231 = vmatpush1.msra.mxu0 %v4230
    %v4232 = vand.u32 %v3225, 4294901760
    %v4233 = vsub.f32 %v3225, %v4232
    %4234 = vmatprep.subr.mxu0 %v4233
    %v4235 = vand.u32 %v3224, 4294901760
    %v4236 = vsub.f32 %v3224, %v4235
    %4237 = vmatpush1.msra.mxu0 %v4236
    %v4238 = vand.u32 %v3233, 4294901760
    %v4239 = vsub.f32 %v3233, %v4238
    %4240 = vmatprep.subr.mxu0 %v4239
    %v4241 = vand.u32 %v3232, 4294901760
    %v4242 = vsub.f32 %v3232, %v4241
    %4243 = vmatpush1.msra.mxu0 %v4242
    %v4244 = vand.u32 %v3241, 4294901760
    %v4245 = vsub.f32 %v3241, %v4244
    %4246 = vmatprep.subr.mxu0 %v4245
    %v4247 = vand.u32 %v3240, 4294901760
    %v4248 = vsub.f32 %v3240, %v4247
    %4249 = vmatpush1.msra.mxu0 %v4248
    %4250 = vmatprep.subr.mxu0 0.0
    %4251 = vmatpush1.msra.mxu0 0.0
    %4252 = vmatprep.subr.mxu0 0.0
    %4253 = vmatpush1.msra.mxu0 0.0
    %4254 = vmatprep.subr.mxu0 0.0
    %4255 = vmatpush1.msra.mxu0 0.0
    %4256 = vmatprep.subr.mxu0 0.0
    %4257 = vmatpush1.msra.mxu0 0.0
    %4258 = vmatprep.subr.mxu0 0.0
    %4259 = vmatpush1.msra.mxu0 0.0
    %4260 = vmatprep.subr.mxu0 0.0
    %4261 = vmatpush1.msra.mxu0 0.0
    %4262 = vmatprep.subr.mxu0 0.0
    %4263 = vmatpush1.msra.mxu0 0.0
    %4264 = vmatprep.subr.mxu0 0.0
    %4265 = vmatpush1.msra.mxu0 0.0
    %4266 = vmatprep.subr.mxu0 0.0
    %4267 = vmatpush1.msra.mxu0 0.0
    %4268 = vmatprep.subr.mxu0 0.0
    %4269 = vmatpush1.msra.mxu0 0.0
    %4270 = vmatprep.subr.mxu0 0.0
    %4271 = vmatpush1.msra.mxu0 0.0
    %4272 = vmatprep.subr.mxu0 0.0
    %4273 = vmatpush1.msra.mxu0 0.0
    %4274 = vmatprep.subr.mxu0 0.0
    %4275 = vmatpush1.msra.mxu0 0.0
    %4276 = vmatprep.subr.mxu0 0.0
    %4277 = vmatpush1.msra.mxu0 0.0
    %4278 = vmatprep.subr.mxu0 0.0
    %4279 = vmatpush1.msra.mxu0 0.0
    %4280 = vmatprep.subr.mxu0 0.0
    %4281 = vmatpush1.msra.mxu0 0.0
    %4282 = vmatprep.subr.mxu0 0.0
    %4283 = vmatpush1.msra.mxu0 0.0
    %4284 = vmatprep.subr.mxu0 0.0
    %4285 = vmatpush1.msra.mxu0 0.0
    %4286 = vmatprep.subr.mxu0 0.0
    %4287 = vmatpush1.msra.mxu0 0.0
    %4288 = vmatprep.subr.mxu0 0.0
    %4289 = vmatpush1.msra.mxu0 0.0
    %4290 = vmatprep.subr.mxu0 0.0
    %4291 = vmatpush1.msra.mxu0 0.0
    %4292 = vmatprep.subr.mxu0 0.0
    %4293 = vmatpush1.msra.mxu0 0.0
    %4294 = vmatprep.subr.mxu0 0.0
    %4295 = vmatpush1.msra.mxu0 0.0
    %4296 = vmatprep.subr.mxu0 0.0
    %4297 = vmatpush1.msra.mxu0 0.0
    %4298 = vmatprep.subr.mxu0 0.0
    %4299 = vmatpush1.msra.mxu0 0.0
    %4300 = vmatprep.subr.mxu0 0.0
    %4301 = vmatpush1.msra.mxu0 0.0
    %4302 = vmatprep.subr.mxu0 0.0
    %4303 = vmatpush1.msra.mxu0 0.0
    %4304 = vmatprep.subr.mxu0 0.0
    %4305 = vmatpush1.msra.mxu0 0.0
    %4306 = vmatprep.mubr.f32.mxu0 0.0
    %v4307 = vand.u32 %v3275, 4294901760
    %v4308 = vsub.f32 %v3275, %v4307
    %4309 = vmatmul.mubr.f32.gmra.mrb[0].mxu0 %v4308
    %v4310 = vpop.f32.mrb[0].mxu0
    %v4311 = vadd.f32 %v4201, %v4310
    %v4312 = vpop.f32.mrb[0].mxu0
    %v4313 = vadd.f32 %v4203, %v4312
    %4314 = vmatprep.mubr.f32.mxu0 0.0
    %v4315 = vand.u32 %v3278, 4294901760
    %v4316 = vsub.f32 %v3278, %v4315
    %4317 = vmatmul.mubr.f32.gmra.mrb[0].mxu0 %v4316
    %v4318 = vpop.f32.mrb[0].mxu0
    %v4319 = vadd.f32 %v4208, %v4318
    %v4320 = vpop.f32.mrb[0].mxu0
    %v4321 = vadd.f32 %v4210, %v4320
    %4322 = vmatprep.mubr.f32.mxu0 0.0
    %v4323 = vand.u32 %v3281, 4294901760
    %v4324 = vsub.f32 %v3281, %v4323
    %4325 = vmatmul.mubr.f32.gmra.mrb[0].mxu0 %v4324
    %v4326 = vpop.f32.mrb[0].mxu0
    %v4327 = vadd.f32 %v4215, %v4326
    %v4328 = vpop.f32.mrb[0].mxu0
    %v4329 = vadd.f32 %v4217, %v4328
    %4330 = vmatprep.mubr.f32.mxu0 0.0
    %v4331 = vand.u32 %v3284, 4294901760
    %v4332 = vsub.f32 %v3284, %v4331
    %4333 = vmatmul.mubr.f32.gmra.mrb[0].mxu0 %v4332
    %v4334 = vpop.f32.mrb[0].mxu0
    %v4335 = vadd.f32 %v4222, %v4334
    %v4336 = vpop.f32.mrb[0].mxu0
    %v4337 = vadd.f32 %v4224, %v4336
    %4338 = vdwg.mxu0
    %v4339 = vand.u32 %v3217, 4294901760
    %4340 = vmatprep.subr.mxu0 %v4339
    %v4341 = vand.u32 %v3216, 4294901760
    %4342 = vmatpush1.msra.mxu0 %v4341
    %v4343 = vand.u32 %v3225, 4294901760
    %4344 = vmatprep.subr.mxu0 %v4343
    %v4345 = vand.u32 %v3224, 4294901760
    %4346 = vmatpush1.msra.mxu0 %v4345
    %v4347 = vand.u32 %v3233, 4294901760
    %4348 = vmatprep.subr.mxu0 %v4347
    %v4349 = vand.u32 %v3232, 4294901760
    %4350 = vmatpush1.msra.mxu0 %v4349
    %v4351 = vand.u32 %v3241, 4294901760
    %4352 = vmatprep.subr.mxu0 %v4351
    %v4353 = vand.u32 %v3240, 4294901760
    %4354 = vmatpush1.msra.mxu0 %v4353
    %4355 = vmatprep.subr.mxu0 0.0
    %4356 = vmatpush1.msra.mxu0 0.0
    %4357 = vmatprep.subr.mxu0 0.0
    %4358 = vmatpush1.msra.mxu0 0.0
    %4359 = vmatprep.subr.mxu0 0.0
    %4360 = vmatpush1.msra.mxu0 0.0
    %4361 = vmatprep.subr.mxu0 0.0
    %4362 = vmatpush1.msra.mxu0 0.0
    %4363 = vmatprep.subr.mxu0 0.0
    %4364 = vmatpush1.msra.mxu0 0.0
    %4365 = vmatprep.subr.mxu0 0.0
    %4366 = vmatpush1.msra.mxu0 0.0
    %4367 = vmatprep.subr.mxu0 0.0
    %4368 = vmatpush1.msra.mxu0 0.0
    %4369 = vmatprep.subr.mxu0 0.0
    %4370 = vmatpush1.msra.mxu0 0.0
    %4371 = vmatprep.subr.mxu0 0.0
    %4372 = vmatpush1.msra.mxu0 0.0
    %4373 = vmatprep.subr.mxu0 0.0
    %4374 = vmatpush1.msra.mxu0 0.0
    %4375 = vmatprep.subr.mxu0 0.0
    %4376 = vmatpush1.msra.mxu0 0.0
    %4377 = vmatprep.subr.mxu0 0.0
    %4378 = vmatpush1.msra.mxu0 0.0
    %4379 = vmatprep.subr.mxu0 0.0
    %4380 = vmatpush1.msra.mxu0 0.0
    %4381 = vmatprep.subr.mxu0 0.0
    %4382 = vmatpush1.msra.mxu0 0.0
    %4383 = vmatprep.subr.mxu0 0.0
    %4384 = vmatpush1.msra.mxu0 0.0
    %4385 = vmatprep.subr.mxu0 0.0
    %4386 = vmatpush1.msra.mxu0 0.0
    %4387 = vmatprep.subr.mxu0 0.0
    %4388 = vmatpush1.msra.mxu0 0.0
    %4389 = vmatprep.subr.mxu0 0.0
    %4390 = vmatpush1.msra.mxu0 0.0
    %4391 = vmatprep.subr.mxu0 0.0
    %4392 = vmatpush1.msra.mxu0 0.0
    %4393 = vmatprep.subr.mxu0 0.0
    %4394 = vmatpush1.msra.mxu0 0.0
    %4395 = vmatprep.subr.mxu0 0.0
    %4396 = vmatpush1.msra.mxu0 0.0
    %4397 = vmatprep.subr.mxu0 0.0
    %4398 = vmatpush1.msra.mxu0 0.0
    %4399 = vmatprep.subr.mxu0 0.0
    %4400 = vmatpush1.msra.mxu0 0.0
    %4401 = vmatprep.subr.mxu0 0.0
    %4402 = vmatpush1.msra.mxu0 0.0
    %4403 = vmatprep.subr.mxu0 0.0
    %4404 = vmatpush1.msra.mxu0 0.0
    %4405 = vmatprep.subr.mxu0 0.0
    %4406 = vmatpush1.msra.mxu0 0.0
    %4407 = vmatprep.subr.mxu0 0.0
    %4408 = vmatpush1.msra.mxu0 0.0
    %4409 = vmatprep.subr.mxu0 0.0
    %4410 = vmatpush1.msra.mxu0 0.0
    %4411 = vmatprep.mubr.f32.mxu0 0.0
    %v4412 = vand.u32 %v3275, 4294901760
    %v4413 = vsub.f32 %v3275, %v4412
    %v4414 = vand.u32 %v4413, 4294901760
    %4415 = vmatmul.mubr.f32.gmra.mrb[0].mxu0 %v4414
    %v4416 = vpop.f32.mrb[0].mxu0
    %v4417 = vadd.f32 %v4311, %v4416
    %v4418 = vpop.f32.mrb[0].mxu0
    %v4419 = vadd.f32 %v4313, %v4418
    %4420 = vmatprep.mubr.f32.mxu0 0.0
    %v4421 = vand.u32 %v3278, 4294901760
    %v4422 = vsub.f32 %v3278, %v4421
    %v4423 = vand.u32 %v4422, 4294901760
    %4424 = vmatmul.mubr.f32.gmra.mrb[0].mxu0 %v4423
    %v4425 = vpop.f32.mrb[0].mxu0
    %v4426 = vadd.f32 %v4319, %v4425
    %v4427 = vpop.f32.mrb[0].mxu0
    %v4428 = vadd.f32 %v4321, %v4427
    %4429 = vmatprep.mubr.f32.mxu0 0.0
    %v4430 = vand.u32 %v3281, 4294901760
    %v4431 = vsub.f32 %v3281, %v4430
    %v4432 = vand.u32 %v4431, 4294901760
    %4433 = vmatmul.mubr.f32.gmra.mrb[0].mxu0 %v4432
    %v4434 = vpop.f32.mrb[0].mxu0
    %v4435 = vadd.f32 %v4327, %v4434
    %v4436 = vpop.f32.mrb[0].mxu0
    %v4437 = vadd.f32 %v4329, %v4436
    %4438 = vmatprep.mubr.f32.mxu0 0.0
    %v4439 = vand.u32 %v3284, 4294901760
    %v4440 = vsub.f32 %v3284, %v4439
    %v4441 = vand.u32 %v4440, 4294901760
    %4442 = vmatmul.mubr.f32.gmra.mrb[0].mxu0 %v4441
    %v4443 = vpop.f32.mrb[0].mxu0
    %v4444 = vadd.f32 %v4335, %v4443
    %v4445 = vpop.f32.mrb[0].mxu0
    %v4446 = vadd.f32 %v4337, %v4445
    %4447 = vdwg.mxu0
    %v4448 = vand.u32 %v3217, 4294901760
    %v4449 = vsub.f32 %v3217, %v4448
    %v4450 = vand.u32 %v4449, 4294901760
    %4451 = vmatprep.subr.mxu0 %v4450
    %v4452 = vand.u32 %v3216, 4294901760
    %v4453 = vsub.f32 %v3216, %v4452
    %v4454 = vand.u32 %v4453, 4294901760
    %4455 = vmatpush1.msra.mxu0 %v4454
    %v4456 = vand.u32 %v3225, 4294901760
    %v4457 = vsub.f32 %v3225, %v4456
    %v4458 = vand.u32 %v4457, 4294901760
    %4459 = vmatprep.subr.mxu0 %v4458
    %v4460 = vand.u32 %v3224, 4294901760
    %v4461 = vsub.f32 %v3224, %v4460
    %v4462 = vand.u32 %v4461, 4294901760
    %4463 = vmatpush1.msra.mxu0 %v4462
    %v4464 = vand.u32 %v3233, 4294901760
    %v4465 = vsub.f32 %v3233, %v4464
    %v4466 = vand.u32 %v4465, 4294901760
    %4467 = vmatprep.subr.mxu0 %v4466
    %v4468 = vand.u32 %v3232, 4294901760
    %v4469 = vsub.f32 %v3232, %v4468
    %v4470 = vand.u32 %v4469, 4294901760
    %4471 = vmatpush1.msra.mxu0 %v4470
    %v4472 = vand.u32 %v3241, 4294901760
    %v4473 = vsub.f32 %v3241, %v4472
    %v4474 = vand.u32 %v4473, 4294901760
    %4475 = vmatprep.subr.mxu0 %v4474
    %v4476 = vand.u32 %v3240, 4294901760
    %v4477 = vsub.f32 %v3240, %v4476
    %v4478 = vand.u32 %v4477, 4294901760
    %4479 = vmatpush1.msra.mxu0 %v4478
    %4480 = vmatprep.subr.mxu0 0.0
    %4481 = vmatpush1.msra.mxu0 0.0
    %4482 = vmatprep.subr.mxu0 0.0
    %4483 = vmatpush1.msra.mxu0 0.0
    %4484 = vmatprep.subr.mxu0 0.0
    %4485 = vmatpush1.msra.mxu0 0.0
    %4486 = vmatprep.subr.mxu0 0.0
    %4487 = vmatpush1.msra.mxu0 0.0
    %4488 = vmatprep.subr.mxu0 0.0
    %4489 = vmatpush1.msra.mxu0 0.0
    %4490 = vmatprep.subr.mxu0 0.0
    %4491 = vmatpush1.msra.mxu0 0.0
    %4492 = vmatprep.subr.mxu0 0.0
    %4493 = vmatpush1.msra.mxu0 0.0
    %4494 = vmatprep.subr.mxu0 0.0
    %4495 = vmatpush1.msra.mxu0 0.0
    %4496 = vmatprep.subr.mxu0 0.0
    %4497 = vmatpush1.msra.mxu0 0.0
    %4498 = vmatprep.subr.mxu0 0.0
    %4499 = vmatpush1.msra.mxu0 0.0
    %4500 = vmatprep.subr.mxu0 0.0
    %4501 = vmatpush1.msra.mxu0 0.0
    %4502 = vmatprep.subr.mxu0 0.0
    %4503 = vmatpush1.msra.mxu0 0.0
    %4504 = vmatprep.subr.mxu0 0.0
    %4505 = vmatpush1.msra.mxu0 0.0
    %4506 = vmatprep.subr.mxu0 0.0
    %4507 = vmatpush1.msra.mxu0 0.0
    %4508 = vmatprep.subr.mxu0 0.0
    %4509 = vmatpush1.msra.mxu0 0.0
    %4510 = vmatprep.subr.mxu0 0.0
    %4511 = vmatpush1.msra.mxu0 0.0
    %4512 = vmatprep.subr.mxu0 0.0
    %4513 = vmatpush1.msra.mxu0 0.0
    %4514 = vmatprep.subr.mxu0 0.0
    %4515 = vmatpush1.msra.mxu0 0.0
    %4516 = vmatprep.subr.mxu0 0.0
    %4517 = vmatpush1.msra.mxu0 0.0
    %4518 = vmatprep.subr.mxu0 0.0
    %4519 = vmatpush1.msra.mxu0 0.0
    %4520 = vmatprep.subr.mxu0 0.0
    %4521 = vmatpush1.msra.mxu0 0.0
    %4522 = vmatprep.subr.mxu0 0.0
    %4523 = vmatpush1.msra.mxu0 0.0
    %4524 = vmatprep.subr.mxu0 0.0
    %4525 = vmatpush1.msra.mxu0 0.0
    %4526 = vmatprep.subr.mxu0 0.0
    %4527 = vmatpush1.msra.mxu0 0.0
    %4528 = vmatprep.subr.mxu0 0.0
    %4529 = vmatpush1.msra.mxu0 0.0
    %4530 = vmatprep.subr.mxu0 0.0
    %4531 = vmatpush1.msra.mxu0 0.0
    %4532 = vmatprep.subr.mxu0 0.0
    %4533 = vmatpush1.msra.mxu0 0.0
    %4534 = vmatprep.subr.mxu0 0.0
    %4535 = vmatpush1.msra.mxu0 0.0
    %4536 = vmatprep.mubr.f32.mxu0 0.0
    %v4537 = vand.u32 %v3275, 4294901760
    %4538 = vmatmul.mubr.f32.gmra.mrb[0].mxu0 %v4537
    %v4539 = vpop.f32.mrb[0].mxu0
    %v4540 = vadd.f32 %v4417, %v4539
    %v4541 = vpop.f32.mrb[0].mxu0
    %v4542 = vadd.f32 %v4419, %v4541
    %4543 = vmatprep.mubr.f32.mxu0 0.0
    %v4544 = vand.u32 %v3278, 4294901760
    %4545 = vmatmul.mubr.f32.gmra.mrb[0].mxu0 %v4544
    %v4546 = vpop.f32.mrb[0].mxu0
    %v4547 = vadd.f32 %v4426, %v4546
    %v4548 = vpop.f32.mrb[0].mxu0
    %v4549 = vadd.f32 %v4428, %v4548
    %4550 = vmatprep.mubr.f32.mxu0 0.0
    %v4551 = vand.u32 %v3281, 4294901760
    %4552 = vmatmul.mubr.f32.gmra.mrb[0].mxu0 %v4551
    %v4553 = vpop.f32.mrb[0].mxu0
    %v4554 = vadd.f32 %v4435, %v4553
    %v4555 = vpop.f32.mrb[0].mxu0
    %v4556 = vadd.f32 %v4437, %v4555
    %4557 = vmatprep.mubr.f32.mxu0 0.0
    %v4558 = vand.u32 %v3284, 4294901760
    %4559 = vmatmul.mubr.f32.gmra.mrb[0].mxu0 %v4558
    %v4560 = vpop.f32.mrb[0].mxu0
    %v4561 = vadd.f32 %v4444, %v4560
    %v4562 = vpop.f32.mrb[0].mxu0
    %v4563 = vadd.f32 %v4446, %v4562
    %4564 = vdwg.mxu0
    %v4565 = vand.u32 %v3217, 4294901760
    %4566 = vmatprep.subr.mxu0 %v4565
    %v4567 = vand.u32 %v3216, 4294901760
    %4568 = vmatpush1.msra.mxu0 %v4567
    %v4569 = vand.u32 %v3225, 4294901760
    %4570 = vmatprep.subr.mxu0 %v4569
    %v4571 = vand.u32 %v3224, 4294901760
    %4572 = vmatpush1.msra.mxu0 %v4571
    %v4573 = vand.u32 %v3233, 4294901760
    %4574 = vmatprep.subr.mxu0 %v4573
    %v4575 = vand.u32 %v3232, 4294901760
    %4576 = vmatpush1.msra.mxu0 %v4575
    %v4577 = vand.u32 %v3241, 4294901760
    %4578 = vmatprep.subr.mxu0 %v4577
    %v4579 = vand.u32 %v3240, 4294901760
    %4580 = vmatpush1.msra.mxu0 %v4579
    %4581 = vmatprep.subr.mxu0 0.0
    %4582 = vmatpush1.msra.mxu0 0.0
    %4583 = vmatprep.subr.mxu0 0.0
    %4584 = vmatpush1.msra.mxu0 0.0
    %4585 = vmatprep.subr.mxu0 0.0
    %4586 = vmatpush1.msra.mxu0 0.0
    %4587 = vmatprep.subr.mxu0 0.0
    %4588 = vmatpush1.msra.mxu0 0.0
    %4589 = vmatprep.subr.mxu0 0.0
    %4590 = vmatpush1.msra.mxu0 0.0
    %4591 = vmatprep.subr.mxu0 0.0
    %4592 = vmatpush1.msra.mxu0 0.0
    %4593 = vmatprep.subr.mxu0 0.0
    %4594 = vmatpush1.msra.mxu0 0.0
    %4595 = vmatprep.subr.mxu0 0.0
    %4596 = vmatpush1.msra.mxu0 0.0
    %4597 = vmatprep.subr.mxu0 0.0
    %4598 = vmatpush1.msra.mxu0 0.0
    %4599 = vmatprep.subr.mxu0 0.0
    %4600 = vmatpush1.msra.mxu0 0.0
    %4601 = vmatprep.subr.mxu0 0.0
    %4602 = vmatpush1.msra.mxu0 0.0
    %4603 = vmatprep.subr.mxu0 0.0
    %4604 = vmatpush1.msra.mxu0 0.0
    %4605 = vmatprep.subr.mxu0 0.0
    %4606 = vmatpush1.msra.mxu0 0.0
    %4607 = vmatprep.subr.mxu0 0.0
    %4608 = vmatpush1.msra.mxu0 0.0
    %4609 = vmatprep.subr.mxu0 0.0
    %4610 = vmatpush1.msra.mxu0 0.0
    %4611 = vmatprep.subr.mxu0 0.0
    %4612 = vmatpush1.msra.mxu0 0.0
    %4613 = vmatprep.subr.mxu0 0.0
    %4614 = vmatpush1.msra.mxu0 0.0
    %4615 = vmatprep.subr.mxu0 0.0
    %4616 = vmatpush1.msra.mxu0 0.0
    %4617 = vmatprep.subr.mxu0 0.0
    %4618 = vmatpush1.msra.mxu0 0.0
    %4619 = vmatprep.subr.mxu0 0.0
    %4620 = vmatpush1.msra.mxu0 0.0
    %4621 = vmatprep.subr.mxu0 0.0
    %4622 = vmatpush1.msra.mxu0 0.0
    %4623 = vmatprep.subr.mxu0 0.0
    %4624 = vmatpush1.msra.mxu0 0.0
    %4625 = vmatprep.subr.mxu0 0.0
    %4626 = vmatpush1.msra.mxu0 0.0
    %4627 = vmatprep.subr.mxu0 0.0
    %4628 = vmatpush1.msra.mxu0 0.0
    %4629 = vmatprep.subr.mxu0 0.0
    %4630 = vmatpush1.msra.mxu0 0.0
    %4631 = vmatprep.subr.mxu0 0.0
    %4632 = vmatpush1.msra.mxu0 0.0
    %4633 = vmatprep.subr.mxu0 0.0
    %4634 = vmatpush1.msra.mxu0 0.0
    %4635 = vmatprep.subr.mxu0 0.0
    %4636 = vmatpush1.msra.mxu0 0.0
    %4637 = vmatprep.mubr.f32.mxu0 0.0
    %v4638 = vand.u32 %v3275, 4294901760
    %4639 = vmatmul.mubr.f32.gmra.mrb[0].mxu0 %v4638
    %v4640 = vpop.f32.mrb[0].mxu0
    %v4641 = vadd.f32 %v4540, %v4640
    %v4642 = vpop.f32.mrb[0].mxu0
    %v4643 = vadd.f32 %v4542, %v4642
    %4644 = vmatprep.mubr.f32.mxu0 0.0
    %v4645 = vand.u32 %v3278, 4294901760
    %4646 = vmatmul.mubr.f32.gmra.mrb[0].mxu0 %v4645
    %v4647 = vpop.f32.mrb[0].mxu0
    %v4648 = vadd.f32 %v4547, %v4647
    %v4649 = vpop.f32.mrb[0].mxu0
    %v4650 = vadd.f32 %v4549, %v4649
    %4651 = vmatprep.mubr.f32.mxu0 0.0
    %v4652 = vand.u32 %v3281, 4294901760
    %4653 = vmatmul.mubr.f32.gmra.mrb[0].mxu0 %v4652
    %v4654 = vpop.f32.mrb[0].mxu0
    %v4655 = vadd.f32 %v4554, %v4654
    %v4656 = vpop.f32.mrb[0].mxu0
    %v4657 = vadd.f32 %v4556, %v4656
    %4658 = vmatprep.mubr.f32.mxu0 0.0
    %v4659 = vand.u32 %v3284, 4294901760
    %4660 = vmatmul.mubr.f32.gmra.mrb[0].mxu0 %v4659
    %v4661 = vpop.f32.mrb[0].mxu0
    %v4662 = vadd.f32 %v4561, %v4661
    %v4663 = vpop.f32.mrb[0].mxu0
    %v4664 = vadd.f32 %v4563, %v4663
    %4665 = vdwg.mxu0
    %v4666 = vand.u32 %v3219, 4294901760
    %4667 = vmatprep.subr.mxu0 %v4666
    %v4668 = vand.u32 %v3218, 4294901760
    %4669 = vmatpush1.msra.mxu0 %v4668
    %v4670 = vand.u32 %v3227, 4294901760
    %4671 = vmatprep.subr.mxu0 %v4670
    %v4672 = vand.u32 %v3226, 4294901760
    %4673 = vmatpush1.msra.mxu0 %v4672
    %v4674 = vand.u32 %v3235, 4294901760
    %4675 = vmatprep.subr.mxu0 %v4674
    %v4676 = vand.u32 %v3234, 4294901760
    %4677 = vmatpush1.msra.mxu0 %v4676
    %v4678 = vand.u32 %v3243, 4294901760
    %4679 = vmatprep.subr.mxu0 %v4678
    %v4680 = vand.u32 %v3242, 4294901760
    %4681 = vmatpush1.msra.mxu0 %v4680
    %4682 = vmatprep.subr.mxu0 0.0
    %4683 = vmatpush1.msra.mxu0 0.0
    %4684 = vmatprep.subr.mxu0 0.0
    %4685 = vmatpush1.msra.mxu0 0.0
    %4686 = vmatprep.subr.mxu0 0.0
    %4687 = vmatpush1.msra.mxu0 0.0
    %4688 = vmatprep.subr.mxu0 0.0
    %4689 = vmatpush1.msra.mxu0 0.0
    %4690 = vmatprep.subr.mxu0 0.0
    %4691 = vmatpush1.msra.mxu0 0.0
    %4692 = vmatprep.subr.mxu0 0.0
    %4693 = vmatpush1.msra.mxu0 0.0
    %4694 = vmatprep.subr.mxu0 0.0
    %4695 = vmatpush1.msra.mxu0 0.0
    %4696 = vmatprep.subr.mxu0 0.0
    %4697 = vmatpush1.msra.mxu0 0.0
    %4698 = vmatprep.subr.mxu0 0.0
    %4699 = vmatpush1.msra.mxu0 0.0
    %4700 = vmatprep.subr.mxu0 0.0
    %4701 = vmatpush1.msra.mxu0 0.0
    %4702 = vmatprep.subr.mxu0 0.0
    %4703 = vmatpush1.msra.mxu0 0.0
    %4704 = vmatprep.subr.mxu0 0.0
    %4705 = vmatpush1.msra.mxu0 0.0
    %4706 = vmatprep.subr.mxu0 0.0
    %4707 = vmatpush1.msra.mxu0 0.0
    %4708 = vmatprep.subr.mxu0 0.0
    %4709 = vmatpush1.msra.mxu0 0.0
    %4710 = vmatprep.subr.mxu0 0.0
    %4711 = vmatpush1.msra.mxu0 0.0
    %4712 = vmatprep.subr.mxu0 0.0
    %4713 = vmatpush1.msra.mxu0 0.0
    %4714 = vmatprep.subr.mxu0 0.0
    %4715 = vmatpush1.msra.mxu0 0.0
    %4716 = vmatprep.subr.mxu0 0.0
    %4717 = vmatpush1.msra.mxu0 0.0
    %4718 = vmatprep.subr.mxu0 0.0
    %4719 = vmatpush1.msra.mxu0 0.0
    %4720 = vmatprep.subr.mxu0 0.0
    %4721 = vmatpush1.msra.mxu0 0.0
    %4722 = vmatprep.subr.mxu0 0.0
    %4723 = vmatpush1.msra.mxu0 0.0
    %4724 = vmatprep.subr.mxu0 0.0
    %4725 = vmatpush1.msra.mxu0 0.0
    %4726 = vmatprep.subr.mxu0 0.0
    %4727 = vmatpush1.msra.mxu0 0.0
    %4728 = vmatprep.subr.mxu0 0.0
    %4729 = vmatpush1.msra.mxu0 0.0
    %4730 = vmatprep.subr.mxu0 0.0
    %4731 = vmatpush1.msra.mxu0 0.0
    %4732 = vmatprep.subr.mxu0 0.0
    %4733 = vmatpush1.msra.mxu0 0.0
    %4734 = vmatprep.subr.mxu0 0.0
    %4735 = vmatpush1.msra.mxu0 0.0
    %4736 = vmatprep.subr.mxu0 0.0
    %4737 = vmatpush1.msra.mxu0 0.0
    %4738 = vmatprep.mubr.f32.mxu0 0.0
    %v4739 = vand.u32 %v3275, 4294901760
    %v4740 = vsub.f32 %v3275, %v4739
    %v4741 = vand.u32 %v4740, 4294901760
    %v4742 = vsub.f32 %v4740, %v4741
    %v4743 = vand.u32 %v4742, 4294901760
    %4744 = vmatmul.mubr.f32.gmra.mrb[0].mxu0 %v4743
    %v4745 = vpop.f32.mrb[0].mxu0
    %v4746 = vadd.f32 %v3257, %v4745
    %v4747 = vpop.f32.mrb[0].mxu0
    %v4748 = vadd.f32 %v3257, %v4747
    %4749 = vmatprep.mubr.f32.mxu0 0.0
    %v4750 = vand.u32 %v3278, 4294901760
    %v4751 = vsub.f32 %v3278, %v4750
    %v4752 = vand.u32 %v4751, 4294901760
    %v4753 = vsub.f32 %v4751, %v4752
    %v4754 = vand.u32 %v4753, 4294901760
    %4755 = vmatmul.mubr.f32.gmra.mrb[0].mxu0 %v4754
    %v4756 = vpop.f32.mrb[0].mxu0
    %v4757 = vadd.f32 %v3262, %v4756
    %v4758 = vpop.f32.mrb[0].mxu0
    %v4759 = vadd.f32 %v3262, %v4758
    %4760 = vmatprep.mubr.f32.mxu0 0.0
    %v4761 = vand.u32 %v3281, 4294901760
    %v4762 = vsub.f32 %v3281, %v4761
    %v4763 = vand.u32 %v4762, 4294901760
    %v4764 = vsub.f32 %v4762, %v4763
    %v4765 = vand.u32 %v4764, 4294901760
    %4766 = vmatmul.mubr.f32.gmra.mrb[0].mxu0 %v4765
    %v4767 = vpop.f32.mrb[0].mxu0
    %v4768 = vadd.f32 %v3267, %v4767
    %v4769 = vpop.f32.mrb[0].mxu0
    %v4770 = vadd.f32 %v3267, %v4769
    %4771 = vmatprep.mubr.f32.mxu0 0.0
    %v4772 = vand.u32 %v3284, 4294901760
    %v4773 = vsub.f32 %v3284, %v4772
    %v4774 = vand.u32 %v4773, 4294901760
    %v4775 = vsub.f32 %v4773, %v4774
    %v4776 = vand.u32 %v4775, 4294901760
    %4777 = vmatmul.mubr.f32.gmra.mrb[0].mxu0 %v4776
    %v4778 = vpop.f32.mrb[0].mxu0
    %v4779 = vadd.f32 %v3272, %v4778
    %v4780 = vpop.f32.mrb[0].mxu0
    %v4781 = vadd.f32 %v3272, %v4780
    %4782 = vdwg.mxu0
    %v4783 = vand.u32 %v3219, 4294901760
    %v4784 = vsub.f32 %v3219, %v4783
    %v4785 = vand.u32 %v4784, 4294901760
    %v4786 = vsub.f32 %v4784, %v4785
    %v4787 = vand.u32 %v4786, 4294901760
    %4788 = vmatprep.subr.mxu0 %v4787
    %v4789 = vand.u32 %v3218, 4294901760
    %v4790 = vsub.f32 %v3218, %v4789
    %v4791 = vand.u32 %v4790, 4294901760
    %v4792 = vsub.f32 %v4790, %v4791
    %v4793 = vand.u32 %v4792, 4294901760
    %4794 = vmatpush1.msra.mxu0 %v4793
    %v4795 = vand.u32 %v3227, 4294901760
    %v4796 = vsub.f32 %v3227, %v4795
    %v4797 = vand.u32 %v4796, 4294901760
    %v4798 = vsub.f32 %v4796, %v4797
    %v4799 = vand.u32 %v4798, 4294901760
    %4800 = vmatprep.subr.mxu0 %v4799
    %v4801 = vand.u32 %v3226, 4294901760
    %v4802 = vsub.f32 %v3226, %v4801
    %v4803 = vand.u32 %v4802, 4294901760
    %v4804 = vsub.f32 %v4802, %v4803
    %v4805 = vand.u32 %v4804, 4294901760
    %4806 = vmatpush1.msra.mxu0 %v4805
    %v4807 = vand.u32 %v3235, 4294901760
    %v4808 = vsub.f32 %v3235, %v4807
    %v4809 = vand.u32 %v4808, 4294901760
    %v4810 = vsub.f32 %v4808, %v4809
    %v4811 = vand.u32 %v4810, 4294901760
    %4812 = vmatprep.subr.mxu0 %v4811
    %v4813 = vand.u32 %v3234, 4294901760
    %v4814 = vsub.f32 %v3234, %v4813
    %v4815 = vand.u32 %v4814, 4294901760
    %v4816 = vsub.f32 %v4814, %v4815
    %v4817 = vand.u32 %v4816, 4294901760
    %4818 = vmatpush1.msra.mxu0 %v4817
    %v4819 = vand.u32 %v3243, 4294901760
    %v4820 = vsub.f32 %v3243, %v4819
    %v4821 = vand.u32 %v4820, 4294901760
    %v4822 = vsub.f32 %v4820, %v4821
    %v4823 = vand.u32 %v4822, 4294901760
    %4824 = vmatprep.subr.mxu0 %v4823
    %v4825 = vand.u32 %v3242, 4294901760
    %v4826 = vsub.f32 %v3242, %v4825
    %v4827 = vand.u32 %v4826, 4294901760
    %v4828 = vsub.f32 %v4826, %v4827
    %v4829 = vand.u32 %v4828, 4294901760
    %4830 = vmatpush1.msra.mxu0 %v4829
    %4831 = vmatprep.subr.mxu0 0.0
    %4832 = vmatpush1.msra.mxu0 0.0
    %4833 = vmatprep.subr.mxu0 0.0
    %4834 = vmatpush1.msra.mxu0 0.0
    %4835 = vmatprep.subr.mxu0 0.0
    %4836 = vmatpush1.msra.mxu0 0.0
    %4837 = vmatprep.subr.mxu0 0.0
    %4838 = vmatpush1.msra.mxu0 0.0
    %4839 = vmatprep.subr.mxu0 0.0
    %4840 = vmatpush1.msra.mxu0 0.0
    %4841 = vmatprep.subr.mxu0 0.0
    %4842 = vmatpush1.msra.mxu0 0.0
    %4843 = vmatprep.subr.mxu0 0.0
    %4844 = vmatpush1.msra.mxu0 0.0
    %4845 = vmatprep.subr.mxu0 0.0
    %4846 = vmatpush1.msra.mxu0 0.0
    %4847 = vmatprep.subr.mxu0 0.0
    %4848 = vmatpush1.msra.mxu0 0.0
    %4849 = vmatprep.subr.mxu0 0.0
    %4850 = vmatpush1.msra.mxu0 0.0
    %4851 = vmatprep.subr.mxu0 0.0
    %4852 = vmatpush1.msra.mxu0 0.0
    %4853 = vmatprep.subr.mxu0 0.0
    %4854 = vmatpush1.msra.mxu0 0.0
    %4855 = vmatprep.subr.mxu0 0.0
    %4856 = vmatpush1.msra.mxu0 0.0
    %4857 = vmatprep.subr.mxu0 0.0
    %4858 = vmatpush1.msra.mxu0 0.0
    %4859 = vmatprep.subr.mxu0 0.0
    %4860 = vmatpush1.msra.mxu0 0.0
    %4861 = vmatprep.subr.mxu0 0.0
    %4862 = vmatpush1.msra.mxu0 0.0
    %4863 = vmatprep.subr.mxu0 0.0
    %4864 = vmatpush1.msra.mxu0 0.0
    %4865 = vmatprep.subr.mxu0 0.0
    %4866 = vmatpush1.msra.mxu0 0.0
    %4867 = vmatprep.subr.mxu0 0.0
    %4868 = vmatpush1.msra.mxu0 0.0
    %4869 = vmatprep.subr.mxu0 0.0
    %4870 = vmatpush1.msra.mxu0 0.0
    %4871 = vmatprep.subr.mxu0 0.0
    %4872 = vmatpush1.msra.mxu0 0.0
    %4873 = vmatprep.subr.mxu0 0.0
    %4874 = vmatpush1.msra.mxu0 0.0
    %4875 = vmatprep.subr.mxu0 0.0
    %4876 = vmatpush1.msra.mxu0 0.0
    %4877 = vmatprep.subr.mxu0 0.0
    %4878 = vmatpush1.msra.mxu0 0.0
    %4879 = vmatprep.subr.mxu0 0.0
    %4880 = vmatpush1.msra.mxu0 0.0
    %4881 = vmatprep.subr.mxu0 0.0
    %4882 = vmatpush1.msra.mxu0 0.0
    %4883 = vmatprep.subr.mxu0 0.0
    %4884 = vmatpush1.msra.mxu0 0.0
    %4885 = vmatprep.subr.mxu0 0.0
    %4886 = vmatpush1.msra.mxu0 0.0
    %4887 = vmatprep.mubr.f32.mxu0 0.0
    %v4888 = vand.u32 %v3275, 4294901760
    %4889 = vmatmul.mubr.f32.gmra.mrb[0].mxu0 %v4888
    %v4890 = vpop.f32.mrb[0].mxu0
    %v4891 = vadd.f32 %v4746, %v4890
    %v4892 = vpop.f32.mrb[0].mxu0
    %v4893 = vadd.f32 %v4748, %v4892
    %4894 = vmatprep.mubr.f32.mxu0 0.0
    %v4895 = vand.u32 %v3278, 4294901760
    %4896 = vmatmul.mubr.f32.gmra.mrb[0].mxu0 %v4895
    %v4897 = vpop.f32.mrb[0].mxu0
    %v4898 = vadd.f32 %v4757, %v4897
    %v4899 = vpop.f32.mrb[0].mxu0
    %v4900 = vadd.f32 %v4759, %v4899
    %4901 = vmatprep.mubr.f32.mxu0 0.0
    %v4902 = vand.u32 %v3281, 4294901760
    %4903 = vmatmul.mubr.f32.gmra.mrb[0].mxu0 %v4902
    %v4904 = vpop.f32.mrb[0].mxu0
    %v4905 = vadd.f32 %v4768, %v4904
    %v4906 = vpop.f32.mrb[0].mxu0
    %v4907 = vadd.f32 %v4770, %v4906
    %4908 = vmatprep.mubr.f32.mxu0 0.0
    %v4909 = vand.u32 %v3284, 4294901760
    %4910 = vmatmul.mubr.f32.gmra.mrb[0].mxu0 %v4909
    %v4911 = vpop.f32.mrb[0].mxu0
    %v4912 = vadd.f32 %v4779, %v4911
    %v4913 = vpop.f32.mrb[0].mxu0
    %v4914 = vadd.f32 %v4781, %v4913
    %4915 = vdwg.mxu0
    %v4916 = vand.u32 %v3219, 4294901760
    %v4917 = vsub.f32 %v3219, %v4916
    %4918 = vmatprep.subr.mxu0 %v4917
    %v4919 = vand.u32 %v3218, 4294901760
    %v4920 = vsub.f32 %v3218, %v4919
    %4921 = vmatpush1.msra.mxu0 %v4920
    %v4922 = vand.u32 %v3227, 4294901760
    %v4923 = vsub.f32 %v3227, %v4922
    %4924 = vmatprep.subr.mxu0 %v4923
    %v4925 = vand.u32 %v3226, 4294901760
    %v4926 = vsub.f32 %v3226, %v4925
    %4927 = vmatpush1.msra.mxu0 %v4926
    %v4928 = vand.u32 %v3235, 4294901760
    %v4929 = vsub.f32 %v3235, %v4928
    %4930 = vmatprep.subr.mxu0 %v4929
    %v4931 = vand.u32 %v3234, 4294901760
    %v4932 = vsub.f32 %v3234, %v4931
    %4933 = vmatpush1.msra.mxu0 %v4932
    %v4934 = vand.u32 %v3243, 4294901760
    %v4935 = vsub.f32 %v3243, %v4934
    %4936 = vmatprep.subr.mxu0 %v4935
    %v4937 = vand.u32 %v3242, 4294901760
    %v4938 = vsub.f32 %v3242, %v4937
    %4939 = vmatpush1.msra.mxu0 %v4938
    %4940 = vmatprep.subr.mxu0 0.0
    %4941 = vmatpush1.msra.mxu0 0.0
    %4942 = vmatprep.subr.mxu0 0.0
    %4943 = vmatpush1.msra.mxu0 0.0
    %4944 = vmatprep.subr.mxu0 0.0
    %4945 = vmatpush1.msra.mxu0 0.0
    %4946 = vmatprep.subr.mxu0 0.0
    %4947 = vmatpush1.msra.mxu0 0.0
    %4948 = vmatprep.subr.mxu0 0.0
    %4949 = vmatpush1.msra.mxu0 0.0
    %4950 = vmatprep.subr.mxu0 0.0
    %4951 = vmatpush1.msra.mxu0 0.0
    %4952 = vmatprep.subr.mxu0 0.0
    %4953 = vmatpush1.msra.mxu0 0.0
    %4954 = vmatprep.subr.mxu0 0.0
    %4955 = vmatpush1.msra.mxu0 0.0
    %4956 = vmatprep.subr.mxu0 0.0
    %4957 = vmatpush1.msra.mxu0 0.0
    %4958 = vmatprep.subr.mxu0 0.0
    %4959 = vmatpush1.msra.mxu0 0.0
    %4960 = vmatprep.subr.mxu0 0.0
    %4961 = vmatpush1.msra.mxu0 0.0
    %4962 = vmatprep.subr.mxu0 0.0
    %4963 = vmatpush1.msra.mxu0 0.0
    %4964 = vmatprep.subr.mxu0 0.0
    %4965 = vmatpush1.msra.mxu0 0.0
    %4966 = vmatprep.subr.mxu0 0.0
    %4967 = vmatpush1.msra.mxu0 0.0
    %4968 = vmatprep.subr.mxu0 0.0
    %4969 = vmatpush1.msra.mxu0 0.0
    %4970 = vmatprep.subr.mxu0 0.0
    %4971 = vmatpush1.msra.mxu0 0.0
    %4972 = vmatprep.subr.mxu0 0.0
    %4973 = vmatpush1.msra.mxu0 0.0
    %4974 = vmatprep.subr.mxu0 0.0
    %4975 = vmatpush1.msra.mxu0 0.0
    %4976 = vmatprep.subr.mxu0 0.0
    %4977 = vmatpush1.msra.mxu0 0.0
    %4978 = vmatprep.subr.mxu0 0.0
    %4979 = vmatpush1.msra.mxu0 0.0
    %4980 = vmatprep.subr.mxu0 0.0
    %4981 = vmatpush1.msra.mxu0 0.0
    %4982 = vmatprep.subr.mxu0 0.0
    %4983 = vmatpush1.msra.mxu0 0.0
    %4984 = vmatprep.subr.mxu0 0.0
    %4985 = vmatpush1.msra.mxu0 0.0
    %4986 = vmatprep.subr.mxu0 0.0
    %4987 = vmatpush1.msra.mxu0 0.0
    %4988 = vmatprep.subr.mxu0 0.0
    %4989 = vmatpush1.msra.mxu0 0.0
    %4990 = vmatprep.subr.mxu0 0.0
    %4991 = vmatpush1.msra.mxu0 0.0
    %4992 = vmatprep.subr.mxu0 0.0
    %4993 = vmatpush1.msra.mxu0 0.0
    %4994 = vmatprep.subr.mxu0 0.0
    %4995 = vmatpush1.msra.mxu0 0.0
    %4996 = vmatprep.mubr.f32.mxu0 0.0
    %v4997 = vand.u32 %v3275, 4294901760
    %v4998 = vsub.f32 %v3275, %v4997
    %4999 = vmatmul.mubr.f32.gmra.mrb[0].mxu0 %v4998
    %v5000 = vpop.f32.mrb[0].mxu0
    %v5001 = vadd.f32 %v4891, %v5000
    %v5002 = vpop.f32.mrb[0].mxu0
    %v5003 = vadd.f32 %v4893, %v5002
    %5004 = vmatprep.mubr.f32.mxu0 0.0
    %v5005 = vand.u32 %v3278, 4294901760
    %v5006 = vsub.f32 %v3278, %v5005
    %5007 = vmatmul.mubr.f32.gmra.mrb[0].mxu0 %v5006
    %v5008 = vpop.f32.mrb[0].mxu0
    %v5009 = vadd.f32 %v4898, %v5008
    %v5010 = vpop.f32.mrb[0].mxu0
    %v5011 = vadd.f32 %v4900, %v5010
    %5012 = vmatprep.mubr.f32.mxu0 0.0
    %v5013 = vand.u32 %v3281, 4294901760
    %v5014 = vsub.f32 %v3281, %v5013
    %5015 = vmatmul.mubr.f32.gmra.mrb[0].mxu0 %v5014
    %v5016 = vpop.f32.mrb[0].mxu0
    %v5017 = vadd.f32 %v4905, %v5016
    %v5018 = vpop.f32.mrb[0].mxu0
    %v5019 = vadd.f32 %v4907, %v5018
    %5020 = vmatprep.mubr.f32.mxu0 0.0
    %v5021 = vand.u32 %v3284, 4294901760
    %v5022 = vsub.f32 %v3284, %v5021
    %5023 = vmatmul.mubr.f32.gmra.mrb[0].mxu0 %v5022
    %v5024 = vpop.f32.mrb[0].mxu0
    %v5025 = vadd.f32 %v4912, %v5024
    %v5026 = vpop.f32.mrb[0].mxu0
    %v5027 = vadd.f32 %v4914, %v5026
    %5028 = vdwg.mxu0
    %v5029 = vand.u32 %v3219, 4294901760
    %5030 = vmatprep.subr.mxu0 %v5029
    %v5031 = vand.u32 %v3218, 4294901760
    %5032 = vmatpush1.msra.mxu0 %v5031
    %v5033 = vand.u32 %v3227, 4294901760
    %5034 = vmatprep.subr.mxu0 %v5033
    %v5035 = vand.u32 %v3226, 4294901760
    %5036 = vmatpush1.msra.mxu0 %v5035
    %v5037 = vand.u32 %v3235, 4294901760
    %5038 = vmatprep.subr.mxu0 %v5037
    %v5039 = vand.u32 %v3234, 4294901760
    %5040 = vmatpush1.msra.mxu0 %v5039
    %v5041 = vand.u32 %v3243, 4294901760
    %5042 = vmatprep.subr.mxu0 %v5041
    %v5043 = vand.u32 %v3242, 4294901760
    %5044 = vmatpush1.msra.mxu0 %v5043
    %5045 = vmatprep.subr.mxu0 0.0
    %5046 = vmatpush1.msra.mxu0 0.0
    %5047 = vmatprep.subr.mxu0 0.0
    %5048 = vmatpush1.msra.mxu0 0.0
    %5049 = vmatprep.subr.mxu0 0.0
    %5050 = vmatpush1.msra.mxu0 0.0
    %5051 = vmatprep.subr.mxu0 0.0
    %5052 = vmatpush1.msra.mxu0 0.0
    %5053 = vmatprep.subr.mxu0 0.0
    %5054 = vmatpush1.msra.mxu0 0.0
    %5055 = vmatprep.subr.mxu0 0.0
    %5056 = vmatpush1.msra.mxu0 0.0
    %5057 = vmatprep.subr.mxu0 0.0
    %5058 = vmatpush1.msra.mxu0 0.0
    %5059 = vmatprep.subr.mxu0 0.0
    %5060 = vmatpush1.msra.mxu0 0.0
    %5061 = vmatprep.subr.mxu0 0.0
    %5062 = vmatpush1.msra.mxu0 0.0
    %5063 = vmatprep.subr.mxu0 0.0
    %5064 = vmatpush1.msra.mxu0 0.0
    %5065 = vmatprep.subr.mxu0 0.0
    %5066 = vmatpush1.msra.mxu0 0.0
    %5067 = vmatprep.subr.mxu0 0.0
    %5068 = vmatpush1.msra.mxu0 0.0
    %5069 = vmatprep.subr.mxu0 0.0
    %5070 = vmatpush1.msra.mxu0 0.0
    %5071 = vmatprep.subr.mxu0 0.0
    %5072 = vmatpush1.msra.mxu0 0.0
    %5073 = vmatprep.subr.mxu0 0.0
    %5074 = vmatpush1.msra.mxu0 0.0
    %5075 = vmatprep.subr.mxu0 0.0
    %5076 = vmatpush1.msra.mxu0 0.0
    %5077 = vmatprep.subr.mxu0 0.0
    %5078 = vmatpush1.msra.mxu0 0.0
    %5079 = vmatprep.subr.mxu0 0.0
    %5080 = vmatpush1.msra.mxu0 0.0
    %5081 = vmatprep.subr.mxu0 0.0
    %5082 = vmatpush1.msra.mxu0 0.0
    %5083 = vmatprep.subr.mxu0 0.0
    %5084 = vmatpush1.msra.mxu0 0.0
    %5085 = vmatprep.subr.mxu0 0.0
    %5086 = vmatpush1.msra.mxu0 0.0
    %5087 = vmatprep.subr.mxu0 0.0
    %5088 = vmatpush1.msra.mxu0 0.0
    %5089 = vmatprep.subr.mxu0 0.0
    %5090 = vmatpush1.msra.mxu0 0.0
    %5091 = vmatprep.subr.mxu0 0.0
    %5092 = vmatpush1.msra.mxu0 0.0
    %5093 = vmatprep.subr.mxu0 0.0
    %5094 = vmatpush1.msra.mxu0 0.0
    %5095 = vmatprep.subr.mxu0 0.0
    %5096 = vmatpush1.msra.mxu0 0.0
    %5097 = vmatprep.subr.mxu0 0.0
    %5098 = vmatpush1.msra.mxu0 0.0
    %5099 = vmatprep.subr.mxu0 0.0
    %5100 = vmatpush1.msra.mxu0 0.0
    %5101 = vmatprep.mubr.f32.mxu0 0.0
    %v5102 = vand.u32 %v3275, 4294901760
    %v5103 = vsub.f32 %v3275, %v5102
    %v5104 = vand.u32 %v5103, 4294901760
    %5105 = vmatmul.mubr.f32.gmra.mrb[0].mxu0 %v5104
    %v5106 = vpop.f32.mrb[0].mxu0
    %v5107 = vadd.f32 %v5001, %v5106
    %v5108 = vpop.f32.mrb[0].mxu0
    %v5109 = vadd.f32 %v5003, %v5108
    %5110 = vmatprep.mubr.f32.mxu0 0.0
    %v5111 = vand.u32 %v3278, 4294901760
    %v5112 = vsub.f32 %v3278, %v5111
    %v5113 = vand.u32 %v5112, 4294901760
    %5114 = vmatmul.mubr.f32.gmra.mrb[0].mxu0 %v5113
    %v5115 = vpop.f32.mrb[0].mxu0
    %v5116 = vadd.f32 %v5009, %v5115
    %v5117 = vpop.f32.mrb[0].mxu0
    %v5118 = vadd.f32 %v5011, %v5117
    %5119 = vmatprep.mubr.f32.mxu0 0.0
    %v5120 = vand.u32 %v3281, 4294901760
    %v5121 = vsub.f32 %v3281, %v5120
    %v5122 = vand.u32 %v5121, 4294901760
    %5123 = vmatmul.mubr.f32.gmra.mrb[0].mxu0 %v5122
    %v5124 = vpop.f32.mrb[0].mxu0
    %v5125 = vadd.f32 %v5017, %v5124
    %v5126 = vpop.f32.mrb[0].mxu0
    %v5127 = vadd.f32 %v5019, %v5126
    %5128 = vmatprep.mubr.f32.mxu0 0.0
    %v5129 = vand.u32 %v3284, 4294901760
    %v5130 = vsub.f32 %v3284, %v5129
    %v5131 = vand.u32 %v5130, 4294901760
    %5132 = vmatmul.mubr.f32.gmra.mrb[0].mxu0 %v5131
    %v5133 = vpop.f32.mrb[0].mxu0
    %v5134 = vadd.f32 %v5025, %v5133
    %v5135 = vpop.f32.mrb[0].mxu0
    %v5136 = vadd.f32 %v5027, %v5135
    %5137 = vdwg.mxu0
    %v5138 = vand.u32 %v3219, 4294901760
    %v5139 = vsub.f32 %v3219, %v5138
    %v5140 = vand.u32 %v5139, 4294901760
    %5141 = vmatprep.subr.mxu0 %v5140
    %v5142 = vand.u32 %v3218, 4294901760
    %v5143 = vsub.f32 %v3218, %v5142
    %v5144 = vand.u32 %v5143, 4294901760
    %5145 = vmatpush1.msra.mxu0 %v5144
    %v5146 = vand.u32 %v3227, 4294901760
    %v5147 = vsub.f32 %v3227, %v5146
    %v5148 = vand.u32 %v5147, 4294901760
    %5149 = vmatprep.subr.mxu0 %v5148
    %v5150 = vand.u32 %v3226, 4294901760
    %v5151 = vsub.f32 %v3226, %v5150
    %v5152 = vand.u32 %v5151, 4294901760
    %5153 = vmatpush1.msra.mxu0 %v5152
    %v5154 = vand.u32 %v3235, 4294901760
    %v5155 = vsub.f32 %v3235, %v5154
    %v5156 = vand.u32 %v5155, 4294901760
    %5157 = vmatprep.subr.mxu0 %v5156
    %v5158 = vand.u32 %v3234, 4294901760
    %v5159 = vsub.f32 %v3234, %v5158
    %v5160 = vand.u32 %v5159, 4294901760
    %5161 = vmatpush1.msra.mxu0 %v5160
    %v5162 = vand.u32 %v3243, 4294901760
    %v5163 = vsub.f32 %v3243, %v5162
    %v5164 = vand.u32 %v5163, 4294901760
    %5165 = vmatprep.subr.mxu0 %v5164
    %v5166 = vand.u32 %v3242, 4294901760
    %v5167 = vsub.f32 %v3242, %v5166
    %v5168 = vand.u32 %v5167, 4294901760
    %5169 = vmatpush1.msra.mxu0 %v5168
    %5170 = vmatprep.subr.mxu0 0.0
    %5171 = vmatpush1.msra.mxu0 0.0
    %5172 = vmatprep.subr.mxu0 0.0
    %5173 = vmatpush1.msra.mxu0 0.0
    %5174 = vmatprep.subr.mxu0 0.0
    %5175 = vmatpush1.msra.mxu0 0.0
    %5176 = vmatprep.subr.mxu0 0.0
    %5177 = vmatpush1.msra.mxu0 0.0
    %5178 = vmatprep.subr.mxu0 0.0
    %5179 = vmatpush1.msra.mxu0 0.0
    %5180 = vmatprep.subr.mxu0 0.0
    %5181 = vmatpush1.msra.mxu0 0.0
    %5182 = vmatprep.subr.mxu0 0.0
    %5183 = vmatpush1.msra.mxu0 0.0
    %5184 = vmatprep.subr.mxu0 0.0
    %5185 = vmatpush1.msra.mxu0 0.0
    %5186 = vmatprep.subr.mxu0 0.0
    %5187 = vmatpush1.msra.mxu0 0.0
    %5188 = vmatprep.subr.mxu0 0.0
    %5189 = vmatpush1.msra.mxu0 0.0
    %5190 = vmatprep.subr.mxu0 0.0
    %5191 = vmatpush1.msra.mxu0 0.0
    %5192 = vmatprep.subr.mxu0 0.0
    %5193 = vmatpush1.msra.mxu0 0.0
    %5194 = vmatprep.subr.mxu0 0.0
    %5195 = vmatpush1.msra.mxu0 0.0
    %5196 = vmatprep.subr.mxu0 0.0
    %5197 = vmatpush1.msra.mxu0 0.0
    %5198 = vmatprep.subr.mxu0 0.0
    %5199 = vmatpush1.msra.mxu0 0.0
    %5200 = vmatprep.subr.mxu0 0.0
    %5201 = vmatpush1.msra.mxu0 0.0
    %5202 = vmatprep.subr.mxu0 0.0
    %5203 = vmatpush1.msra.mxu0 0.0
    %5204 = vmatprep.subr.mxu0 0.0
    %5205 = vmatpush1.msra.mxu0 0.0
    %5206 = vmatprep.subr.mxu0 0.0
    %5207 = vmatpush1.msra.mxu0 0.0
    %5208 = vmatprep.subr.mxu0 0.0
    %5209 = vmatpush1.msra.mxu0 0.0
    %5210 = vmatprep.subr.mxu0 0.0
    %5211 = vmatpush1.msra.mxu0 0.0
    %5212 = vmatprep.subr.mxu0 0.0
    %5213 = vmatpush1.msra.mxu0 0.0
    %5214 = vmatprep.subr.mxu0 0.0
    %5215 = vmatpush1.msra.mxu0 0.0
    %5216 = vmatprep.subr.mxu0 0.0
    %5217 = vmatpush1.msra.mxu0 0.0
    %5218 = vmatprep.subr.mxu0 0.0
    %5219 = vmatpush1.msra.mxu0 0.0
    %5220 = vmatprep.subr.mxu0 0.0
    %5221 = vmatpush1.msra.mxu0 0.0
    %5222 = vmatprep.subr.mxu0 0.0
    %5223 = vmatpush1.msra.mxu0 0.0
    %5224 = vmatprep.subr.mxu0 0.0
    %5225 = vmatpush1.msra.mxu0 0.0
    %5226 = vmatprep.mubr.f32.mxu0 0.0
    %v5227 = vand.u32 %v3275, 4294901760
    %5228 = vmatmul.mubr.f32.gmra.mrb[0].mxu0 %v5227
    %v5229 = vpop.f32.mrb[0].mxu0
    %v5230 = vadd.f32 %v5107, %v5229
    %v5231 = vpop.f32.mrb[0].mxu0
    %v5232 = vadd.f32 %v5109, %v5231
    %5233 = vmatprep.mubr.f32.mxu0 0.0
    %v5234 = vand.u32 %v3278, 4294901760
    %5235 = vmatmul.mubr.f32.gmra.mrb[0].mxu0 %v5234
    %v5236 = vpop.f32.mrb[0].mxu0
    %v5237 = vadd.f32 %v5116, %v5236
    %v5238 = vpop.f32.mrb[0].mxu0
    %v5239 = vadd.f32 %v5118, %v5238
    %5240 = vmatprep.mubr.f32.mxu0 0.0
    %v5241 = vand.u32 %v3281, 4294901760
    %5242 = vmatmul.mubr.f32.gmra.mrb[0].mxu0 %v5241
    %v5243 = vpop.f32.mrb[0].mxu0
    %v5244 = vadd.f32 %v5125, %v5243
    %v5245 = vpop.f32.mrb[0].mxu0
    %v5246 = vadd.f32 %v5127, %v5245
    %5247 = vmatprep.mubr.f32.mxu0 0.0
    %v5248 = vand.u32 %v3284, 4294901760
    %5249 = vmatmul.mubr.f32.gmra.mrb[0].mxu0 %v5248
    %v5250 = vpop.f32.mrb[0].mxu0
    %v5251 = vadd.f32 %v5134, %v5250
    %v5252 = vpop.f32.mrb[0].mxu0
    %v5253 = vadd.f32 %v5136, %v5252
    %5254 = vdwg.mxu0
    %v5255 = vand.u32 %v3219, 4294901760
    %5256 = vmatprep.subr.mxu0 %v5255
    %v5257 = vand.u32 %v3218, 4294901760
    %5258 = vmatpush1.msra.mxu0 %v5257
    %v5259 = vand.u32 %v3227, 4294901760
    %5260 = vmatprep.subr.mxu0 %v5259
    %v5261 = vand.u32 %v3226, 4294901760
    %5262 = vmatpush1.msra.mxu0 %v5261
    %v5263 = vand.u32 %v3235, 4294901760
    %5264 = vmatprep.subr.mxu0 %v5263
    %v5265 = vand.u32 %v3234, 4294901760
    %5266 = vmatpush1.msra.mxu0 %v5265
    %v5267 = vand.u32 %v3243, 4294901760
    %5268 = vmatprep.subr.mxu0 %v5267
    %v5269 = vand.u32 %v3242, 4294901760
    %5270 = vmatpush1.msra.mxu0 %v5269
    %5271 = vmatprep.subr.mxu0 0.0
    %5272 = vmatpush1.msra.mxu0 0.0
    %5273 = vmatprep.subr.mxu0 0.0
    %5274 = vmatpush1.msra.mxu0 0.0
    %5275 = vmatprep.subr.mxu0 0.0
    %5276 = vmatpush1.msra.mxu0 0.0
    %5277 = vmatprep.subr.mxu0 0.0
    %5278 = vmatpush1.msra.mxu0 0.0
    %5279 = vmatprep.subr.mxu0 0.0
    %5280 = vmatpush1.msra.mxu0 0.0
    %5281 = vmatprep.subr.mxu0 0.0
    %5282 = vmatpush1.msra.mxu0 0.0
    %5283 = vmatprep.subr.mxu0 0.0
    %5284 = vmatpush1.msra.mxu0 0.0
    %5285 = vmatprep.subr.mxu0 0.0
    %5286 = vmatpush1.msra.mxu0 0.0
    %5287 = vmatprep.subr.mxu0 0.0
    %5288 = vmatpush1.msra.mxu0 0.0
    %5289 = vmatprep.subr.mxu0 0.0
    %5290 = vmatpush1.msra.mxu0 0.0
    %5291 = vmatprep.subr.mxu0 0.0
    %5292 = vmatpush1.msra.mxu0 0.0
    %5293 = vmatprep.subr.mxu0 0.0
    %5294 = vmatpush1.msra.mxu0 0.0
    %5295 = vmatprep.subr.mxu0 0.0
    %5296 = vmatpush1.msra.mxu0 0.0
    %5297 = vmatprep.subr.mxu0 0.0
    %5298 = vmatpush1.msra.mxu0 0.0
    %5299 = vmatprep.subr.mxu0 0.0
    %5300 = vmatpush1.msra.mxu0 0.0
    %5301 = vmatprep.subr.mxu0 0.0
    %5302 = vmatpush1.msra.mxu0 0.0
    %5303 = vmatprep.subr.mxu0 0.0
    %5304 = vmatpush1.msra.mxu0 0.0
    %5305 = vmatprep.subr.mxu0 0.0
    %5306 = vmatpush1.msra.mxu0 0.0
    %5307 = vmatprep.subr.mxu0 0.0
    %5308 = vmatpush1.msra.mxu0 0.0
    %5309 = vmatprep.subr.mxu0 0.0
    %5310 = vmatpush1.msra.mxu0 0.0
    %5311 = vmatprep.subr.mxu0 0.0
    %5312 = vmatpush1.msra.mxu0 0.0
    %5313 = vmatprep.subr.mxu0 0.0
    %5314 = vmatpush1.msra.mxu0 0.0
    %5315 = vmatprep.subr.mxu0 0.0
    %5316 = vmatpush1.msra.mxu0 0.0
    %5317 = vmatprep.subr.mxu0 0.0
    %5318 = vmatpush1.msra.mxu0 0.0
    %5319 = vmatprep.subr.mxu0 0.0
    %5320 = vmatpush1.msra.mxu0 0.0
    %5321 = vmatprep.subr.mxu0 0.0
    %5322 = vmatpush1.msra.mxu0 0.0
    %5323 = vmatprep.subr.mxu0 0.0
    %5324 = vmatpush1.msra.mxu0 0.0
    %5325 = vmatprep.subr.mxu0 0.0
    %5326 = vmatpush1.msra.mxu0 0.0
    %5327 = vmatprep.mubr.f32.mxu0 0.0
    %v5328 = vand.u32 %v3275, 4294901760
    %5329 = vmatmul.mubr.f32.gmra.mrb[0].mxu0 %v5328
    %v5330 = vpop.f32.mrb[0].mxu0
    %v5331 = vadd.f32 %v5230, %v5330
    %v5332 = vpop.f32.mrb[0].mxu0
    %v5333 = vadd.f32 %v5232, %v5332
    %5334 = vmatprep.mubr.f32.mxu0 0.0
    %v5335 = vand.u32 %v3278, 4294901760
    %5336 = vmatmul.mubr.f32.gmra.mrb[0].mxu0 %v5335
    %v5337 = vpop.f32.mrb[0].mxu0
    %v5338 = vadd.f32 %v5237, %v5337
    %v5339 = vpop.f32.mrb[0].mxu0
    %v5340 = vadd.f32 %v5239, %v5339
    %5341 = vmatprep.mubr.f32.mxu0 0.0
    %v5342 = vand.u32 %v3281, 4294901760
    %5343 = vmatmul.mubr.f32.gmra.mrb[0].mxu0 %v5342
    %v5344 = vpop.f32.mrb[0].mxu0
    %v5345 = vadd.f32 %v5244, %v5344
    %v5346 = vpop.f32.mrb[0].mxu0
    %v5347 = vadd.f32 %v5246, %v5346
    %5348 = vmatprep.mubr.f32.mxu0 0.0
    %v5349 = vand.u32 %v3284, 4294901760
    %5350 = vmatmul.mubr.f32.gmra.mrb[0].mxu0 %v5349
    %v5351 = vpop.f32.mrb[0].mxu0
    %v5352 = vadd.f32 %v5251, %v5351
    %v5353 = vpop.f32.mrb[0].mxu0
    %v5354 = vadd.f32 %v5253, %v5353
    %5355 = vdwg.mxu0
    %v5356 = vand.u32 %v3221, 4294901760
    %5357 = vmatprep.subr.mxu0 %v5356
    %v5358 = vand.u32 %v3220, 4294901760
    %5359 = vmatpush1.msra.mxu0 %v5358
    %v5360 = vand.u32 %v3229, 4294901760
    %5361 = vmatprep.subr.mxu0 %v5360
    %v5362 = vand.u32 %v3228, 4294901760
    %5363 = vmatpush1.msra.mxu0 %v5362
    %v5364 = vand.u32 %v3237, 4294901760
    %5365 = vmatprep.subr.mxu0 %v5364
    %v5366 = vand.u32 %v3236, 4294901760
    %5367 = vmatpush1.msra.mxu0 %v5366
    %v5368 = vand.u32 %v3245, 4294901760
    %5369 = vmatprep.subr.mxu0 %v5368
    %v5370 = vand.u32 %v3244, 4294901760
    %5371 = vmatpush1.msra.mxu0 %v5370
    %5372 = vmatprep.subr.mxu0 0.0
    %5373 = vmatpush1.msra.mxu0 0.0
    %5374 = vmatprep.subr.mxu0 0.0
    %5375 = vmatpush1.msra.mxu0 0.0
    %5376 = vmatprep.subr.mxu0 0.0
    %5377 = vmatpush1.msra.mxu0 0.0
    %5378 = vmatprep.subr.mxu0 0.0
    %5379 = vmatpush1.msra.mxu0 0.0
    %5380 = vmatprep.subr.mxu0 0.0
    %5381 = vmatpush1.msra.mxu0 0.0
    %5382 = vmatprep.subr.mxu0 0.0
    %5383 = vmatpush1.msra.mxu0 0.0
    %5384 = vmatprep.subr.mxu0 0.0
    %5385 = vmatpush1.msra.mxu0 0.0
    %5386 = vmatprep.subr.mxu0 0.0
    %5387 = vmatpush1.msra.mxu0 0.0
    %5388 = vmatprep.subr.mxu0 0.0
    %5389 = vmatpush1.msra.mxu0 0.0
    %5390 = vmatprep.subr.mxu0 0.0
    %5391 = vmatpush1.msra.mxu0 0.0
    %5392 = vmatprep.subr.mxu0 0.0
    %5393 = vmatpush1.msra.mxu0 0.0
    %5394 = vmatprep.subr.mxu0 0.0
    %5395 = vmatpush1.msra.mxu0 0.0
    %5396 = vmatprep.subr.mxu0 0.0
    %5397 = vmatpush1.msra.mxu0 0.0
    %5398 = vmatprep.subr.mxu0 0.0
    %5399 = vmatpush1.msra.mxu0 0.0
    %5400 = vmatprep.subr.mxu0 0.0
    %5401 = vmatpush1.msra.mxu0 0.0
    %5402 = vmatprep.subr.mxu0 0.0
    %5403 = vmatpush1.msra.mxu0 0.0
    %5404 = vmatprep.subr.mxu0 0.0
    %5405 = vmatpush1.msra.mxu0 0.0
    %5406 = vmatprep.subr.mxu0 0.0
    %5407 = vmatpush1.msra.mxu0 0.0
    %5408 = vmatprep.subr.mxu0 0.0
    %5409 = vmatpush1.msra.mxu0 0.0
    %5410 = vmatprep.subr.mxu0 0.0
    %5411 = vmatpush1.msra.mxu0 0.0
    %5412 = vmatprep.subr.mxu0 0.0
    %5413 = vmatpush1.msra.mxu0 0.0
    %5414 = vmatprep.subr.mxu0 0.0
    %5415 = vmatpush1.msra.mxu0 0.0
    %5416 = vmatprep.subr.mxu0 0.0
    %5417 = vmatpush1.msra.mxu0 0.0
    %5418 = vmatprep.subr.mxu0 0.0
    %5419 = vmatpush1.msra.mxu0 0.0
    %5420 = vmatprep.subr.mxu0 0.0
    %5421 = vmatpush1.msra.mxu0 0.0
    %5422 = vmatprep.subr.mxu0 0.0
    %5423 = vmatpush1.msra.mxu0 0.0
    %5424 = vmatprep.subr.mxu0 0.0
    %5425 = vmatpush1.msra.mxu0 0.0
    %5426 = vmatprep.subr.mxu0 0.0
    %5427 = vmatpush1.msra.mxu0 0.0
    %5428 = vmatprep.mubr.f32.mxu0 0.0
    %v5429 = vand.u32 %v3275, 4294901760
    %v5430 = vsub.f32 %v3275, %v5429
    %v5431 = vand.u32 %v5430, 4294901760
    %v5432 = vsub.f32 %v5430, %v5431
    %v5433 = vand.u32 %v5432, 4294901760
    %5434 = vmatmul.mubr.f32.gmra.mrb[0].mxu0 %v5433
    %v5435 = vpop.f32.mrb[0].mxu0
    %v5436 = vadd.f32 %v3257, %v5435
    %v5437 = vpop.f32.mrb[0].mxu0
    %v5438 = vadd.f32 %v3257, %v5437
    %5439 = vmatprep.mubr.f32.mxu0 0.0
    %v5440 = vand.u32 %v3278, 4294901760
    %v5441 = vsub.f32 %v3278, %v5440
    %v5442 = vand.u32 %v5441, 4294901760
    %v5443 = vsub.f32 %v5441, %v5442
    %v5444 = vand.u32 %v5443, 4294901760
    %5445 = vmatmul.mubr.f32.gmra.mrb[0].mxu0 %v5444
    %v5446 = vpop.f32.mrb[0].mxu0
    %v5447 = vadd.f32 %v3262, %v5446
    %v5448 = vpop.f32.mrb[0].mxu0
    %v5449 = vadd.f32 %v3262, %v5448
    %5450 = vmatprep.mubr.f32.mxu0 0.0
    %v5451 = vand.u32 %v3281, 4294901760
    %v5452 = vsub.f32 %v3281, %v5451
    %v5453 = vand.u32 %v5452, 4294901760
    %v5454 = vsub.f32 %v5452, %v5453
    %v5455 = vand.u32 %v5454, 4294901760
    %5456 = vmatmul.mubr.f32.gmra.mrb[0].mxu0 %v5455
    %v5457 = vpop.f32.mrb[0].mxu0
    %v5458 = vadd.f32 %v3267, %v5457
    %v5459 = vpop.f32.mrb[0].mxu0
    %v5460 = vadd.f32 %v3267, %v5459
    %5461 = vmatprep.mubr.f32.mxu0 0.0
    %v5462 = vand.u32 %v3284, 4294901760
    %v5463 = vsub.f32 %v3284, %v5462
    %v5464 = vand.u32 %v5463, 4294901760
    %v5465 = vsub.f32 %v5463, %v5464
    %v5466 = vand.u32 %v5465, 4294901760
    %5467 = vmatmul.mubr.f32.gmra.mrb[0].mxu0 %v5466
    %v5468 = vpop.f32.mrb[0].mxu0
    %v5469 = vadd.f32 %v3272, %v5468
    %v5470 = vpop.f32.mrb[0].mxu0
    %v5471 = vadd.f32 %v3272, %v5470
    %5472 = vdwg.mxu0
    %v5473 = vand.u32 %v3221, 4294901760
    %v5474 = vsub.f32 %v3221, %v5473
    %v5475 = vand.u32 %v5474, 4294901760
    %v5476 = vsub.f32 %v5474, %v5475
    %v5477 = vand.u32 %v5476, 4294901760
    %5478 = vmatprep.subr.mxu0 %v5477
    %v5479 = vand.u32 %v3220, 4294901760
    %v5480 = vsub.f32 %v3220, %v5479
    %v5481 = vand.u32 %v5480, 4294901760
    %v5482 = vsub.f32 %v5480, %v5481
    %v5483 = vand.u32 %v5482, 4294901760
    %5484 = vmatpush1.msra.mxu0 %v5483
    %v5485 = vand.u32 %v3229, 4294901760
    %v5486 = vsub.f32 %v3229, %v5485
    %v5487 = vand.u32 %v5486, 4294901760
    %v5488 = vsub.f32 %v5486, %v5487
    %v5489 = vand.u32 %v5488, 4294901760
    %5490 = vmatprep.subr.mxu0 %v5489
    %v5491 = vand.u32 %v3228, 4294901760
    %v5492 = vsub.f32 %v3228, %v5491
    %v5493 = vand.u32 %v5492, 4294901760
    %v5494 = vsub.f32 %v5492, %v5493
    %v5495 = vand.u32 %v5494, 4294901760
    %5496 = vmatpush1.msra.mxu0 %v5495
    %v5497 = vand.u32 %v3237, 4294901760
    %v5498 = vsub.f32 %v3237, %v5497
    %v5499 = vand.u32 %v5498, 4294901760
    %v5500 = vsub.f32 %v5498, %v5499
    %v5501 = vand.u32 %v5500, 4294901760
    %5502 = vmatprep.subr.mxu0 %v5501
    %v5503 = vand.u32 %v3236, 4294901760
    %v5504 = vsub.f32 %v3236, %v5503
    %v5505 = vand.u32 %v5504, 4294901760
    %v5506 = vsub.f32 %v5504, %v5505
    %v5507 = vand.u32 %v5506, 4294901760
    %5508 = vmatpush1.msra.mxu0 %v5507
    %v5509 = vand.u32 %v3245, 4294901760
    %v5510 = vsub.f32 %v3245, %v5509
    %v5511 = vand.u32 %v5510, 4294901760
    %v5512 = vsub.f32 %v5510, %v5511
    %v5513 = vand.u32 %v5512, 4294901760
    %5514 = vmatprep.subr.mxu0 %v5513
    %v5515 = vand.u32 %v3244, 4294901760
    %v5516 = vsub.f32 %v3244, %v5515
    %v5517 = vand.u32 %v5516, 4294901760
    %v5518 = vsub.f32 %v5516, %v5517
    %v5519 = vand.u32 %v5518, 4294901760
    %5520 = vmatpush1.msra.mxu0 %v5519
    %5521 = vmatprep.subr.mxu0 0.0
    %5522 = vmatpush1.msra.mxu0 0.0
    %5523 = vmatprep.subr.mxu0 0.0
    %5524 = vmatpush1.msra.mxu0 0.0
    %5525 = vmatprep.subr.mxu0 0.0
    %5526 = vmatpush1.msra.mxu0 0.0
    %5527 = vmatprep.subr.mxu0 0.0
    %5528 = vmatpush1.msra.mxu0 0.0
    %5529 = vmatprep.subr.mxu0 0.0
    %5530 = vmatpush1.msra.mxu0 0.0
    %5531 = vmatprep.subr.mxu0 0.0
    %5532 = vmatpush1.msra.mxu0 0.0
    %5533 = vmatprep.subr.mxu0 0.0
    %5534 = vmatpush1.msra.mxu0 0.0
    %5535 = vmatprep.subr.mxu0 0.0
    %5536 = vmatpush1.msra.mxu0 0.0
    %5537 = vmatprep.subr.mxu0 0.0
    %5538 = vmatpush1.msra.mxu0 0.0
    %5539 = vmatprep.subr.mxu0 0.0
    %5540 = vmatpush1.msra.mxu0 0.0
    %5541 = vmatprep.subr.mxu0 0.0
    %5542 = vmatpush1.msra.mxu0 0.0
    %5543 = vmatprep.subr.mxu0 0.0
    %5544 = vmatpush1.msra.mxu0 0.0
    %5545 = vmatprep.subr.mxu0 0.0
    %5546 = vmatpush1.msra.mxu0 0.0
    %5547 = vmatprep.subr.mxu0 0.0
    %5548 = vmatpush1.msra.mxu0 0.0
    %5549 = vmatprep.subr.mxu0 0.0
    %5550 = vmatpush1.msra.mxu0 0.0
    %5551 = vmatprep.subr.mxu0 0.0
    %5552 = vmatpush1.msra.mxu0 0.0
    %5553 = vmatprep.subr.mxu0 0.0
    %5554 = vmatpush1.msra.mxu0 0.0
    %5555 = vmatprep.subr.mxu0 0.0
    %5556 = vmatpush1.msra.mxu0 0.0
    %5557 = vmatprep.subr.mxu0 0.0
    %5558 = vmatpush1.msra.mxu0 0.0
    %5559 = vmatprep.subr.mxu0 0.0
    %5560 = vmatpush1.msra.mxu0 0.0
    %5561 = vmatprep.subr.mxu0 0.0
    %5562 = vmatpush1.msra.mxu0 0.0
    %5563 = vmatprep.subr.mxu0 0.0
    %5564 = vmatpush1.msra.mxu0 0.0
    %5565 = vmatprep.subr.mxu0 0.0
    %5566 = vmatpush1.msra.mxu0 0.0
    %5567 = vmatprep.subr.mxu0 0.0
    %5568 = vmatpush1.msra.mxu0 0.0
    %5569 = vmatprep.subr.mxu0 0.0
    %5570 = vmatpush1.msra.mxu0 0.0
    %5571 = vmatprep.subr.mxu0 0.0
    %5572 = vmatpush1.msra.mxu0 0.0
    %5573 = vmatprep.subr.mxu0 0.0
    %5574 = vmatpush1.msra.mxu0 0.0
    %5575 = vmatprep.subr.mxu0 0.0
    %5576 = vmatpush1.msra.mxu0 0.0
    %5577 = vmatprep.mubr.f32.mxu0 0.0
    %v5578 = vand.u32 %v3275, 4294901760
    %5579 = vmatmul.mubr.f32.gmra.mrb[0].mxu0 %v5578
    %v5580 = vpop.f32.mrb[0].mxu0
    %v5581 = vadd.f32 %v5436, %v5580
    %v5582 = vpop.f32.mrb[0].mxu0
    %v5583 = vadd.f32 %v5438, %v5582
    %5584 = vmatprep.mubr.f32.mxu0 0.0
    %v5585 = vand.u32 %v3278, 4294901760
    %5586 = vmatmul.mubr.f32.gmra.mrb[0].mxu0 %v5585
    %v5587 = vpop.f32.mrb[0].mxu0
    %v5588 = vadd.f32 %v5447, %v5587
    %v5589 = vpop.f32.mrb[0].mxu0
    %v5590 = vadd.f32 %v5449, %v5589
    %5591 = vmatprep.mubr.f32.mxu0 0.0
    %v5592 = vand.u32 %v3281, 4294901760
    %5593 = vmatmul.mubr.f32.gmra.mrb[0].mxu0 %v5592
    %v5594 = vpop.f32.mrb[0].mxu0
    %v5595 = vadd.f32 %v5458, %v5594
    %v5596 = vpop.f32.mrb[0].mxu0
    %v5597 = vadd.f32 %v5460, %v5596
    %5598 = vmatprep.mubr.f32.mxu0 0.0
    %v5599 = vand.u32 %v3284, 4294901760
    %5600 = vmatmul.mubr.f32.gmra.mrb[0].mxu0 %v5599
    %v5601 = vpop.f32.mrb[0].mxu0
    %v5602 = vadd.f32 %v5469, %v5601
    %v5603 = vpop.f32.mrb[0].mxu0
    %v5604 = vadd.f32 %v5471, %v5603
    %5605 = vdwg.mxu0
    %v5606 = vand.u32 %v3221, 4294901760
    %v5607 = vsub.f32 %v3221, %v5606
    %5608 = vmatprep.subr.mxu0 %v5607
    %v5609 = vand.u32 %v3220, 4294901760
    %v5610 = vsub.f32 %v3220, %v5609
    %5611 = vmatpush1.msra.mxu0 %v5610
    %v5612 = vand.u32 %v3229, 4294901760
    %v5613 = vsub.f32 %v3229, %v5612
    %5614 = vmatprep.subr.mxu0 %v5613
    %v5615 = vand.u32 %v3228, 4294901760
    %v5616 = vsub.f32 %v3228, %v5615
    %5617 = vmatpush1.msra.mxu0 %v5616
    %v5618 = vand.u32 %v3237, 4294901760
    %v5619 = vsub.f32 %v3237, %v5618
    %5620 = vmatprep.subr.mxu0 %v5619
    %v5621 = vand.u32 %v3236, 4294901760
    %v5622 = vsub.f32 %v3236, %v5621
    %5623 = vmatpush1.msra.mxu0 %v5622
    %v5624 = vand.u32 %v3245, 4294901760
    %v5625 = vsub.f32 %v3245, %v5624
    %5626 = vmatprep.subr.mxu0 %v5625
    %v5627 = vand.u32 %v3244, 4294901760
    %v5628 = vsub.f32 %v3244, %v5627
    %5629 = vmatpush1.msra.mxu0 %v5628
    %5630 = vmatprep.subr.mxu0 0.0
    %5631 = vmatpush1.msra.mxu0 0.0
    %5632 = vmatprep.subr.mxu0 0.0
    %5633 = vmatpush1.msra.mxu0 0.0
    %5634 = vmatprep.subr.mxu0 0.0
    %5635 = vmatpush1.msra.mxu0 0.0
    %5636 = vmatprep.subr.mxu0 0.0
    %5637 = vmatpush1.msra.mxu0 0.0
    %5638 = vmatprep.subr.mxu0 0.0
    %5639 = vmatpush1.msra.mxu0 0.0
    %5640 = vmatprep.subr.mxu0 0.0
    %5641 = vmatpush1.msra.mxu0 0.0
    %5642 = vmatprep.subr.mxu0 0.0
    %5643 = vmatpush1.msra.mxu0 0.0
    %5644 = vmatprep.subr.mxu0 0.0
    %5645 = vmatpush1.msra.mxu0 0.0
    %5646 = vmatprep.subr.mxu0 0.0
    %5647 = vmatpush1.msra.mxu0 0.0
    %5648 = vmatprep.subr.mxu0 0.0
    %5649 = vmatpush1.msra.mxu0 0.0
    %5650 = vmatprep.subr.mxu0 0.0
    %5651 = vmatpush1.msra.mxu0 0.0
    %5652 = vmatprep.subr.mxu0 0.0
    %5653 = vmatpush1.msra.mxu0 0.0
    %5654 = vmatprep.subr.mxu0 0.0
    %5655 = vmatpush1.msra.mxu0 0.0
    %5656 = vmatprep.subr.mxu0 0.0
    %5657 = vmatpush1.msra.mxu0 0.0
    %5658 = vmatprep.subr.mxu0 0.0
    %5659 = vmatpush1.msra.mxu0 0.0
    %5660 = vmatprep.subr.mxu0 0.0
    %5661 = vmatpush1.msra.mxu0 0.0
    %5662 = vmatprep.subr.mxu0 0.0
    %5663 = vmatpush1.msra.mxu0 0.0
    %5664 = vmatprep.subr.mxu0 0.0
    %5665 = vmatpush1.msra.mxu0 0.0
    %5666 = vmatprep.subr.mxu0 0.0
    %5667 = vmatpush1.msra.mxu0 0.0
    %5668 = vmatprep.subr.mxu0 0.0
    %5669 = vmatpush1.msra.mxu0 0.0
    %5670 = vmatprep.subr.mxu0 0.0
    %5671 = vmatpush1.msra.mxu0 0.0
    %5672 = vmatprep.subr.mxu0 0.0
    %5673 = vmatpush1.msra.mxu0 0.0
    %5674 = vmatprep.subr.mxu0 0.0
    %5675 = vmatpush1.msra.mxu0 0.0
    %5676 = vmatprep.subr.mxu0 0.0
    %5677 = vmatpush1.msra.mxu0 0.0
    %5678 = vmatprep.subr.mxu0 0.0
    %5679 = vmatpush1.msra.mxu0 0.0
    %5680 = vmatprep.subr.mxu0 0.0
    %5681 = vmatpush1.msra.mxu0 0.0
    %5682 = vmatprep.subr.mxu0 0.0
    %5683 = vmatpush1.msra.mxu0 0.0
    %5684 = vmatprep.subr.mxu0 0.0
    %5685 = vmatpush1.msra.mxu0 0.0
    %5686 = vmatprep.mubr.f32.mxu0 0.0
    %v5687 = vand.u32 %v3275, 4294901760
    %v5688 = vsub.f32 %v3275, %v5687
    %5689 = vmatmul.mubr.f32.gmra.mrb[0].mxu0 %v5688
    %v5690 = vpop.f32.mrb[0].mxu0
    %v5691 = vadd.f32 %v5581, %v5690
    %v5692 = vpop.f32.mrb[0].mxu0
    %v5693 = vadd.f32 %v5583, %v5692
    %5694 = vmatprep.mubr.f32.mxu0 0.0
    %v5695 = vand.u32 %v3278, 4294901760
    %v5696 = vsub.f32 %v3278, %v5695
    %5697 = vmatmul.mubr.f32.gmra.mrb[0].mxu0 %v5696
    %v5698 = vpop.f32.mrb[0].mxu0
    %v5699 = vadd.f32 %v5588, %v5698
    %v5700 = vpop.f32.mrb[0].mxu0
    %v5701 = vadd.f32 %v5590, %v5700
    %5702 = vmatprep.mubr.f32.mxu0 0.0
    %v5703 = vand.u32 %v3281, 4294901760
    %v5704 = vsub.f32 %v3281, %v5703
    %5705 = vmatmul.mubr.f32.gmra.mrb[0].mxu0 %v5704
    %v5706 = vpop.f32.mrb[0].mxu0
    %v5707 = vadd.f32 %v5595, %v5706
    %v5708 = vpop.f32.mrb[0].mxu0
    %v5709 = vadd.f32 %v5597, %v5708
    %5710 = vmatprep.mubr.f32.mxu0 0.0
    %v5711 = vand.u32 %v3284, 4294901760
    %v5712 = vsub.f32 %v3284, %v5711
    %5713 = vmatmul.mubr.f32.gmra.mrb[0].mxu0 %v5712
    %v5714 = vpop.f32.mrb[0].mxu0
    %v5715 = vadd.f32 %v5602, %v5714
    %v5716 = vpop.f32.mrb[0].mxu0
    %v5717 = vadd.f32 %v5604, %v5716
    %5718 = vdwg.mxu0
    %v5719 = vand.u32 %v3221, 4294901760
    %5720 = vmatprep.subr.mxu0 %v5719
    %v5721 = vand.u32 %v3220, 4294901760
    %5722 = vmatpush1.msra.mxu0 %v5721
    %v5723 = vand.u32 %v3229, 4294901760
    %5724 = vmatprep.subr.mxu0 %v5723
    %v5725 = vand.u32 %v3228, 4294901760
    %5726 = vmatpush1.msra.mxu0 %v5725
    %v5727 = vand.u32 %v3237, 4294901760
    %5728 = vmatprep.subr.mxu0 %v5727
    %v5729 = vand.u32 %v3236, 4294901760
    %5730 = vmatpush1.msra.mxu0 %v5729
    %v5731 = vand.u32 %v3245, 4294901760
    %5732 = vmatprep.subr.mxu0 %v5731
    %v5733 = vand.u32 %v3244, 4294901760
    %5734 = vmatpush1.msra.mxu0 %v5733
    %5735 = vmatprep.subr.mxu0 0.0
    %5736 = vmatpush1.msra.mxu0 0.0
    %5737 = vmatprep.subr.mxu0 0.0
    %5738 = vmatpush1.msra.mxu0 0.0
    %5739 = vmatprep.subr.mxu0 0.0
    %5740 = vmatpush1.msra.mxu0 0.0
    %5741 = vmatprep.subr.mxu0 0.0
    %5742 = vmatpush1.msra.mxu0 0.0
    %5743 = vmatprep.subr.mxu0 0.0
    %5744 = vmatpush1.msra.mxu0 0.0
    %5745 = vmatprep.subr.mxu0 0.0
    %5746 = vmatpush1.msra.mxu0 0.0
    %5747 = vmatprep.subr.mxu0 0.0
    %5748 = vmatpush1.msra.mxu0 0.0
    %5749 = vmatprep.subr.mxu0 0.0
    %5750 = vmatpush1.msra.mxu0 0.0
    %5751 = vmatprep.subr.mxu0 0.0
    %5752 = vmatpush1.msra.mxu0 0.0
    %5753 = vmatprep.subr.mxu0 0.0
    %5754 = vmatpush1.msra.mxu0 0.0
    %5755 = vmatprep.subr.mxu0 0.0
    %5756 = vmatpush1.msra.mxu0 0.0
    %5757 = vmatprep.subr.mxu0 0.0
    %5758 = vmatpush1.msra.mxu0 0.0
    %5759 = vmatprep.subr.mxu0 0.0
    %5760 = vmatpush1.msra.mxu0 0.0
    %5761 = vmatprep.subr.mxu0 0.0
    %5762 = vmatpush1.msra.mxu0 0.0
    %5763 = vmatprep.subr.mxu0 0.0
    %5764 = vmatpush1.msra.mxu0 0.0
    %5765 = vmatprep.subr.mxu0 0.0
    %5766 = vmatpush1.msra.mxu0 0.0
    %5767 = vmatprep.subr.mxu0 0.0
    %5768 = vmatpush1.msra.mxu0 0.0
    %5769 = vmatprep.subr.mxu0 0.0
    %5770 = vmatpush1.msra.mxu0 0.0
    %5771 = vmatprep.subr.mxu0 0.0
    %5772 = vmatpush1.msra.mxu0 0.0
    %5773 = vmatprep.subr.mxu0 0.0
    %5774 = vmatpush1.msra.mxu0 0.0
    %5775 = vmatprep.subr.mxu0 0.0
    %5776 = vmatpush1.msra.mxu0 0.0
    %5777 = vmatprep.subr.mxu0 0.0
    %5778 = vmatpush1.msra.mxu0 0.0
    %5779 = vmatprep.subr.mxu0 0.0
    %5780 = vmatpush1.msra.mxu0 0.0
    %5781 = vmatprep.subr.mxu0 0.0
    %5782 = vmatpush1.msra.mxu0 0.0
    %5783 = vmatprep.subr.mxu0 0.0
    %5784 = vmatpush1.msra.mxu0 0.0
    %5785 = vmatprep.subr.mxu0 0.0
    %5786 = vmatpush1.msra.mxu0 0.0
    %5787 = vmatprep.subr.mxu0 0.0
    %5788 = vmatpush1.msra.mxu0 0.0
    %5789 = vmatprep.subr.mxu0 0.0
    %5790 = vmatpush1.msra.mxu0 0.0
    %5791 = vmatprep.mubr.f32.mxu0 0.0
    %v5792 = vand.u32 %v3275, 4294901760
    %v5793 = vsub.f32 %v3275, %v5792
    %v5794 = vand.u32 %v5793, 4294901760
    %5795 = vmatmul.mubr.f32.gmra.mrb[0].mxu0 %v5794
    %v5796 = vpop.f32.mrb[0].mxu0
    %v5797 = vadd.f32 %v5691, %v5796
    %v5798 = vpop.f32.mrb[0].mxu0
    %v5799 = vadd.f32 %v5693, %v5798
    %5800 = vmatprep.mubr.f32.mxu0 0.0
    %v5801 = vand.u32 %v3278, 4294901760
    %v5802 = vsub.f32 %v3278, %v5801
    %v5803 = vand.u32 %v5802, 4294901760
    %5804 = vmatmul.mubr.f32.gmra.mrb[0].mxu0 %v5803
    %v5805 = vpop.f32.mrb[0].mxu0
    %v5806 = vadd.f32 %v5699, %v5805
    %v5807 = vpop.f32.mrb[0].mxu0
    %v5808 = vadd.f32 %v5701, %v5807
    %5809 = vmatprep.mubr.f32.mxu0 0.0
    %v5810 = vand.u32 %v3281, 4294901760
    %v5811 = vsub.f32 %v3281, %v5810
    %v5812 = vand.u32 %v5811, 4294901760
    %5813 = vmatmul.mubr.f32.gmra.mrb[0].mxu0 %v5812
    %v5814 = vpop.f32.mrb[0].mxu0
    %v5815 = vadd.f32 %v5707, %v5814
    %v5816 = vpop.f32.mrb[0].mxu0
    %v5817 = vadd.f32 %v5709, %v5816
    %5818 = vmatprep.mubr.f32.mxu0 0.0
    %v5819 = vand.u32 %v3284, 4294901760
    %v5820 = vsub.f32 %v3284, %v5819
    %v5821 = vand.u32 %v5820, 4294901760
    %5822 = vmatmul.mubr.f32.gmra.mrb[0].mxu0 %v5821
    %v5823 = vpop.f32.mrb[0].mxu0
    %v5824 = vadd.f32 %v5715, %v5823
    %v5825 = vpop.f32.mrb[0].mxu0
    %v5826 = vadd.f32 %v5717, %v5825
    %5827 = vdwg.mxu0
    %v5828 = vand.u32 %v3221, 4294901760
    %v5829 = vsub.f32 %v3221, %v5828
    %v5830 = vand.u32 %v5829, 4294901760
    %5831 = vmatprep.subr.mxu0 %v5830
    %v5832 = vand.u32 %v3220, 4294901760
    %v5833 = vsub.f32 %v3220, %v5832
    %v5834 = vand.u32 %v5833, 4294901760
    %5835 = vmatpush1.msra.mxu0 %v5834
    %v5836 = vand.u32 %v3229, 4294901760
    %v5837 = vsub.f32 %v3229, %v5836
    %v5838 = vand.u32 %v5837, 4294901760
    %5839 = vmatprep.subr.mxu0 %v5838
    %v5840 = vand.u32 %v3228, 4294901760
    %v5841 = vsub.f32 %v3228, %v5840
    %v5842 = vand.u32 %v5841, 4294901760
    %5843 = vmatpush1.msra.mxu0 %v5842
    %v5844 = vand.u32 %v3237, 4294901760
    %v5845 = vsub.f32 %v3237, %v5844
    %v5846 = vand.u32 %v5845, 4294901760
    %5847 = vmatprep.subr.mxu0 %v5846
    %v5848 = vand.u32 %v3236, 4294901760
    %v5849 = vsub.f32 %v3236, %v5848
    %v5850 = vand.u32 %v5849, 4294901760
    %5851 = vmatpush1.msra.mxu0 %v5850
    %v5852 = vand.u32 %v3245, 4294901760
    %v5853 = vsub.f32 %v3245, %v5852
    %v5854 = vand.u32 %v5853, 4294901760
    %5855 = vmatprep.subr.mxu0 %v5854
    %v5856 = vand.u32 %v3244, 4294901760
    %v5857 = vsub.f32 %v3244, %v5856
    %v5858 = vand.u32 %v5857, 4294901760
    %5859 = vmatpush1.msra.mxu0 %v5858
    %5860 = vmatprep.subr.mxu0 0.0
    %5861 = vmatpush1.msra.mxu0 0.0
    %5862 = vmatprep.subr.mxu0 0.0
    %5863 = vmatpush1.msra.mxu0 0.0
    %5864 = vmatprep.subr.mxu0 0.0
    %5865 = vmatpush1.msra.mxu0 0.0
    %5866 = vmatprep.subr.mxu0 0.0
    %5867 = vmatpush1.msra.mxu0 0.0
    %5868 = vmatprep.subr.mxu0 0.0
    %5869 = vmatpush1.msra.mxu0 0.0
    %5870 = vmatprep.subr.mxu0 0.0
    %5871 = vmatpush1.msra.mxu0 0.0
    %5872 = vmatprep.subr.mxu0 0.0
    %5873 = vmatpush1.msra.mxu0 0.0
    %5874 = vmatprep.subr.mxu0 0.0
    %5875 = vmatpush1.msra.mxu0 0.0
    %5876 = vmatprep.subr.mxu0 0.0
    %5877 = vmatpush1.msra.mxu0 0.0
    %5878 = vmatprep.subr.mxu0 0.0
    %5879 = vmatpush1.msra.mxu0 0.0
    %5880 = vmatprep.subr.mxu0 0.0
    %5881 = vmatpush1.msra.mxu0 0.0
    %5882 = vmatprep.subr.mxu0 0.0
    %5883 = vmatpush1.msra.mxu0 0.0
    %5884 = vmatprep.subr.mxu0 0.0
    %5885 = vmatpush1.msra.mxu0 0.0
    %5886 = vmatprep.subr.mxu0 0.0
    %5887 = vmatpush1.msra.mxu0 0.0
    %5888 = vmatprep.subr.mxu0 0.0
    %5889 = vmatpush1.msra.mxu0 0.0
    %5890 = vmatprep.subr.mxu0 0.0
    %5891 = vmatpush1.msra.mxu0 0.0
    %5892 = vmatprep.subr.mxu0 0.0
    %5893 = vmatpush1.msra.mxu0 0.0
    %5894 = vmatprep.subr.mxu0 0.0
    %5895 = vmatpush1.msra.mxu0 0.0
    %5896 = vmatprep.subr.mxu0 0.0
    %5897 = vmatpush1.msra.mxu0 0.0
    %5898 = vmatprep.subr.mxu0 0.0
    %5899 = vmatpush1.msra.mxu0 0.0
    %5900 = vmatprep.subr.mxu0 0.0
    %5901 = vmatpush1.msra.mxu0 0.0
    %5902 = vmatprep.subr.mxu0 0.0
    %5903 = vmatpush1.msra.mxu0 0.0
    %5904 = vmatprep.subr.mxu0 0.0
    %5905 = vmatpush1.msra.mxu0 0.0
    %5906 = vmatprep.subr.mxu0 0.0
    %5907 = vmatpush1.msra.mxu0 0.0
    %5908 = vmatprep.subr.mxu0 0.0
    %5909 = vmatpush1.msra.mxu0 0.0
    %5910 = vmatprep.subr.mxu0 0.0
    %5911 = vmatpush1.msra.mxu0 0.0
    %5912 = vmatprep.subr.mxu0 0.0
    %5913 = vmatpush1.msra.mxu0 0.0
    %5914 = vmatprep.subr.mxu0 0.0
    %5915 = vmatpush1.msra.mxu0 0.0
    %5916 = vmatprep.mubr.f32.mxu0 0.0
    %v5917 = vand.u32 %v3275, 4294901760
    %5918 = vmatmul.mubr.f32.gmra.mrb[0].mxu0 %v5917
    %v5919 = vpop.f32.mrb[0].mxu0
    %v5920 = vadd.f32 %v5797, %v5919
    %v5921 = vpop.f32.mrb[0].mxu0
    %v5922 = vadd.f32 %v5799, %v5921
    %5923 = vmatprep.mubr.f32.mxu0 0.0
    %v5924 = vand.u32 %v3278, 4294901760
    %5925 = vmatmul.mubr.f32.gmra.mrb[0].mxu0 %v5924
    %v5926 = vpop.f32.mrb[0].mxu0
    %v5927 = vadd.f32 %v5806, %v5926
    %v5928 = vpop.f32.mrb[0].mxu0
    %v5929 = vadd.f32 %v5808, %v5928
    %5930 = vmatprep.mubr.f32.mxu0 0.0
    %v5931 = vand.u32 %v3281, 4294901760
    %5932 = vmatmul.mubr.f32.gmra.mrb[0].mxu0 %v5931
    %v5933 = vpop.f32.mrb[0].mxu0
    %v5934 = vadd.f32 %v5815, %v5933
    %v5935 = vpop.f32.mrb[0].mxu0
    %v5936 = vadd.f32 %v5817, %v5935
    %5937 = vmatprep.mubr.f32.mxu0 0.0
    %v5938 = vand.u32 %v3284, 4294901760
    %5939 = vmatmul.mubr.f32.gmra.mrb[0].mxu0 %v5938
    %v5940 = vpop.f32.mrb[0].mxu0
    %v5941 = vadd.f32 %v5824, %v5940
    %v5942 = vpop.f32.mrb[0].mxu0
    %v5943 = vadd.f32 %v5826, %v5942
    %5944 = vdwg.mxu0
    %v5945 = vand.u32 %v3221, 4294901760
    %5946 = vmatprep.subr.mxu0 %v5945
    %v5947 = vand.u32 %v3220, 4294901760
    %5948 = vmatpush1.msra.mxu0 %v5947
    %v5949 = vand.u32 %v3229, 4294901760
    %5950 = vmatprep.subr.mxu0 %v5949
    %v5951 = vand.u32 %v3228, 4294901760
    %5952 = vmatpush1.msra.mxu0 %v5951
    %v5953 = vand.u32 %v3237, 4294901760
    %5954 = vmatprep.subr.mxu0 %v5953
    %v5955 = vand.u32 %v3236, 4294901760
    %5956 = vmatpush1.msra.mxu0 %v5955
    %v5957 = vand.u32 %v3245, 4294901760
    %5958 = vmatprep.subr.mxu0 %v5957
    %v5959 = vand.u32 %v3244, 4294901760
    %5960 = vmatpush1.msra.mxu0 %v5959
    %5961 = vmatprep.subr.mxu0 0.0
    %5962 = vmatpush1.msra.mxu0 0.0
    %5963 = vmatprep.subr.mxu0 0.0
    %5964 = vmatpush1.msra.mxu0 0.0
    %5965 = vmatprep.subr.mxu0 0.0
    %5966 = vmatpush1.msra.mxu0 0.0
    %5967 = vmatprep.subr.mxu0 0.0
    %5968 = vmatpush1.msra.mxu0 0.0
    %5969 = vmatprep.subr.mxu0 0.0
    %5970 = vmatpush1.msra.mxu0 0.0
    %5971 = vmatprep.subr.mxu0 0.0
    %5972 = vmatpush1.msra.mxu0 0.0
    %5973 = vmatprep.subr.mxu0 0.0
    %5974 = vmatpush1.msra.mxu0 0.0
    %5975 = vmatprep.subr.mxu0 0.0
    %5976 = vmatpush1.msra.mxu0 0.0
    %5977 = vmatprep.subr.mxu0 0.0
    %5978 = vmatpush1.msra.mxu0 0.0
    %5979 = vmatprep.subr.mxu0 0.0
    %5980 = vmatpush1.msra.mxu0 0.0
    %5981 = vmatprep.subr.mxu0 0.0
    %5982 = vmatpush1.msra.mxu0 0.0
    %5983 = vmatprep.subr.mxu0 0.0
    %5984 = vmatpush1.msra.mxu0 0.0
    %5985 = vmatprep.subr.mxu0 0.0
    %5986 = vmatpush1.msra.mxu0 0.0
    %5987 = vmatprep.subr.mxu0 0.0
    %5988 = vmatpush1.msra.mxu0 0.0
    %5989 = vmatprep.subr.mxu0 0.0
    %5990 = vmatpush1.msra.mxu0 0.0
    %5991 = vmatprep.subr.mxu0 0.0
    %5992 = vmatpush1.msra.mxu0 0.0
    %5993 = vmatprep.subr.mxu0 0.0
    %5994 = vmatpush1.msra.mxu0 0.0
    %5995 = vmatprep.subr.mxu0 0.0
    %5996 = vmatpush1.msra.mxu0 0.0
    %5997 = vmatprep.subr.mxu0 0.0
    %5998 = vmatpush1.msra.mxu0 0.0
    %5999 = vmatprep.subr.mxu0 0.0
    %6000 = vmatpush1.msra.mxu0 0.0
    %6001 = vmatprep.subr.mxu0 0.0
    %6002 = vmatpush1.msra.mxu0 0.0
    %6003 = vmatprep.subr.mxu0 0.0
    %6004 = vmatpush1.msra.mxu0 0.0
    %6005 = vmatprep.subr.mxu0 0.0
    %6006 = vmatpush1.msra.mxu0 0.0
    %6007 = vmatprep.subr.mxu0 0.0
    %6008 = vmatpush1.msra.mxu0 0.0
    %6009 = vmatprep.subr.mxu0 0.0
    %6010 = vmatpush1.msra.mxu0 0.0
    %6011 = vmatprep.subr.mxu0 0.0
    %6012 = vmatpush1.msra.mxu0 0.0
    %6013 = vmatprep.subr.mxu0 0.0
    %6014 = vmatpush1.msra.mxu0 0.0
    %6015 = vmatprep.subr.mxu0 0.0
    %6016 = vmatpush1.msra.mxu0 0.0
    %6017 = vmatprep.mubr.f32.mxu0 0.0
    %v6018 = vand.u32 %v3275, 4294901760
    %6019 = vmatmul.mubr.f32.gmra.mrb[0].mxu0 %v6018
    %v6020 = vpop.f32.mrb[0].mxu0
    %v6021 = vadd.f32 %v5920, %v6020
    %v6022 = vpop.f32.mrb[0].mxu0
    %v6023 = vadd.f32 %v5922, %v6022
    %6024 = vmatprep.mubr.f32.mxu0 0.0
    %v6025 = vand.u32 %v3278, 4294901760
    %6026 = vmatmul.mubr.f32.gmra.mrb[0].mxu0 %v6025
    %v6027 = vpop.f32.mrb[0].mxu0
    %v6028 = vadd.f32 %v5927, %v6027
    %v6029 = vpop.f32.mrb[0].mxu0
    %v6030 = vadd.f32 %v5929, %v6029
    %6031 = vmatprep.mubr.f32.mxu0 0.0
    %v6032 = vand.u32 %v3281, 4294901760
    %6033 = vmatmul.mubr.f32.gmra.mrb[0].mxu0 %v6032
    %v6034 = vpop.f32.mrb[0].mxu0
    %v6035 = vadd.f32 %v5934, %v6034
    %v6036 = vpop.f32.mrb[0].mxu0
    %v6037 = vadd.f32 %v5936, %v6036
    %6038 = vmatprep.mubr.f32.mxu0 0.0
    %v6039 = vand.u32 %v3284, 4294901760
    %6040 = vmatmul.mubr.f32.gmra.mrb[0].mxu0 %v6039
    %v6041 = vpop.f32.mrb[0].mxu0
    %v6042 = vadd.f32 %v5941, %v6041
    %v6043 = vpop.f32.mrb[0].mxu0
    %v6044 = vadd.f32 %v5943, %v6043
    %6045 = vdwg.mxu0
    %v6046 = vtanh.pop %v3951
    %v6047 = vtanh.pop %v3953
    %v6048 = vtanh.pop %v4641
    %v6049 = vtanh.pop %v4643
    %v6050 = vtanh.pop %v5331
    %v6051 = vtanh.pop %v5333
    %v6052 = vtanh.pop %v6021
    %v6053 = vtanh.pop %v6023
    %v6054 = vtanh.pop %v3958
    %v6055 = vtanh.pop %v3960
    %v6056 = vtanh.pop %v4648
    %v6057 = vtanh.pop %v4650
    %v6058 = vtanh.pop %v5338
    %v6059 = vtanh.pop %v5340
    %v6060 = vtanh.pop %v6028
    %v6061 = vtanh.pop %v6030
    %v6062 = vtanh.pop %v3965
    %v6063 = vtanh.pop %v3967
    %v6064 = vtanh.pop %v4655
    %v6065 = vtanh.pop %v4657
    %v6066 = vtanh.pop %v5345
    %v6067 = vtanh.pop %v5347
    %v6068 = vtanh.pop %v6035
    %v6069 = vtanh.pop %v6037
    %v6070 = vtanh.pop %v3972
    %v6071 = vtanh.pop %v3974
    %v6072 = vtanh.pop %v4662
    %v6073 = vtanh.pop %v4664
    %v6074 = vtanh.pop %v5352
    %v6075 = vtanh.pop %v5354
    %v6076 = vtanh.pop %v6042
    %v6077 = vtanh.pop %v6044
    %v6078 = vld [vmem:[%s7] sm:$0xff]
    %v6079 = vld [vmem:[%s7 + $0x8] sm:$0xff]
    %v6080 = vld [vmem:[%s7 + $0x10] sm:$0xff]
    %v6081 = vld [vmem:[%s7 + $0x18] sm:$0xff]
    %v6082 = vld [vmem:[%s8] sm:$0xff]
    %v6083 = vld [vmem:[%s8 + $0x8] sm:$0xff]
    %v6084 = vld [vmem:[%s8 + $0x10] sm:$0xff]
    %v6085 = vld [vmem:[%s8 + $0x18] sm:$0xff]
    %6087 = vset.pattern.permute.xlu0 0
    %6088 = vperm.xlu0 %6087, %v6082
    %v6089 = vpop.permute.xlu0 %6088
    %6092 = vset.pattern.permute.xlu0 0
    %6093 = vperm.xlu0 %6092, %v6083
    %v6094 = vpop.permute.xlu0 %6093
    %6097 = vset.pattern.permute.xlu0 0
    %6098 = vperm.xlu0 %6097, %v6084
    %v6099 = vpop.permute.xlu0 %6098
    %6102 = vset.pattern.permute.xlu0 0
    %6103 = vperm.xlu0 %6102, %v6085
    %v6104 = vpop.permute.xlu0 %6103
    %v6107 = vsel %vm441, %v6078, 0
    %v6110 = vsel %vm441, %v6079, 0
    %v6113 = vsel %vm441, %v6080, 0
    %v6116 = vsel %vm441, %v6081, 0
    %v6118 = vand.u32 %v6047, 4294901760
    %6119 = vmatprep.subr.mxu0 %v6118
    %v6120 = vand.u32 %v6046, 4294901760
    %6121 = vmatpush1.msra.mxu0 %v6120
    %v6122 = vand.u32 %v6055, 4294901760
    %6123 = vmatprep.subr.mxu0 %v6122
    %v6124 = vand.u32 %v6054, 4294901760
    %6125 = vmatpush1.msra.mxu0 %v6124
    %v6126 = vand.u32 %v6063, 4294901760
    %6127 = vmatprep.subr.mxu0 %v6126
    %v6128 = vand.u32 %v6062, 4294901760
    %6129 = vmatpush1.msra.mxu0 %v6128
    %v6130 = vand.u32 %v6071, 4294901760
    %6131 = vmatprep.subr.mxu0 %v6130
    %v6132 = vand.u32 %v6070, 4294901760
    %6133 = vmatpush1.msra.mxu0 %v6132
    %6134 = vmatprep.subr.mxu0 0.0
    %6135 = vmatpush1.msra.mxu0 0.0
    %6136 = vmatprep.subr.mxu0 0.0
    %6137 = vmatpush1.msra.mxu0 0.0
    %6138 = vmatprep.subr.mxu0 0.0
    %6139 = vmatpush1.msra.mxu0 0.0
    %6140 = vmatprep.subr.mxu0 0.0
    %6141 = vmatpush1.msra.mxu0 0.0
    %6142 = vmatprep.subr.mxu0 0.0
    %6143 = vmatpush1.msra.mxu0 0.0
    %6144 = vmatprep.subr.mxu0 0.0
    %6145 = vmatpush1.msra.mxu0 0.0
    %6146 = vmatprep.subr.mxu0 0.0
    %6147 = vmatpush1.msra.mxu0 0.0
    %6148 = vmatprep.subr.mxu0 0.0
    %6149 = vmatpush1.msra.mxu0 0.0
    %6150 = vmatprep.subr.mxu0 0.0
    %6151 = vmatpush1.msra.mxu0 0.0
    %6152 = vmatprep.subr.mxu0 0.0
    %6153 = vmatpush1.msra.mxu0 0.0
    %6154 = vmatprep.subr.mxu0 0.0
    %6155 = vmatpush1.msra.mxu0 0.0
    %6156 = vmatprep.subr.mxu0 0.0
    %6157 = vmatpush1.msra.mxu0 0.0
    %6158 = vmatprep.subr.mxu0 0.0
    %6159 = vmatpush1.msra.mxu0 0.0
    %6160 = vmatprep.subr.mxu0 0.0
    %6161 = vmatpush1.msra.mxu0 0.0
    %6162 = vmatprep.subr.mxu0 0.0
    %6163 = vmatpush1.msra.mxu0 0.0
    %6164 = vmatprep.subr.mxu0 0.0
    %6165 = vmatpush1.msra.mxu0 0.0
    %6166 = vmatprep.subr.mxu0 0.0
    %6167 = vmatpush1.msra.mxu0 0.0
    %6168 = vmatprep.subr.mxu0 0.0
    %6169 = vmatpush1.msra.mxu0 0.0
    %6170 = vmatprep.subr.mxu0 0.0
    %6171 = vmatpush1.msra.mxu0 0.0
    %6172 = vmatprep.subr.mxu0 0.0
    %6173 = vmatpush1.msra.mxu0 0.0
    %6174 = vmatprep.subr.mxu0 0.0
    %6175 = vmatpush1.msra.mxu0 0.0
    %6176 = vmatprep.subr.mxu0 0.0
    %6177 = vmatpush1.msra.mxu0 0.0
    %6178 = vmatprep.subr.mxu0 0.0
    %6179 = vmatpush1.msra.mxu0 0.0
    %6180 = vmatprep.subr.mxu0 0.0
    %6181 = vmatpush1.msra.mxu0 0.0
    %6182 = vmatprep.subr.mxu0 0.0
    %6183 = vmatpush1.msra.mxu0 0.0
    %6184 = vmatprep.subr.mxu0 0.0
    %6185 = vmatpush1.msra.mxu0 0.0
    %6186 = vmatprep.subr.mxu0 0.0
    %6187 = vmatpush1.msra.mxu0 0.0
    %6188 = vmatprep.subr.mxu0 0.0
    %6189 = vmatpush1.msra.mxu0 0.0
    %6190 = vmatprep.mubr.f32.mxu0 0.0
    %v6191 = vand.u32 %v6107, 4294901760
    %v6192 = vsub.f32 %v6107, %v6191
    %v6193 = vand.u32 %v6192, 4294901760
    %v6194 = vsub.f32 %v6192, %v6193
    %v6195 = vand.u32 %v6194, 4294901760
    %6196 = vmatmul.mubr.f32.gmra.mrb[0].mxu0 %v6195
    %v6197 = vpop.f32.mrb[0].mxu0
    %v6198 = vadd.f32 %v6089, %v6197
    %v6199 = vpop.f32.mrb[0].mxu0
    %v6200 = vadd.f32 %v6089, %v6199
    %6201 = vmatprep.mubr.f32.mxu0 0.0
    %v6202 = vand.u32 %v6110, 4294901760
    %v6203 = vsub.f32 %v6110, %v6202
    %v6204 = vand.u32 %v6203, 4294901760
    %v6205 = vsub.f32 %v6203, %v6204
    %v6206 = vand.u32 %v6205, 4294901760
    %6207 = vmatmul.mubr.f32.gmra.mrb[0].mxu0 %v6206
    %v6208 = vpop.f32.mrb[0].mxu0
    %v6209 = vadd.f32 %v6094, %v6208
    %v6210 = vpop.f32.mrb[0].mxu0
    %v6211 = vadd.f32 %v6094, %v6210
    %6212 = vmatprep.mubr.f32.mxu0 0.0
    %v6213 = vand.u32 %v6113, 4294901760
    %v6214 = vsub.f32 %v6113, %v6213
    %v6215 = vand.u32 %v6214, 4294901760
    %v6216 = vsub.f32 %v6214, %v6215
    %v6217 = vand.u32 %v6216, 4294901760
    %6218 = vmatmul.mubr.f32.gmra.mrb[0].mxu0 %v6217
    %v6219 = vpop.f32.mrb[0].mxu0
    %v6220 = vadd.f32 %v6099, %v6219
    %v6221 = vpop.f32.mrb[0].mxu0
    %v6222 = vadd.f32 %v6099, %v6221
    %6223 = vmatprep.mubr.f32.mxu0 0.0
    %v6224 = vand.u32 %v6116, 4294901760
    %v6225 = vsub.f32 %v6116, %v6224
    %v6226 = vand.u32 %v6225, 4294901760
    %v6227 = vsub.f32 %v6225, %v6226
    %v6228 = vand.u32 %v6227, 4294901760
    %6229 = vmatmul.mubr.f32.gmra.mrb[0].mxu0 %v6228
    %v6230 = vpop.f32.mrb[0].mxu0
    %v6231 = vadd.f32 %v6104, %v6230
    %v6232 = vpop.f32.mrb[0].mxu0
    %v6233 = vadd.f32 %v6104, %v6232
    %6234 = vdwg.mxu0
    %v6235 = vand.u32 %v6047, 4294901760
    %v6236 = vsub.f32 %v6047, %v6235
    %v6237 = vand.u32 %v6236, 4294901760
    %v6238 = vsub.f32 %v6236, %v6237
    %v6239 = vand.u32 %v6238, 4294901760
    %6240 = vmatprep.subr.mxu0 %v6239
    %v6241 = vand.u32 %v6046, 4294901760
    %v6242 = vsub.f32 %v6046, %v6241
    %v6243 = vand.u32 %v6242, 4294901760
    %v6244 = vsub.f32 %v6242, %v6243
    %v6245 = vand.u32 %v6244, 4294901760
    %6246 = vmatpush1.msra.mxu0 %v6245
    %v6247 = vand.u32 %v6055, 4294901760
    %v6248 = vsub.f32 %v6055, %v6247
    %v6249 = vand.u32 %v6248, 4294901760
    %v6250 = vsub.f32 %v6248, %v6249
    %v6251 = vand.u32 %v6250, 4294901760
    %6252 = vmatprep.subr.mxu0 %v6251
    %v6253 = vand.u32 %v6054, 4294901760
    %v6254 = vsub.f32 %v6054, %v6253
    %v6255 = vand.u32 %v6254, 4294901760
    %v6256 = vsub.f32 %v6254, %v6255
    %v6257 = vand.u32 %v6256, 4294901760
    %6258 = vmatpush1.msra.mxu0 %v6257
    %v6259 = vand.u32 %v6063, 4294901760
    %v6260 = vsub.f32 %v6063, %v6259
    %v6261 = vand.u32 %v6260, 4294901760
    %v6262 = vsub.f32 %v6260, %v6261
    %v6263 = vand.u32 %v6262, 4294901760
    %6264 = vmatprep.subr.mxu0 %v6263
    %v6265 = vand.u32 %v6062, 4294901760
    %v6266 = vsub.f32 %v6062, %v6265
    %v6267 = vand.u32 %v6266, 4294901760
    %v6268 = vsub.f32 %v6266, %v6267
    %v6269 = vand.u32 %v6268, 4294901760
    %6270 = vmatpush1.msra.mxu0 %v6269
    %v6271 = vand.u32 %v6071, 4294901760
    %v6272 = vsub.f32 %v6071, %v6271
    %v6273 = vand.u32 %v6272, 4294901760
    %v6274 = vsub.f32 %v6272, %v6273
    %v6275 = vand.u32 %v6274, 4294901760
    %6276 = vmatprep.subr.mxu0 %v6275
    %v6277 = vand.u32 %v6070, 4294901760
    %v6278 = vsub.f32 %v6070, %v6277
    %v6279 = vand.u32 %v6278, 4294901760
    %v6280 = vsub.f32 %v6278, %v6279
    %v6281 = vand.u32 %v6280, 4294901760
    %6282 = vmatpush1.msra.mxu0 %v6281
    %6283 = vmatprep.subr.mxu0 0.0
    %6284 = vmatpush1.msra.mxu0 0.0
    %6285 = vmatprep.subr.mxu0 0.0
    %6286 = vmatpush1.msra.mxu0 0.0
    %6287 = vmatprep.subr.mxu0 0.0
    %6288 = vmatpush1.msra.mxu0 0.0
    %6289 = vmatprep.subr.mxu0 0.0
    %6290 = vmatpush1.msra.mxu0 0.0
    %6291 = vmatprep.subr.mxu0 0.0
    %6292 = vmatpush1.msra.mxu0 0.0
    %6293 = vmatprep.subr.mxu0 0.0
    %6294 = vmatpush1.msra.mxu0 0.0
    %6295 = vmatprep.subr.mxu0 0.0
    %6296 = vmatpush1.msra.mxu0 0.0
    %6297 = vmatprep.subr.mxu0 0.0
    %6298 = vmatpush1.msra.mxu0 0.0
    %6299 = vmatprep.subr.mxu0 0.0
    %6300 = vmatpush1.msra.mxu0 0.0
    %6301 = vmatprep.subr.mxu0 0.0
    %6302 = vmatpush1.msra.mxu0 0.0
    %6303 = vmatprep.subr.mxu0 0.0
    %6304 = vmatpush1.msra.mxu0 0.0
    %6305 = vmatprep.subr.mxu0 0.0
    %6306 = vmatpush1.msra.mxu0 0.0
    %6307 = vmatprep.subr.mxu0 0.0
    %6308 = vmatpush1.msra.mxu0 0.0
    %6309 = vmatprep.subr.mxu0 0.0
    %6310 = vmatpush1.msra.mxu0 0.0
    %6311 = vmatprep.subr.mxu0 0.0
    %6312 = vmatpush1.msra.mxu0 0.0
    %6313 = vmatprep.subr.mxu0 0.0
    %6314 = vmatpush1.msra.mxu0 0.0
    %6315 = vmatprep.subr.mxu0 0.0
    %6316 = vmatpush1.msra.mxu0 0.0
    %6317 = vmatprep.subr.mxu0 0.0
    %6318 = vmatpush1.msra.mxu0 0.0
    %6319 = vmatprep.subr.mxu0 0.0
    %6320 = vmatpush1.msra.mxu0 0.0
    %6321 = vmatprep.subr.mxu0 0.0
    %6322 = vmatpush1.msra.mxu0 0.0
    %6323 = vmatprep.subr.mxu0 0.0
    %6324 = vmatpush1.msra.mxu0 0.0
    %6325 = vmatprep.subr.mxu0 0.0
    %6326 = vmatpush1.msra.mxu0 0.0
    %6327 = vmatprep.subr.mxu0 0.0
    %6328 = vmatpush1.msra.mxu0 0.0
    %6329 = vmatprep.subr.mxu0 0.0
    %6330 = vmatpush1.msra.mxu0 0.0
    %6331 = vmatprep.subr.mxu0 0.0
    %6332 = vmatpush1.msra.mxu0 0.0
    %6333 = vmatprep.subr.mxu0 0.0
    %6334 = vmatpush1.msra.mxu0 0.0
    %6335 = vmatprep.subr.mxu0 0.0
    %6336 = vmatpush1.msra.mxu0 0.0
    %6337 = vmatprep.subr.mxu0 0.0
    %6338 = vmatpush1.msra.mxu0 0.0
    %6339 = vmatprep.mubr.f32.mxu0 0.0
    %v6340 = vand.u32 %v6107, 4294901760
    %6341 = vmatmul.mubr.f32.gmra.mrb[0].mxu0 %v6340
    %v6342 = vpop.f32.mrb[0].mxu0
    %v6343 = vadd.f32 %v6198, %v6342
    %v6344 = vpop.f32.mrb[0].mxu0
    %v6345 = vadd.f32 %v6200, %v6344
    %6346 = vmatprep.mubr.f32.mxu0 0.0
    %v6347 = vand.u32 %v6110, 4294901760
    %6348 = vmatmul.mubr.f32.gmra.mrb[0].mxu0 %v6347
    %v6349 = vpop.f32.mrb[0].mxu0
    %v6350 = vadd.f32 %v6209, %v6349
    %v6351 = vpop.f32.mrb[0].mxu0
    %v6352 = vadd.f32 %v6211, %v6351
    %6353 = vmatprep.mubr.f32.mxu0 0.0
    %v6354 = vand.u32 %v6113, 4294901760
    %6355 = vmatmul.mubr.f32.gmra.mrb[0].mxu0 %v6354
    %v6356 = vpop.f32.mrb[0].mxu0
    %v6357 = vadd.f32 %v6220, %v6356
    %v6358 = vpop.f32.mrb[0].mxu0
    %v6359 = vadd.f32 %v6222, %v6358
    %6360 = vmatprep.mubr.f32.mxu0 0.0
    %v6361 = vand.u32 %v6116, 4294901760
    %6362 = vmatmul.mubr.f32.gmra.mrb[0].mxu0 %v6361
    %v6363 = vpop.f32.mrb[0].mxu0
    %v6364 = vadd.f32 %v6231, %v6363
    %v6365 = vpop.f32.mrb[0].mxu0
    %v6366 = vadd.f32 %v6233, %v6365
    %6367 = vdwg.mxu0
    %v6368 = vand.u32 %v6047, 4294901760
    %v6369 = vsub.f32 %v6047, %v6368
    %6370 = vmatprep.subr.mxu0 %v6369
    %v6371 = vand.u32 %v6046, 4294901760
    %v6372 = vsub.f32 %v6046, %v6371
    %6373 = vmatpush1.msra.mxu0 %v6372
    %v6374 = vand.u32 %v6055, 4294901760
    %v6375 = vsub.f32 %v6055, %v6374
    %6376 = vmatprep.subr.mxu0 %v6375
    %v6377 = vand.u32 %v6054, 4294901760
    %v6378 = vsub.f32 %v6054, %v6377
    %6379 = vmatpush1.msra.mxu0 %v6378
    %v6380 = vand.u32 %v6063, 4294901760
    %v6381 = vsub.f32 %v6063, %v6380
    %6382 = vmatprep.subr.mxu0 %v6381
    %v6383 = vand.u32 %v6062, 4294901760
    %v6384 = vsub.f32 %v6062, %v6383
    %6385 = vmatpush1.msra.mxu0 %v6384
    %v6386 = vand.u32 %v6071, 4294901760
    %v6387 = vsub.f32 %v6071, %v6386
    %6388 = vmatprep.subr.mxu0 %v6387
    %v6389 = vand.u32 %v6070, 4294901760
    %v6390 = vsub.f32 %v6070, %v6389
    %6391 = vmatpush1.msra.mxu0 %v6390
    %6392 = vmatprep.subr.mxu0 0.0
    %6393 = vmatpush1.msra.mxu0 0.0
    %6394 = vmatprep.subr.mxu0 0.0
    %6395 = vmatpush1.msra.mxu0 0.0
    %6396 = vmatprep.subr.mxu0 0.0
    %6397 = vmatpush1.msra.mxu0 0.0
    %6398 = vmatprep.subr.mxu0 0.0
    %6399 = vmatpush1.msra.mxu0 0.0
    %6400 = vmatprep.subr.mxu0 0.0
    %6401 = vmatpush1.msra.mxu0 0.0
    %6402 = vmatprep.subr.mxu0 0.0
    %6403 = vmatpush1.msra.mxu0 0.0
    %6404 = vmatprep.subr.mxu0 0.0
    %6405 = vmatpush1.msra.mxu0 0.0
    %6406 = vmatprep.subr.mxu0 0.0
    %6407 = vmatpush1.msra.mxu0 0.0
    %6408 = vmatprep.subr.mxu0 0.0
    %6409 = vmatpush1.msra.mxu0 0.0
    %6410 = vmatprep.subr.mxu0 0.0
    %6411 = vmatpush1.msra.mxu0 0.0
    %6412 = vmatprep.subr.mxu0 0.0
    %6413 = vmatpush1.msra.mxu0 0.0
    %6414 = vmatprep.subr.mxu0 0.0
    %6415 = vmatpush1.msra.mxu0 0.0
    %6416 = vmatprep.subr.mxu0 0.0
    %6417 = vmatpush1.msra.mxu0 0.0
    %6418 = vmatprep.subr.mxu0 0.0
    %6419 = vmatpush1.msra.mxu0 0.0
    %6420 = vmatprep.subr.mxu0 0.0
    %6421 = vmatpush1.msra.mxu0 0.0
    %6422 = vmatprep.subr.mxu0 0.0
    %6423 = vmatpush1.msra.mxu0 0.0
    %6424 = vmatprep.subr.mxu0 0.0
    %6425 = vmatpush1.msra.mxu0 0.0
    %6426 = vmatprep.subr.mxu0 0.0
    %6427 = vmatpush1.msra.mxu0 0.0
    %6428 = vmatprep.subr.mxu0 0.0
    %6429 = vmatpush1.msra.mxu0 0.0
    %6430 = vmatprep.subr.mxu0 0.0
    %6431 = vmatpush1.msra.mxu0 0.0
    %6432 = vmatprep.subr.mxu0 0.0
    %6433 = vmatpush1.msra.mxu0 0.0
    %6434 = vmatprep.subr.mxu0 0.0
    %6435 = vmatpush1.msra.mxu0 0.0
    %6436 = vmatprep.subr.mxu0 0.0
    %6437 = vmatpush1.msra.mxu0 0.0
    %6438 = vmatprep.subr.mxu0 0.0
    %6439 = vmatpush1.msra.mxu0 0.0
    %6440 = vmatprep.subr.mxu0 0.0
    %6441 = vmatpush1.msra.mxu0 0.0
    %6442 = vmatprep.subr.mxu0 0.0
    %6443 = vmatpush1.msra.mxu0 0.0
    %6444 = vmatprep.subr.mxu0 0.0
    %6445 = vmatpush1.msra.mxu0 0.0
    %6446 = vmatprep.subr.mxu0 0.0
    %6447 = vmatpush1.msra.mxu0 0.0
    %6448 = vmatprep.mubr.f32.mxu0 0.0
    %v6449 = vand.u32 %v6107, 4294901760
    %v6450 = vsub.f32 %v6107, %v6449
    %6451 = vmatmul.mubr.f32.gmra.mrb[0].mxu0 %v6450
    %v6452 = vpop.f32.mrb[0].mxu0
    %v6453 = vadd.f32 %v6343, %v6452
    %v6454 = vpop.f32.mrb[0].mxu0
    %v6455 = vadd.f32 %v6345, %v6454
    %6456 = vmatprep.mubr.f32.mxu0 0.0
    %v6457 = vand.u32 %v6110, 4294901760
    %v6458 = vsub.f32 %v6110, %v6457
    %6459 = vmatmul.mubr.f32.gmra.mrb[0].mxu0 %v6458
    %v6460 = vpop.f32.mrb[0].mxu0
    %v6461 = vadd.f32 %v6350, %v6460
    %v6462 = vpop.f32.mrb[0].mxu0
    %v6463 = vadd.f32 %v6352, %v6462
    %6464 = vmatprep.mubr.f32.mxu0 0.0
    %v6465 = vand.u32 %v6113, 4294901760
    %v6466 = vsub.f32 %v6113, %v6465
    %6467 = vmatmul.mubr.f32.gmra.mrb[0].mxu0 %v6466
    %v6468 = vpop.f32.mrb[0].mxu0
    %v6469 = vadd.f32 %v6357, %v6468
    %v6470 = vpop.f32.mrb[0].mxu0
    %v6471 = vadd.f32 %v6359, %v6470
    %6472 = vmatprep.mubr.f32.mxu0 0.0
    %v6473 = vand.u32 %v6116, 4294901760
    %v6474 = vsub.f32 %v6116, %v6473
    %6475 = vmatmul.mubr.f32.gmra.mrb[0].mxu0 %v6474
    %v6476 = vpop.f32.mrb[0].mxu0
    %v6477 = vadd.f32 %v6364, %v6476
    %v6478 = vpop.f32.mrb[0].mxu0
    %v6479 = vadd.f32 %v6366, %v6478
    %6480 = vdwg.mxu0
    %v6481 = vand.u32 %v6047, 4294901760
    %6482 = vmatprep.subr.mxu0 %v6481
    %v6483 = vand.u32 %v6046, 4294901760
    %6484 = vmatpush1.msra.mxu0 %v6483
    %v6485 = vand.u32 %v6055, 4294901760
    %6486 = vmatprep.subr.mxu0 %v6485
    %v6487 = vand.u32 %v6054, 4294901760
    %6488 = vmatpush1.msra.mxu0 %v6487
    %v6489 = vand.u32 %v6063, 4294901760
    %6490 = vmatprep.subr.mxu0 %v6489
    %v6491 = vand.u32 %v6062, 4294901760
    %6492 = vmatpush1.msra.mxu0 %v6491
    %v6493 = vand.u32 %v6071, 4294901760
    %6494 = vmatprep.subr.mxu0 %v6493
    %v6495 = vand.u32 %v6070, 4294901760
    %6496 = vmatpush1.msra.mxu0 %v6495
    %6497 = vmatprep.subr.mxu0 0.0
    %6498 = vmatpush1.msra.mxu0 0.0
    %6499 = vmatprep.subr.mxu0 0.0
    %6500 = vmatpush1.msra.mxu0 0.0
    %6501 = vmatprep.subr.mxu0 0.0
    %6502 = vmatpush1.msra.mxu0 0.0
    %6503 = vmatprep.subr.mxu0 0.0
    %6504 = vmatpush1.msra.mxu0 0.0
    %6505 = vmatprep.subr.mxu0 0.0
    %6506 = vmatpush1.msra.mxu0 0.0
    %6507 = vmatprep.subr.mxu0 0.0
    %6508 = vmatpush1.msra.mxu0 0.0
    %6509 = vmatprep.subr.mxu0 0.0
    %6510 = vmatpush1.msra.mxu0 0.0
    %6511 = vmatprep.subr.mxu0 0.0
    %6512 = vmatpush1.msra.mxu0 0.0
    %6513 = vmatprep.subr.mxu0 0.0
    %6514 = vmatpush1.msra.mxu0 0.0
    %6515 = vmatprep.subr.mxu0 0.0
    %6516 = vmatpush1.msra.mxu0 0.0
    %6517 = vmatprep.subr.mxu0 0.0
    %6518 = vmatpush1.msra.mxu0 0.0
    %6519 = vmatprep.subr.mxu0 0.0
    %6520 = vmatpush1.msra.mxu0 0.0
    %6521 = vmatprep.subr.mxu0 0.0
    %6522 = vmatpush1.msra.mxu0 0.0
    %6523 = vmatprep.subr.mxu0 0.0
    %6524 = vmatpush1.msra.mxu0 0.0
    %6525 = vmatprep.subr.mxu0 0.0
    %6526 = vmatpush1.msra.mxu0 0.0
    %6527 = vmatprep.subr.mxu0 0.0
    %6528 = vmatpush1.msra.mxu0 0.0
    %6529 = vmatprep.subr.mxu0 0.0
    %6530 = vmatpush1.msra.mxu0 0.0
    %6531 = vmatprep.subr.mxu0 0.0
    %6532 = vmatpush1.msra.mxu0 0.0
    %6533 = vmatprep.subr.mxu0 0.0
    %6534 = vmatpush1.msra.mxu0 0.0
    %6535 = vmatprep.subr.mxu0 0.0
    %6536 = vmatpush1.msra.mxu0 0.0
    %6537 = vmatprep.subr.mxu0 0.0
    %6538 = vmatpush1.msra.mxu0 0.0
    %6539 = vmatprep.subr.mxu0 0.0
    %6540 = vmatpush1.msra.mxu0 0.0
    %6541 = vmatprep.subr.mxu0 0.0
    %6542 = vmatpush1.msra.mxu0 0.0
    %6543 = vmatprep.subr.mxu0 0.0
    %6544 = vmatpush1.msra.mxu0 0.0
    %6545 = vmatprep.subr.mxu0 0.0
    %6546 = vmatpush1.msra.mxu0 0.0
    %6547 = vmatprep.subr.mxu0 0.0
    %6548 = vmatpush1.msra.mxu0 0.0
    %6549 = vmatprep.subr.mxu0 0.0
    %6550 = vmatpush1.msra.mxu0 0.0
    %6551 = vmatprep.subr.mxu0 0.0
    %6552 = vmatpush1.msra.mxu0 0.0
    %6553 = vmatprep.mubr.f32.mxu0 0.0
    %v6554 = vand.u32 %v6107, 4294901760
    %v6555 = vsub.f32 %v6107, %v6554
    %v6556 = vand.u32 %v6555, 4294901760
    %6557 = vmatmul.mubr.f32.gmra.mrb[0].mxu0 %v6556
    %v6558 = vpop.f32.mrb[0].mxu0
    %v6559 = vadd.f32 %v6453, %v6558
    %v6560 = vpop.f32.mrb[0].mxu0
    %v6561 = vadd.f32 %v6455, %v6560
    %6562 = vmatprep.mubr.f32.mxu0 0.0
    %v6563 = vand.u32 %v6110, 4294901760
    %v6564 = vsub.f32 %v6110, %v6563
    %v6565 = vand.u32 %v6564, 4294901760
    %6566 = vmatmul.mubr.f32.gmra.mrb[0].mxu0 %v6565
    %v6567 = vpop.f32.mrb[0].mxu0
    %v6568 = vadd.f32 %v6461, %v6567
    %v6569 = vpop.f32.mrb[0].mxu0
    %v6570 = vadd.f32 %v6463, %v6569
    %6571 = vmatprep.mubr.f32.mxu0 0.0
    %v6572 = vand.u32 %v6113, 4294901760
    %v6573 = vsub.f32 %v6113, %v6572
    %v6574 = vand.u32 %v6573, 4294901760
    %6575 = vmatmul.mubr.f32.gmra.mrb[0].mxu0 %v6574
    %v6576 = vpop.f32.mrb[0].mxu0
    %v6577 = vadd.f32 %v6469, %v6576
    %v6578 = vpop.f32.mrb[0].mxu0
    %v6579 = vadd.f32 %v6471, %v6578
    %6580 = vmatprep.mubr.f32.mxu0 0.0
    %v6581 = vand.u32 %v6116, 4294901760
    %v6582 = vsub.f32 %v6116, %v6581
    %v6583 = vand.u32 %v6582, 4294901760
    %6584 = vmatmul.mubr.f32.gmra.mrb[0].mxu0 %v6583
    %v6585 = vpop.f32.mrb[0].mxu0
    %v6586 = vadd.f32 %v6477, %v6585
    %v6587 = vpop.f32.mrb[0].mxu0
    %v6588 = vadd.f32 %v6479, %v6587
    %6589 = vdwg.mxu0
    %v6590 = vand.u32 %v6047, 4294901760
    %v6591 = vsub.f32 %v6047, %v6590
    %v6592 = vand.u32 %v6591, 4294901760
    %6593 = vmatprep.subr.mxu0 %v6592
    %v6594 = vand.u32 %v6046, 4294901760
    %v6595 = vsub.f32 %v6046, %v6594
    %v6596 = vand.u32 %v6595, 4294901760
    %6597 = vmatpush1.msra.mxu0 %v6596
    %v6598 = vand.u32 %v6055, 4294901760
    %v6599 = vsub.f32 %v6055, %v6598
    %v6600 = vand.u32 %v6599, 4294901760
    %6601 = vmatprep.subr.mxu0 %v6600
    %v6602 = vand.u32 %v6054, 4294901760
    %v6603 = vsub.f32 %v6054, %v6602
    %v6604 = vand.u32 %v6603, 4294901760
    %6605 = vmatpush1.msra.mxu0 %v6604
    %v6606 = vand.u32 %v6063, 4294901760
    %v6607 = vsub.f32 %v6063, %v6606
    %v6608 = vand.u32 %v6607, 4294901760
    %6609 = vmatprep.subr.mxu0 %v6608
    %v6610 = vand.u32 %v6062, 4294901760
    %v6611 = vsub.f32 %v6062, %v6610
    %v6612 = vand.u32 %v6611, 4294901760
    %6613 = vmatpush1.msra.mxu0 %v6612
    %v6614 = vand.u32 %v6071, 4294901760
    %v6615 = vsub.f32 %v6071, %v6614
    %v6616 = vand.u32 %v6615, 4294901760
    %6617 = vmatprep.subr.mxu0 %v6616
    %v6618 = vand.u32 %v6070, 4294901760
    %v6619 = vsub.f32 %v6070, %v6618
    %v6620 = vand.u32 %v6619, 4294901760
    %6621 = vmatpush1.msra.mxu0 %v6620
    %6622 = vmatprep.subr.mxu0 0.0
    %6623 = vmatpush1.msra.mxu0 0.0
    %6624 = vmatprep.subr.mxu0 0.0
    %6625 = vmatpush1.msra.mxu0 0.0
    %6626 = vmatprep.subr.mxu0 0.0
    %6627 = vmatpush1.msra.mxu0 0.0
    %6628 = vmatprep.subr.mxu0 0.0
    %6629 = vmatpush1.msra.mxu0 0.0
    %6630 = vmatprep.subr.mxu0 0.0
    %6631 = vmatpush1.msra.mxu0 0.0
    %6632 = vmatprep.subr.mxu0 0.0
    %6633 = vmatpush1.msra.mxu0 0.0
    %6634 = vmatprep.subr.mxu0 0.0
    %6635 = vmatpush1.msra.mxu0 0.0
    %6636 = vmatprep.subr.mxu0 0.0
    %6637 = vmatpush1.msra.mxu0 0.0
    %6638 = vmatprep.subr.mxu0 0.0
    %6639 = vmatpush1.msra.mxu0 0.0
    %6640 = vmatprep.subr.mxu0 0.0
    %6641 = vmatpush1.msra.mxu0 0.0
    %6642 = vmatprep.subr.mxu0 0.0
    %6643 = vmatpush1.msra.mxu0 0.0
    %6644 = vmatprep.subr.mxu0 0.0
    %6645 = vmatpush1.msra.mxu0 0.0
    %6646 = vmatprep.subr.mxu0 0.0
    %6647 = vmatpush1.msra.mxu0 0.0
    %6648 = vmatprep.subr.mxu0 0.0
    %6649 = vmatpush1.msra.mxu0 0.0
    %6650 = vmatprep.subr.mxu0 0.0
    %6651 = vmatpush1.msra.mxu0 0.0
    %6652 = vmatprep.subr.mxu0 0.0
    %6653 = vmatpush1.msra.mxu0 0.0
    %6654 = vmatprep.subr.mxu0 0.0
    %6655 = vmatpush1.msra.mxu0 0.0
    %6656 = vmatprep.subr.mxu0 0.0
    %6657 = vmatpush1.msra.mxu0 0.0
    %6658 = vmatprep.subr.mxu0 0.0
    %6659 = vmatpush1.msra.mxu0 0.0
    %6660 = vmatprep.subr.mxu0 0.0
    %6661 = vmatpush1.msra.mxu0 0.0
    %6662 = vmatprep.subr.mxu0 0.0
    %6663 = vmatpush1.msra.mxu0 0.0
    %6664 = vmatprep.subr.mxu0 0.0
    %6665 = vmatpush1.msra.mxu0 0.0
    %6666 = vmatprep.subr.mxu0 0.0
    %6667 = vmatpush1.msra.mxu0 0.0
    %6668 = vmatprep.subr.mxu0 0.0
    %6669 = vmatpush1.msra.mxu0 0.0
    %6670 = vmatprep.subr.mxu0 0.0
    %6671 = vmatpush1.msra.mxu0 0.0
    %6672 = vmatprep.subr.mxu0 0.0
    %6673 = vmatpush1.msra.mxu0 0.0
    %6674 = vmatprep.subr.mxu0 0.0
    %6675 = vmatpush1.msra.mxu0 0.0
    %6676 = vmatprep.subr.mxu0 0.0
    %6677 = vmatpush1.msra.mxu0 0.0
    %6678 = vmatprep.mubr.f32.mxu0 0.0
    %v6679 = vand.u32 %v6107, 4294901760
    %6680 = vmatmul.mubr.f32.gmra.mrb[0].mxu0 %v6679
    %v6681 = vpop.f32.mrb[0].mxu0
    %v6682 = vadd.f32 %v6559, %v6681
    %v6683 = vpop.f32.mrb[0].mxu0
    %v6684 = vadd.f32 %v6561, %v6683
    %6685 = vmatprep.mubr.f32.mxu0 0.0
    %v6686 = vand.u32 %v6110, 4294901760
    %6687 = vmatmul.mubr.f32.gmra.mrb[0].mxu0 %v6686
    %v6688 = vpop.f32.mrb[0].mxu0
    %v6689 = vadd.f32 %v6568, %v6688
    %v6690 = vpop.f32.mrb[0].mxu0
    %v6691 = vadd.f32 %v6570, %v6690
    %6692 = vmatprep.mubr.f32.mxu0 0.0
    %v6693 = vand.u32 %v6113, 4294901760
    %6694 = vmatmul.mubr.f32.gmra.mrb[0].mxu0 %v6693
    %v6695 = vpop.f32.mrb[0].mxu0
    %v6696 = vadd.f32 %v6577, %v6695
    %v6697 = vpop.f32.mrb[0].mxu0
    %v6698 = vadd.f32 %v6579, %v6697
    %6699 = vmatprep.mubr.f32.mxu0 0.0
    %v6700 = vand.u32 %v6116, 4294901760
    %6701 = vmatmul.mubr.f32.gmra.mrb[0].mxu0 %v6700
    %v6702 = vpop.f32.mrb[0].mxu0
    %v6703 = vadd.f32 %v6586, %v6702
    %v6704 = vpop.f32.mrb[0].mxu0
    %v6705 = vadd.f32 %v6588, %v6704
    %6706 = vdwg.mxu0
    %v6707 = vand.u32 %v6047, 4294901760
    %6708 = vmatprep.subr.mxu0 %v6707
    %v6709 = vand.u32 %v6046, 4294901760
    %6710 = vmatpush1.msra.mxu0 %v6709
    %v6711 = vand.u32 %v6055, 4294901760
    %6712 = vmatprep.subr.mxu0 %v6711
    %v6713 = vand.u32 %v6054, 4294901760
    %6714 = vmatpush1.msra.mxu0 %v6713
    %v6715 = vand.u32 %v6063, 4294901760
    %6716 = vmatprep.subr.mxu0 %v6715
    %v6717 = vand.u32 %v6062, 4294901760
    %6718 = vmatpush1.msra.mxu0 %v6717
    %v6719 = vand.u32 %v6071, 4294901760
    %6720 = vmatprep.subr.mxu0 %v6719
    %v6721 = vand.u32 %v6070, 4294901760
    %6722 = vmatpush1.msra.mxu0 %v6721
    %6723 = vmatprep.subr.mxu0 0.0
    %6724 = vmatpush1.msra.mxu0 0.0
    %6725 = vmatprep.subr.mxu0 0.0
    %6726 = vmatpush1.msra.mxu0 0.0
    %6727 = vmatprep.subr.mxu0 0.0
    %6728 = vmatpush1.msra.mxu0 0.0
    %6729 = vmatprep.subr.mxu0 0.0
    %6730 = vmatpush1.msra.mxu0 0.0
    %6731 = vmatprep.subr.mxu0 0.0
    %6732 = vmatpush1.msra.mxu0 0.0
    %6733 = vmatprep.subr.mxu0 0.0
    %6734 = vmatpush1.msra.mxu0 0.0
    %6735 = vmatprep.subr.mxu0 0.0
    %6736 = vmatpush1.msra.mxu0 0.0
    %6737 = vmatprep.subr.mxu0 0.0
    %6738 = vmatpush1.msra.mxu0 0.0
    %6739 = vmatprep.subr.mxu0 0.0
    %6740 = vmatpush1.msra.mxu0 0.0
    %6741 = vmatprep.subr.mxu0 0.0
    %6742 = vmatpush1.msra.mxu0 0.0
    %6743 = vmatprep.subr.mxu0 0.0
    %6744 = vmatpush1.msra.mxu0 0.0
    %6745 = vmatprep.subr.mxu0 0.0
    %6746 = vmatpush1.msra.mxu0 0.0
    %6747 = vmatprep.subr.mxu0 0.0
    %6748 = vmatpush1.msra.mxu0 0.0
    %6749 = vmatprep.subr.mxu0 0.0
    %6750 = vmatpush1.msra.mxu0 0.0
    %6751 = vmatprep.subr.mxu0 0.0
    %6752 = vmatpush1.msra.mxu0 0.0
    %6753 = vmatprep.subr.mxu0 0.0
    %6754 = vmatpush1.msra.mxu0 0.0
    %6755 = vmatprep.subr.mxu0 0.0
    %6756 = vmatpush1.msra.mxu0 0.0
    %6757 = vmatprep.subr.mxu0 0.0
    %6758 = vmatpush1.msra.mxu0 0.0
    %6759 = vmatprep.subr.mxu0 0.0
    %6760 = vmatpush1.msra.mxu0 0.0
    %6761 = vmatprep.subr.mxu0 0.0
    %6762 = vmatpush1.msra.mxu0 0.0
    %6763 = vmatprep.subr.mxu0 0.0
    %6764 = vmatpush1.msra.mxu0 0.0
    %6765 = vmatprep.subr.mxu0 0.0
    %6766 = vmatpush1.msra.mxu0 0.0
    %6767 = vmatprep.subr.mxu0 0.0
    %6768 = vmatpush1.msra.mxu0 0.0
    %6769 = vmatprep.subr.mxu0 0.0
    %6770 = vmatpush1.msra.mxu0 0.0
    %6771 = vmatprep.subr.mxu0 0.0
    %6772 = vmatpush1.msra.mxu0 0.0
    %6773 = vmatprep.subr.mxu0 0.0
    %6774 = vmatpush1.msra.mxu0 0.0
    %6775 = vmatprep.subr.mxu0 0.0
    %6776 = vmatpush1.msra.mxu0 0.0
    %6777 = vmatprep.subr.mxu0 0.0
    %6778 = vmatpush1.msra.mxu0 0.0
    %6779 = vmatprep.mubr.f32.mxu0 0.0
    %v6780 = vand.u32 %v6107, 4294901760
    %6781 = vmatmul.mubr.f32.gmra.mrb[0].mxu0 %v6780
    %v6782 = vpop.f32.mrb[0].mxu0
    %v6783 = vadd.f32 %v6682, %v6782
    %v6784 = vpop.f32.mrb[0].mxu0
    %v6785 = vadd.f32 %v6684, %v6784
    %6786 = vmatprep.mubr.f32.mxu0 0.0
    %v6787 = vand.u32 %v6110, 4294901760
    %6788 = vmatmul.mubr.f32.gmra.mrb[0].mxu0 %v6787
    %v6789 = vpop.f32.mrb[0].mxu0
    %v6790 = vadd.f32 %v6689, %v6789
    %v6791 = vpop.f32.mrb[0].mxu0
    %v6792 = vadd.f32 %v6691, %v6791
    %6793 = vmatprep.mubr.f32.mxu0 0.0
    %v6794 = vand.u32 %v6113, 4294901760
    %6795 = vmatmul.mubr.f32.gmra.mrb[0].mxu0 %v6794
    %v6796 = vpop.f32.mrb[0].mxu0
    %v6797 = vadd.f32 %v6696, %v6796
    %v6798 = vpop.f32.mrb[0].mxu0
    %v6799 = vadd.f32 %v6698, %v6798
    %6800 = vmatprep.mubr.f32.mxu0 0.0
    %v6801 = vand.u32 %v6116, 4294901760
    %6802 = vmatmul.mubr.f32.gmra.mrb[0].mxu0 %v6801
    %v6803 = vpop.f32.mrb[0].mxu0
    %v6804 = vadd.f32 %v6703, %v6803
    %v6805 = vpop.f32.mrb[0].mxu0
    %v6806 = vadd.f32 %v6705, %v6805
    %6807 = vdwg.mxu0
    %v6808 = vand.u32 %v6049, 4294901760
    %6809 = vmatprep.subr.mxu0 %v6808
    %v6810 = vand.u32 %v6048, 4294901760
    %6811 = vmatpush1.msra.mxu0 %v6810
    %v6812 = vand.u32 %v6057, 4294901760
    %6813 = vmatprep.subr.mxu0 %v6812
    %v6814 = vand.u32 %v6056, 4294901760
    %6815 = vmatpush1.msra.mxu0 %v6814
    %v6816 = vand.u32 %v6065, 4294901760
    %6817 = vmatprep.subr.mxu0 %v6816
    %v6818 = vand.u32 %v6064, 4294901760
    %6819 = vmatpush1.msra.mxu0 %v6818
    %v6820 = vand.u32 %v6073, 4294901760
    %6821 = vmatprep.subr.mxu0 %v6820
    %v6822 = vand.u32 %v6072, 4294901760
    %6823 = vmatpush1.msra.mxu0 %v6822
    %6824 = vmatprep.subr.mxu0 0.0
    %6825 = vmatpush1.msra.mxu0 0.0
    %6826 = vmatprep.subr.mxu0 0.0
    %6827 = vmatpush1.msra.mxu0 0.0
    %6828 = vmatprep.subr.mxu0 0.0
    %6829 = vmatpush1.msra.mxu0 0.0
    %6830 = vmatprep.subr.mxu0 0.0
    %6831 = vmatpush1.msra.mxu0 0.0
    %6832 = vmatprep.subr.mxu0 0.0
    %6833 = vmatpush1.msra.mxu0 0.0
    %6834 = vmatprep.subr.mxu0 0.0
    %6835 = vmatpush1.msra.mxu0 0.0
    %6836 = vmatprep.subr.mxu0 0.0
    %6837 = vmatpush1.msra.mxu0 0.0
    %6838 = vmatprep.subr.mxu0 0.0
    %6839 = vmatpush1.msra.mxu0 0.0
    %6840 = vmatprep.subr.mxu0 0.0
    %6841 = vmatpush1.msra.mxu0 0.0
    %6842 = vmatprep.subr.mxu0 0.0
    %6843 = vmatpush1.msra.mxu0 0.0
    %6844 = vmatprep.subr.mxu0 0.0
    %6845 = vmatpush1.msra.mxu0 0.0
    %6846 = vmatprep.subr.mxu0 0.0
    %6847 = vmatpush1.msra.mxu0 0.0
    %6848 = vmatprep.subr.mxu0 0.0
    %6849 = vmatpush1.msra.mxu0 0.0
    %6850 = vmatprep.subr.mxu0 0.0
    %6851 = vmatpush1.msra.mxu0 0.0
    %6852 = vmatprep.subr.mxu0 0.0
    %6853 = vmatpush1.msra.mxu0 0.0
    %6854 = vmatprep.subr.mxu0 0.0
    %6855 = vmatpush1.msra.mxu0 0.0
    %6856 = vmatprep.subr.mxu0 0.0
    %6857 = vmatpush1.msra.mxu0 0.0
    %6858 = vmatprep.subr.mxu0 0.0
    %6859 = vmatpush1.msra.mxu0 0.0
    %6860 = vmatprep.subr.mxu0 0.0
    %6861 = vmatpush1.msra.mxu0 0.0
    %6862 = vmatprep.subr.mxu0 0.0
    %6863 = vmatpush1.msra.mxu0 0.0
    %6864 = vmatprep.subr.mxu0 0.0
    %6865 = vmatpush1.msra.mxu0 0.0
    %6866 = vmatprep.subr.mxu0 0.0
    %6867 = vmatpush1.msra.mxu0 0.0
    %6868 = vmatprep.subr.mxu0 0.0
    %6869 = vmatpush1.msra.mxu0 0.0
    %6870 = vmatprep.subr.mxu0 0.0
    %6871 = vmatpush1.msra.mxu0 0.0
    %6872 = vmatprep.subr.mxu0 0.0
    %6873 = vmatpush1.msra.mxu0 0.0
    %6874 = vmatprep.subr.mxu0 0.0
    %6875 = vmatpush1.msra.mxu0 0.0
    %6876 = vmatprep.subr.mxu0 0.0
    %6877 = vmatpush1.msra.mxu0 0.0
    %6878 = vmatprep.subr.mxu0 0.0
    %6879 = vmatpush1.msra.mxu0 0.0
    %6880 = vmatprep.mubr.f32.mxu0 0.0
    %v6881 = vand.u32 %v6107, 4294901760
    %v6882 = vsub.f32 %v6107, %v6881
    %v6883 = vand.u32 %v6882, 4294901760
    %v6884 = vsub.f32 %v6882, %v6883
    %v6885 = vand.u32 %v6884, 4294901760
    %6886 = vmatmul.mubr.f32.gmra.mrb[0].mxu0 %v6885
    %v6887 = vpop.f32.mrb[0].mxu0
    %v6888 = vadd.f32 %v6089, %v6887
    %v6889 = vpop.f32.mrb[0].mxu0
    %v6890 = vadd.f32 %v6089, %v6889
    %6891 = vmatprep.mubr.f32.mxu0 0.0
    %v6892 = vand.u32 %v6110, 4294901760
    %v6893 = vsub.f32 %v6110, %v6892
    %v6894 = vand.u32 %v6893, 4294901760
    %v6895 = vsub.f32 %v6893, %v6894
    %v6896 = vand.u32 %v6895, 4294901760
    %6897 = vmatmul.mubr.f32.gmra.mrb[0].mxu0 %v6896
    %v6898 = vpop.f32.mrb[0].mxu0
    %v6899 = vadd.f32 %v6094, %v6898
    %v6900 = vpop.f32.mrb[0].mxu0
    %v6901 = vadd.f32 %v6094, %v6900
    %6902 = vmatprep.mubr.f32.mxu0 0.0
    %v6903 = vand.u32 %v6113, 4294901760
    %v6904 = vsub.f32 %v6113, %v6903
    %v6905 = vand.u32 %v6904, 4294901760
    %v6906 = vsub.f32 %v6904, %v6905
    %v6907 = vand.u32 %v6906, 4294901760
    %6908 = vmatmul.mubr.f32.gmra.mrb[0].mxu0 %v6907
    %v6909 = vpop.f32.mrb[0].mxu0
    %v6910 = vadd.f32 %v6099, %v6909
    %v6911 = vpop.f32.mrb[0].mxu0
    %v6912 = vadd.f32 %v6099, %v6911
    %6913 = vmatprep.mubr.f32.mxu0 0.0
    %v6914 = vand.u32 %v6116, 4294901760
    %v6915 = vsub.f32 %v6116, %v6914
    %v6916 = vand.u32 %v6915, 4294901760
    %v6917 = vsub.f32 %v6915, %v6916
    %v6918 = vand.u32 %v6917, 4294901760
    %6919 = vmatmul.mubr.f32.gmra.mrb[0].mxu0 %v6918
    %v6920 = vpop.f32.mrb[0].mxu0
    %v6921 = vadd.f32 %v6104, %v6920
    %v6922 = vpop.f32.mrb[0].mxu0
    %v6923 = vadd.f32 %v6104, %v6922
    %6924 = vdwg.mxu0
    %v6925 = vand.u32 %v6049, 4294901760
    %v6926 = vsub.f32 %v6049, %v6925
    %v6927 = vand.u32 %v6926, 4294901760
    %v6928 = vsub.f32 %v6926, %v6927
    %v6929 = vand.u32 %v6928, 4294901760
    %6930 = vmatprep.subr.mxu0 %v6929
    %v6931 = vand.u32 %v6048, 4294901760
    %v6932 = vsub.f32 %v6048, %v6931
    %v6933 = vand.u32 %v6932, 4294901760
    %v6934 = vsub.f32 %v6932, %v6933
    %v6935 = vand.u32 %v6934, 4294901760
    %6936 = vmatpush1.msra.mxu0 %v6935
    %v6937 = vand.u32 %v6057, 4294901760
    %v6938 = vsub.f32 %v6057, %v6937
    %v6939 = vand.u32 %v6938, 4294901760
    %v6940 = vsub.f32 %v6938, %v6939
    %v6941 = vand.u32 %v6940, 4294901760
    %6942 = vmatprep.subr.mxu0 %v6941
    %v6943 = vand.u32 %v6056, 4294901760
    %v6944 = vsub.f32 %v6056, %v6943
    %v6945 = vand.u32 %v6944, 4294901760
    %v6946 = vsub.f32 %v6944, %v6945
    %v6947 = vand.u32 %v6946, 4294901760
    %6948 = vmatpush1.msra.mxu0 %v6947
    %v6949 = vand.u32 %v6065, 4294901760
    %v6950 = vsub.f32 %v6065, %v6949
    %v6951 = vand.u32 %v6950, 4294901760
    %v6952 = vsub.f32 %v6950, %v6951
    %v6953 = vand.u32 %v6952, 4294901760
    %6954 = vmatprep.subr.mxu0 %v6953
    %v6955 = vand.u32 %v6064, 4294901760
    %v6956 = vsub.f32 %v6064, %v6955
    %v6957 = vand.u32 %v6956, 4294901760
    %v6958 = vsub.f32 %v6956, %v6957
    %v6959 = vand.u32 %v6958, 4294901760
    %6960 = vmatpush1.msra.mxu0 %v6959
    %v6961 = vand.u32 %v6073, 4294901760
    %v6962 = vsub.f32 %v6073, %v6961
    %v6963 = vand.u32 %v6962, 4294901760
    %v6964 = vsub.f32 %v6962, %v6963
    %v6965 = vand.u32 %v6964, 4294901760
    %6966 = vmatprep.subr.mxu0 %v6965
    %v6967 = vand.u32 %v6072, 4294901760
    %v6968 = vsub.f32 %v6072, %v6967
    %v6969 = vand.u32 %v6968, 4294901760
    %v6970 = vsub.f32 %v6968, %v6969
    %v6971 = vand.u32 %v6970, 4294901760
    %6972 = vmatpush1.msra.mxu0 %v6971
    %6973 = vmatprep.subr.mxu0 0.0
    %6974 = vmatpush1.msra.mxu0 0.0
    %6975 = vmatprep.subr.mxu0 0.0
    %6976 = vmatpush1.msra.mxu0 0.0
    %6977 = vmatprep.subr.mxu0 0.0
    %6978 = vmatpush1.msra.mxu0 0.0
    %6979 = vmatprep.subr.mxu0 0.0
    %6980 = vmatpush1.msra.mxu0 0.0
    %6981 = vmatprep.subr.mxu0 0.0
    %6982 = vmatpush1.msra.mxu0 0.0
    %6983 = vmatprep.subr.mxu0 0.0
    %6984 = vmatpush1.msra.mxu0 0.0
    %6985 = vmatprep.subr.mxu0 0.0
    %6986 = vmatpush1.msra.mxu0 0.0
    %6987 = vmatprep.subr.mxu0 0.0
    %6988 = vmatpush1.msra.mxu0 0.0
    %6989 = vmatprep.subr.mxu0 0.0
    %6990 = vmatpush1.msra.mxu0 0.0
    %6991 = vmatprep.subr.mxu0 0.0
    %6992 = vmatpush1.msra.mxu0 0.0
    %6993 = vmatprep.subr.mxu0 0.0
    %6994 = vmatpush1.msra.mxu0 0.0
    %6995 = vmatprep.subr.mxu0 0.0
    %6996 = vmatpush1.msra.mxu0 0.0
    %6997 = vmatprep.subr.mxu0 0.0
    %6998 = vmatpush1.msra.mxu0 0.0
    %6999 = vmatprep.subr.mxu0 0.0
    %7000 = vmatpush1.msra.mxu0 0.0
    %7001 = vmatprep.subr.mxu0 0.0
    %7002 = vmatpush1.msra.mxu0 0.0
    %7003 = vmatprep.subr.mxu0 0.0
    %7004 = vmatpush1.msra.mxu0 0.0
    %7005 = vmatprep.subr.mxu0 0.0
    %7006 = vmatpush1.msra.mxu0 0.0
    %7007 = vmatprep.subr.mxu0 0.0
    %7008 = vmatpush1.msra.mxu0 0.0
    %7009 = vmatprep.subr.mxu0 0.0
    %7010 = vmatpush1.msra.mxu0 0.0
    %7011 = vmatprep.subr.mxu0 0.0
    %7012 = vmatpush1.msra.mxu0 0.0
    %7013 = vmatprep.subr.mxu0 0.0
    %7014 = vmatpush1.msra.mxu0 0.0
    %7015 = vmatprep.subr.mxu0 0.0
    %7016 = vmatpush1.msra.mxu0 0.0
    %7017 = vmatprep.subr.mxu0 0.0
    %7018 = vmatpush1.msra.mxu0 0.0
    %7019 = vmatprep.subr.mxu0 0.0
    %7020 = vmatpush1.msra.mxu0 0.0
    %7021 = vmatprep.subr.mxu0 0.0
    %7022 = vmatpush1.msra.mxu0 0.0
    %7023 = vmatprep.subr.mxu0 0.0
    %7024 = vmatpush1.msra.mxu0 0.0
    %7025 = vmatprep.subr.mxu0 0.0
    %7026 = vmatpush1.msra.mxu0 0.0
    %7027 = vmatprep.subr.mxu0 0.0
    %7028 = vmatpush1.msra.mxu0 0.0
    %7029 = vmatprep.mubr.f32.mxu0 0.0
    %v7030 = vand.u32 %v6107, 4294901760
    %7031 = vmatmul.mubr.f32.gmra.mrb[0].mxu0 %v7030
    %v7032 = vpop.f32.mrb[0].mxu0
    %v7033 = vadd.f32 %v6888, %v7032
    %v7034 = vpop.f32.mrb[0].mxu0
    %v7035 = vadd.f32 %v6890, %v7034
    %7036 = vmatprep.mubr.f32.mxu0 0.0
    %v7037 = vand.u32 %v6110, 4294901760
    %7038 = vmatmul.mubr.f32.gmra.mrb[0].mxu0 %v7037
    %v7039 = vpop.f32.mrb[0].mxu0
    %v7040 = vadd.f32 %v6899, %v7039
    %v7041 = vpop.f32.mrb[0].mxu0
    %v7042 = vadd.f32 %v6901, %v7041
    %7043 = vmatprep.mubr.f32.mxu0 0.0
    %v7044 = vand.u32 %v6113, 4294901760
    %7045 = vmatmul.mubr.f32.gmra.mrb[0].mxu0 %v7044
    %v7046 = vpop.f32.mrb[0].mxu0
    %v7047 = vadd.f32 %v6910, %v7046
    %v7048 = vpop.f32.mrb[0].mxu0
    %v7049 = vadd.f32 %v6912, %v7048
    %7050 = vmatprep.mubr.f32.mxu0 0.0
    %v7051 = vand.u32 %v6116, 4294901760
    %7052 = vmatmul.mubr.f32.gmra.mrb[0].mxu0 %v7051
    %v7053 = vpop.f32.mrb[0].mxu0
    %v7054 = vadd.f32 %v6921, %v7053
    %v7055 = vpop.f32.mrb[0].mxu0
    %v7056 = vadd.f32 %v6923, %v7055
    %7057 = vdwg.mxu0
    %v7058 = vand.u32 %v6049, 4294901760
    %v7059 = vsub.f32 %v6049, %v7058
    %7060 = vmatprep.subr.mxu0 %v7059
    %v7061 = vand.u32 %v6048, 4294901760
    %v7062 = vsub.f32 %v6048, %v7061
    %7063 = vmatpush1.msra.mxu0 %v7062
    %v7064 = vand.u32 %v6057, 4294901760
    %v7065 = vsub.f32 %v6057, %v7064
    %7066 = vmatprep.subr.mxu0 %v7065
    %v7067 = vand.u32 %v6056, 4294901760
    %v7068 = vsub.f32 %v6056, %v7067
    %7069 = vmatpush1.msra.mxu0 %v7068
    %v7070 = vand.u32 %v6065, 4294901760
    %v7071 = vsub.f32 %v6065, %v7070
    %7072 = vmatprep.subr.mxu0 %v7071
    %v7073 = vand.u32 %v6064, 4294901760
    %v7074 = vsub.f32 %v6064, %v7073
    %7075 = vmatpush1.msra.mxu0 %v7074
    %v7076 = vand.u32 %v6073, 4294901760
    %v7077 = vsub.f32 %v6073, %v7076
    %7078 = vmatprep.subr.mxu0 %v7077
    %v7079 = vand.u32 %v6072, 4294901760
    %v7080 = vsub.f32 %v6072, %v7079
    %7081 = vmatpush1.msra.mxu0 %v7080
    %7082 = vmatprep.subr.mxu0 0.0
    %7083 = vmatpush1.msra.mxu0 0.0
    %7084 = vmatprep.subr.mxu0 0.0
    %7085 = vmatpush1.msra.mxu0 0.0
    %7086 = vmatprep.subr.mxu0 0.0
    %7087 = vmatpush1.msra.mxu0 0.0
    %7088 = vmatprep.subr.mxu0 0.0
    %7089 = vmatpush1.msra.mxu0 0.0
    %7090 = vmatprep.subr.mxu0 0.0
    %7091 = vmatpush1.msra.mxu0 0.0
    %7092 = vmatprep.subr.mxu0 0.0
    %7093 = vmatpush1.msra.mxu0 0.0
    %7094 = vmatprep.subr.mxu0 0.0
    %7095 = vmatpush1.msra.mxu0 0.0
    %7096 = vmatprep.subr.mxu0 0.0
    %7097 = vmatpush1.msra.mxu0 0.0
    %7098 = vmatprep.subr.mxu0 0.0
    %7099 = vmatpush1.msra.mxu0 0.0
    %7100 = vmatprep.subr.mxu0 0.0
    %7101 = vmatpush1.msra.mxu0 0.0
    %7102 = vmatprep.subr.mxu0 0.0
    %7103 = vmatpush1.msra.mxu0 0.0
    %7104 = vmatprep.subr.mxu0 0.0
    %7105 = vmatpush1.msra.mxu0 0.0
    %7106 = vmatprep.subr.mxu0 0.0
    %7107 = vmatpush1.msra.mxu0 0.0
    %7108 = vmatprep.subr.mxu0 0.0
    %7109 = vmatpush1.msra.mxu0 0.0
    %7110 = vmatprep.subr.mxu0 0.0
    %7111 = vmatpush1.msra.mxu0 0.0
    %7112 = vmatprep.subr.mxu0 0.0
    %7113 = vmatpush1.msra.mxu0 0.0
    %7114 = vmatprep.subr.mxu0 0.0
    %7115 = vmatpush1.msra.mxu0 0.0
    %7116 = vmatprep.subr.mxu0 0.0
    %7117 = vmatpush1.msra.mxu0 0.0
    %7118 = vmatprep.subr.mxu0 0.0
    %7119 = vmatpush1.msra.mxu0 0.0
    %7120 = vmatprep.subr.mxu0 0.0
    %7121 = vmatpush1.msra.mxu0 0.0
    %7122 = vmatprep.subr.mxu0 0.0
    %7123 = vmatpush1.msra.mxu0 0.0
    %7124 = vmatprep.subr.mxu0 0.0
    %7125 = vmatpush1.msra.mxu0 0.0
    %7126 = vmatprep.subr.mxu0 0.0
    %7127 = vmatpush1.msra.mxu0 0.0
    %7128 = vmatprep.subr.mxu0 0.0
    %7129 = vmatpush1.msra.mxu0 0.0
    %7130 = vmatprep.subr.mxu0 0.0
    %7131 = vmatpush1.msra.mxu0 0.0
    %7132 = vmatprep.subr.mxu0 0.0
    %7133 = vmatpush1.msra.mxu0 0.0
    %7134 = vmatprep.subr.mxu0 0.0
    %7135 = vmatpush1.msra.mxu0 0.0
    %7136 = vmatprep.subr.mxu0 0.0
    %7137 = vmatpush1.msra.mxu0 0.0
    %7138 = vmatprep.mubr.f32.mxu0 0.0
    %v7139 = vand.u32 %v6107, 4294901760
    %v7140 = vsub.f32 %v6107, %v7139
    %7141 = vmatmul.mubr.f32.gmra.mrb[0].mxu0 %v7140
    %v7142 = vpop.f32.mrb[0].mxu0
    %v7143 = vadd.f32 %v7033, %v7142
    %v7144 = vpop.f32.mrb[0].mxu0
    %v7145 = vadd.f32 %v7035, %v7144
    %7146 = vmatprep.mubr.f32.mxu0 0.0
    %v7147 = vand.u32 %v6110, 4294901760
    %v7148 = vsub.f32 %v6110, %v7147
    %7149 = vmatmul.mubr.f32.gmra.mrb[0].mxu0 %v7148
    %v7150 = vpop.f32.mrb[0].mxu0
    %v7151 = vadd.f32 %v7040, %v7150
    %v7152 = vpop.f32.mrb[0].mxu0
    %v7153 = vadd.f32 %v7042, %v7152
    %7154 = vmatprep.mubr.f32.mxu0 0.0
    %v7155 = vand.u32 %v6113, 4294901760
    %v7156 = vsub.f32 %v6113, %v7155
    %7157 = vmatmul.mubr.f32.gmra.mrb[0].mxu0 %v7156
    %v7158 = vpop.f32.mrb[0].mxu0
    %v7159 = vadd.f32 %v7047, %v7158
    %v7160 = vpop.f32.mrb[0].mxu0
    %v7161 = vadd.f32 %v7049, %v7160
    %7162 = vmatprep.mubr.f32.mxu0 0.0
    %v7163 = vand.u32 %v6116, 4294901760
    %v7164 = vsub.f32 %v6116, %v7163
    %7165 = vmatmul.mubr.f32.gmra.mrb[0].mxu0 %v7164
    %v7166 = vpop.f32.mrb[0].mxu0
    %v7167 = vadd.f32 %v7054, %v7166
    %v7168 = vpop.f32.mrb[0].mxu0
    %v7169 = vadd.f32 %v7056, %v7168
    %7170 = vdwg.mxu0
    %v7171 = vand.u32 %v6049, 4294901760
    %7172 = vmatprep.subr.mxu0 %v7171
    %v7173 = vand.u32 %v6048, 4294901760
    %7174 = vmatpush1.msra.mxu0 %v7173
    %v7175 = vand.u32 %v6057, 4294901760
    %7176 = vmatprep.subr.mxu0 %v7175
    %v7177 = vand.u32 %v6056, 4294901760
    %7178 = vmatpush1.msra.mxu0 %v7177
    %v7179 = vand.u32 %v6065, 4294901760
    %7180 = vmatprep.subr.mxu0 %v7179
    %v7181 = vand.u32 %v6064, 4294901760
    %7182 = vmatpush1.msra.mxu0 %v7181
    %v7183 = vand.u32 %v6073, 4294901760
    %7184 = vmatprep.subr.mxu0 %v7183
    %v7185 = vand.u32 %v6072, 4294901760
    %7186 = vmatpush1.msra.mxu0 %v7185
    %7187 = vmatprep.subr.mxu0 0.0
    %7188 = vmatpush1.msra.mxu0 0.0
    %7189 = vmatprep.subr.mxu0 0.0
    %7190 = vmatpush1.msra.mxu0 0.0
    %7191 = vmatprep.subr.mxu0 0.0
    %7192 = vmatpush1.msra.mxu0 0.0
    %7193 = vmatprep.subr.mxu0 0.0
    %7194 = vmatpush1.msra.mxu0 0.0
    %7195 = vmatprep.subr.mxu0 0.0
    %7196 = vmatpush1.msra.mxu0 0.0
    %7197 = vmatprep.subr.mxu0 0.0
    %7198 = vmatpush1.msra.mxu0 0.0
    %7199 = vmatprep.subr.mxu0 0.0
    %7200 = vmatpush1.msra.mxu0 0.0
    %7201 = vmatprep.subr.mxu0 0.0
    %7202 = vmatpush1.msra.mxu0 0.0
    %7203 = vmatprep.subr.mxu0 0.0
    %7204 = vmatpush1.msra.mxu0 0.0
    %7205 = vmatprep.subr.mxu0 0.0
    %7206 = vmatpush1.msra.mxu0 0.0
    %7207 = vmatprep.subr.mxu0 0.0
    %7208 = vmatpush1.msra.mxu0 0.0
    %7209 = vmatprep.subr.mxu0 0.0
    %7210 = vmatpush1.msra.mxu0 0.0
    %7211 = vmatprep.subr.mxu0 0.0
    %7212 = vmatpush1.msra.mxu0 0.0
    %7213 = vmatprep.subr.mxu0 0.0
    %7214 = vmatpush1.msra.mxu0 0.0
    %7215 = vmatprep.subr.mxu0 0.0
    %7216 = vmatpush1.msra.mxu0 0.0
    %7217 = vmatprep.subr.mxu0 0.0
    %7218 = vmatpush1.msra.mxu0 0.0
    %7219 = vmatprep.subr.mxu0 0.0
    %7220 = vmatpush1.msra.mxu0 0.0
    %7221 = vmatprep.subr.mxu0 0.0
    %7222 = vmatpush1.msra.mxu0 0.0
    %7223 = vmatprep.subr.mxu0 0.0
    %7224 = vmatpush1.msra.mxu0 0.0
    %7225 = vmatprep.subr.mxu0 0.0
    %7226 = vmatpush1.msra.mxu0 0.0
    %7227 = vmatprep.subr.mxu0 0.0
    %7228 = vmatpush1.msra.mxu0 0.0
    %7229 = vmatprep.subr.mxu0 0.0
    %7230 = vmatpush1.msra.mxu0 0.0
    %7231 = vmatprep.subr.mxu0 0.0
    %7232 = vmatpush1.msra.mxu0 0.0
    %7233 = vmatprep.subr.mxu0 0.0
    %7234 = vmatpush1.msra.mxu0 0.0
    %7235 = vmatprep.subr.mxu0 0.0
    %7236 = vmatpush1.msra.mxu0 0.0
    %7237 = vmatprep.subr.mxu0 0.0
    %7238 = vmatpush1.msra.mxu0 0.0
    %7239 = vmatprep.subr.mxu0 0.0
    %7240 = vmatpush1.msra.mxu0 0.0
    %7241 = vmatprep.subr.mxu0 0.0
    %7242 = vmatpush1.msra.mxu0 0.0
    %7243 = vmatprep.mubr.f32.mxu0 0.0
    %v7244 = vand.u32 %v6107, 4294901760
    %v7245 = vsub.f32 %v6107, %v7244
    %v7246 = vand.u32 %v7245, 4294901760
    %7247 = vmatmul.mubr.f32.gmra.mrb[0].mxu0 %v7246
    %v7248 = vpop.f32.mrb[0].mxu0
    %v7249 = vadd.f32 %v7143, %v7248
    %v7250 = vpop.f32.mrb[0].mxu0
    %v7251 = vadd.f32 %v7145, %v7250
    %7252 = vmatprep.mubr.f32.mxu0 0.0
    %v7253 = vand.u32 %v6110, 4294901760
    %v7254 = vsub.f32 %v6110, %v7253
    %v7255 = vand.u32 %v7254, 4294901760
    %7256 = vmatmul.mubr.f32.gmra.mrb[0].mxu0 %v7255
    %v7257 = vpop.f32.mrb[0].mxu0
    %v7258 = vadd.f32 %v7151, %v7257
    %v7259 = vpop.f32.mrb[0].mxu0
    %v7260 = vadd.f32 %v7153, %v7259
    %7261 = vmatprep.mubr.f32.mxu0 0.0
    %v7262 = vand.u32 %v6113, 4294901760
    %v7263 = vsub.f32 %v6113, %v7262
    %v7264 = vand.u32 %v7263, 4294901760
    %7265 = vmatmul.mubr.f32.gmra.mrb[0].mxu0 %v7264
    %v7266 = vpop.f32.mrb[0].mxu0
    %v7267 = vadd.f32 %v7159, %v7266
    %v7268 = vpop.f32.mrb[0].mxu0
    %v7269 = vadd.f32 %v7161, %v7268
    %7270 = vmatprep.mubr.f32.mxu0 0.0
    %v7271 = vand.u32 %v6116, 4294901760
    %v7272 = vsub.f32 %v6116, %v7271
    %v7273 = vand.u32 %v7272, 4294901760
    %7274 = vmatmul.mubr.f32.gmra.mrb[0].mxu0 %v7273
    %v7275 = vpop.f32.mrb[0].mxu0
    %v7276 = vadd.f32 %v7167, %v7275
    %v7277 = vpop.f32.mrb[0].mxu0
    %v7278 = vadd.f32 %v7169, %v7277
    %7279 = vdwg.mxu0
    %v7280 = vand.u32 %v6049, 4294901760
    %v7281 = vsub.f32 %v6049, %v7280
    %v7282 = vand.u32 %v7281, 4294901760
    %7283 = vmatprep.subr.mxu0 %v7282
    %v7284 = vand.u32 %v6048, 4294901760
    %v7285 = vsub.f32 %v6048, %v7284
    %v7286 = vand.u32 %v7285, 4294901760
    %7287 = vmatpush1.msra.mxu0 %v7286
    %v7288 = vand.u32 %v6057, 4294901760
    %v7289 = vsub.f32 %v6057, %v7288
    %v7290 = vand.u32 %v7289, 4294901760
    %7291 = vmatprep.subr.mxu0 %v7290
    %v7292 = vand.u32 %v6056, 4294901760
    %v7293 = vsub.f32 %v6056, %v7292
    %v7294 = vand.u32 %v7293, 4294901760
    %7295 = vmatpush1.msra.mxu0 %v7294
    %v7296 = vand.u32 %v6065, 4294901760
    %v7297 = vsub.f32 %v6065, %v7296
    %v7298 = vand.u32 %v7297, 4294901760
    %7299 = vmatprep.subr.mxu0 %v7298
    %v7300 = vand.u32 %v6064, 4294901760
    %v7301 = vsub.f32 %v6064, %v7300
    %v7302 = vand.u32 %v7301, 4294901760
    %7303 = vmatpush1.msra.mxu0 %v7302
    %v7304 = vand.u32 %v6073, 4294901760
    %v7305 = vsub.f32 %v6073, %v7304
    %v7306 = vand.u32 %v7305, 4294901760
    %7307 = vmatprep.subr.mxu0 %v7306
    %v7308 = vand.u32 %v6072, 4294901760
    %v7309 = vsub.f32 %v6072, %v7308
    %v7310 = vand.u32 %v7309, 4294901760
    %7311 = vmatpush1.msra.mxu0 %v7310
    %7312 = vmatprep.subr.mxu0 0.0
    %7313 = vmatpush1.msra.mxu0 0.0
    %7314 = vmatprep.subr.mxu0 0.0
    %7315 = vmatpush1.msra.mxu0 0.0
    %7316 = vmatprep.subr.mxu0 0.0
    %7317 = vmatpush1.msra.mxu0 0.0
    %7318 = vmatprep.subr.mxu0 0.0
    %7319 = vmatpush1.msra.mxu0 0.0
    %7320 = vmatprep.subr.mxu0 0.0
    %7321 = vmatpush1.msra.mxu0 0.0
    %7322 = vmatprep.subr.mxu0 0.0
    %7323 = vmatpush1.msra.mxu0 0.0
    %7324 = vmatprep.subr.mxu0 0.0
    %7325 = vmatpush1.msra.mxu0 0.0
    %7326 = vmatprep.subr.mxu0 0.0
    %7327 = vmatpush1.msra.mxu0 0.0
    %7328 = vmatprep.subr.mxu0 0.0
    %7329 = vmatpush1.msra.mxu0 0.0
    %7330 = vmatprep.subr.mxu0 0.0
    %7331 = vmatpush1.msra.mxu0 0.0
    %7332 = vmatprep.subr.mxu0 0.0
    %7333 = vmatpush1.msra.mxu0 0.0
    %7334 = vmatprep.subr.mxu0 0.0
    %7335 = vmatpush1.msra.mxu0 0.0
    %7336 = vmatprep.subr.mxu0 0.0
    %7337 = vmatpush1.msra.mxu0 0.0
    %7338 = vmatprep.subr.mxu0 0.0
    %7339 = vmatpush1.msra.mxu0 0.0
    %7340 = vmatprep.subr.mxu0 0.0
    %7341 = vmatpush1.msra.mxu0 0.0
    %7342 = vmatprep.subr.mxu0 0.0
    %7343 = vmatpush1.msra.mxu0 0.0
    %7344 = vmatprep.subr.mxu0 0.0
    %7345 = vmatpush1.msra.mxu0 0.0
    %7346 = vmatprep.subr.mxu0 0.0
    %7347 = vmatpush1.msra.mxu0 0.0
    %7348 = vmatprep.subr.mxu0 0.0
    %7349 = vmatpush1.msra.mxu0 0.0
    %7350 = vmatprep.subr.mxu0 0.0
    %7351 = vmatpush1.msra.mxu0 0.0
    %7352 = vmatprep.subr.mxu0 0.0
    %7353 = vmatpush1.msra.mxu0 0.0
    %7354 = vmatprep.subr.mxu0 0.0
    %7355 = vmatpush1.msra.mxu0 0.0
    %7356 = vmatprep.subr.mxu0 0.0
    %7357 = vmatpush1.msra.mxu0 0.0
    %7358 = vmatprep.subr.mxu0 0.0
    %7359 = vmatpush1.msra.mxu0 0.0
    %7360 = vmatprep.subr.mxu0 0.0
    %7361 = vmatpush1.msra.mxu0 0.0
    %7362 = vmatprep.subr.mxu0 0.0
    %7363 = vmatpush1.msra.mxu0 0.0
    %7364 = vmatprep.subr.mxu0 0.0
    %7365 = vmatpush1.msra.mxu0 0.0
    %7366 = vmatprep.subr.mxu0 0.0
    %7367 = vmatpush1.msra.mxu0 0.0
    %7368 = vmatprep.mubr.f32.mxu0 0.0
    %v7369 = vand.u32 %v6107, 4294901760
    %7370 = vmatmul.mubr.f32.gmra.mrb[0].mxu0 %v7369
    %v7371 = vpop.f32.mrb[0].mxu0
    %v7372 = vadd.f32 %v7249, %v7371
    %v7373 = vpop.f32.mrb[0].mxu0
    %v7374 = vadd.f32 %v7251, %v7373
    %7375 = vmatprep.mubr.f32.mxu0 0.0
    %v7376 = vand.u32 %v6110, 4294901760
    %7377 = vmatmul.mubr.f32.gmra.mrb[0].mxu0 %v7376
    %v7378 = vpop.f32.mrb[0].mxu0
    %v7379 = vadd.f32 %v7258, %v7378
    %v7380 = vpop.f32.mrb[0].mxu0
    %v7381 = vadd.f32 %v7260, %v7380
    %7382 = vmatprep.mubr.f32.mxu0 0.0
    %v7383 = vand.u32 %v6113, 4294901760
    %7384 = vmatmul.mubr.f32.gmra.mrb[0].mxu0 %v7383
    %v7385 = vpop.f32.mrb[0].mxu0
    %v7386 = vadd.f32 %v7267, %v7385
    %v7387 = vpop.f32.mrb[0].mxu0
    %v7388 = vadd.f32 %v7269, %v7387
    %7389 = vmatprep.mubr.f32.mxu0 0.0
    %v7390 = vand.u32 %v6116, 4294901760
    %7391 = vmatmul.mubr.f32.gmra.mrb[0].mxu0 %v7390
    %v7392 = vpop.f32.mrb[0].mxu0
    %v7393 = vadd.f32 %v7276, %v7392
    %v7394 = vpop.f32.mrb[0].mxu0
    %v7395 = vadd.f32 %v7278, %v7394
    %7396 = vdwg.mxu0
    %v7397 = vand.u32 %v6049, 4294901760
    %7398 = vmatprep.subr.mxu0 %v7397
    %v7399 = vand.u32 %v6048, 4294901760
    %7400 = vmatpush1.msra.mxu0 %v7399
    %v7401 = vand.u32 %v6057, 4294901760
    %7402 = vmatprep.subr.mxu0 %v7401
    %v7403 = vand.u32 %v6056, 4294901760
    %7404 = vmatpush1.msra.mxu0 %v7403
    %v7405 = vand.u32 %v6065, 4294901760
    %7406 = vmatprep.subr.mxu0 %v7405
    %v7407 = vand.u32 %v6064, 4294901760
    %7408 = vmatpush1.msra.mxu0 %v7407
    %v7409 = vand.u32 %v6073, 4294901760
    %7410 = vmatprep.subr.mxu0 %v7409
    %v7411 = vand.u32 %v6072, 4294901760
    %7412 = vmatpush1.msra.mxu0 %v7411
    %7413 = vmatprep.subr.mxu0 0.0
    %7414 = vmatpush1.msra.mxu0 0.0
    %7415 = vmatprep.subr.mxu0 0.0
    %7416 = vmatpush1.msra.mxu0 0.0
    %7417 = vmatprep.subr.mxu0 0.0
    %7418 = vmatpush1.msra.mxu0 0.0
    %7419 = vmatprep.subr.mxu0 0.0
    %7420 = vmatpush1.msra.mxu0 0.0
    %7421 = vmatprep.subr.mxu0 0.0
    %7422 = vmatpush1.msra.mxu0 0.0
    %7423 = vmatprep.subr.mxu0 0.0
    %7424 = vmatpush1.msra.mxu0 0.0
    %7425 = vmatprep.subr.mxu0 0.0
    %7426 = vmatpush1.msra.mxu0 0.0
    %7427 = vmatprep.subr.mxu0 0.0
    %7428 = vmatpush1.msra.mxu0 0.0
    %7429 = vmatprep.subr.mxu0 0.0
    %7430 = vmatpush1.msra.mxu0 0.0
    %7431 = vmatprep.subr.mxu0 0.0
    %7432 = vmatpush1.msra.mxu0 0.0
    %7433 = vmatprep.subr.mxu0 0.0
    %7434 = vmatpush1.msra.mxu0 0.0
    %7435 = vmatprep.subr.mxu0 0.0
    %7436 = vmatpush1.msra.mxu0 0.0
    %7437 = vmatprep.subr.mxu0 0.0
    %7438 = vmatpush1.msra.mxu0 0.0
    %7439 = vmatprep.subr.mxu0 0.0
    %7440 = vmatpush1.msra.mxu0 0.0
    %7441 = vmatprep.subr.mxu0 0.0
    %7442 = vmatpush1.msra.mxu0 0.0
    %7443 = vmatprep.subr.mxu0 0.0
    %7444 = vmatpush1.msra.mxu0 0.0
    %7445 = vmatprep.subr.mxu0 0.0
    %7446 = vmatpush1.msra.mxu0 0.0
    %7447 = vmatprep.subr.mxu0 0.0
    %7448 = vmatpush1.msra.mxu0 0.0
    %7449 = vmatprep.subr.mxu0 0.0
    %7450 = vmatpush1.msra.mxu0 0.0
    %7451 = vmatprep.subr.mxu0 0.0
    %7452 = vmatpush1.msra.mxu0 0.0
    %7453 = vmatprep.subr.mxu0 0.0
    %7454 = vmatpush1.msra.mxu0 0.0
    %7455 = vmatprep.subr.mxu0 0.0
    %7456 = vmatpush1.msra.mxu0 0.0
    %7457 = vmatprep.subr.mxu0 0.0
    %7458 = vmatpush1.msra.mxu0 0.0
    %7459 = vmatprep.subr.mxu0 0.0
    %7460 = vmatpush1.msra.mxu0 0.0
    %7461 = vmatprep.subr.mxu0 0.0
    %7462 = vmatpush1.msra.mxu0 0.0
    %7463 = vmatprep.subr.mxu0 0.0
    %7464 = vmatpush1.msra.mxu0 0.0
    %7465 = vmatprep.subr.mxu0 0.0
    %7466 = vmatpush1.msra.mxu0 0.0
    %7467 = vmatprep.subr.mxu0 0.0
    %7468 = vmatpush1.msra.mxu0 0.0
    %7469 = vmatprep.mubr.f32.mxu0 0.0
    %v7470 = vand.u32 %v6107, 4294901760
    %7471 = vmatmul.mubr.f32.gmra.mrb[0].mxu0 %v7470
    %v7472 = vpop.f32.mrb[0].mxu0
    %v7473 = vadd.f32 %v7372, %v7472
    %v7474 = vpop.f32.mrb[0].mxu0
    %v7475 = vadd.f32 %v7374, %v7474
    %7476 = vmatprep.mubr.f32.mxu0 0.0
    %v7477 = vand.u32 %v6110, 4294901760
    %7478 = vmatmul.mubr.f32.gmra.mrb[0].mxu0 %v7477
    %v7479 = vpop.f32.mrb[0].mxu0
    %v7480 = vadd.f32 %v7379, %v7479
    %v7481 = vpop.f32.mrb[0].mxu0
    %v7482 = vadd.f32 %v7381, %v7481
    %7483 = vmatprep.mubr.f32.mxu0 0.0
    %v7484 = vand.u32 %v6113, 4294901760
    %7485 = vmatmul.mubr.f32.gmra.mrb[0].mxu0 %v7484
    %v7486 = vpop.f32.mrb[0].mxu0
    %v7487 = vadd.f32 %v7386, %v7486
    %v7488 = vpop.f32.mrb[0].mxu0
    %v7489 = vadd.f32 %v7388, %v7488
    %7490 = vmatprep.mubr.f32.mxu0 0.0
    %v7491 = vand.u32 %v6116, 4294901760
    %7492 = vmatmul.mubr.f32.gmra.mrb[0].mxu0 %v7491
    %v7493 = vpop.f32.mrb[0].mxu0
    %v7494 = vadd.f32 %v7393, %v7493
    %v7495 = vpop.f32.mrb[0].mxu0
    %v7496 = vadd.f32 %v7395, %v7495
    %7497 = vdwg.mxu0
    %v7498 = vand.u32 %v6051, 4294901760
    %7499 = vmatprep.subr.mxu0 %v7498
    %v7500 = vand.u32 %v6050, 4294901760
    %7501 = vmatpush1.msra.mxu0 %v7500
    %v7502 = vand.u32 %v6059, 4294901760
    %7503 = vmatprep.subr.mxu0 %v7502
    %v7504 = vand.u32 %v6058, 4294901760
    %7505 = vmatpush1.msra.mxu0 %v7504
    %v7506 = vand.u32 %v6067, 4294901760
    %7507 = vmatprep.subr.mxu0 %v7506
    %v7508 = vand.u32 %v6066, 4294901760
    %7509 = vmatpush1.msra.mxu0 %v7508
    %v7510 = vand.u32 %v6075, 4294901760
    %7511 = vmatprep.subr.mxu0 %v7510
    %v7512 = vand.u32 %v6074, 4294901760
    %7513 = vmatpush1.msra.mxu0 %v7512
    %7514 = vmatprep.subr.mxu0 0.0
    %7515 = vmatpush1.msra.mxu0 0.0
    %7516 = vmatprep.subr.mxu0 0.0
    %7517 = vmatpush1.msra.mxu0 0.0
    %7518 = vmatprep.subr.mxu0 0.0
    %7519 = vmatpush1.msra.mxu0 0.0
    %7520 = vmatprep.subr.mxu0 0.0
    %7521 = vmatpush1.msra.mxu0 0.0
    %7522 = vmatprep.subr.mxu0 0.0
    %7523 = vmatpush1.msra.mxu0 0.0
    %7524 = vmatprep.subr.mxu0 0.0
    %7525 = vmatpush1.msra.mxu0 0.0
    %7526 = vmatprep.subr.mxu0 0.0
    %7527 = vmatpush1.msra.mxu0 0.0
    %7528 = vmatprep.subr.mxu0 0.0
    %7529 = vmatpush1.msra.mxu0 0.0
    %7530 = vmatprep.subr.mxu0 0.0
    %7531 = vmatpush1.msra.mxu0 0.0
    %7532 = vmatprep.subr.mxu0 0.0
    %7533 = vmatpush1.msra.mxu0 0.0
    %7534 = vmatprep.subr.mxu0 0.0
    %7535 = vmatpush1.msra.mxu0 0.0
    %7536 = vmatprep.subr.mxu0 0.0
    %7537 = vmatpush1.msra.mxu0 0.0
    %7538 = vmatprep.subr.mxu0 0.0
    %7539 = vmatpush1.msra.mxu0 0.0
    %7540 = vmatprep.subr.mxu0 0.0
    %7541 = vmatpush1.msra.mxu0 0.0
    %7542 = vmatprep.subr.mxu0 0.0
    %7543 = vmatpush1.msra.mxu0 0.0
    %7544 = vmatprep.subr.mxu0 0.0
    %7545 = vmatpush1.msra.mxu0 0.0
    %7546 = vmatprep.subr.mxu0 0.0
    %7547 = vmatpush1.msra.mxu0 0.0
    %7548 = vmatprep.subr.mxu0 0.0
    %7549 = vmatpush1.msra.mxu0 0.0
    %7550 = vmatprep.subr.mxu0 0.0
    %7551 = vmatpush1.msra.mxu0 0.0
    %7552 = vmatprep.subr.mxu0 0.0
    %7553 = vmatpush1.msra.mxu0 0.0
    %7554 = vmatprep.subr.mxu0 0.0
    %7555 = vmatpush1.msra.mxu0 0.0
    %7556 = vmatprep.subr.mxu0 0.0
    %7557 = vmatpush1.msra.mxu0 0.0
    %7558 = vmatprep.subr.mxu0 0.0
    %7559 = vmatpush1.msra.mxu0 0.0
    %7560 = vmatprep.subr.mxu0 0.0
    %7561 = vmatpush1.msra.mxu0 0.0
    %7562 = vmatprep.subr.mxu0 0.0
    %7563 = vmatpush1.msra.mxu0 0.0
    %7564 = vmatprep.subr.mxu0 0.0
    %7565 = vmatpush1.msra.mxu0 0.0
    %7566 = vmatprep.subr.mxu0 0.0
    %7567 = vmatpush1.msra.mxu0 0.0
    %7568 = vmatprep.subr.mxu0 0.0
    %7569 = vmatpush1.msra.mxu0 0.0
    %7570 = vmatprep.mubr.f32.mxu0 0.0
    %v7571 = vand.u32 %v6107, 4294901760
    %v7572 = vsub.f32 %v6107, %v7571
    %v7573 = vand.u32 %v7572, 4294901760
    %v7574 = vsub.f32 %v7572, %v7573
    %v7575 = vand.u32 %v7574, 4294901760
    %7576 = vmatmul.mubr.f32.gmra.mrb[0].mxu0 %v7575
    %v7577 = vpop.f32.mrb[0].mxu0
    %v7578 = vadd.f32 %v6089, %v7577
    %v7579 = vpop.f32.mrb[0].mxu0
    %v7580 = vadd.f32 %v6089, %v7579
    %7581 = vmatprep.mubr.f32.mxu0 0.0
    %v7582 = vand.u32 %v6110, 4294901760
    %v7583 = vsub.f32 %v6110, %v7582
    %v7584 = vand.u32 %v7583, 4294901760
    %v7585 = vsub.f32 %v7583, %v7584
    %v7586 = vand.u32 %v7585, 4294901760
    %7587 = vmatmul.mubr.f32.gmra.mrb[0].mxu0 %v7586
    %v7588 = vpop.f32.mrb[0].mxu0
    %v7589 = vadd.f32 %v6094, %v7588
    %v7590 = vpop.f32.mrb[0].mxu0
    %v7591 = vadd.f32 %v6094, %v7590
    %7592 = vmatprep.mubr.f32.mxu0 0.0
    %v7593 = vand.u32 %v6113, 4294901760
    %v7594 = vsub.f32 %v6113, %v7593
    %v7595 = vand.u32 %v7594, 4294901760
    %v7596 = vsub.f32 %v7594, %v7595
    %v7597 = vand.u32 %v7596, 4294901760
    %7598 = vmatmul.mubr.f32.gmra.mrb[0].mxu0 %v7597
    %v7599 = vpop.f32.mrb[0].mxu0
    %v7600 = vadd.f32 %v6099, %v7599
    %v7601 = vpop.f32.mrb[0].mxu0
    %v7602 = vadd.f32 %v6099, %v7601
    %7603 = vmatprep.mubr.f32.mxu0 0.0
    %v7604 = vand.u32 %v6116, 4294901760
    %v7605 = vsub.f32 %v6116, %v7604
    %v7606 = vand.u32 %v7605, 4294901760
    %v7607 = vsub.f32 %v7605, %v7606
    %v7608 = vand.u32 %v7607, 4294901760
    %7609 = vmatmul.mubr.f32.gmra.mrb[0].mxu0 %v7608
    %v7610 = vpop.f32.mrb[0].mxu0
    %v7611 = vadd.f32 %v6104, %v7610
    %v7612 = vpop.f32.mrb[0].mxu0
    %v7613 = vadd.f32 %v6104, %v7612
    %7614 = vdwg.mxu0
    %v7615 = vand.u32 %v6051, 4294901760
    %v7616 = vsub.f32 %v6051, %v7615
    %v7617 = vand.u32 %v7616, 4294901760
    %v7618 = vsub.f32 %v7616, %v7617
    %v7619 = vand.u32 %v7618, 4294901760
    %7620 = vmatprep.subr.mxu0 %v7619
    %v7621 = vand.u32 %v6050, 4294901760
    %v7622 = vsub.f32 %v6050, %v7621
    %v7623 = vand.u32 %v7622, 4294901760
    %v7624 = vsub.f32 %v7622, %v7623
    %v7625 = vand.u32 %v7624, 4294901760
    %7626 = vmatpush1.msra.mxu0 %v7625
    %v7627 = vand.u32 %v6059, 4294901760
    %v7628 = vsub.f32 %v6059, %v7627
    %v7629 = vand.u32 %v7628, 4294901760
    %v7630 = vsub.f32 %v7628, %v7629
    %v7631 = vand.u32 %v7630, 4294901760
    %7632 = vmatprep.subr.mxu0 %v7631
    %v7633 = vand.u32 %v6058, 4294901760
    %v7634 = vsub.f32 %v6058, %v7633
    %v7635 = vand.u32 %v7634, 4294901760
    %v7636 = vsub.f32 %v7634, %v7635
    %v7637 = vand.u32 %v7636, 4294901760
    %7638 = vmatpush1.msra.mxu0 %v7637
    %v7639 = vand.u32 %v6067, 4294901760
    %v7640 = vsub.f32 %v6067, %v7639
    %v7641 = vand.u32 %v7640, 4294901760
    %v7642 = vsub.f32 %v7640, %v7641
    %v7643 = vand.u32 %v7642, 4294901760
    %7644 = vmatprep.subr.mxu0 %v7643
    %v7645 = vand.u32 %v6066, 4294901760
    %v7646 = vsub.f32 %v6066, %v7645
    %v7647 = vand.u32 %v7646, 4294901760
    %v7648 = vsub.f32 %v7646, %v7647
    %v7649 = vand.u32 %v7648, 4294901760
    %7650 = vmatpush1.msra.mxu0 %v7649
    %v7651 = vand.u32 %v6075, 4294901760
    %v7652 = vsub.f32 %v6075, %v7651
    %v7653 = vand.u32 %v7652, 4294901760
    %v7654 = vsub.f32 %v7652, %v7653
    %v7655 = vand.u32 %v7654, 4294901760
    %7656 = vmatprep.subr.mxu0 %v7655
    %v7657 = vand.u32 %v6074, 4294901760
    %v7658 = vsub.f32 %v6074, %v7657
    %v7659 = vand.u32 %v7658, 4294901760
    %v7660 = vsub.f32 %v7658, %v7659
    %v7661 = vand.u32 %v7660, 4294901760
    %7662 = vmatpush1.msra.mxu0 %v7661
    %7663 = vmatprep.subr.mxu0 0.0
    %7664 = vmatpush1.msra.mxu0 0.0
    %7665 = vmatprep.subr.mxu0 0.0
    %7666 = vmatpush1.msra.mxu0 0.0
    %7667 = vmatprep.subr.mxu0 0.0
    %7668 = vmatpush1.msra.mxu0 0.0
    %7669 = vmatprep.subr.mxu0 0.0
    %7670 = vmatpush1.msra.mxu0 0.0
    %7671 = vmatprep.subr.mxu0 0.0
    %7672 = vmatpush1.msra.mxu0 0.0
    %7673 = vmatprep.subr.mxu0 0.0
    %7674 = vmatpush1.msra.mxu0 0.0
    %7675 = vmatprep.subr.mxu0 0.0
    %7676 = vmatpush1.msra.mxu0 0.0
    %7677 = vmatprep.subr.mxu0 0.0
    %7678 = vmatpush1.msra.mxu0 0.0
    %7679 = vmatprep.subr.mxu0 0.0
    %7680 = vmatpush1.msra.mxu0 0.0
    %7681 = vmatprep.subr.mxu0 0.0
    %7682 = vmatpush1.msra.mxu0 0.0
    %7683 = vmatprep.subr.mxu0 0.0
    %7684 = vmatpush1.msra.mxu0 0.0
    %7685 = vmatprep.subr.mxu0 0.0
    %7686 = vmatpush1.msra.mxu0 0.0
    %7687 = vmatprep.subr.mxu0 0.0
    %7688 = vmatpush1.msra.mxu0 0.0
    %7689 = vmatprep.subr.mxu0 0.0
    %7690 = vmatpush1.msra.mxu0 0.0
    %7691 = vmatprep.subr.mxu0 0.0
    %7692 = vmatpush1.msra.mxu0 0.0
    %7693 = vmatprep.subr.mxu0 0.0
    %7694 = vmatpush1.msra.mxu0 0.0
    %7695 = vmatprep.subr.mxu0 0.0
    %7696 = vmatpush1.msra.mxu0 0.0
    %7697 = vmatprep.subr.mxu0 0.0
    %7698 = vmatpush1.msra.mxu0 0.0
    %7699 = vmatprep.subr.mxu0 0.0
    %7700 = vmatpush1.msra.mxu0 0.0
    %7701 = vmatprep.subr.mxu0 0.0
    %7702 = vmatpush1.msra.mxu0 0.0
    %7703 = vmatprep.subr.mxu0 0.0
    %7704 = vmatpush1.msra.mxu0 0.0
    %7705 = vmatprep.subr.mxu0 0.0
    %7706 = vmatpush1.msra.mxu0 0.0
    %7707 = vmatprep.subr.mxu0 0.0
    %7708 = vmatpush1.msra.mxu0 0.0
    %7709 = vmatprep.subr.mxu0 0.0
    %7710 = vmatpush1.msra.mxu0 0.0
    %7711 = vmatprep.subr.mxu0 0.0
    %7712 = vmatpush1.msra.mxu0 0.0
    %7713 = vmatprep.subr.mxu0 0.0
    %7714 = vmatpush1.msra.mxu0 0.0
    %7715 = vmatprep.subr.mxu0 0.0
    %7716 = vmatpush1.msra.mxu0 0.0
    %7717 = vmatprep.subr.mxu0 0.0
    %7718 = vmatpush1.msra.mxu0 0.0
    %7719 = vmatprep.mubr.f32.mxu0 0.0
    %v7720 = vand.u32 %v6107, 4294901760
    %7721 = vmatmul.mubr.f32.gmra.mrb[0].mxu0 %v7720
    %v7722 = vpop.f32.mrb[0].mxu0
    %v7723 = vadd.f32 %v7578, %v7722
    %v7724 = vpop.f32.mrb[0].mxu0
    %v7725 = vadd.f32 %v7580, %v7724
    %7726 = vmatprep.mubr.f32.mxu0 0.0
    %v7727 = vand.u32 %v6110, 4294901760
    %7728 = vmatmul.mubr.f32.gmra.mrb[0].mxu0 %v7727
    %v7729 = vpop.f32.mrb[0].mxu0
    %v7730 = vadd.f32 %v7589, %v7729
    %v7731 = vpop.f32.mrb[0].mxu0
    %v7732 = vadd.f32 %v7591, %v7731
    %7733 = vmatprep.mubr.f32.mxu0 0.0
    %v7734 = vand.u32 %v6113, 4294901760
    %7735 = vmatmul.mubr.f32.gmra.mrb[0].mxu0 %v7734
    %v7736 = vpop.f32.mrb[0].mxu0
    %v7737 = vadd.f32 %v7600, %v7736
    %v7738 = vpop.f32.mrb[0].mxu0
    %v7739 = vadd.f32 %v7602, %v7738
    %7740 = vmatprep.mubr.f32.mxu0 0.0
    %v7741 = vand.u32 %v6116, 4294901760
    %7742 = vmatmul.mubr.f32.gmra.mrb[0].mxu0 %v7741
    %v7743 = vpop.f32.mrb[0].mxu0
    %v7744 = vadd.f32 %v7611, %v7743
    %v7745 = vpop.f32.mrb[0].mxu0
    %v7746 = vadd.f32 %v7613, %v7745
    %7747 = vdwg.mxu0
    %v7748 = vand.u32 %v6051, 4294901760
    %v7749 = vsub.f32 %v6051, %v7748
    %7750 = vmatprep.subr.mxu0 %v7749
    %v7751 = vand.u32 %v6050, 4294901760
    %v7752 = vsub.f32 %v6050, %v7751
    %7753 = vmatpush1.msra.mxu0 %v7752
    %v7754 = vand.u32 %v6059, 4294901760
    %v7755 = vsub.f32 %v6059, %v7754
    %7756 = vmatprep.subr.mxu0 %v7755
    %v7757 = vand.u32 %v6058, 4294901760
    %v7758 = vsub.f32 %v6058, %v7757
    %7759 = vmatpush1.msra.mxu0 %v7758
    %v7760 = vand.u32 %v6067, 4294901760
    %v7761 = vsub.f32 %v6067, %v7760
    %7762 = vmatprep.subr.mxu0 %v7761
    %v7763 = vand.u32 %v6066, 4294901760
    %v7764 = vsub.f32 %v6066, %v7763
    %7765 = vmatpush1.msra.mxu0 %v7764
    %v7766 = vand.u32 %v6075, 4294901760
    %v7767 = vsub.f32 %v6075, %v7766
    %7768 = vmatprep.subr.mxu0 %v7767
    %v7769 = vand.u32 %v6074, 4294901760
    %v7770 = vsub.f32 %v6074, %v7769
    %7771 = vmatpush1.msra.mxu0 %v7770
    %7772 = vmatprep.subr.mxu0 0.0
    %7773 = vmatpush1.msra.mxu0 0.0
    %7774 = vmatprep.subr.mxu0 0.0
    %7775 = vmatpush1.msra.mxu0 0.0
    %7776 = vmatprep.subr.mxu0 0.0
    %7777 = vmatpush1.msra.mxu0 0.0
    %7778 = vmatprep.subr.mxu0 0.0
    %7779 = vmatpush1.msra.mxu0 0.0
    %7780 = vmatprep.subr.mxu0 0.0
    %7781 = vmatpush1.msra.mxu0 0.0
    %7782 = vmatprep.subr.mxu0 0.0
    %7783 = vmatpush1.msra.mxu0 0.0
    %7784 = vmatprep.subr.mxu0 0.0
    %7785 = vmatpush1.msra.mxu0 0.0
    %7786 = vmatprep.subr.mxu0 0.0
    %7787 = vmatpush1.msra.mxu0 0.0
    %7788 = vmatprep.subr.mxu0 0.0
    %7789 = vmatpush1.msra.mxu0 0.0
    %7790 = vmatprep.subr.mxu0 0.0
    %7791 = vmatpush1.msra.mxu0 0.0
    %7792 = vmatprep.subr.mxu0 0.0
    %7793 = vmatpush1.msra.mxu0 0.0
    %7794 = vmatprep.subr.mxu0 0.0
    %7795 = vmatpush1.msra.mxu0 0.0
    %7796 = vmatprep.subr.mxu0 0.0
    %7797 = vmatpush1.msra.mxu0 0.0
    %7798 = vmatprep.subr.mxu0 0.0
    %7799 = vmatpush1.msra.mxu0 0.0
    %7800 = vmatprep.subr.mxu0 0.0
    %7801 = vmatpush1.msra.mxu0 0.0
    %7802 = vmatprep.subr.mxu0 0.0
    %7803 = vmatpush1.msra.mxu0 0.0
    %7804 = vmatprep.subr.mxu0 0.0
    %7805 = vmatpush1.msra.mxu0 0.0
    %7806 = vmatprep.subr.mxu0 0.0
    %7807 = vmatpush1.msra.mxu0 0.0
    %7808 = vmatprep.subr.mxu0 0.0
    %7809 = vmatpush1.msra.mxu0 0.0
    %7810 = vmatprep.subr.mxu0 0.0
    %7811 = vmatpush1.msra.mxu0 0.0
    %7812 = vmatprep.subr.mxu0 0.0
    %7813 = vmatpush1.msra.mxu0 0.0
    %7814 = vmatprep.subr.mxu0 0.0
    %7815 = vmatpush1.msra.mxu0 0.0
    %7816 = vmatprep.subr.mxu0 0.0
    %7817 = vmatpush1.msra.mxu0 0.0
    %7818 = vmatprep.subr.mxu0 0.0
    %7819 = vmatpush1.msra.mxu0 0.0
    %7820 = vmatprep.subr.mxu0 0.0
    %7821 = vmatpush1.msra.mxu0 0.0
    %7822 = vmatprep.subr.mxu0 0.0
    %7823 = vmatpush1.msra.mxu0 0.0
    %7824 = vmatprep.subr.mxu0 0.0
    %7825 = vmatpush1.msra.mxu0 0.0
    %7826 = vmatprep.subr.mxu0 0.0
    %7827 = vmatpush1.msra.mxu0 0.0
    %7828 = vmatprep.mubr.f32.mxu0 0.0
    %v7829 = vand.u32 %v6107, 4294901760
    %v7830 = vsub.f32 %v6107, %v7829
    %7831 = vmatmul.mubr.f32.gmra.mrb[0].mxu0 %v7830
    %v7832 = vpop.f32.mrb[0].mxu0
    %v7833 = vadd.f32 %v7723, %v7832
    %v7834 = vpop.f32.mrb[0].mxu0
    %v7835 = vadd.f32 %v7725, %v7834
    %7836 = vmatprep.mubr.f32.mxu0 0.0
    %v7837 = vand.u32 %v6110, 4294901760
    %v7838 = vsub.f32 %v6110, %v7837
    %7839 = vmatmul.mubr.f32.gmra.mrb[0].mxu0 %v7838
    %v7840 = vpop.f32.mrb[0].mxu0
    %v7841 = vadd.f32 %v7730, %v7840
    %v7842 = vpop.f32.mrb[0].mxu0
    %v7843 = vadd.f32 %v7732, %v7842
    %7844 = vmatprep.mubr.f32.mxu0 0.0
    %v7845 = vand.u32 %v6113, 4294901760
    %v7846 = vsub.f32 %v6113, %v7845
    %7847 = vmatmul.mubr.f32.gmra.mrb[0].mxu0 %v7846
    %v7848 = vpop.f32.mrb[0].mxu0
    %v7849 = vadd.f32 %v7737, %v7848
    %v7850 = vpop.f32.mrb[0].mxu0
    %v7851 = vadd.f32 %v7739, %v7850
    %7852 = vmatprep.mubr.f32.mxu0 0.0
    %v7853 = vand.u32 %v6116, 4294901760
    %v7854 = vsub.f32 %v6116, %v7853
    %7855 = vmatmul.mubr.f32.gmra.mrb[0].mxu0 %v7854
    %v7856 = vpop.f32.mrb[0].mxu0
    %v7857 = vadd.f32 %v7744, %v7856
    %v7858 = vpop.f32.mrb[0].mxu0
    %v7859 = vadd.f32 %v7746, %v7858
    %7860 = vdwg.mxu0
    %v7861 = vand.u32 %v6051, 4294901760
    %7862 = vmatprep.subr.mxu0 %v7861
    %v7863 = vand.u32 %v6050, 4294901760
    %7864 = vmatpush1.msra.mxu0 %v7863
    %v7865 = vand.u32 %v6059, 4294901760
    %7866 = vmatprep.subr.mxu0 %v7865
    %v7867 = vand.u32 %v6058, 4294901760
    %7868 = vmatpush1.msra.mxu0 %v7867
    %v7869 = vand.u32 %v6067, 4294901760
    %7870 = vmatprep.subr.mxu0 %v7869
    %v7871 = vand.u32 %v6066, 4294901760
    %7872 = vmatpush1.msra.mxu0 %v7871
    %v7873 = vand.u32 %v6075, 4294901760
    %7874 = vmatprep.subr.mxu0 %v7873
    %v7875 = vand.u32 %v6074, 4294901760
    %7876 = vmatpush1.msra.mxu0 %v7875
    %7877 = vmatprep.subr.mxu0 0.0
    %7878 = vmatpush1.msra.mxu0 0.0
    %7879 = vmatprep.subr.mxu0 0.0
    %7880 = vmatpush1.msra.mxu0 0.0
    %7881 = vmatprep.subr.mxu0 0.0
    %7882 = vmatpush1.msra.mxu0 0.0
    %7883 = vmatprep.subr.mxu0 0.0
    %7884 = vmatpush1.msra.mxu0 0.0
    %7885 = vmatprep.subr.mxu0 0.0
    %7886 = vmatpush1.msra.mxu0 0.0
    %7887 = vmatprep.subr.mxu0 0.0
    %7888 = vmatpush1.msra.mxu0 0.0
    %7889 = vmatprep.subr.mxu0 0.0
    %7890 = vmatpush1.msra.mxu0 0.0
    %7891 = vmatprep.subr.mxu0 0.0
    %7892 = vmatpush1.msra.mxu0 0.0
    %7893 = vmatprep.subr.mxu0 0.0
    %7894 = vmatpush1.msra.mxu0 0.0
    %7895 = vmatprep.subr.mxu0 0.0
    %7896 = vmatpush1.msra.mxu0 0.0
    %7897 = vmatprep.subr.mxu0 0.0
    %7898 = vmatpush1.msra.mxu0 0.0
    %7899 = vmatprep.subr.mxu0 0.0
    %7900 = vmatpush1.msra.mxu0 0.0
    %7901 = vmatprep.subr.mxu0 0.0
    %7902 = vmatpush1.msra.mxu0 0.0
    %7903 = vmatprep.subr.mxu0 0.0
    %7904 = vmatpush1.msra.mxu0 0.0
    %7905 = vmatprep.subr.mxu0 0.0
    %7906 = vmatpush1.msra.mxu0 0.0
    %7907 = vmatprep.subr.mxu0 0.0
    %7908 = vmatpush1.msra.mxu0 0.0
    %7909 = vmatprep.subr.mxu0 0.0
    %7910 = vmatpush1.msra.mxu0 0.0
    %7911 = vmatprep.subr.mxu0 0.0
    %7912 = vmatpush1.msra.mxu0 0.0
    %7913 = vmatprep.subr.mxu0 0.0
    %7914 = vmatpush1.msra.mxu0 0.0
    %7915 = vmatprep.subr.mxu0 0.0
    %7916 = vmatpush1.msra.mxu0 0.0
    %7917 = vmatprep.subr.mxu0 0.0
    %7918 = vmatpush1.msra.mxu0 0.0
    %7919 = vmatprep.subr.mxu0 0.0
    %7920 = vmatpush1.msra.mxu0 0.0
    %7921 = vmatprep.subr.mxu0 0.0
    %7922 = vmatpush1.msra.mxu0 0.0
    %7923 = vmatprep.subr.mxu0 0.0
    %7924 = vmatpush1.msra.mxu0 0.0
    %7925 = vmatprep.subr.mxu0 0.0
    %7926 = vmatpush1.msra.mxu0 0.0
    %7927 = vmatprep.subr.mxu0 0.0
    %7928 = vmatpush1.msra.mxu0 0.0
    %7929 = vmatprep.subr.mxu0 0.0
    %7930 = vmatpush1.msra.mxu0 0.0
    %7931 = vmatprep.subr.mxu0 0.0
    %7932 = vmatpush1.msra.mxu0 0.0
    %7933 = vmatprep.mubr.f32.mxu0 0.0
    %v7934 = vand.u32 %v6107, 4294901760
    %v7935 = vsub.f32 %v6107, %v7934
    %v7936 = vand.u32 %v7935, 4294901760
    %7937 = vmatmul.mubr.f32.gmra.mrb[0].mxu0 %v7936
    %v7938 = vpop.f32.mrb[0].mxu0
    %v7939 = vadd.f32 %v7833, %v7938
    %v7940 = vpop.f32.mrb[0].mxu0
    %v7941 = vadd.f32 %v7835, %v7940
    %7942 = vmatprep.mubr.f32.mxu0 0.0
    %v7943 = vand.u32 %v6110, 4294901760
    %v7944 = vsub.f32 %v6110, %v7943
    %v7945 = vand.u32 %v7944, 4294901760
    %7946 = vmatmul.mubr.f32.gmra.mrb[0].mxu0 %v7945
    %v7947 = vpop.f32.mrb[0].mxu0
    %v7948 = vadd.f32 %v7841, %v7947
    %v7949 = vpop.f32.mrb[0].mxu0
    %v7950 = vadd.f32 %v7843, %v7949
    %7951 = vmatprep.mubr.f32.mxu0 0.0
    %v7952 = vand.u32 %v6113, 4294901760
    %v7953 = vsub.f32 %v6113, %v7952
    %v7954 = vand.u32 %v7953, 4294901760
    %7955 = vmatmul.mubr.f32.gmra.mrb[0].mxu0 %v7954
    %v7956 = vpop.f32.mrb[0].mxu0
    %v7957 = vadd.f32 %v7849, %v7956
    %v7958 = vpop.f32.mrb[0].mxu0
    %v7959 = vadd.f32 %v7851, %v7958
    %7960 = vmatprep.mubr.f32.mxu0 0.0
    %v7961 = vand.u32 %v6116, 4294901760
    %v7962 = vsub.f32 %v6116, %v7961
    %v7963 = vand.u32 %v7962, 4294901760
    %7964 = vmatmul.mubr.f32.gmra.mrb[0].mxu0 %v7963
    %v7965 = vpop.f32.mrb[0].mxu0
    %v7966 = vadd.f32 %v7857, %v7965
    %v7967 = vpop.f32.mrb[0].mxu0
    %v7968 = vadd.f32 %v7859, %v7967
    %7969 = vdwg.mxu0
    %v7970 = vand.u32 %v6051, 4294901760
    %v7971 = vsub.f32 %v6051, %v7970
    %v7972 = vand.u32 %v7971, 4294901760
    %7973 = vmatprep.subr.mxu0 %v7972
    %v7974 = vand.u32 %v6050, 4294901760
    %v7975 = vsub.f32 %v6050, %v7974
    %v7976 = vand.u32 %v7975, 4294901760
    %7977 = vmatpush1.msra.mxu0 %v7976
    %v7978 = vand.u32 %v6059, 4294901760
    %v7979 = vsub.f32 %v6059, %v7978
    %v7980 = vand.u32 %v7979, 4294901760
    %7981 = vmatprep.subr.mxu0 %v7980
    %v7982 = vand.u32 %v6058, 4294901760
    %v7983 = vsub.f32 %v6058, %v7982
    %v7984 = vand.u32 %v7983, 4294901760
    %7985 = vmatpush1.msra.mxu0 %v7984
    %v7986 = vand.u32 %v6067, 4294901760
    %v7987 = vsub.f32 %v6067, %v7986
    %v7988 = vand.u32 %v7987, 4294901760
    %7989 = vmatprep.subr.mxu0 %v7988
    %v7990 = vand.u32 %v6066, 4294901760
    %v7991 = vsub.f32 %v6066, %v7990
    %v7992 = vand.u32 %v7991, 4294901760
    %7993 = vmatpush1.msra.mxu0 %v7992
    %v7994 = vand.u32 %v6075, 4294901760
    %v7995 = vsub.f32 %v6075, %v7994
    %v7996 = vand.u32 %v7995, 4294901760
    %7997 = vmatprep.subr.mxu0 %v7996
    %v7998 = vand.u32 %v6074, 4294901760
    %v7999 = vsub.f32 %v6074, %v7998
    %v8000 = vand.u32 %v7999, 4294901760
    %8001 = vmatpush1.msra.mxu0 %v8000
    %8002 = vmatprep.subr.mxu0 0.0
    %8003 = vmatpush1.msra.mxu0 0.0
    %8004 = vmatprep.subr.mxu0 0.0
    %8005 = vmatpush1.msra.mxu0 0.0
    %8006 = vmatprep.subr.mxu0 0.0
    %8007 = vmatpush1.msra.mxu0 0.0
    %8008 = vmatprep.subr.mxu0 0.0
    %8009 = vmatpush1.msra.mxu0 0.0
    %8010 = vmatprep.subr.mxu0 0.0
    %8011 = vmatpush1.msra.mxu0 0.0
    %8012 = vmatprep.subr.mxu0 0.0
    %8013 = vmatpush1.msra.mxu0 0.0
    %8014 = vmatprep.subr.mxu0 0.0
    %8015 = vmatpush1.msra.mxu0 0.0
    %8016 = vmatprep.subr.mxu0 0.0
    %8017 = vmatpush1.msra.mxu0 0.0
    %8018 = vmatprep.subr.mxu0 0.0
    %8019 = vmatpush1.msra.mxu0 0.0
    %8020 = vmatprep.subr.mxu0 0.0
    %8021 = vmatpush1.msra.mxu0 0.0
    %8022 = vmatprep.subr.mxu0 0.0
    %8023 = vmatpush1.msra.mxu0 0.0
    %8024 = vmatprep.subr.mxu0 0.0
    %8025 = vmatpush1.msra.mxu0 0.0
    %8026 = vmatprep.subr.mxu0 0.0
    %8027 = vmatpush1.msra.mxu0 0.0
    %8028 = vmatprep.subr.mxu0 0.0
    %8029 = vmatpush1.msra.mxu0 0.0
    %8030 = vmatprep.subr.mxu0 0.0
    %8031 = vmatpush1.msra.mxu0 0.0
    %8032 = vmatprep.subr.mxu0 0.0
    %8033 = vmatpush1.msra.mxu0 0.0
    %8034 = vmatprep.subr.mxu0 0.0
    %8035 = vmatpush1.msra.mxu0 0.0
    %8036 = vmatprep.subr.mxu0 0.0
    %8037 = vmatpush1.msra.mxu0 0.0
    %8038 = vmatprep.subr.mxu0 0.0
    %8039 = vmatpush1.msra.mxu0 0.0
    %8040 = vmatprep.subr.mxu0 0.0
    %8041 = vmatpush1.msra.mxu0 0.0
    %8042 = vmatprep.subr.mxu0 0.0
    %8043 = vmatpush1.msra.mxu0 0.0
    %8044 = vmatprep.subr.mxu0 0.0
    %8045 = vmatpush1.msra.mxu0 0.0
    %8046 = vmatprep.subr.mxu0 0.0
    %8047 = vmatpush1.msra.mxu0 0.0
    %8048 = vmatprep.subr.mxu0 0.0
    %8049 = vmatpush1.msra.mxu0 0.0
    %8050 = vmatprep.subr.mxu0 0.0
    %8051 = vmatpush1.msra.mxu0 0.0
    %8052 = vmatprep.subr.mxu0 0.0
    %8053 = vmatpush1.msra.mxu0 0.0
    %8054 = vmatprep.subr.mxu0 0.0
    %8055 = vmatpush1.msra.mxu0 0.0
    %8056 = vmatprep.subr.mxu0 0.0
    %8057 = vmatpush1.msra.mxu0 0.0
    %8058 = vmatprep.mubr.f32.mxu0 0.0
    %v8059 = vand.u32 %v6107, 4294901760
    %8060 = vmatmul.mubr.f32.gmra.mrb[0].mxu0 %v8059
    %v8061 = vpop.f32.mrb[0].mxu0
    %v8062 = vadd.f32 %v7939, %v8061
    %v8063 = vpop.f32.mrb[0].mxu0
    %v8064 = vadd.f32 %v7941, %v8063
    %8065 = vmatprep.mubr.f32.mxu0 0.0
    %v8066 = vand.u32 %v6110, 4294901760
    %8067 = vmatmul.mubr.f32.gmra.mrb[0].mxu0 %v8066
    %v8068 = vpop.f32.mrb[0].mxu0
    %v8069 = vadd.f32 %v7948, %v8068
    %v8070 = vpop.f32.mrb[0].mxu0
    %v8071 = vadd.f32 %v7950, %v8070
    %8072 = vmatprep.mubr.f32.mxu0 0.0
    %v8073 = vand.u32 %v6113, 4294901760
    %8074 = vmatmul.mubr.f32.gmra.mrb[0].mxu0 %v8073
    %v8075 = vpop.f32.mrb[0].mxu0
    %v8076 = vadd.f32 %v7957, %v8075
    %v8077 = vpop.f32.mrb[0].mxu0
    %v8078 = vadd.f32 %v7959, %v8077
    %8079 = vmatprep.mubr.f32.mxu0 0.0
    %v8080 = vand.u32 %v6116, 4294901760
    %8081 = vmatmul.mubr.f32.gmra.mrb[0].mxu0 %v8080
    %v8082 = vpop.f32.mrb[0].mxu0
    %v8083 = vadd.f32 %v7966, %v8082
    %v8084 = vpop.f32.mrb[0].mxu0
    %v8085 = vadd.f32 %v7968, %v8084
    %8086 = vdwg.mxu0
    %v8087 = vand.u32 %v6051, 4294901760
    %8088 = vmatprep.subr.mxu0 %v8087
    %v8089 = vand.u32 %v6050, 4294901760
    %8090 = vmatpush1.msra.mxu0 %v8089
    %v8091 = vand.u32 %v6059, 4294901760
    %8092 = vmatprep.subr.mxu0 %v8091
    %v8093 = vand.u32 %v6058, 4294901760
    %8094 = vmatpush1.msra.mxu0 %v8093
    %v8095 = vand.u32 %v6067, 4294901760
    %8096 = vmatprep.subr.mxu0 %v8095
    %v8097 = vand.u32 %v6066, 4294901760
    %8098 = vmatpush1.msra.mxu0 %v8097
    %v8099 = vand.u32 %v6075, 4294901760
    %8100 = vmatprep.subr.mxu0 %v8099
    %v8101 = vand.u32 %v6074, 4294901760
    %8102 = vmatpush1.msra.mxu0 %v8101
    %8103 = vmatprep.subr.mxu0 0.0
    %8104 = vmatpush1.msra.mxu0 0.0
    %8105 = vmatprep.subr.mxu0 0.0
    %8106 = vmatpush1.msra.mxu0 0.0
    %8107 = vmatprep.subr.mxu0 0.0
    %8108 = vmatpush1.msra.mxu0 0.0
    %8109 = vmatprep.subr.mxu0 0.0
    %8110 = vmatpush1.msra.mxu0 0.0
    %8111 = vmatprep.subr.mxu0 0.0
    %8112 = vmatpush1.msra.mxu0 0.0
    %8113 = vmatprep.subr.mxu0 0.0
    %8114 = vmatpush1.msra.mxu0 0.0
    %8115 = vmatprep.subr.mxu0 0.0
    %8116 = vmatpush1.msra.mxu0 0.0
    %8117 = vmatprep.subr.mxu0 0.0
    %8118 = vmatpush1.msra.mxu0 0.0
    %8119 = vmatprep.subr.mxu0 0.0
    %8120 = vmatpush1.msra.mxu0 0.0
    %8121 = vmatprep.subr.mxu0 0.0
    %8122 = vmatpush1.msra.mxu0 0.0
    %8123 = vmatprep.subr.mxu0 0.0
    %8124 = vmatpush1.msra.mxu0 0.0
    %8125 = vmatprep.subr.mxu0 0.0
    %8126 = vmatpush1.msra.mxu0 0.0
    %8127 = vmatprep.subr.mxu0 0.0
    %8128 = vmatpush1.msra.mxu0 0.0
    %8129 = vmatprep.subr.mxu0 0.0
    %8130 = vmatpush1.msra.mxu0 0.0
    %8131 = vmatprep.subr.mxu0 0.0
    %8132 = vmatpush1.msra.mxu0 0.0
    %8133 = vmatprep.subr.mxu0 0.0
    %8134 = vmatpush1.msra.mxu0 0.0
    %8135 = vmatprep.subr.mxu0 0.0
    %8136 = vmatpush1.msra.mxu0 0.0
    %8137 = vmatprep.subr.mxu0 0.0
    %8138 = vmatpush1.msra.mxu0 0.0
    %8139 = vmatprep.subr.mxu0 0.0
    %8140 = vmatpush1.msra.mxu0 0.0
    %8141 = vmatprep.subr.mxu0 0.0
    %8142 = vmatpush1.msra.mxu0 0.0
    %8143 = vmatprep.subr.mxu0 0.0
    %8144 = vmatpush1.msra.mxu0 0.0
    %8145 = vmatprep.subr.mxu0 0.0
    %8146 = vmatpush1.msra.mxu0 0.0
    %8147 = vmatprep.subr.mxu0 0.0
    %8148 = vmatpush1.msra.mxu0 0.0
    %8149 = vmatprep.subr.mxu0 0.0
    %8150 = vmatpush1.msra.mxu0 0.0
    %8151 = vmatprep.subr.mxu0 0.0
    %8152 = vmatpush1.msra.mxu0 0.0
    %8153 = vmatprep.subr.mxu0 0.0
    %8154 = vmatpush1.msra.mxu0 0.0
    %8155 = vmatprep.subr.mxu0 0.0
    %8156 = vmatpush1.msra.mxu0 0.0
    %8157 = vmatprep.subr.mxu0 0.0
    %8158 = vmatpush1.msra.mxu0 0.0
    %8159 = vmatprep.mubr.f32.mxu0 0.0
    %v8160 = vand.u32 %v6107, 4294901760
    %8161 = vmatmul.mubr.f32.gmra.mrb[0].mxu0 %v8160
    %v8162 = vpop.f32.mrb[0].mxu0
    %v8163 = vadd.f32 %v8062, %v8162
    %v8164 = vpop.f32.mrb[0].mxu0
    %v8165 = vadd.f32 %v8064, %v8164
    %8166 = vmatprep.mubr.f32.mxu0 0.0
    %v8167 = vand.u32 %v6110, 4294901760
    %8168 = vmatmul.mubr.f32.gmra.mrb[0].mxu0 %v8167
    %v8169 = vpop.f32.mrb[0].mxu0
    %v8170 = vadd.f32 %v8069, %v8169
    %v8171 = vpop.f32.mrb[0].mxu0
    %v8172 = vadd.f32 %v8071, %v8171
    %8173 = vmatprep.mubr.f32.mxu0 0.0
    %v8174 = vand.u32 %v6113, 4294901760
    %8175 = vmatmul.mubr.f32.gmra.mrb[0].mxu0 %v8174
    %v8176 = vpop.f32.mrb[0].mxu0
    %v8177 = vadd.f32 %v8076, %v8176
    %v8178 = vpop.f32.mrb[0].mxu0
    %v8179 = vadd.f32 %v8078, %v8178
    %8180 = vmatprep.mubr.f32.mxu0 0.0
    %v8181 = vand.u32 %v6116, 4294901760
    %8182 = vmatmul.mubr.f32.gmra.mrb[0].mxu0 %v8181
    %v8183 = vpop.f32.mrb[0].mxu0
    %v8184 = vadd.f32 %v8083, %v8183
    %v8185 = vpop.f32.mrb[0].mxu0
    %v8186 = vadd.f32 %v8085, %v8185
    %8187 = vdwg.mxu0
    %v8188 = vand.u32 %v6053, 4294901760
    %8189 = vmatprep.subr.mxu0 %v8188
    %v8190 = vand.u32 %v6052, 4294901760
    %8191 = vmatpush1.msra.mxu0 %v8190
    %v8192 = vand.u32 %v6061, 4294901760
    %8193 = vmatprep.subr.mxu0 %v8192
    %v8194 = vand.u32 %v6060, 4294901760
    %8195 = vmatpush1.msra.mxu0 %v8194
    %v8196 = vand.u32 %v6069, 4294901760
    %8197 = vmatprep.subr.mxu0 %v8196
    %v8198 = vand.u32 %v6068, 4294901760
    %8199 = vmatpush1.msra.mxu0 %v8198
    %v8200 = vand.u32 %v6077, 4294901760
    %8201 = vmatprep.subr.mxu0 %v8200
    %v8202 = vand.u32 %v6076, 4294901760
    %8203 = vmatpush1.msra.mxu0 %v8202
    %8204 = vmatprep.subr.mxu0 0.0
    %8205 = vmatpush1.msra.mxu0 0.0
    %8206 = vmatprep.subr.mxu0 0.0
    %8207 = vmatpush1.msra.mxu0 0.0
    %8208 = vmatprep.subr.mxu0 0.0
    %8209 = vmatpush1.msra.mxu0 0.0
    %8210 = vmatprep.subr.mxu0 0.0
    %8211 = vmatpush1.msra.mxu0 0.0
    %8212 = vmatprep.subr.mxu0 0.0
    %8213 = vmatpush1.msra.mxu0 0.0
    %8214 = vmatprep.subr.mxu0 0.0
    %8215 = vmatpush1.msra.mxu0 0.0
    %8216 = vmatprep.subr.mxu0 0.0
    %8217 = vmatpush1.msra.mxu0 0.0
    %8218 = vmatprep.subr.mxu0 0.0
    %8219 = vmatpush1.msra.mxu0 0.0
    %8220 = vmatprep.subr.mxu0 0.0
    %8221 = vmatpush1.msra.mxu0 0.0
    %8222 = vmatprep.subr.mxu0 0.0
    %8223 = vmatpush1.msra.mxu0 0.0
    %8224 = vmatprep.subr.mxu0 0.0
    %8225 = vmatpush1.msra.mxu0 0.0
    %8226 = vmatprep.subr.mxu0 0.0
    %8227 = vmatpush1.msra.mxu0 0.0
    %8228 = vmatprep.subr.mxu0 0.0
    %8229 = vmatpush1.msra.mxu0 0.0
    %8230 = vmatprep.subr.mxu0 0.0
    %8231 = vmatpush1.msra.mxu0 0.0
    %8232 = vmatprep.subr.mxu0 0.0
    %8233 = vmatpush1.msra.mxu0 0.0
    %8234 = vmatprep.subr.mxu0 0.0
    %8235 = vmatpush1.msra.mxu0 0.0
    %8236 = vmatprep.subr.mxu0 0.0
    %8237 = vmatpush1.msra.mxu0 0.0
    %8238 = vmatprep.subr.mxu0 0.0
    %8239 = vmatpush1.msra.mxu0 0.0
    %8240 = vmatprep.subr.mxu0 0.0
    %8241 = vmatpush1.msra.mxu0 0.0
    %8242 = vmatprep.subr.mxu0 0.0
    %8243 = vmatpush1.msra.mxu0 0.0
    %8244 = vmatprep.subr.mxu0 0.0
    %8245 = vmatpush1.msra.mxu0 0.0
    %8246 = vmatprep.subr.mxu0 0.0
    %8247 = vmatpush1.msra.mxu0 0.0
    %8248 = vmatprep.subr.mxu0 0.0
    %8249 = vmatpush1.msra.mxu0 0.0
    %8250 = vmatprep.subr.mxu0 0.0
    %8251 = vmatpush1.msra.mxu0 0.0
    %8252 = vmatprep.subr.mxu0 0.0
    %8253 = vmatpush1.msra.mxu0 0.0
    %8254 = vmatprep.subr.mxu0 0.0
    %8255 = vmatpush1.msra.mxu0 0.0
    %8256 = vmatprep.subr.mxu0 0.0
    %8257 = vmatpush1.msra.mxu0 0.0
    %8258 = vmatprep.subr.mxu0 0.0
    %8259 = vmatpush1.msra.mxu0 0.0
    %8260 = vmatprep.mubr.f32.mxu0 0.0
    %v8261 = vand.u32 %v6107, 4294901760
    %v8262 = vsub.f32 %v6107, %v8261
    %v8263 = vand.u32 %v8262, 4294901760
    %v8264 = vsub.f32 %v8262, %v8263
    %v8265 = vand.u32 %v8264, 4294901760
    %8266 = vmatmul.mubr.f32.gmra.mrb[0].mxu0 %v8265
    %v8267 = vpop.f32.mrb[0].mxu0
    %v8268 = vadd.f32 %v6089, %v8267
    %v8269 = vpop.f32.mrb[0].mxu0
    %v8270 = vadd.f32 %v6089, %v8269
    %8271 = vmatprep.mubr.f32.mxu0 0.0
    %v8272 = vand.u32 %v6110, 4294901760
    %v8273 = vsub.f32 %v6110, %v8272
    %v8274 = vand.u32 %v8273, 4294901760
    %v8275 = vsub.f32 %v8273, %v8274
    %v8276 = vand.u32 %v8275, 4294901760
    %8277 = vmatmul.mubr.f32.gmra.mrb[0].mxu0 %v8276
    %v8278 = vpop.f32.mrb[0].mxu0
    %v8279 = vadd.f32 %v6094, %v8278
    %v8280 = vpop.f32.mrb[0].mxu0
    %v8281 = vadd.f32 %v6094, %v8280
    %8282 = vmatprep.mubr.f32.mxu0 0.0
    %v8283 = vand.u32 %v6113, 4294901760
    %v8284 = vsub.f32 %v6113, %v8283
    %v8285 = vand.u32 %v8284, 4294901760
    %v8286 = vsub.f32 %v8284, %v8285
    %v8287 = vand.u32 %v8286, 4294901760
    %8288 = vmatmul.mubr.f32.gmra.mrb[0].mxu0 %v8287
    %v8289 = vpop.f32.mrb[0].mxu0
    %v8290 = vadd.f32 %v6099, %v8289
    %v8291 = vpop.f32.mrb[0].mxu0
    %v8292 = vadd.f32 %v6099, %v8291
    %8293 = vmatprep.mubr.f32.mxu0 0.0
    %v8294 = vand.u32 %v6116, 4294901760
    %v8295 = vsub.f32 %v6116, %v8294
    %v8296 = vand.u32 %v8295, 4294901760
    %v8297 = vsub.f32 %v8295, %v8296
    %v8298 = vand.u32 %v8297, 4294901760
    %8299 = vmatmul.mubr.f32.gmra.mrb[0].mxu0 %v8298
    %v8300 = vpop.f32.mrb[0].mxu0
    %v8301 = vadd.f32 %v6104, %v8300
    %v8302 = vpop.f32.mrb[0].mxu0
    %v8303 = vadd.f32 %v6104, %v8302
    %8304 = vdwg.mxu0
    %v8305 = vand.u32 %v6053, 4294901760
    %v8306 = vsub.f32 %v6053, %v8305
    %v8307 = vand.u32 %v8306, 4294901760
    %v8308 = vsub.f32 %v8306, %v8307
    %v8309 = vand.u32 %v8308, 4294901760
    %8310 = vmatprep.subr.mxu0 %v8309
    %v8311 = vand.u32 %v6052, 4294901760
    %v8312 = vsub.f32 %v6052, %v8311
    %v8313 = vand.u32 %v8312, 4294901760
    %v8314 = vsub.f32 %v8312, %v8313
    %v8315 = vand.u32 %v8314, 4294901760
    %8316 = vmatpush1.msra.mxu0 %v8315
    %v8317 = vand.u32 %v6061, 4294901760
    %v8318 = vsub.f32 %v6061, %v8317
    %v8319 = vand.u32 %v8318, 4294901760
    %v8320 = vsub.f32 %v8318, %v8319
    %v8321 = vand.u32 %v8320, 4294901760
    %8322 = vmatprep.subr.mxu0 %v8321
    %v8323 = vand.u32 %v6060, 4294901760
    %v8324 = vsub.f32 %v6060, %v8323
    %v8325 = vand.u32 %v8324, 4294901760
    %v8326 = vsub.f32 %v8324, %v8325
    %v8327 = vand.u32 %v8326, 4294901760
    %8328 = vmatpush1.msra.mxu0 %v8327
    %v8329 = vand.u32 %v6069, 4294901760
    %v8330 = vsub.f32 %v6069, %v8329
    %v8331 = vand.u32 %v8330, 4294901760
    %v8332 = vsub.f32 %v8330, %v8331
    %v8333 = vand.u32 %v8332, 4294901760
    %8334 = vmatprep.subr.mxu0 %v8333
    %v8335 = vand.u32 %v6068, 4294901760
    %v8336 = vsub.f32 %v6068, %v8335
    %v8337 = vand.u32 %v8336, 4294901760
    %v8338 = vsub.f32 %v8336, %v8337
    %v8339 = vand.u32 %v8338, 4294901760
    %8340 = vmatpush1.msra.mxu0 %v8339
    %v8341 = vand.u32 %v6077, 4294901760
    %v8342 = vsub.f32 %v6077, %v8341
    %v8343 = vand.u32 %v8342, 4294901760
    %v8344 = vsub.f32 %v8342, %v8343
    %v8345 = vand.u32 %v8344, 4294901760
    %8346 = vmatprep.subr.mxu0 %v8345
    %v8347 = vand.u32 %v6076, 4294901760
    %v8348 = vsub.f32 %v6076, %v8347
    %v8349 = vand.u32 %v8348, 4294901760
    %v8350 = vsub.f32 %v8348, %v8349
    %v8351 = vand.u32 %v8350, 4294901760
    %8352 = vmatpush1.msra.mxu0 %v8351
    %8353 = vmatprep.subr.mxu0 0.0
    %8354 = vmatpush1.msra.mxu0 0.0
    %8355 = vmatprep.subr.mxu0 0.0
    %8356 = vmatpush1.msra.mxu0 0.0
    %8357 = vmatprep.subr.mxu0 0.0
    %8358 = vmatpush1.msra.mxu0 0.0
    %8359 = vmatprep.subr.mxu0 0.0
    %8360 = vmatpush1.msra.mxu0 0.0
    %8361 = vmatprep.subr.mxu0 0.0
    %8362 = vmatpush1.msra.mxu0 0.0
    %8363 = vmatprep.subr.mxu0 0.0
    %8364 = vmatpush1.msra.mxu0 0.0
    %8365 = vmatprep.subr.mxu0 0.0
    %8366 = vmatpush1.msra.mxu0 0.0
    %8367 = vmatprep.subr.mxu0 0.0
    %8368 = vmatpush1.msra.mxu0 0.0
    %8369 = vmatprep.subr.mxu0 0.0
    %8370 = vmatpush1.msra.mxu0 0.0
    %8371 = vmatprep.subr.mxu0 0.0
    %8372 = vmatpush1.msra.mxu0 0.0
    %8373 = vmatprep.subr.mxu0 0.0
    %8374 = vmatpush1.msra.mxu0 0.0
    %8375 = vmatprep.subr.mxu0 0.0
    %8376 = vmatpush1.msra.mxu0 0.0
    %8377 = vmatprep.subr.mxu0 0.0
    %8378 = vmatpush1.msra.mxu0 0.0
    %8379 = vmatprep.subr.mxu0 0.0
    %8380 = vmatpush1.msra.mxu0 0.0
    %8381 = vmatprep.subr.mxu0 0.0
    %8382 = vmatpush1.msra.mxu0 0.0
    %8383 = vmatprep.subr.mxu0 0.0
    %8384 = vmatpush1.msra.mxu0 0.0
    %8385 = vmatprep.subr.mxu0 0.0
    %8386 = vmatpush1.msra.mxu0 0.0
    %8387 = vmatprep.subr.mxu0 0.0
    %8388 = vmatpush1.msra.mxu0 0.0
    %8389 = vmatprep.subr.mxu0 0.0
    %8390 = vmatpush1.msra.mxu0 0.0
    %8391 = vmatprep.subr.mxu0 0.0
    %8392 = vmatpush1.msra.mxu0 0.0
    %8393 = vmatprep.subr.mxu0 0.0
    %8394 = vmatpush1.msra.mxu0 0.0
    %8395 = vmatprep.subr.mxu0 0.0
    %8396 = vmatpush1.msra.mxu0 0.0
    %8397 = vmatprep.subr.mxu0 0.0
    %8398 = vmatpush1.msra.mxu0 0.0
    %8399 = vmatprep.subr.mxu0 0.0
    %8400 = vmatpush1.msra.mxu0 0.0
    %8401 = vmatprep.subr.mxu0 0.0
    %8402 = vmatpush1.msra.mxu0 0.0
    %8403 = vmatprep.subr.mxu0 0.0
    %8404 = vmatpush1.msra.mxu0 0.0
    %8405 = vmatprep.subr.mxu0 0.0
    %8406 = vmatpush1.msra.mxu0 0.0
    %8407 = vmatprep.subr.mxu0 0.0
    %8408 = vmatpush1.msra.mxu0 0.0
    %8409 = vmatprep.mubr.f32.mxu0 0.0
    %v8410 = vand.u32 %v6107, 4294901760
    %8411 = vmatmul.mubr.f32.gmra.mrb[0].mxu0 %v8410
    %v8412 = vpop.f32.mrb[0].mxu0
    %v8413 = vadd.f32 %v8268, %v8412
    %v8414 = vpop.f32.mrb[0].mxu0
    %v8415 = vadd.f32 %v8270, %v8414
    %8416 = vmatprep.mubr.f32.mxu0 0.0
    %v8417 = vand.u32 %v6110, 4294901760
    %8418 = vmatmul.mubr.f32.gmra.mrb[0].mxu0 %v8417
    %v8419 = vpop.f32.mrb[0].mxu0
    %v8420 = vadd.f32 %v8279, %v8419
    %v8421 = vpop.f32.mrb[0].mxu0
    %v8422 = vadd.f32 %v8281, %v8421
    %8423 = vmatprep.mubr.f32.mxu0 0.0
    %v8424 = vand.u32 %v6113, 4294901760
    %8425 = vmatmul.mubr.f32.gmra.mrb[0].mxu0 %v8424
    %v8426 = vpop.f32.mrb[0].mxu0
    %v8427 = vadd.f32 %v8290, %v8426
    %v8428 = vpop.f32.mrb[0].mxu0
    %v8429 = vadd.f32 %v8292, %v8428
    %8430 = vmatprep.mubr.f32.mxu0 0.0
    %v8431 = vand.u32 %v6116, 4294901760
    %8432 = vmatmul.mubr.f32.gmra.mrb[0].mxu0 %v8431
    %v8433 = vpop.f32.mrb[0].mxu0
    %v8434 = vadd.f32 %v8301, %v8433
    %v8435 = vpop.f32.mrb[0].mxu0
    %v8436 = vadd.f32 %v8303, %v8435
    %8437 = vdwg.mxu0
    %v8438 = vand.u32 %v6053, 4294901760
    %v8439 = vsub.f32 %v6053, %v8438
    %8440 = vmatprep.subr.mxu0 %v8439
    %v8441 = vand.u32 %v6052, 4294901760
    %v8442 = vsub.f32 %v6052, %v8441
    %8443 = vmatpush1.msra.mxu0 %v8442
    %v8444 = vand.u32 %v6061, 4294901760
    %v8445 = vsub.f32 %v6061, %v8444
    %8446 = vmatprep.subr.mxu0 %v8445
    %v8447 = vand.u32 %v6060, 4294901760
    %v8448 = vsub.f32 %v6060, %v8447
    %8449 = vmatpush1.msra.mxu0 %v8448
    %v8450 = vand.u32 %v6069, 4294901760
    %v8451 = vsub.f32 %v6069, %v8450
    %8452 = vmatprep.subr.mxu0 %v8451
    %v8453 = vand.u32 %v6068, 4294901760
    %v8454 = vsub.f32 %v6068, %v8453
    %8455 = vmatpush1.msra.mxu0 %v8454
    %v8456 = vand.u32 %v6077, 4294901760
    %v8457 = vsub.f32 %v6077, %v8456
    %8458 = vmatprep.subr.mxu0 %v8457
    %v8459 = vand.u32 %v6076, 4294901760
    %v8460 = vsub.f32 %v6076, %v8459
    %8461 = vmatpush1.msra.mxu0 %v8460
    %8462 = vmatprep.subr.mxu0 0.0
    %8463 = vmatpush1.msra.mxu0 0.0
    %8464 = vmatprep.subr.mxu0 0.0
    %8465 = vmatpush1.msra.mxu0 0.0
    %8466 = vmatprep.subr.mxu0 0.0
    %8467 = vmatpush1.msra.mxu0 0.0
    %8468 = vmatprep.subr.mxu0 0.0
    %8469 = vmatpush1.msra.mxu0 0.0
    %8470 = vmatprep.subr.mxu0 0.0
    %8471 = vmatpush1.msra.mxu0 0.0
    %8472 = vmatprep.subr.mxu0 0.0
    %8473 = vmatpush1.msra.mxu0 0.0
    %8474 = vmatprep.subr.mxu0 0.0
    %8475 = vmatpush1.msra.mxu0 0.0
    %8476 = vmatprep.subr.mxu0 0.0
    %8477 = vmatpush1.msra.mxu0 0.0
    %8478 = vmatprep.subr.mxu0 0.0
    %8479 = vmatpush1.msra.mxu0 0.0
    %8480 = vmatprep.subr.mxu0 0.0
    %8481 = vmatpush1.msra.mxu0 0.0
    %8482 = vmatprep.subr.mxu0 0.0
    %8483 = vmatpush1.msra.mxu0 0.0
    %8484 = vmatprep.subr.mxu0 0.0
    %8485 = vmatpush1.msra.mxu0 0.0
    %8486 = vmatprep.subr.mxu0 0.0
    %8487 = vmatpush1.msra.mxu0 0.0
    %8488 = vmatprep.subr.mxu0 0.0
    %8489 = vmatpush1.msra.mxu0 0.0
    %8490 = vmatprep.subr.mxu0 0.0
    %8491 = vmatpush1.msra.mxu0 0.0
    %8492 = vmatprep.subr.mxu0 0.0
    %8493 = vmatpush1.msra.mxu0 0.0
    %8494 = vmatprep.subr.mxu0 0.0
    %8495 = vmatpush1.msra.mxu0 0.0
    %8496 = vmatprep.subr.mxu0 0.0
    %8497 = vmatpush1.msra.mxu0 0.0
    %8498 = vmatprep.subr.mxu0 0.0
    %8499 = vmatpush1.msra.mxu0 0.0
    %8500 = vmatprep.subr.mxu0 0.0
    %8501 = vmatpush1.msra.mxu0 0.0
    %8502 = vmatprep.subr.mxu0 0.0
    %8503 = vmatpush1.msra.mxu0 0.0
    %8504 = vmatprep.subr.mxu0 0.0
    %8505 = vmatpush1.msra.mxu0 0.0
    %8506 = vmatprep.subr.mxu0 0.0
    %8507 = vmatpush1.msra.mxu0 0.0
    %8508 = vmatprep.subr.mxu0 0.0
    %8509 = vmatpush1.msra.mxu0 0.0
    %8510 = vmatprep.subr.mxu0 0.0
    %8511 = vmatpush1.msra.mxu0 0.0
    %8512 = vmatprep.subr.mxu0 0.0
    %8513 = vmatpush1.msra.mxu0 0.0
    %8514 = vmatprep.subr.mxu0 0.0
    %8515 = vmatpush1.msra.mxu0 0.0
    %8516 = vmatprep.subr.mxu0 0.0
    %8517 = vmatpush1.msra.mxu0 0.0
    %8518 = vmatprep.mubr.f32.mxu0 0.0
    %v8519 = vand.u32 %v6107, 4294901760
    %v8520 = vsub.f32 %v6107, %v8519
    %8521 = vmatmul.mubr.f32.gmra.mrb[0].mxu0 %v8520
    %v8522 = vpop.f32.mrb[0].mxu0
    %v8523 = vadd.f32 %v8413, %v8522
    %v8524 = vpop.f32.mrb[0].mxu0
    %v8525 = vadd.f32 %v8415, %v8524
    %8526 = vmatprep.mubr.f32.mxu0 0.0
    %v8527 = vand.u32 %v6110, 4294901760
    %v8528 = vsub.f32 %v6110, %v8527
    %8529 = vmatmul.mubr.f32.gmra.mrb[0].mxu0 %v8528
    %v8530 = vpop.f32.mrb[0].mxu0
    %v8531 = vadd.f32 %v8420, %v8530
    %v8532 = vpop.f32.mrb[0].mxu0
    %v8533 = vadd.f32 %v8422, %v8532
    %8534 = vmatprep.mubr.f32.mxu0 0.0
    %v8535 = vand.u32 %v6113, 4294901760
    %v8536 = vsub.f32 %v6113, %v8535
    %8537 = vmatmul.mubr.f32.gmra.mrb[0].mxu0 %v8536
    %v8538 = vpop.f32.mrb[0].mxu0
    %v8539 = vadd.f32 %v8427, %v8538
    %v8540 = vpop.f32.mrb[0].mxu0
    %v8541 = vadd.f32 %v8429, %v8540
    %8542 = vmatprep.mubr.f32.mxu0 0.0
    %v8543 = vand.u32 %v6116, 4294901760
    %v8544 = vsub.f32 %v6116, %v8543
    %8545 = vmatmul.mubr.f32.gmra.mrb[0].mxu0 %v8544
    %v8546 = vpop.f32.mrb[0].mxu0
    %v8547 = vadd.f32 %v8434, %v8546
    %v8548 = vpop.f32.mrb[0].mxu0
    %v8549 = vadd.f32 %v8436, %v8548
    %8550 = vdwg.mxu0
    %v8551 = vand.u32 %v6053, 4294901760
    %8552 = vmatprep.subr.mxu0 %v8551
    %v8553 = vand.u32 %v6052, 4294901760
    %8554 = vmatpush1.msra.mxu0 %v8553
    %v8555 = vand.u32 %v6061, 4294901760
    %8556 = vmatprep.subr.mxu0 %v8555
    %v8557 = vand.u32 %v6060, 4294901760
    %8558 = vmatpush1.msra.mxu0 %v8557
    %v8559 = vand.u32 %v6069, 4294901760
    %8560 = vmatprep.subr.mxu0 %v8559
    %v8561 = vand.u32 %v6068, 4294901760
    %8562 = vmatpush1.msra.mxu0 %v8561
    %v8563 = vand.u32 %v6077, 4294901760
    %8564 = vmatprep.subr.mxu0 %v8563
    %v8565 = vand.u32 %v6076, 4294901760
    %8566 = vmatpush1.msra.mxu0 %v8565
    %8567 = vmatprep.subr.mxu0 0.0
    %8568 = vmatpush1.msra.mxu0 0.0
    %8569 = vmatprep.subr.mxu0 0.0
    %8570 = vmatpush1.msra.mxu0 0.0
    %8571 = vmatprep.subr.mxu0 0.0
    %8572 = vmatpush1.msra.mxu0 0.0
    %8573 = vmatprep.subr.mxu0 0.0
    %8574 = vmatpush1.msra.mxu0 0.0
    %8575 = vmatprep.subr.mxu0 0.0
    %8576 = vmatpush1.msra.mxu0 0.0
    %8577 = vmatprep.subr.mxu0 0.0
    %8578 = vmatpush1.msra.mxu0 0.0
    %8579 = vmatprep.subr.mxu0 0.0
    %8580 = vmatpush1.msra.mxu0 0.0
    %8581 = vmatprep.subr.mxu0 0.0
    %8582 = vmatpush1.msra.mxu0 0.0
    %8583 = vmatprep.subr.mxu0 0.0
    %8584 = vmatpush1.msra.mxu0 0.0
    %8585 = vmatprep.subr.mxu0 0.0
    %8586 = vmatpush1.msra.mxu0 0.0
    %8587 = vmatprep.subr.mxu0 0.0
    %8588 = vmatpush1.msra.mxu0 0.0
    %8589 = vmatprep.subr.mxu0 0.0
    %8590 = vmatpush1.msra.mxu0 0.0
    %8591 = vmatprep.subr.mxu0 0.0
    %8592 = vmatpush1.msra.mxu0 0.0
    %8593 = vmatprep.subr.mxu0 0.0
    %8594 = vmatpush1.msra.mxu0 0.0
    %8595 = vmatprep.subr.mxu0 0.0
    %8596 = vmatpush1.msra.mxu0 0.0
    %8597 = vmatprep.subr.mxu0 0.0
    %8598 = vmatpush1.msra.mxu0 0.0
    %8599 = vmatprep.subr.mxu0 0.0
    %8600 = vmatpush1.msra.mxu0 0.0
    %8601 = vmatprep.subr.mxu0 0.0
    %8602 = vmatpush1.msra.mxu0 0.0
    %8603 = vmatprep.subr.mxu0 0.0
    %8604 = vmatpush1.msra.mxu0 0.0
    %8605 = vmatprep.subr.mxu0 0.0
    %8606 = vmatpush1.msra.mxu0 0.0
    %8607 = vmatprep.subr.mxu0 0.0
    %8608 = vmatpush1.msra.mxu0 0.0
    %8609 = vmatprep.subr.mxu0 0.0
    %8610 = vmatpush1.msra.mxu0 0.0
    %8611 = vmatprep.subr.mxu0 0.0
    %8612 = vmatpush1.msra.mxu0 0.0
    %8613 = vmatprep.subr.mxu0 0.0
    %8614 = vmatpush1.msra.mxu0 0.0
    %8615 = vmatprep.subr.mxu0 0.0
    %8616 = vmatpush1.msra.mxu0 0.0
    %8617 = vmatprep.subr.mxu0 0.0
    %8618 = vmatpush1.msra.mxu0 0.0
    %8619 = vmatprep.subr.mxu0 0.0
    %8620 = vmatpush1.msra.mxu0 0.0
    %8621 = vmatprep.subr.mxu0 0.0
    %8622 = vmatpush1.msra.mxu0 0.0
    %8623 = vmatprep.mubr.f32.mxu0 0.0
    %v8624 = vand.u32 %v6107, 4294901760
    %v8625 = vsub.f32 %v6107, %v8624
    %v8626 = vand.u32 %v8625, 4294901760
    %8627 = vmatmul.mubr.f32.gmra.mrb[0].mxu0 %v8626
    %v8628 = vpop.f32.mrb[0].mxu0
    %v8629 = vadd.f32 %v8523, %v8628
    %v8630 = vpop.f32.mrb[0].mxu0
    %v8631 = vadd.f32 %v8525, %v8630
    %8632 = vmatprep.mubr.f32.mxu0 0.0
    %v8633 = vand.u32 %v6110, 4294901760
    %v8634 = vsub.f32 %v6110, %v8633
    %v8635 = vand.u32 %v8634, 4294901760
    %8636 = vmatmul.mubr.f32.gmra.mrb[0].mxu0 %v8635
    %v8637 = vpop.f32.mrb[0].mxu0
    %v8638 = vadd.f32 %v8531, %v8637
    %v8639 = vpop.f32.mrb[0].mxu0
    %v8640 = vadd.f32 %v8533, %v8639
    %8641 = vmatprep.mubr.f32.mxu0 0.0
    %v8642 = vand.u32 %v6113, 4294901760
    %v8643 = vsub.f32 %v6113, %v8642
    %v8644 = vand.u32 %v8643, 4294901760
    %8645 = vmatmul.mubr.f32.gmra.mrb[0].mxu0 %v8644
    %v8646 = vpop.f32.mrb[0].mxu0
    %v8647 = vadd.f32 %v8539, %v8646
    %v8648 = vpop.f32.mrb[0].mxu0
    %v8649 = vadd.f32 %v8541, %v8648
    %8650 = vmatprep.mubr.f32.mxu0 0.0
    %v8651 = vand.u32 %v6116, 4294901760
    %v8652 = vsub.f32 %v6116, %v8651
    %v8653 = vand.u32 %v8652, 4294901760
    %8654 = vmatmul.mubr.f32.gmra.mrb[0].mxu0 %v8653
    %v8655 = vpop.f32.mrb[0].mxu0
    %v8656 = vadd.f32 %v8547, %v8655
    %v8657 = vpop.f32.mrb[0].mxu0
    %v8658 = vadd.f32 %v8549, %v8657
    %8659 = vdwg.mxu0
    %v8660 = vand.u32 %v6053, 4294901760
    %v8661 = vsub.f32 %v6053, %v8660
    %v8662 = vand.u32 %v8661, 4294901760
    %8663 = vmatprep.subr.mxu0 %v8662
    %v8664 = vand.u32 %v6052, 4294901760
    %v8665 = vsub.f32 %v6052, %v8664
    %v8666 = vand.u32 %v8665, 4294901760
    %8667 = vmatpush1.msra.mxu0 %v8666
    %v8668 = vand.u32 %v6061, 4294901760
    %v8669 = vsub.f32 %v6061, %v8668
    %v8670 = vand.u32 %v8669, 4294901760
    %8671 = vmatprep.subr.mxu0 %v8670
    %v8672 = vand.u32 %v6060, 4294901760
    %v8673 = vsub.f32 %v6060, %v8672
    %v8674 = vand.u32 %v8673, 4294901760
    %8675 = vmatpush1.msra.mxu0 %v8674
    %v8676 = vand.u32 %v6069, 4294901760
    %v8677 = vsub.f32 %v6069, %v8676
    %v8678 = vand.u32 %v8677, 4294901760
    %8679 = vmatprep.subr.mxu0 %v8678
    %v8680 = vand.u32 %v6068, 4294901760
    %v8681 = vsub.f32 %v6068, %v8680
    %v8682 = vand.u32 %v8681, 4294901760
    %8683 = vmatpush1.msra.mxu0 %v8682
    %v8684 = vand.u32 %v6077, 4294901760
    %v8685 = vsub.f32 %v6077, %v8684
    %v8686 = vand.u32 %v8685, 4294901760
    %8687 = vmatprep.subr.mxu0 %v8686
    %v8688 = vand.u32 %v6076, 4294901760
    %v8689 = vsub.f32 %v6076, %v8688
    %v8690 = vand.u32 %v8689, 4294901760
    %8691 = vmatpush1.msra.mxu0 %v8690
    %8692 = vmatprep.subr.mxu0 0.0
    %8693 = vmatpush1.msra.mxu0 0.0
    %8694 = vmatprep.subr.mxu0 0.0
    %8695 = vmatpush1.msra.mxu0 0.0
    %8696 = vmatprep.subr.mxu0 0.0
    %8697 = vmatpush1.msra.mxu0 0.0
    %8698 = vmatprep.subr.mxu0 0.0
    %8699 = vmatpush1.msra.mxu0 0.0
    %8700 = vmatprep.subr.mxu0 0.0
    %8701 = vmatpush1.msra.mxu0 0.0
    %8702 = vmatprep.subr.mxu0 0.0
    %8703 = vmatpush1.msra.mxu0 0.0
    %8704 = vmatprep.subr.mxu0 0.0
    %8705 = vmatpush1.msra.mxu0 0.0
    %8706 = vmatprep.subr.mxu0 0.0
    %8707 = vmatpush1.msra.mxu0 0.0
    %8708 = vmatprep.subr.mxu0 0.0
    %8709 = vmatpush1.msra.mxu0 0.0
    %8710 = vmatprep.subr.mxu0 0.0
    %8711 = vmatpush1.msra.mxu0 0.0
    %8712 = vmatprep.subr.mxu0 0.0
    %8713 = vmatpush1.msra.mxu0 0.0
    %8714 = vmatprep.subr.mxu0 0.0
    %8715 = vmatpush1.msra.mxu0 0.0
    %8716 = vmatprep.subr.mxu0 0.0
    %8717 = vmatpush1.msra.mxu0 0.0
    %8718 = vmatprep.subr.mxu0 0.0
    %8719 = vmatpush1.msra.mxu0 0.0
    %8720 = vmatprep.subr.mxu0 0.0
    %8721 = vmatpush1.msra.mxu0 0.0
    %8722 = vmatprep.subr.mxu0 0.0
    %8723 = vmatpush1.msra.mxu0 0.0
    %8724 = vmatprep.subr.mxu0 0.0
    %8725 = vmatpush1.msra.mxu0 0.0
    %8726 = vmatprep.subr.mxu0 0.0
    %8727 = vmatpush1.msra.mxu0 0.0
    %8728 = vmatprep.subr.mxu0 0.0
    %8729 = vmatpush1.msra.mxu0 0.0
    %8730 = vmatprep.subr.mxu0 0.0
    %8731 = vmatpush1.msra.mxu0 0.0
    %8732 = vmatprep.subr.mxu0 0.0
    %8733 = vmatpush1.msra.mxu0 0.0
    %8734 = vmatprep.subr.mxu0 0.0
    %8735 = vmatpush1.msra.mxu0 0.0
    %8736 = vmatprep.subr.mxu0 0.0
    %8737 = vmatpush1.msra.mxu0 0.0
    %8738 = vmatprep.subr.mxu0 0.0
    %8739 = vmatpush1.msra.mxu0 0.0
    %8740 = vmatprep.subr.mxu0 0.0
    %8741 = vmatpush1.msra.mxu0 0.0
    %8742 = vmatprep.subr.mxu0 0.0
    %8743 = vmatpush1.msra.mxu0 0.0
    %8744 = vmatprep.subr.mxu0 0.0
    %8745 = vmatpush1.msra.mxu0 0.0
    %8746 = vmatprep.subr.mxu0 0.0
    %8747 = vmatpush1.msra.mxu0 0.0
    %8748 = vmatprep.mubr.f32.mxu0 0.0
    %v8749 = vand.u32 %v6107, 4294901760
    %8750 = vmatmul.mubr.f32.gmra.mrb[0].mxu0 %v8749
    %v8751 = vpop.f32.mrb[0].mxu0
    %v8752 = vadd.f32 %v8629, %v8751
    %v8753 = vpop.f32.mrb[0].mxu0
    %v8754 = vadd.f32 %v8631, %v8753
    %8755 = vmatprep.mubr.f32.mxu0 0.0
    %v8756 = vand.u32 %v6110, 4294901760
    %8757 = vmatmul.mubr.f32.gmra.mrb[0].mxu0 %v8756
    %v8758 = vpop.f32.mrb[0].mxu0
    %v8759 = vadd.f32 %v8638, %v8758
    %v8760 = vpop.f32.mrb[0].mxu0
    %v8761 = vadd.f32 %v8640, %v8760
    %8762 = vmatprep.mubr.f32.mxu0 0.0
    %v8763 = vand.u32 %v6113, 4294901760
    %8764 = vmatmul.mubr.f32.gmra.mrb[0].mxu0 %v8763
    %v8765 = vpop.f32.mrb[0].mxu0
    %v8766 = vadd.f32 %v8647, %v8765
    %v8767 = vpop.f32.mrb[0].mxu0
    %v8768 = vadd.f32 %v8649, %v8767
    %8769 = vmatprep.mubr.f32.mxu0 0.0
    %v8770 = vand.u32 %v6116, 4294901760
    %8771 = vmatmul.mubr.f32.gmra.mrb[0].mxu0 %v8770
    %v8772 = vpop.f32.mrb[0].mxu0
    %v8773 = vadd.f32 %v8656, %v8772
    %v8774 = vpop.f32.mrb[0].mxu0
    %v8775 = vadd.f32 %v8658, %v8774
    %8776 = vdwg.mxu0
    %v8777 = vand.u32 %v6053, 4294901760
    %8778 = vmatprep.subr.mxu0 %v8777
    %v8779 = vand.u32 %v6052, 4294901760
    %8780 = vmatpush1.msra.mxu0 %v8779
    %v8781 = vand.u32 %v6061, 4294901760
    %8782 = vmatprep.subr.mxu0 %v8781
    %v8783 = vand.u32 %v6060, 4294901760
    %8784 = vmatpush1.msra.mxu0 %v8783
    %v8785 = vand.u32 %v6069, 4294901760
    %8786 = vmatprep.subr.mxu0 %v8785
    %v8787 = vand.u32 %v6068, 4294901760
    %8788 = vmatpush1.msra.mxu0 %v8787
    %v8789 = vand.u32 %v6077, 4294901760
    %8790 = vmatprep.subr.mxu0 %v8789
    %v8791 = vand.u32 %v6076, 4294901760
    %8792 = vmatpush1.msra.mxu0 %v8791
    %8793 = vmatprep.subr.mxu0 0.0
    %8794 = vmatpush1.msra.mxu0 0.0
    %8795 = vmatprep.subr.mxu0 0.0
    %8796 = vmatpush1.msra.mxu0 0.0
    %8797 = vmatprep.subr.mxu0 0.0
    %8798 = vmatpush1.msra.mxu0 0.0
    %8799 = vmatprep.subr.mxu0 0.0
    %8800 = vmatpush1.msra.mxu0 0.0
    %8801 = vmatprep.subr.mxu0 0.0
    %8802 = vmatpush1.msra.mxu0 0.0
    %8803 = vmatprep.subr.mxu0 0.0
    %8804 = vmatpush1.msra.mxu0 0.0
    %8805 = vmatprep.subr.mxu0 0.0
    %8806 = vmatpush1.msra.mxu0 0.0
    %8807 = vmatprep.subr.mxu0 0.0
    %8808 = vmatpush1.msra.mxu0 0.0
    %8809 = vmatprep.subr.mxu0 0.0
    %8810 = vmatpush1.msra.mxu0 0.0
    %8811 = vmatprep.subr.mxu0 0.0
    %8812 = vmatpush1.msra.mxu0 0.0
    %8813 = vmatprep.subr.mxu0 0.0
    %8814 = vmatpush1.msra.mxu0 0.0
    %8815 = vmatprep.subr.mxu0 0.0
    %8816 = vmatpush1.msra.mxu0 0.0
    %8817 = vmatprep.subr.mxu0 0.0
    %8818 = vmatpush1.msra.mxu0 0.0
    %8819 = vmatprep.subr.mxu0 0.0
    %8820 = vmatpush1.msra.mxu0 0.0
    %8821 = vmatprep.subr.mxu0 0.0
    %8822 = vmatpush1.msra.mxu0 0.0
    %8823 = vmatprep.subr.mxu0 0.0
    %8824 = vmatpush1.msra.mxu0 0.0
    %8825 = vmatprep.subr.mxu0 0.0
    %8826 = vmatpush1.msra.mxu0 0.0
    %8827 = vmatprep.subr.mxu0 0.0
    %8828 = vmatpush1.msra.mxu0 0.0
    %8829 = vmatprep.subr.mxu0 0.0
    %8830 = vmatpush1.msra.mxu0 0.0
    %8831 = vmatprep.subr.mxu0 0.0
    %8832 = vmatpush1.msra.mxu0 0.0
    %8833 = vmatprep.subr.mxu0 0.0
    %8834 = vmatpush1.msra.mxu0 0.0
    %8835 = vmatprep.subr.mxu0 0.0
    %8836 = vmatpush1.msra.mxu0 0.0
    %8837 = vmatprep.subr.mxu0 0.0
    %8838 = vmatpush1.msra.mxu0 0.0
    %8839 = vmatprep.subr.mxu0 0.0
    %8840 = vmatpush1.msra.mxu0 0.0
    %8841 = vmatprep.subr.mxu0 0.0
    %8842 = vmatpush1.msra.mxu0 0.0
    %8843 = vmatprep.subr.mxu0 0.0
    %8844 = vmatpush1.msra.mxu0 0.0
    %8845 = vmatprep.subr.mxu0 0.0
    %8846 = vmatpush1.msra.mxu0 0.0
    %8847 = vmatprep.subr.mxu0 0.0
    %8848 = vmatpush1.msra.mxu0 0.0
    %8849 = vmatprep.mubr.f32.mxu0 0.0
    %v8850 = vand.u32 %v6107, 4294901760
    %8851 = vmatmul.mubr.f32.gmra.mrb[0].mxu0 %v8850
    %v8852 = vpop.f32.mrb[0].mxu0
    %v8853 = vadd.f32 %v8752, %v8852
    %v8854 = vpop.f32.mrb[0].mxu0
    %v8855 = vadd.f32 %v8754, %v8854
    %8856 = vmatprep.mubr.f32.mxu0 0.0
    %v8857 = vand.u32 %v6110, 4294901760
    %8858 = vmatmul.mubr.f32.gmra.mrb[0].mxu0 %v8857
    %v8859 = vpop.f32.mrb[0].mxu0
    %v8860 = vadd.f32 %v8759, %v8859
    %v8861 = vpop.f32.mrb[0].mxu0
    %v8862 = vadd.f32 %v8761, %v8861
    %8863 = vmatprep.mubr.f32.mxu0 0.0
    %v8864 = vand.u32 %v6113, 4294901760
    %8865 = vmatmul.mubr.f32.gmra.mrb[0].mxu0 %v8864
    %v8866 = vpop.f32.mrb[0].mxu0
    %v8867 = vadd.f32 %v8766, %v8866
    %v8868 = vpop.f32.mrb[0].mxu0
    %v8869 = vadd.f32 %v8768, %v8868
    %8870 = vmatprep.mubr.f32.mxu0 0.0
    %v8871 = vand.u32 %v6116, 4294901760
    %8872 = vmatmul.mubr.f32.gmra.mrb[0].mxu0 %v8871
    %v8873 = vpop.f32.mrb[0].mxu0
    %v8874 = vadd.f32 %v8773, %v8873
    %v8875 = vpop.f32.mrb[0].mxu0
    %v8876 = vadd.f32 %v8775, %v8875
    %8877 = vdwg.mxu0
    %v8878 = vtanh.pop %v6783
    %v8879 = vtanh.pop %v6785
    %v8880 = vtanh.pop %v7473
    %v8881 = vtanh.pop %v7475
    %v8882 = vtanh.pop %v8163
    %v8883 = vtanh.pop %v8165
    %v8884 = vtanh.pop %v8853
    %v8885 = vtanh.pop %v8855
    %v8886 = vtanh.pop %v6790
    %v8887 = vtanh.pop %v6792
    %v8888 = vtanh.pop %v7480
    %v8889 = vtanh.pop %v7482
    %v8890 = vtanh.pop %v8170
    %v8891 = vtanh.pop %v8172
    %v8892 = vtanh.pop %v8860
    %v8893 = vtanh.pop %v8862
    %v8894 = vtanh.pop %v6797
    %v8895 = vtanh.pop %v6799
    %v8896 = vtanh.pop %v7487
    %v8897 = vtanh.pop %v7489
    %v8898 = vtanh.pop %v8177
    %v8899 = vtanh.pop %v8179
    %v8900 = vtanh.pop %v8867
    %v8901 = vtanh.pop %v8869
    %v8902 = vtanh.pop %v6804
    %v8903 = vtanh.pop %v6806
    %v8904 = vtanh.pop %v7494
    %v8905 = vtanh.pop %v7496
    %v8906 = vtanh.pop %v8184
    %v8907 = vtanh.pop %v8186
    %v8908 = vtanh.pop %v8874
    %v8909 = vtanh.pop %v8876
    %v8910 = vld [vmem:[%s9] sm:$0x1]
    %v8911 = vld [vmem:[#allocation2] sm:$0x1]
    %8913 = vset.pattern.permute.xlu0 0
    %8914 = vperm.xlu0 %8913, %v8911
    %v8915 = vpop.permute.xlu0 %8914
    %v8917 = vlaneseq
    %v8918 = vshrl.u32 %v8917, 7
    %v8919 = vsub.s32 0, %v8918
    %v8920 = vrot.slane %v8915, %v8919
    %v8922 = vsel %vm441, %v8910, 0
    %v8924 = vand.u32 %v8879, 4294901760
    %8925 = vmatprep.subr.mxu0 %v8924
    %v8926 = vand.u32 %v8878, 4294901760
    %8927 = vmatpush1.msra.mxu0 %v8926
    %v8928 = vand.u32 %v8887, 4294901760
    %8929 = vmatprep.subr.mxu0 %v8928
    %v8930 = vand.u32 %v8886, 4294901760
    %8931 = vmatpush1.msra.mxu0 %v8930
    %v8932 = vand.u32 %v8895, 4294901760
    %8933 = vmatprep.subr.mxu0 %v8932
    %v8934 = vand.u32 %v8894, 4294901760
    %8935 = vmatpush1.msra.mxu0 %v8934
    %v8936 = vand.u32 %v8903, 4294901760
    %8937 = vmatprep.subr.mxu0 %v8936
    %v8938 = vand.u32 %v8902, 4294901760
    %8939 = vmatpush1.msra.mxu0 %v8938
    %8940 = vmatprep.subr.mxu0 0.0
    %8941 = vmatpush1.msra.mxu0 0.0
    %8942 = vmatprep.subr.mxu0 0.0
    %8943 = vmatpush1.msra.mxu0 0.0
    %8944 = vmatprep.subr.mxu0 0.0
    %8945 = vmatpush1.msra.mxu0 0.0
    %8946 = vmatprep.subr.mxu0 0.0
    %8947 = vmatpush1.msra.mxu0 0.0
    %8948 = vmatprep.subr.mxu0 0.0
    %8949 = vmatpush1.msra.mxu0 0.0
    %8950 = vmatprep.subr.mxu0 0.0
    %8951 = vmatpush1.msra.mxu0 0.0
    %8952 = vmatprep.subr.mxu0 0.0
    %8953 = vmatpush1.msra.mxu0 0.0
    %8954 = vmatprep.subr.mxu0 0.0
    %8955 = vmatpush1.msra.mxu0 0.0
    %8956 = vmatprep.subr.mxu0 0.0
    %8957 = vmatpush1.msra.mxu0 0.0
    %8958 = vmatprep.subr.mxu0 0.0
    %8959 = vmatpush1.msra.mxu0 0.0
    %8960 = vmatprep.subr.mxu0 0.0
    %8961 = vmatpush1.msra.mxu0 0.0
    %8962 = vmatprep.subr.mxu0 0.0
    %8963 = vmatpush1.msra.mxu0 0.0
    %8964 = vmatprep.subr.mxu0 0.0
    %8965 = vmatpush1.msra.mxu0 0.0
    %8966 = vmatprep.subr.mxu0 0.0
    %8967 = vmatpush1.msra.mxu0 0.0
    %8968 = vmatprep.subr.mxu0 0.0
    %8969 = vmatpush1.msra.mxu0 0.0
    %8970 = vmatprep.subr.mxu0 0.0
    %8971 = vmatpush1.msra.mxu0 0.0
    %8972 = vmatprep.subr.mxu0 0.0
    %8973 = vmatpush1.msra.mxu0 0.0
    %8974 = vmatprep.subr.mxu0 0.0
    %8975 = vmatpush1.msra.mxu0 0.0
    %8976 = vmatprep.subr.mxu0 0.0
    %8977 = vmatpush1.msra.mxu0 0.0
    %8978 = vmatprep.subr.mxu0 0.0
    %8979 = vmatpush1.msra.mxu0 0.0
    %8980 = vmatprep.subr.mxu0 0.0
    %8981 = vmatpush1.msra.mxu0 0.0
    %8982 = vmatprep.subr.mxu0 0.0
    %8983 = vmatpush1.msra.mxu0 0.0
    %8984 = vmatprep.subr.mxu0 0.0
    %8985 = vmatpush1.msra.mxu0 0.0
    %8986 = vmatprep.subr.mxu0 0.0
    %8987 = vmatpush1.msra.mxu0 0.0
    %8988 = vmatprep.subr.mxu0 0.0
    %8989 = vmatpush1.msra.mxu0 0.0
    %8990 = vmatprep.subr.mxu0 0.0
    %8991 = vmatpush1.msra.mxu0 0.0
    %8992 = vmatprep.subr.mxu0 0.0
    %8993 = vmatpush1.msra.mxu0 0.0
    %8994 = vmatprep.subr.mxu0 0.0
    %8995 = vmatpush1.msra.mxu0 0.0
    %8996 = vmatprep.mubr.f32.mxu0 0.0
    %v8997 = vand.u32 %v8922, 4294901760
    %v8998 = vsub.f32 %v8922, %v8997
    %v8999 = vand.u32 %v8998, 4294901760
    %v9000 = vsub.f32 %v8998, %v8999
    %v9001 = vand.u32 %v9000, 4294901760
    %9002 = vmatmul.mubr.f32.gmra.mrb[0].mxu0 %v9001
    %v9003 = vpop.f32.mrb[0].mxu0
    %v9004 = vadd.f32 %v8920, %v9003
    %v9005 = vpop.f32.mrb[0].mxu0
    %v9006 = vadd.f32 %v8920, %v9005
    %9007 = vdwg.mxu0
    %v9008 = vand.u32 %v8879, 4294901760
    %v9009 = vsub.f32 %v8879, %v9008
    %v9010 = vand.u32 %v9009, 4294901760
    %v9011 = vsub.f32 %v9009, %v9010
    %v9012 = vand.u32 %v9011, 4294901760
    %9013 = vmatprep.subr.mxu0 %v9012
    %v9014 = vand.u32 %v8878, 4294901760
    %v9015 = vsub.f32 %v8878, %v9014
    %v9016 = vand.u32 %v9015, 4294901760
    %v9017 = vsub.f32 %v9015, %v9016
    %v9018 = vand.u32 %v9017, 4294901760
    %9019 = vmatpush1.msra.mxu0 %v9018
    %v9020 = vand.u32 %v8887, 4294901760
    %v9021 = vsub.f32 %v8887, %v9020
    %v9022 = vand.u32 %v9021, 4294901760
    %v9023 = vsub.f32 %v9021, %v9022
    %v9024 = vand.u32 %v9023, 4294901760
    %9025 = vmatprep.subr.mxu0 %v9024
    %v9026 = vand.u32 %v8886, 4294901760
    %v9027 = vsub.f32 %v8886, %v9026
    %v9028 = vand.u32 %v9027, 4294901760
    %v9029 = vsub.f32 %v9027, %v9028
    %v9030 = vand.u32 %v9029, 4294901760
    %9031 = vmatpush1.msra.mxu0 %v9030
    %v9032 = vand.u32 %v8895, 4294901760
    %v9033 = vsub.f32 %v8895, %v9032
    %v9034 = vand.u32 %v9033, 4294901760
    %v9035 = vsub.f32 %v9033, %v9034
    %v9036 = vand.u32 %v9035, 4294901760
    %9037 = vmatprep.subr.mxu0 %v9036
    %v9038 = vand.u32 %v8894, 4294901760
    %v9039 = vsub.f32 %v8894, %v9038
    %v9040 = vand.u32 %v9039, 4294901760
    %v9041 = vsub.f32 %v9039, %v9040
    %v9042 = vand.u32 %v9041, 4294901760
    %9043 = vmatpush1.msra.mxu0 %v9042
    %v9044 = vand.u32 %v8903, 4294901760
    %v9045 = vsub.f32 %v8903, %v9044
    %v9046 = vand.u32 %v9045, 4294901760
    %v9047 = vsub.f32 %v9045, %v9046
    %v9048 = vand.u32 %v9047, 4294901760
    %9049 = vmatprep.subr.mxu0 %v9048
    %v9050 = vand.u32 %v8902, 4294901760
    %v9051 = vsub.f32 %v8902, %v9050
    %v9052 = vand.u32 %v9051, 4294901760
    %v9053 = vsub.f32 %v9051, %v9052
    %v9054 = vand.u32 %v9053, 4294901760
    %9055 = vmatpush1.msra.mxu0 %v9054
    %9056 = vmatprep.subr.mxu0 0.0
    %9057 = vmatpush1.msra.mxu0 0.0
    %9058 = vmatprep.subr.mxu0 0.0
    %9059 = vmatpush1.msra.mxu0 0.0
    %9060 = vmatprep.subr.mxu0 0.0
    %9061 = vmatpush1.msra.mxu0 0.0
    %9062 = vmatprep.subr.mxu0 0.0
    %9063 = vmatpush1.msra.mxu0 0.0
    %9064 = vmatprep.subr.mxu0 0.0
    %9065 = vmatpush1.msra.mxu0 0.0
    %9066 = vmatprep.subr.mxu0 0.0
    %9067 = vmatpush1.msra.mxu0 0.0
    %9068 = vmatprep.subr.mxu0 0.0
    %9069 = vmatpush1.msra.mxu0 0.0
    %9070 = vmatprep.subr.mxu0 0.0
    %9071 = vmatpush1.msra.mxu0 0.0
    %9072 = vmatprep.subr.mxu0 0.0
    %9073 = vmatpush1.msra.mxu0 0.0
    %9074 = vmatprep.subr.mxu0 0.0
    %9075 = vmatpush1.msra.mxu0 0.0
    %9076 = vmatprep.subr.mxu0 0.0
    %9077 = vmatpush1.msra.mxu0 0.0
    %9078 = vmatprep.subr.mxu0 0.0
    %9079 = vmatpush1.msra.mxu0 0.0
    %9080 = vmatprep.subr.mxu0 0.0
    %9081 = vmatpush1.msra.mxu0 0.0
    %9082 = vmatprep.subr.mxu0 0.0
    %9083 = vmatpush1.msra.mxu0 0.0
    %9084 = vmatprep.subr.mxu0 0.0
    %9085 = vmatpush1.msra.mxu0 0.0
    %9086 = vmatprep.subr.mxu0 0.0
    %9087 = vmatpush1.msra.mxu0 0.0
    %9088 = vmatprep.subr.mxu0 0.0
    %9089 = vmatpush1.msra.mxu0 0.0
    %9090 = vmatprep.subr.mxu0 0.0
    %9091 = vmatpush1.msra.mxu0 0.0
    %9092 = vmatprep.subr.mxu0 0.0
    %9093 = vmatpush1.msra.mxu0 0.0
    %9094 = vmatprep.subr.mxu0 0.0
    %9095 = vmatpush1.msra.mxu0 0.0
    %9096 = vmatprep.subr.mxu0 0.0
    %9097 = vmatpush1.msra.mxu0 0.0
    %9098 = vmatprep.subr.mxu0 0.0
    %9099 = vmatpush1.msra.mxu0 0.0
    %9100 = vmatprep.subr.mxu0 0.0
    %9101 = vmatpush1.msra.mxu0 0.0
    %9102 = vmatprep.subr.mxu0 0.0
    %9103 = vmatpush1.msra.mxu0 0.0
    %9104 = vmatprep.subr.mxu0 0.0
    %9105 = vmatpush1.msra.mxu0 0.0
    %9106 = vmatprep.subr.mxu0 0.0
    %9107 = vmatpush1.msra.mxu0 0.0
    %9108 = vmatprep.subr.mxu0 0.0
    %9109 = vmatpush1.msra.mxu0 0.0
    %9110 = vmatprep.subr.mxu0 0.0
    %9111 = vmatpush1.msra.mxu0 0.0
    %9112 = vmatprep.mubr.f32.mxu0 0.0
    %v9113 = vand.u32 %v8922, 4294901760
    %9114 = vmatmul.mubr.f32.gmra.mrb[0].mxu0 %v9113
    %v9115 = vpop.f32.mrb[0].mxu0
    %v9116 = vadd.f32 %v9004, %v9115
    %v9117 = vpop.f32.mrb[0].mxu0
    %v9118 = vadd.f32 %v9006, %v9117
    %9119 = vdwg.mxu0
    %v9120 = vand.u32 %v8879, 4294901760
    %v9121 = vsub.f32 %v8879, %v9120
    %9122 = vmatprep.subr.mxu0 %v9121
    %v9123 = vand.u32 %v8878, 4294901760
    %v9124 = vsub.f32 %v8878, %v9123
    %9125 = vmatpush1.msra.mxu0 %v9124
    %v9126 = vand.u32 %v8887, 4294901760
    %v9127 = vsub.f32 %v8887, %v9126
    %9128 = vmatprep.subr.mxu0 %v9127
    %v9129 = vand.u32 %v8886, 4294901760
    %v9130 = vsub.f32 %v8886, %v9129
    %9131 = vmatpush1.msra.mxu0 %v9130
    %v9132 = vand.u32 %v8895, 4294901760
    %v9133 = vsub.f32 %v8895, %v9132
    %9134 = vmatprep.subr.mxu0 %v9133
    %v9135 = vand.u32 %v8894, 4294901760
    %v9136 = vsub.f32 %v8894, %v9135
    %9137 = vmatpush1.msra.mxu0 %v9136
    %v9138 = vand.u32 %v8903, 4294901760
    %v9139 = vsub.f32 %v8903, %v9138
    %9140 = vmatprep.subr.mxu0 %v9139
    %v9141 = vand.u32 %v8902, 4294901760
    %v9142 = vsub.f32 %v8902, %v9141
    %9143 = vmatpush1.msra.mxu0 %v9142
    %9144 = vmatprep.subr.mxu0 0.0
    %9145 = vmatpush1.msra.mxu0 0.0
    %9146 = vmatprep.subr.mxu0 0.0
    %9147 = vmatpush1.msra.mxu0 0.0
    %9148 = vmatprep.subr.mxu0 0.0
    %9149 = vmatpush1.msra.mxu0 0.0
    %9150 = vmatprep.subr.mxu0 0.0
    %9151 = vmatpush1.msra.mxu0 0.0
    %9152 = vmatprep.subr.mxu0 0.0
    %9153 = vmatpush1.msra.mxu0 0.0
    %9154 = vmatprep.subr.mxu0 0.0
    %9155 = vmatpush1.msra.mxu0 0.0
    %9156 = vmatprep.subr.mxu0 0.0
    %9157 = vmatpush1.msra.mxu0 0.0
    %9158 = vmatprep.subr.mxu0 0.0
    %9159 = vmatpush1.msra.mxu0 0.0
    %9160 = vmatprep.subr.mxu0 0.0
    %9161 = vmatpush1.msra.mxu0 0.0
    %9162 = vmatprep.subr.mxu0 0.0
    %9163 = vmatpush1.msra.mxu0 0.0
    %9164 = vmatprep.subr.mxu0 0.0
    %9165 = vmatpush1.msra.mxu0 0.0
    %9166 = vmatprep.subr.mxu0 0.0
    %9167 = vmatpush1.msra.mxu0 0.0
    %9168 = vmatprep.subr.mxu0 0.0
    %9169 = vmatpush1.msra.mxu0 0.0
    %9170 = vmatprep.subr.mxu0 0.0
    %9171 = vmatpush1.msra.mxu0 0.0
    %9172 = vmatprep.subr.mxu0 0.0
    %9173 = vmatpush1.msra.mxu0 0.0
    %9174 = vmatprep.subr.mxu0 0.0
    %9175 = vmatpush1.msra.mxu0 0.0
    %9176 = vmatprep.subr.mxu0 0.0
    %9177 = vmatpush1.msra.mxu0 0.0
    %9178 = vmatprep.subr.mxu0 0.0
    %9179 = vmatpush1.msra.mxu0 0.0
    %9180 = vmatprep.subr.mxu0 0.0
    %9181 = vmatpush1.msra.mxu0 0.0
    %9182 = vmatprep.subr.mxu0 0.0
    %9183 = vmatpush1.msra.mxu0 0.0
    %9184 = vmatprep.subr.mxu0 0.0
    %9185 = vmatpush1.msra.mxu0 0.0
    %9186 = vmatprep.subr.mxu0 0.0
    %9187 = vmatpush1.msra.mxu0 0.0
    %9188 = vmatprep.subr.mxu0 0.0
    %9189 = vmatpush1.msra.mxu0 0.0
    %9190 = vmatprep.subr.mxu0 0.0
    %9191 = vmatpush1.msra.mxu0 0.0
    %9192 = vmatprep.subr.mxu0 0.0
    %9193 = vmatpush1.msra.mxu0 0.0
    %9194 = vmatprep.subr.mxu0 0.0
    %9195 = vmatpush1.msra.mxu0 0.0
    %9196 = vmatprep.subr.mxu0 0.0
    %9197 = vmatpush1.msra.mxu0 0.0
    %9198 = vmatprep.subr.mxu0 0.0
    %9199 = vmatpush1.msra.mxu0 0.0
    %9200 = vmatprep.mubr.f32.mxu0 0.0
    %v9201 = vand.u32 %v8922, 4294901760
    %v9202 = vsub.f32 %v8922, %v9201
    %9203 = vmatmul.mubr.f32.gmra.mrb[0].mxu0 %v9202
    %v9204 = vpop.f32.mrb[0].mxu0
    %v9205 = vadd.f32 %v9116, %v9204
    %v9206 = vpop.f32.mrb[0].mxu0
    %v9207 = vadd.f32 %v9118, %v9206
    %9208 = vdwg.mxu0
    %v9209 = vand.u32 %v8879, 4294901760
    %9210 = vmatprep.subr.mxu0 %v9209
    %v9211 = vand.u32 %v8878, 4294901760
    %9212 = vmatpush1.msra.mxu0 %v9211
    %v9213 = vand.u32 %v8887, 4294901760
    %9214 = vmatprep.subr.mxu0 %v9213
    %v9215 = vand.u32 %v8886, 4294901760
    %9216 = vmatpush1.msra.mxu0 %v9215
    %v9217 = vand.u32 %v8895, 4294901760
    %9218 = vmatprep.subr.mxu0 %v9217
    %v9219 = vand.u32 %v8894, 4294901760
    %9220 = vmatpush1.msra.mxu0 %v9219
    %v9221 = vand.u32 %v8903, 4294901760
    %9222 = vmatprep.subr.mxu0 %v9221
    %v9223 = vand.u32 %v8902, 4294901760
    %9224 = vmatpush1.msra.mxu0 %v9223
    %9225 = vmatprep.subr.mxu0 0.0
    %9226 = vmatpush1.msra.mxu0 0.0
    %9227 = vmatprep.subr.mxu0 0.0
    %9228 = vmatpush1.msra.mxu0 0.0
    %9229 = vmatprep.subr.mxu0 0.0
    %9230 = vmatpush1.msra.mxu0 0.0
    %9231 = vmatprep.subr.mxu0 0.0
    %9232 = vmatpush1.msra.mxu0 0.0
    %9233 = vmatprep.subr.mxu0 0.0
    %9234 = vmatpush1.msra.mxu0 0.0
    %9235 = vmatprep.subr.mxu0 0.0
    %9236 = vmatpush1.msra.mxu0 0.0
    %9237 = vmatprep.subr.mxu0 0.0
    %9238 = vmatpush1.msra.mxu0 0.0
    %9239 = vmatprep.subr.mxu0 0.0
    %9240 = vmatpush1.msra.mxu0 0.0
    %9241 = vmatprep.subr.mxu0 0.0
    %9242 = vmatpush1.msra.mxu0 0.0
    %9243 = vmatprep.subr.mxu0 0.0
    %9244 = vmatpush1.msra.mxu0 0.0
    %9245 = vmatprep.subr.mxu0 0.0
    %9246 = vmatpush1.msra.mxu0 0.0
    %9247 = vmatprep.subr.mxu0 0.0
    %9248 = vmatpush1.msra.mxu0 0.0
    %9249 = vmatprep.subr.mxu0 0.0
    %9250 = vmatpush1.msra.mxu0 0.0
    %9251 = vmatprep.subr.mxu0 0.0
    %9252 = vmatpush1.msra.mxu0 0.0
    %9253 = vmatprep.subr.mxu0 0.0
    %9254 = vmatpush1.msra.mxu0 0.0
    %9255 = vmatprep.subr.mxu0 0.0
    %9256 = vmatpush1.msra.mxu0 0.0
    %9257 = vmatprep.subr.mxu0 0.0
    %9258 = vmatpush1.msra.mxu0 0.0
    %9259 = vmatprep.subr.mxu0 0.0
    %9260 = vmatpush1.msra.mxu0 0.0
    %9261 = vmatprep.subr.mxu0 0.0
    %9262 = vmatpush1.msra.mxu0 0.0
    %9263 = vmatprep.subr.mxu0 0.0
    %9264 = vmatpush1.msra.mxu0 0.0
    %9265 = vmatprep.subr.mxu0 0.0
    %9266 = vmatpush1.msra.mxu0 0.0
    %9267 = vmatprep.subr.mxu0 0.0
    %9268 = vmatpush1.msra.mxu0 0.0
    %9269 = vmatprep.subr.mxu0 0.0
    %9270 = vmatpush1.msra.mxu0 0.0
    %9271 = vmatprep.subr.mxu0 0.0
    %9272 = vmatpush1.msra.mxu0 0.0
    %9273 = vmatprep.subr.mxu0 0.0
    %9274 = vmatpush1.msra.mxu0 0.0
    %9275 = vmatprep.subr.mxu0 0.0
    %9276 = vmatpush1.msra.mxu0 0.0
    %9277 = vmatprep.subr.mxu0 0.0
    %9278 = vmatpush1.msra.mxu0 0.0
    %9279 = vmatprep.subr.mxu0 0.0
    %9280 = vmatpush1.msra.mxu0 0.0
    %9281 = vmatprep.mubr.f32.mxu0 0.0
    %v9282 = vand.u32 %v8922, 4294901760
    %v9283 = vsub.f32 %v8922, %v9282
    %v9284 = vand.u32 %v9283, 4294901760
    %9285 = vmatmul.mubr.f32.gmra.mrb[0].mxu0 %v9284
    %v9286 = vpop.f32.mrb[0].mxu0
    %v9287 = vadd.f32 %v9205, %v9286
    %v9288 = vpop.f32.mrb[0].mxu0
    %v9289 = vadd.f32 %v9207, %v9288
    %9290 = vdwg.mxu0
    %v9291 = vand.u32 %v8879, 4294901760
    %v9292 = vsub.f32 %v8879, %v9291
    %v9293 = vand.u32 %v9292, 4294901760
    %9294 = vmatprep.subr.mxu0 %v9293
    %v9295 = vand.u32 %v8878, 4294901760
    %v9296 = vsub.f32 %v8878, %v9295
    %v9297 = vand.u32 %v9296, 4294901760
    %9298 = vmatpush1.msra.mxu0 %v9297
    %v9299 = vand.u32 %v8887, 4294901760
    %v9300 = vsub.f32 %v8887, %v9299
    %v9301 = vand.u32 %v9300, 4294901760
    %9302 = vmatprep.subr.mxu0 %v9301
    %v9303 = vand.u32 %v8886, 4294901760
    %v9304 = vsub.f32 %v8886, %v9303
    %v9305 = vand.u32 %v9304, 4294901760
    %9306 = vmatpush1.msra.mxu0 %v9305
    %v9307 = vand.u32 %v8895, 4294901760
    %v9308 = vsub.f32 %v8895, %v9307
    %v9309 = vand.u32 %v9308, 4294901760
    %9310 = vmatprep.subr.mxu0 %v9309
    %v9311 = vand.u32 %v8894, 4294901760
    %v9312 = vsub.f32 %v8894, %v9311
    %v9313 = vand.u32 %v9312, 4294901760
    %9314 = vmatpush1.msra.mxu0 %v9313
    %v9315 = vand.u32 %v8903, 4294901760
    %v9316 = vsub.f32 %v8903, %v9315
    %v9317 = vand.u32 %v9316, 4294901760
    %9318 = vmatprep.subr.mxu0 %v9317
    %v9319 = vand.u32 %v8902, 4294901760
    %v9320 = vsub.f32 %v8902, %v9319
    %v9321 = vand.u32 %v9320, 4294901760
    %9322 = vmatpush1.msra.mxu0 %v9321
    %9323 = vmatprep.subr.mxu0 0.0
    %9324 = vmatpush1.msra.mxu0 0.0
    %9325 = vmatprep.subr.mxu0 0.0
    %9326 = vmatpush1.msra.mxu0 0.0
    %9327 = vmatprep.subr.mxu0 0.0
    %9328 = vmatpush1.msra.mxu0 0.0
    %9329 = vmatprep.subr.mxu0 0.0
    %9330 = vmatpush1.msra.mxu0 0.0
    %9331 = vmatprep.subr.mxu0 0.0
    %9332 = vmatpush1.msra.mxu0 0.0
    %9333 = vmatprep.subr.mxu0 0.0
    %9334 = vmatpush1.msra.mxu0 0.0
    %9335 = vmatprep.subr.mxu0 0.0
    %9336 = vmatpush1.msra.mxu0 0.0
    %9337 = vmatprep.subr.mxu0 0.0
    %9338 = vmatpush1.msra.mxu0 0.0
    %9339 = vmatprep.subr.mxu0 0.0
    %9340 = vmatpush1.msra.mxu0 0.0
    %9341 = vmatprep.subr.mxu0 0.0
    %9342 = vmatpush1.msra.mxu0 0.0
    %9343 = vmatprep.subr.mxu0 0.0
    %9344 = vmatpush1.msra.mxu0 0.0
    %9345 = vmatprep.subr.mxu0 0.0
    %9346 = vmatpush1.msra.mxu0 0.0
    %9347 = vmatprep.subr.mxu0 0.0
    %9348 = vmatpush1.msra.mxu0 0.0
    %9349 = vmatprep.subr.mxu0 0.0
    %9350 = vmatpush1.msra.mxu0 0.0
    %9351 = vmatprep.subr.mxu0 0.0
    %9352 = vmatpush1.msra.mxu0 0.0
    %9353 = vmatprep.subr.mxu0 0.0
    %9354 = vmatpush1.msra.mxu0 0.0
    %9355 = vmatprep.subr.mxu0 0.0
    %9356 = vmatpush1.msra.mxu0 0.0
    %9357 = vmatprep.subr.mxu0 0.0
    %9358 = vmatpush1.msra.mxu0 0.0
    %9359 = vmatprep.subr.mxu0 0.0
    %9360 = vmatpush1.msra.mxu0 0.0
    %9361 = vmatprep.subr.mxu0 0.0
    %9362 = vmatpush1.msra.mxu0 0.0
    %9363 = vmatprep.subr.mxu0 0.0
    %9364 = vmatpush1.msra.mxu0 0.0
    %9365 = vmatprep.subr.mxu0 0.0
    %9366 = vmatpush1.msra.mxu0 0.0
    %9367 = vmatprep.subr.mxu0 0.0
    %9368 = vmatpush1.msra.mxu0 0.0
    %9369 = vmatprep.subr.mxu0 0.0
    %9370 = vmatpush1.msra.mxu0 0.0
    %9371 = vmatprep.subr.mxu0 0.0
    %9372 = vmatpush1.msra.mxu0 0.0
    %9373 = vmatprep.subr.mxu0 0.0
    %9374 = vmatpush1.msra.mxu0 0.0
    %9375 = vmatprep.subr.mxu0 0.0
    %9376 = vmatpush1.msra.mxu0 0.0
    %9377 = vmatprep.subr.mxu0 0.0
    %9378 = vmatpush1.msra.mxu0 0.0
    %9379 = vmatprep.mubr.f32.mxu0 0.0
    %v9380 = vand.u32 %v8922, 4294901760
    %9381 = vmatmul.mubr.f32.gmra.mrb[0].mxu0 %v9380
    %v9382 = vpop.f32.mrb[0].mxu0
    %v9383 = vadd.f32 %v9287, %v9382
    %v9384 = vpop.f32.mrb[0].mxu0
    %v9385 = vadd.f32 %v9289, %v9384
    %9386 = vdwg.mxu0
    %v9387 = vand.u32 %v8879, 4294901760
    %9388 = vmatprep.subr.mxu0 %v9387
    %v9389 = vand.u32 %v8878, 4294901760
    %9390 = vmatpush1.msra.mxu0 %v9389
    %v9391 = vand.u32 %v8887, 4294901760
    %9392 = vmatprep.subr.mxu0 %v9391
    %v9393 = vand.u32 %v8886, 4294901760
    %9394 = vmatpush1.msra.mxu0 %v9393
    %v9395 = vand.u32 %v8895, 4294901760
    %9396 = vmatprep.subr.mxu0 %v9395
    %v9397 = vand.u32 %v8894, 4294901760
    %9398 = vmatpush1.msra.mxu0 %v9397
    %v9399 = vand.u32 %v8903, 4294901760
    %9400 = vmatprep.subr.mxu0 %v9399
    %v9401 = vand.u32 %v8902, 4294901760
    %9402 = vmatpush1.msra.mxu0 %v9401
    %9403 = vmatprep.subr.mxu0 0.0
    %9404 = vmatpush1.msra.mxu0 0.0
    %9405 = vmatprep.subr.mxu0 0.0
    %9406 = vmatpush1.msra.mxu0 0.0
    %9407 = vmatprep.subr.mxu0 0.0
    %9408 = vmatpush1.msra.mxu0 0.0
    %9409 = vmatprep.subr.mxu0 0.0
    %9410 = vmatpush1.msra.mxu0 0.0
    %9411 = vmatprep.subr.mxu0 0.0
    %9412 = vmatpush1.msra.mxu0 0.0
    %9413 = vmatprep.subr.mxu0 0.0
    %9414 = vmatpush1.msra.mxu0 0.0
    %9415 = vmatprep.subr.mxu0 0.0
    %9416 = vmatpush1.msra.mxu0 0.0
    %9417 = vmatprep.subr.mxu0 0.0
    %9418 = vmatpush1.msra.mxu0 0.0
    %9419 = vmatprep.subr.mxu0 0.0
    %9420 = vmatpush1.msra.mxu0 0.0
    %9421 = vmatprep.subr.mxu0 0.0
    %9422 = vmatpush1.msra.mxu0 0.0
    %9423 = vmatprep.subr.mxu0 0.0
    %9424 = vmatpush1.msra.mxu0 0.0
    %9425 = vmatprep.subr.mxu0 0.0
    %9426 = vmatpush1.msra.mxu0 0.0
    %9427 = vmatprep.subr.mxu0 0.0
    %9428 = vmatpush1.msra.mxu0 0.0
    %9429 = vmatprep.subr.mxu0 0.0
    %9430 = vmatpush1.msra.mxu0 0.0
    %9431 = vmatprep.subr.mxu0 0.0
    %9432 = vmatpush1.msra.mxu0 0.0
    %9433 = vmatprep.subr.mxu0 0.0
    %9434 = vmatpush1.msra.mxu0 0.0
    %9435 = vmatprep.subr.mxu0 0.0
    %9436 = vmatpush1.msra.mxu0 0.0
    %9437 = vmatprep.subr.mxu0 0.0
    %9438 = vmatpush1.msra.mxu0 0.0
    %9439 = vmatprep.subr.mxu0 0.0
    %9440 = vmatpush1.msra.mxu0 0.0
    %9441 = vmatprep.subr.mxu0 0.0
    %9442 = vmatpush1.msra.mxu0 0.0
    %9443 = vmatprep.subr.mxu0 0.0
    %9444 = vmatpush1.msra.mxu0 0.0
    %9445 = vmatprep.subr.mxu0 0.0
    %9446 = vmatpush1.msra.mxu0 0.0
    %9447 = vmatprep.subr.mxu0 0.0
    %9448 = vmatpush1.msra.mxu0 0.0
    %9449 = vmatprep.subr.mxu0 0.0
    %9450 = vmatpush1.msra.mxu0 0.0
    %9451 = vmatprep.subr.mxu0 0.0
    %9452 = vmatpush1.msra.mxu0 0.0
    %9453 = vmatprep.subr.mxu0 0.0
    %9454 = vmatpush1.msra.mxu0 0.0
    %9455 = vmatprep.subr.mxu0 0.0
    %9456 = vmatpush1.msra.mxu0 0.0
    %9457 = vmatprep.subr.mxu0 0.0
    %9458 = vmatpush1.msra.mxu0 0.0
    %9459 = vmatprep.mubr.f32.mxu0 0.0
    %v9460 = vand.u32 %v8922, 4294901760
    %9461 = vmatmul.mubr.f32.gmra.mrb[0].mxu0 %v9460
    %v9462 = vpop.f32.mrb[0].mxu0
    %v9463 = vadd.f32 %v9383, %v9462
    %v9464 = vpop.f32.mrb[0].mxu0
    %v9465 = vadd.f32 %v9385, %v9464
    %9466 = vdwg.mxu0
    %v9467 = vand.u32 %v8881, 4294901760
    %9468 = vmatprep.subr.mxu0 %v9467
    %v9469 = vand.u32 %v8880, 4294901760
    %9470 = vmatpush1.msra.mxu0 %v9469
    %v9471 = vand.u32 %v8889, 4294901760
    %9472 = vmatprep.subr.mxu0 %v9471
    %v9473 = vand.u32 %v8888, 4294901760
    %9474 = vmatpush1.msra.mxu0 %v9473
    %v9475 = vand.u32 %v8897, 4294901760
    %9476 = vmatprep.subr.mxu0 %v9475
    %v9477 = vand.u32 %v8896, 4294901760
    %9478 = vmatpush1.msra.mxu0 %v9477
    %v9479 = vand.u32 %v8905, 4294901760
    %9480 = vmatprep.subr.mxu0 %v9479
    %v9481 = vand.u32 %v8904, 4294901760
    %9482 = vmatpush1.msra.mxu0 %v9481
    %9483 = vmatprep.subr.mxu0 0.0
    %9484 = vmatpush1.msra.mxu0 0.0
    %9485 = vmatprep.subr.mxu0 0.0
    %9486 = vmatpush1.msra.mxu0 0.0
    %9487 = vmatprep.subr.mxu0 0.0
    %9488 = vmatpush1.msra.mxu0 0.0
    %9489 = vmatprep.subr.mxu0 0.0
    %9490 = vmatpush1.msra.mxu0 0.0
    %9491 = vmatprep.subr.mxu0 0.0
    %9492 = vmatpush1.msra.mxu0 0.0
    %9493 = vmatprep.subr.mxu0 0.0
    %9494 = vmatpush1.msra.mxu0 0.0
    %9495 = vmatprep.subr.mxu0 0.0
    %9496 = vmatpush1.msra.mxu0 0.0
    %9497 = vmatprep.subr.mxu0 0.0
    %9498 = vmatpush1.msra.mxu0 0.0
    %9499 = vmatprep.subr.mxu0 0.0
    %9500 = vmatpush1.msra.mxu0 0.0
    %9501 = vmatprep.subr.mxu0 0.0
    %9502 = vmatpush1.msra.mxu0 0.0
    %9503 = vmatprep.subr.mxu0 0.0
    %9504 = vmatpush1.msra.mxu0 0.0
    %9505 = vmatprep.subr.mxu0 0.0
    %9506 = vmatpush1.msra.mxu0 0.0
    %9507 = vmatprep.subr.mxu0 0.0
    %9508 = vmatpush1.msra.mxu0 0.0
    %9509 = vmatprep.subr.mxu0 0.0
    %9510 = vmatpush1.msra.mxu0 0.0
    %9511 = vmatprep.subr.mxu0 0.0
    %9512 = vmatpush1.msra.mxu0 0.0
    %9513 = vmatprep.subr.mxu0 0.0
    %9514 = vmatpush1.msra.mxu0 0.0
    %9515 = vmatprep.subr.mxu0 0.0
    %9516 = vmatpush1.msra.mxu0 0.0
    %9517 = vmatprep.subr.mxu0 0.0
    %9518 = vmatpush1.msra.mxu0 0.0
    %9519 = vmatprep.subr.mxu0 0.0
    %9520 = vmatpush1.msra.mxu0 0.0
    %9521 = vmatprep.subr.mxu0 0.0
    %9522 = vmatpush1.msra.mxu0 0.0
    %9523 = vmatprep.subr.mxu0 0.0
    %9524 = vmatpush1.msra.mxu0 0.0
    %9525 = vmatprep.subr.mxu0 0.0
    %9526 = vmatpush1.msra.mxu0 0.0
    %9527 = vmatprep.subr.mxu0 0.0
    %9528 = vmatpush1.msra.mxu0 0.0
    %9529 = vmatprep.subr.mxu0 0.0
    %9530 = vmatpush1.msra.mxu0 0.0
    %9531 = vmatprep.subr.mxu0 0.0
    %9532 = vmatpush1.msra.mxu0 0.0
    %9533 = vmatprep.subr.mxu0 0.0
    %9534 = vmatpush1.msra.mxu0 0.0
    %9535 = vmatprep.subr.mxu0 0.0
    %9536 = vmatpush1.msra.mxu0 0.0
    %9537 = vmatprep.subr.mxu0 0.0
    %9538 = vmatpush1.msra.mxu0 0.0
    %9539 = vmatprep.mubr.f32.mxu0 0.0
    %v9540 = vand.u32 %v8922, 4294901760
    %v9541 = vsub.f32 %v8922, %v9540
    %v9542 = vand.u32 %v9541, 4294901760
    %v9543 = vsub.f32 %v9541, %v9542
    %v9544 = vand.u32 %v9543, 4294901760
    %9545 = vmatmul.mubr.f32.gmra.mrb[0].mxu0 %v9544
    %v9546 = vpop.f32.mrb[0].mxu0
    %v9547 = vadd.f32 %v8920, %v9546
    %v9548 = vpop.f32.mrb[0].mxu0
    %v9549 = vadd.f32 %v8920, %v9548
    %9550 = vdwg.mxu0
    %v9551 = vand.u32 %v8881, 4294901760
    %v9552 = vsub.f32 %v8881, %v9551
    %v9553 = vand.u32 %v9552, 4294901760
    %v9554 = vsub.f32 %v9552, %v9553
    %v9555 = vand.u32 %v9554, 4294901760
    %9556 = vmatprep.subr.mxu0 %v9555
    %v9557 = vand.u32 %v8880, 4294901760
    %v9558 = vsub.f32 %v8880, %v9557
    %v9559 = vand.u32 %v9558, 4294901760
    %v9560 = vsub.f32 %v9558, %v9559
    %v9561 = vand.u32 %v9560, 4294901760
    %9562 = vmatpush1.msra.mxu0 %v9561
    %v9563 = vand.u32 %v8889, 4294901760
    %v9564 = vsub.f32 %v8889, %v9563
    %v9565 = vand.u32 %v9564, 4294901760
    %v9566 = vsub.f32 %v9564, %v9565
    %v9567 = vand.u32 %v9566, 4294901760
    %9568 = vmatprep.subr.mxu0 %v9567
    %v9569 = vand.u32 %v8888, 4294901760
    %v9570 = vsub.f32 %v8888, %v9569
    %v9571 = vand.u32 %v9570, 4294901760
    %v9572 = vsub.f32 %v9570, %v9571
    %v9573 = vand.u32 %v9572, 4294901760
    %9574 = vmatpush1.msra.mxu0 %v9573
    %v9575 = vand.u32 %v8897, 4294901760
    %v9576 = vsub.f32 %v8897, %v9575
    %v9577 = vand.u32 %v9576, 4294901760
    %v9578 = vsub.f32 %v9576, %v9577
    %v9579 = vand.u32 %v9578, 4294901760
    %9580 = vmatprep.subr.mxu0 %v9579
    %v9581 = vand.u32 %v8896, 4294901760
    %v9582 = vsub.f32 %v8896, %v9581
    %v9583 = vand.u32 %v9582, 4294901760
    %v9584 = vsub.f32 %v9582, %v9583
    %v9585 = vand.u32 %v9584, 4294901760
    %9586 = vmatpush1.msra.mxu0 %v9585
    %v9587 = vand.u32 %v8905, 4294901760
    %v9588 = vsub.f32 %v8905, %v9587
    %v9589 = vand.u32 %v9588, 4294901760
    %v9590 = vsub.f32 %v9588, %v9589
    %v9591 = vand.u32 %v9590, 4294901760
    %9592 = vmatprep.subr.mxu0 %v9591
    %v9593 = vand.u32 %v8904, 4294901760
    %v9594 = vsub.f32 %v8904, %v9593
    %v9595 = vand.u32 %v9594, 4294901760
    %v9596 = vsub.f32 %v9594, %v9595
    %v9597 = vand.u32 %v9596, 4294901760
    %9598 = vmatpush1.msra.mxu0 %v9597
    %9599 = vmatprep.subr.mxu0 0.0
    %9600 = vmatpush1.msra.mxu0 0.0
    %9601 = vmatprep.subr.mxu0 0.0
    %9602 = vmatpush1.msra.mxu0 0.0
    %9603 = vmatprep.subr.mxu0 0.0
    %9604 = vmatpush1.msra.mxu0 0.0
    %9605 = vmatprep.subr.mxu0 0.0
    %9606 = vmatpush1.msra.mxu0 0.0
    %9607 = vmatprep.subr.mxu0 0.0
    %9608 = vmatpush1.msra.mxu0 0.0
    %9609 = vmatprep.subr.mxu0 0.0
    %9610 = vmatpush1.msra.mxu0 0.0
    %9611 = vmatprep.subr.mxu0 0.0
    %9612 = vmatpush1.msra.mxu0 0.0
    %9613 = vmatprep.subr.mxu0 0.0
    %9614 = vmatpush1.msra.mxu0 0.0
    %9615 = vmatprep.subr.mxu0 0.0
    %9616 = vmatpush1.msra.mxu0 0.0
    %9617 = vmatprep.subr.mxu0 0.0
    %9618 = vmatpush1.msra.mxu0 0.0
    %9619 = vmatprep.subr.mxu0 0.0
    %9620 = vmatpush1.msra.mxu0 0.0
    %9621 = vmatprep.subr.mxu0 0.0
    %9622 = vmatpush1.msra.mxu0 0.0
    %9623 = vmatprep.subr.mxu0 0.0
    %9624 = vmatpush1.msra.mxu0 0.0
    %9625 = vmatprep.subr.mxu0 0.0
    %9626 = vmatpush1.msra.mxu0 0.0
    %9627 = vmatprep.subr.mxu0 0.0
    %9628 = vmatpush1.msra.mxu0 0.0
    %9629 = vmatprep.subr.mxu0 0.0
    %9630 = vmatpush1.msra.mxu0 0.0
    %9631 = vmatprep.subr.mxu0 0.0
    %9632 = vmatpush1.msra.mxu0 0.0
    %9633 = vmatprep.subr.mxu0 0.0
    %9634 = vmatpush1.msra.mxu0 0.0
    %9635 = vmatprep.subr.mxu0 0.0
    %9636 = vmatpush1.msra.mxu0 0.0
    %9637 = vmatprep.subr.mxu0 0.0
    %9638 = vmatpush1.msra.mxu0 0.0
    %9639 = vmatprep.subr.mxu0 0.0
    %9640 = vmatpush1.msra.mxu0 0.0
    %9641 = vmatprep.subr.mxu0 0.0
    %9642 = vmatpush1.msra.mxu0 0.0
    %9643 = vmatprep.subr.mxu0 0.0
    %9644 = vmatpush1.msra.mxu0 0.0
    %9645 = vmatprep.subr.mxu0 0.0
    %9646 = vmatpush1.msra.mxu0 0.0
    %9647 = vmatprep.subr.mxu0 0.0
    %9648 = vmatpush1.msra.mxu0 0.0
    %9649 = vmatprep.subr.mxu0 0.0
    %9650 = vmatpush1.msra.mxu0 0.0
    %9651 = vmatprep.subr.mxu0 0.0
    %9652 = vmatpush1.msra.mxu0 0.0
    %9653 = vmatprep.subr.mxu0 0.0
    %9654 = vmatpush1.msra.mxu0 0.0
    %9655 = vmatprep.mubr.f32.mxu0 0.0
    %v9656 = vand.u32 %v8922, 4294901760
    %9657 = vmatmul.mubr.f32.gmra.mrb[0].mxu0 %v9656
    %v9658 = vpop.f32.mrb[0].mxu0
    %v9659 = vadd.f32 %v9547, %v9658
    %v9660 = vpop.f32.mrb[0].mxu0
    %v9661 = vadd.f32 %v9549, %v9660
    %9662 = vdwg.mxu0
    %v9663 = vand.u32 %v8881, 4294901760
    %v9664 = vsub.f32 %v8881, %v9663
    %9665 = vmatprep.subr.mxu0 %v9664
    %v9666 = vand.u32 %v8880, 4294901760
    %v9667 = vsub.f32 %v8880, %v9666
    %9668 = vmatpush1.msra.mxu0 %v9667
    %v9669 = vand.u32 %v8889, 4294901760
    %v9670 = vsub.f32 %v8889, %v9669
    %9671 = vmatprep.subr.mxu0 %v9670
    %v9672 = vand.u32 %v8888, 4294901760
    %v9673 = vsub.f32 %v8888, %v9672
    %9674 = vmatpush1.msra.mxu0 %v9673
    %v9675 = vand.u32 %v8897, 4294901760
    %v9676 = vsub.f32 %v8897, %v9675
    %9677 = vmatprep.subr.mxu0 %v9676
    %v9678 = vand.u32 %v8896, 4294901760
    %v9679 = vsub.f32 %v8896, %v9678
    %9680 = vmatpush1.msra.mxu0 %v9679
    %v9681 = vand.u32 %v8905, 4294901760
    %v9682 = vsub.f32 %v8905, %v9681
    %9683 = vmatprep.subr.mxu0 %v9682
    %v9684 = vand.u32 %v8904, 4294901760
    %v9685 = vsub.f32 %v8904, %v9684
    %9686 = vmatpush1.msra.mxu0 %v9685
    %9687 = vmatprep.subr.mxu0 0.0
    %9688 = vmatpush1.msra.mxu0 0.0
    %9689 = vmatprep.subr.mxu0 0.0
    %9690 = vmatpush1.msra.mxu0 0.0
    %9691 = vmatprep.subr.mxu0 0.0
    %9692 = vmatpush1.msra.mxu0 0.0
    %9693 = vmatprep.subr.mxu0 0.0
    %9694 = vmatpush1.msra.mxu0 0.0
    %9695 = vmatprep.subr.mxu0 0.0
    %9696 = vmatpush1.msra.mxu0 0.0
    %9697 = vmatprep.subr.mxu0 0.0
    %9698 = vmatpush1.msra.mxu0 0.0
    %9699 = vmatprep.subr.mxu0 0.0
    %9700 = vmatpush1.msra.mxu0 0.0
    %9701 = vmatprep.subr.mxu0 0.0
    %9702 = vmatpush1.msra.mxu0 0.0
    %9703 = vmatprep.subr.mxu0 0.0
    %9704 = vmatpush1.msra.mxu0 0.0
    %9705 = vmatprep.subr.mxu0 0.0
    %9706 = vmatpush1.msra.mxu0 0.0
    %9707 = vmatprep.subr.mxu0 0.0
    %9708 = vmatpush1.msra.mxu0 0.0
    %9709 = vmatprep.subr.mxu0 0.0
    %9710 = vmatpush1.msra.mxu0 0.0
    %9711 = vmatprep.subr.mxu0 0.0
    %9712 = vmatpush1.msra.mxu0 0.0
    %9713 = vmatprep.subr.mxu0 0.0
    %9714 = vmatpush1.msra.mxu0 0.0
    %9715 = vmatprep.subr.mxu0 0.0
    %9716 = vmatpush1.msra.mxu0 0.0
    %9717 = vmatprep.subr.mxu0 0.0
    %9718 = vmatpush1.msra.mxu0 0.0
    %9719 = vmatprep.subr.mxu0 0.0
    %9720 = vmatpush1.msra.mxu0 0.0
    %9721 = vmatprep.subr.mxu0 0.0
    %9722 = vmatpush1.msra.mxu0 0.0
    %9723 = vmatprep.subr.mxu0 0.0
    %9724 = vmatpush1.msra.mxu0 0.0
    %9725 = vmatprep.subr.mxu0 0.0
    %9726 = vmatpush1.msra.mxu0 0.0
    %9727 = vmatprep.subr.mxu0 0.0
    %9728 = vmatpush1.msra.mxu0 0.0
    %9729 = vmatprep.subr.mxu0 0.0
    %9730 = vmatpush1.msra.mxu0 0.0
    %9731 = vmatprep.subr.mxu0 0.0
    %9732 = vmatpush1.msra.mxu0 0.0
    %9733 = vmatprep.subr.mxu0 0.0
    %9734 = vmatpush1.msra.mxu0 0.0
    %9735 = vmatprep.subr.mxu0 0.0
    %9736 = vmatpush1.msra.mxu0 0.0
    %9737 = vmatprep.subr.mxu0 0.0
    %9738 = vmatpush1.msra.mxu0 0.0
    %9739 = vmatprep.subr.mxu0 0.0
    %9740 = vmatpush1.msra.mxu0 0.0
    %9741 = vmatprep.subr.mxu0 0.0
    %9742 = vmatpush1.msra.mxu0 0.0
    %9743 = vmatprep.mubr.f32.mxu0 0.0
    %v9744 = vand.u32 %v8922, 4294901760
    %v9745 = vsub.f32 %v8922, %v9744
    %9746 = vmatmul.mubr.f32.gmra.mrb[0].mxu0 %v9745
    %v9747 = vpop.f32.mrb[0].mxu0
    %v9748 = vadd.f32 %v9659, %v9747
    %v9749 = vpop.f32.mrb[0].mxu0
    %v9750 = vadd.f32 %v9661, %v9749
    %9751 = vdwg.mxu0
    %v9752 = vand.u32 %v8881, 4294901760
    %9753 = vmatprep.subr.mxu0 %v9752
    %v9754 = vand.u32 %v8880, 4294901760
    %9755 = vmatpush1.msra.mxu0 %v9754
    %v9756 = vand.u32 %v8889, 4294901760
    %9757 = vmatprep.subr.mxu0 %v9756
    %v9758 = vand.u32 %v8888, 4294901760
    %9759 = vmatpush1.msra.mxu0 %v9758
    %v9760 = vand.u32 %v8897, 4294901760
    %9761 = vmatprep.subr.mxu0 %v9760
    %v9762 = vand.u32 %v8896, 4294901760
    %9763 = vmatpush1.msra.mxu0 %v9762
    %v9764 = vand.u32 %v8905, 4294901760
    %9765 = vmatprep.subr.mxu0 %v9764
    %v9766 = vand.u32 %v8904, 4294901760
    %9767 = vmatpush1.msra.mxu0 %v9766
    %9768 = vmatprep.subr.mxu0 0.0
    %9769 = vmatpush1.msra.mxu0 0.0
    %9770 = vmatprep.subr.mxu0 0.0
    %9771 = vmatpush1.msra.mxu0 0.0
    %9772 = vmatprep.subr.mxu0 0.0
    %9773 = vmatpush1.msra.mxu0 0.0
    %9774 = vmatprep.subr.mxu0 0.0
    %9775 = vmatpush1.msra.mxu0 0.0
    %9776 = vmatprep.subr.mxu0 0.0
    %9777 = vmatpush1.msra.mxu0 0.0
    %9778 = vmatprep.subr.mxu0 0.0
    %9779 = vmatpush1.msra.mxu0 0.0
    %9780 = vmatprep.subr.mxu0 0.0
    %9781 = vmatpush1.msra.mxu0 0.0
    %9782 = vmatprep.subr.mxu0 0.0
    %9783 = vmatpush1.msra.mxu0 0.0
    %9784 = vmatprep.subr.mxu0 0.0
    %9785 = vmatpush1.msra.mxu0 0.0
    %9786 = vmatprep.subr.mxu0 0.0
    %9787 = vmatpush1.msra.mxu0 0.0
    %9788 = vmatprep.subr.mxu0 0.0
    %9789 = vmatpush1.msra.mxu0 0.0
    %9790 = vmatprep.subr.mxu0 0.0
    %9791 = vmatpush1.msra.mxu0 0.0
    %9792 = vmatprep.subr.mxu0 0.0
    %9793 = vmatpush1.msra.mxu0 0.0
    %9794 = vmatprep.subr.mxu0 0.0
    %9795 = vmatpush1.msra.mxu0 0.0
    %9796 = vmatprep.subr.mxu0 0.0
    %9797 = vmatpush1.msra.mxu0 0.0
    %9798 = vmatprep.subr.mxu0 0.0
    %9799 = vmatpush1.msra.mxu0 0.0
    %9800 = vmatprep.subr.mxu0 0.0
    %9801 = vmatpush1.msra.mxu0 0.0
    %9802 = vmatprep.subr.mxu0 0.0
    %9803 = vmatpush1.msra.mxu0 0.0
    %9804 = vmatprep.subr.mxu0 0.0
    %9805 = vmatpush1.msra.mxu0 0.0
    %9806 = vmatprep.subr.mxu0 0.0
    %9807 = vmatpush1.msra.mxu0 0.0
    %9808 = vmatprep.subr.mxu0 0.0
    %9809 = vmatpush1.msra.mxu0 0.0
    %9810 = vmatprep.subr.mxu0 0.0
    %9811 = vmatpush1.msra.mxu0 0.0
    %9812 = vmatprep.subr.mxu0 0.0
    %9813 = vmatpush1.msra.mxu0 0.0
    %9814 = vmatprep.subr.mxu0 0.0
    %9815 = vmatpush1.msra.mxu0 0.0
    %9816 = vmatprep.subr.mxu0 0.0
    %9817 = vmatpush1.msra.mxu0 0.0
    %9818 = vmatprep.subr.mxu0 0.0
    %9819 = vmatpush1.msra.mxu0 0.0
    %9820 = vmatprep.subr.mxu0 0.0
    %9821 = vmatpush1.msra.mxu0 0.0
    %9822 = vmatprep.subr.mxu0 0.0
    %9823 = vmatpush1.msra.mxu0 0.0
    %9824 = vmatprep.mubr.f32.mxu0 0.0
    %v9825 = vand.u32 %v8922, 4294901760
    %v9826 = vsub.f32 %v8922, %v9825
    %v9827 = vand.u32 %v9826, 4294901760
    %9828 = vmatmul.mubr.f32.gmra.mrb[0].mxu0 %v9827
    %v9829 = vpop.f32.mrb[0].mxu0
    %v9830 = vadd.f32 %v9748, %v9829
    %v9831 = vpop.f32.mrb[0].mxu0
    %v9832 = vadd.f32 %v9750, %v9831
    %9833 = vdwg.mxu0
    %v9834 = vand.u32 %v8881, 4294901760
    %v9835 = vsub.f32 %v8881, %v9834
    %v9836 = vand.u32 %v9835, 4294901760
    %9837 = vmatprep.subr.mxu0 %v9836
    %v9838 = vand.u32 %v8880, 4294901760
    %v9839 = vsub.f32 %v8880, %v9838
    %v9840 = vand.u32 %v9839, 4294901760
    %9841 = vmatpush1.msra.mxu0 %v9840
    %v9842 = vand.u32 %v8889, 4294901760
    %v9843 = vsub.f32 %v8889, %v9842
    %v9844 = vand.u32 %v9843, 4294901760
    %9845 = vmatprep.subr.mxu0 %v9844
    %v9846 = vand.u32 %v8888, 4294901760
    %v9847 = vsub.f32 %v8888, %v9846
    %v9848 = vand.u32 %v9847, 4294901760
    %9849 = vmatpush1.msra.mxu0 %v9848
    %v9850 = vand.u32 %v8897, 4294901760
    %v9851 = vsub.f32 %v8897, %v9850
    %v9852 = vand.u32 %v9851, 4294901760
    %9853 = vmatprep.subr.mxu0 %v9852
    %v9854 = vand.u32 %v8896, 4294901760
    %v9855 = vsub.f32 %v8896, %v9854
    %v9856 = vand.u32 %v9855, 4294901760
    %9857 = vmatpush1.msra.mxu0 %v9856
    %v9858 = vand.u32 %v8905, 4294901760
    %v9859 = vsub.f32 %v8905, %v9858
    %v9860 = vand.u32 %v9859, 4294901760
    %9861 = vmatprep.subr.mxu0 %v9860
    %v9862 = vand.u32 %v8904, 4294901760
    %v9863 = vsub.f32 %v8904, %v9862
    %v9864 = vand.u32 %v9863, 4294901760
    %9865 = vmatpush1.msra.mxu0 %v9864
    %9866 = vmatprep.subr.mxu0 0.0
    %9867 = vmatpush1.msra.mxu0 0.0
    %9868 = vmatprep.subr.mxu0 0.0
    %9869 = vmatpush1.msra.mxu0 0.0
    %9870 = vmatprep.subr.mxu0 0.0
    %9871 = vmatpush1.msra.mxu0 0.0
    %9872 = vmatprep.subr.mxu0 0.0
    %9873 = vmatpush1.msra.mxu0 0.0
    %9874 = vmatprep.subr.mxu0 0.0
    %9875 = vmatpush1.msra.mxu0 0.0
    %9876 = vmatprep.subr.mxu0 0.0
    %9877 = vmatpush1.msra.mxu0 0.0
    %9878 = vmatprep.subr.mxu0 0.0
    %9879 = vmatpush1.msra.mxu0 0.0
    %9880 = vmatprep.subr.mxu0 0.0
    %9881 = vmatpush1.msra.mxu0 0.0
    %9882 = vmatprep.subr.mxu0 0.0
    %9883 = vmatpush1.msra.mxu0 0.0
    %9884 = vmatprep.subr.mxu0 0.0
    %9885 = vmatpush1.msra.mxu0 0.0
    %9886 = vmatprep.subr.mxu0 0.0
    %9887 = vmatpush1.msra.mxu0 0.0
    %9888 = vmatprep.subr.mxu0 0.0
    %9889 = vmatpush1.msra.mxu0 0.0
    %9890 = vmatprep.subr.mxu0 0.0
    %9891 = vmatpush1.msra.mxu0 0.0
    %9892 = vmatprep.subr.mxu0 0.0
    %9893 = vmatpush1.msra.mxu0 0.0
    %9894 = vmatprep.subr.mxu0 0.0
    %9895 = vmatpush1.msra.mxu0 0.0
    %9896 = vmatprep.subr.mxu0 0.0
    %9897 = vmatpush1.msra.mxu0 0.0
    %9898 = vmatprep.subr.mxu0 0.0
    %9899 = vmatpush1.msra.mxu0 0.0
    %9900 = vmatprep.subr.mxu0 0.0
    %9901 = vmatpush1.msra.mxu0 0.0
    %9902 = vmatprep.subr.mxu0 0.0
    %9903 = vmatpush1.msra.mxu0 0.0
    %9904 = vmatprep.subr.mxu0 0.0
    %9905 = vmatpush1.msra.mxu0 0.0
    %9906 = vmatprep.subr.mxu0 0.0
    %9907 = vmatpush1.msra.mxu0 0.0
    %9908 = vmatprep.subr.mxu0 0.0
    %9909 = vmatpush1.msra.mxu0 0.0
    %9910 = vmatprep.subr.mxu0 0.0
    %9911 = vmatpush1.msra.mxu0 0.0
    %9912 = vmatprep.subr.mxu0 0.0
    %9913 = vmatpush1.msra.mxu0 0.0
    %9914 = vmatprep.subr.mxu0 0.0
    %9915 = vmatpush1.msra.mxu0 0.0
    %9916 = vmatprep.subr.mxu0 0.0
    %9917 = vmatpush1.msra.mxu0 0.0
    %9918 = vmatprep.subr.mxu0 0.0
    %9919 = vmatpush1.msra.mxu0 0.0
    %9920 = vmatprep.subr.mxu0 0.0
    %9921 = vmatpush1.msra.mxu0 0.0
    %9922 = vmatprep.mubr.f32.mxu0 0.0
    %v9923 = vand.u32 %v8922, 4294901760
    %9924 = vmatmul.mubr.f32.gmra.mrb[0].mxu0 %v9923
    %v9925 = vpop.f32.mrb[0].mxu0
    %v9926 = vadd.f32 %v9830, %v9925
    %v9927 = vpop.f32.mrb[0].mxu0
    %v9928 = vadd.f32 %v9832, %v9927
    %9929 = vdwg.mxu0
    %v9930 = vand.u32 %v8881, 4294901760
    %9931 = vmatprep.subr.mxu0 %v9930
    %v9932 = vand.u32 %v8880, 4294901760
    %9933 = vmatpush1.msra.mxu0 %v9932
    %v9934 = vand.u32 %v8889, 4294901760
    %9935 = vmatprep.subr.mxu0 %v9934
    %v9936 = vand.u32 %v8888, 4294901760
    %9937 = vmatpush1.msra.mxu0 %v9936
    %v9938 = vand.u32 %v8897, 4294901760
    %9939 = vmatprep.subr.mxu0 %v9938
    %v9940 = vand.u32 %v8896, 4294901760
    %9941 = vmatpush1.msra.mxu0 %v9940
    %v9942 = vand.u32 %v8905, 4294901760
    %9943 = vmatprep.subr.mxu0 %v9942
    %v9944 = vand.u32 %v8904, 4294901760
    %9945 = vmatpush1.msra.mxu0 %v9944
    %9946 = vmatprep.subr.mxu0 0.0
    %9947 = vmatpush1.msra.mxu0 0.0
    %9948 = vmatprep.subr.mxu0 0.0
    %9949 = vmatpush1.msra.mxu0 0.0
    %9950 = vmatprep.subr.mxu0 0.0
    %9951 = vmatpush1.msra.mxu0 0.0
    %9952 = vmatprep.subr.mxu0 0.0
    %9953 = vmatpush1.msra.mxu0 0.0
    %9954 = vmatprep.subr.mxu0 0.0
    %9955 = vmatpush1.msra.mxu0 0.0
    %9956 = vmatprep.subr.mxu0 0.0
    %9957 = vmatpush1.msra.mxu0 0.0
    %9958 = vmatprep.subr.mxu0 0.0
    %9959 = vmatpush1.msra.mxu0 0.0
    %9960 = vmatprep.subr.mxu0 0.0
    %9961 = vmatpush1.msra.mxu0 0.0
    %9962 = vmatprep.subr.mxu0 0.0
    %9963 = vmatpush1.msra.mxu0 0.0
    %9964 = vmatprep.subr.mxu0 0.0
    %9965 = vmatpush1.msra.mxu0 0.0
    %9966 = vmatprep.subr.mxu0 0.0
    %9967 = vmatpush1.msra.mxu0 0.0
    %9968 = vmatprep.subr.mxu0 0.0
    %9969 = vmatpush1.msra.mxu0 0.0
    %9970 = vmatprep.subr.mxu0 0.0
    %9971 = vmatpush1.msra.mxu0 0.0
    %9972 = vmatprep.subr.mxu0 0.0
    %9973 = vmatpush1.msra.mxu0 0.0
    %9974 = vmatprep.subr.mxu0 0.0
    %9975 = vmatpush1.msra.mxu0 0.0
    %9976 = vmatprep.subr.mxu0 0.0
    %9977 = vmatpush1.msra.mxu0 0.0
    %9978 = vmatprep.subr.mxu0 0.0
    %9979 = vmatpush1.msra.mxu0 0.0
    %9980 = vmatprep.subr.mxu0 0.0
    %9981 = vmatpush1.msra.mxu0 0.0
    %9982 = vmatprep.subr.mxu0 0.0
    %9983 = vmatpush1.msra.mxu0 0.0
    %9984 = vmatprep.subr.mxu0 0.0
    %9985 = vmatpush1.msra.mxu0 0.0
    %9986 = vmatprep.subr.mxu0 0.0
    %9987 = vmatpush1.msra.mxu0 0.0
    %9988 = vmatprep.subr.mxu0 0.0
    %9989 = vmatpush1.msra.mxu0 0.0
    %9990 = vmatprep.subr.mxu0 0.0
    %9991 = vmatpush1.msra.mxu0 0.0
    %9992 = vmatprep.subr.mxu0 0.0
    %9993 = vmatpush1.msra.mxu0 0.0
    %9994 = vmatprep.subr.mxu0 0.0
    %9995 = vmatpush1.msra.mxu0 0.0
    %9996 = vmatprep.subr.mxu0 0.0
    %9997 = vmatpush1.msra.mxu0 0.0
    %9998 = vmatprep.subr.mxu0 0.0
    %9999 = vmatpush1.msra.mxu0 0.0
    %10000 = vmatprep.subr.mxu0 0.0
    %10001 = vmatpush1.msra.mxu0 0.0
    %10002 = vmatprep.mubr.f32.mxu0 0.0
    %v10003 = vand.u32 %v8922, 4294901760
    %10004 = vmatmul.mubr.f32.gmra.mrb[0].mxu0 %v10003
    %v10005 = vpop.f32.mrb[0].mxu0
    %v10006 = vadd.f32 %v9926, %v10005
    %v10007 = vpop.f32.mrb[0].mxu0
    %v10008 = vadd.f32 %v9928, %v10007
    %10009 = vdwg.mxu0
    %v10010 = vand.u32 %v8883, 4294901760
    %10011 = vmatprep.subr.mxu0 %v10010
    %v10012 = vand.u32 %v8882, 4294901760
    %10013 = vmatpush1.msra.mxu0 %v10012
    %v10014 = vand.u32 %v8891, 4294901760
    %10015 = vmatprep.subr.mxu0 %v10014
    %v10016 = vand.u32 %v8890, 4294901760
    %10017 = vmatpush1.msra.mxu0 %v10016
    %v10018 = vand.u32 %v8899, 4294901760
    %10019 = vmatprep.subr.mxu0 %v10018
    %v10020 = vand.u32 %v8898, 4294901760
    %10021 = vmatpush1.msra.mxu0 %v10020
    %v10022 = vand.u32 %v8907, 4294901760
    %10023 = vmatprep.subr.mxu0 %v10022
    %v10024 = vand.u32 %v8906, 4294901760
    %10025 = vmatpush1.msra.mxu0 %v10024
    %10026 = vmatprep.subr.mxu0 0.0
    %10027 = vmatpush1.msra.mxu0 0.0
    %10028 = vmatprep.subr.mxu0 0.0
    %10029 = vmatpush1.msra.mxu0 0.0
    %10030 = vmatprep.subr.mxu0 0.0
    %10031 = vmatpush1.msra.mxu0 0.0
    %10032 = vmatprep.subr.mxu0 0.0
    %10033 = vmatpush1.msra.mxu0 0.0
    %10034 = vmatprep.subr.mxu0 0.0
    %10035 = vmatpush1.msra.mxu0 0.0
    %10036 = vmatprep.subr.mxu0 0.0
    %10037 = vmatpush1.msra.mxu0 0.0
    %10038 = vmatprep.subr.mxu0 0.0
    %10039 = vmatpush1.msra.mxu0 0.0
    %10040 = vmatprep.subr.mxu0 0.0
    %10041 = vmatpush1.msra.mxu0 0.0
    %10042 = vmatprep.subr.mxu0 0.0
    %10043 = vmatpush1.msra.mxu0 0.0
    %10044 = vmatprep.subr.mxu0 0.0
    %10045 = vmatpush1.msra.mxu0 0.0
    %10046 = vmatprep.subr.mxu0 0.0
    %10047 = vmatpush1.msra.mxu0 0.0
    %10048 = vmatprep.subr.mxu0 0.0
    %10049 = vmatpush1.msra.mxu0 0.0
    %10050 = vmatprep.subr.mxu0 0.0
    %10051 = vmatpush1.msra.mxu0 0.0
    %10052 = vmatprep.subr.mxu0 0.0
    %10053 = vmatpush1.msra.mxu0 0.0
    %10054 = vmatprep.subr.mxu0 0.0
    %10055 = vmatpush1.msra.mxu0 0.0
    %10056 = vmatprep.subr.mxu0 0.0
    %10057 = vmatpush1.msra.mxu0 0.0
    %10058 = vmatprep.subr.mxu0 0.0
    %10059 = vmatpush1.msra.mxu0 0.0
    %10060 = vmatprep.subr.mxu0 0.0
    %10061 = vmatpush1.msra.mxu0 0.0
    %10062 = vmatprep.subr.mxu0 0.0
    %10063 = vmatpush1.msra.mxu0 0.0
    %10064 = vmatprep.subr.mxu0 0.0
    %10065 = vmatpush1.msra.mxu0 0.0
    %10066 = vmatprep.subr.mxu0 0.0
    %10067 = vmatpush1.msra.mxu0 0.0
    %10068 = vmatprep.subr.mxu0 0.0
    %10069 = vmatpush1.msra.mxu0 0.0
    %10070 = vmatprep.subr.mxu0 0.0
    %10071 = vmatpush1.msra.mxu0 0.0
    %10072 = vmatprep.subr.mxu0 0.0
    %10073 = vmatpush1.msra.mxu0 0.0
    %10074 = vmatprep.subr.mxu0 0.0
    %10075 = vmatpush1.msra.mxu0 0.0
    %10076 = vmatprep.subr.mxu0 0.0
    %10077 = vmatpush1.msra.mxu0 0.0
    %10078 = vmatprep.subr.mxu0 0.0
    %10079 = vmatpush1.msra.mxu0 0.0
    %10080 = vmatprep.subr.mxu0 0.0
    %10081 = vmatpush1.msra.mxu0 0.0
    %10082 = vmatprep.mubr.f32.mxu0 0.0
    %v10083 = vand.u32 %v8922, 4294901760
    %v10084 = vsub.f32 %v8922, %v10083
    %v10085 = vand.u32 %v10084, 4294901760
    %v10086 = vsub.f32 %v10084, %v10085
    %v10087 = vand.u32 %v10086, 4294901760
    %10088 = vmatmul.mubr.f32.gmra.mrb[0].mxu0 %v10087
    %v10089 = vpop.f32.mrb[0].mxu0
    %v10090 = vadd.f32 %v8920, %v10089
    %v10091 = vpop.f32.mrb[0].mxu0
    %v10092 = vadd.f32 %v8920, %v10091
    %10093 = vdwg.mxu0
    %v10094 = vand.u32 %v8883, 4294901760
    %v10095 = vsub.f32 %v8883, %v10094
    %v10096 = vand.u32 %v10095, 4294901760
    %v10097 = vsub.f32 %v10095, %v10096
    %v10098 = vand.u32 %v10097, 4294901760
    %10099 = vmatprep.subr.mxu0 %v10098
    %v10100 = vand.u32 %v8882, 4294901760
    %v10101 = vsub.f32 %v8882, %v10100
    %v10102 = vand.u32 %v10101, 4294901760
    %v10103 = vsub.f32 %v10101, %v10102
    %v10104 = vand.u32 %v10103, 4294901760
    %10105 = vmatpush1.msra.mxu0 %v10104
    %v10106 = vand.u32 %v8891, 4294901760
    %v10107 = vsub.f32 %v8891, %v10106
    %v10108 = vand.u32 %v10107, 4294901760
    %v10109 = vsub.f32 %v10107, %v10108
    %v10110 = vand.u32 %v10109, 4294901760
    %10111 = vmatprep.subr.mxu0 %v10110
    %v10112 = vand.u32 %v8890, 4294901760
    %v10113 = vsub.f32 %v8890, %v10112
    %v10114 = vand.u32 %v10113, 4294901760
    %v10115 = vsub.f32 %v10113, %v10114
    %v10116 = vand.u32 %v10115, 4294901760
    %10117 = vmatpush1.msra.mxu0 %v10116
    %v10118 = vand.u32 %v8899, 4294901760
    %v10119 = vsub.f32 %v8899, %v10118
    %v10120 = vand.u32 %v10119, 4294901760
    %v10121 = vsub.f32 %v10119, %v10120
    %v10122 = vand.u32 %v10121, 4294901760
    %10123 = vmatprep.subr.mxu0 %v10122
    %v10124 = vand.u32 %v8898, 4294901760
    %v10125 = vsub.f32 %v8898, %v10124
    %v10126 = vand.u32 %v10125, 4294901760
    %v10127 = vsub.f32 %v10125, %v10126
    %v10128 = vand.u32 %v10127, 4294901760
    %10129 = vmatpush1.msra.mxu0 %v10128
    %v10130 = vand.u32 %v8907, 4294901760
    %v10131 = vsub.f32 %v8907, %v10130
    %v10132 = vand.u32 %v10131, 4294901760
    %v10133 = vsub.f32 %v10131, %v10132
    %v10134 = vand.u32 %v10133, 4294901760
    %10135 = vmatprep.subr.mxu0 %v10134
    %v10136 = vand.u32 %v8906, 4294901760
    %v10137 = vsub.f32 %v8906, %v10136
    %v10138 = vand.u32 %v10137, 4294901760
    %v10139 = vsub.f32 %v10137, %v10138
    %v10140 = vand.u32 %v10139, 4294901760
    %10141 = vmatpush1.msra.mxu0 %v10140
    %10142 = vmatprep.subr.mxu0 0.0
    %10143 = vmatpush1.msra.mxu0 0.0
    %10144 = vmatprep.subr.mxu0 0.0
    %10145 = vmatpush1.msra.mxu0 0.0
    %10146 = vmatprep.subr.mxu0 0.0
    %10147 = vmatpush1.msra.mxu0 0.0
    %10148 = vmatprep.subr.mxu0 0.0
    %10149 = vmatpush1.msra.mxu0 0.0
    %10150 = vmatprep.subr.mxu0 0.0
    %10151 = vmatpush1.msra.mxu0 0.0
    %10152 = vmatprep.subr.mxu0 0.0
    %10153 = vmatpush1.msra.mxu0 0.0
    %10154 = vmatprep.subr.mxu0 0.0
    %10155 = vmatpush1.msra.mxu0 0.0
    %10156 = vmatprep.subr.mxu0 0.0
    %10157 = vmatpush1.msra.mxu0 0.0
    %10158 = vmatprep.subr.mxu0 0.0
    %10159 = vmatpush1.msra.mxu0 0.0
    %10160 = vmatprep.subr.mxu0 0.0
    %10161 = vmatpush1.msra.mxu0 0.0
    %10162 = vmatprep.subr.mxu0 0.0
    %10163 = vmatpush1.msra.mxu0 0.0
    %10164 = vmatprep.subr.mxu0 0.0
    %10165 = vmatpush1.msra.mxu0 0.0
    %10166 = vmatprep.subr.mxu0 0.0
    %10167 = vmatpush1.msra.mxu0 0.0
    %10168 = vmatprep.subr.mxu0 0.0
    %10169 = vmatpush1.msra.mxu0 0.0
    %10170 = vmatprep.subr.mxu0 0.0
    %10171 = vmatpush1.msra.mxu0 0.0
    %10172 = vmatprep.subr.mxu0 0.0
    %10173 = vmatpush1.msra.mxu0 0.0
    %10174 = vmatprep.subr.mxu0 0.0
    %10175 = vmatpush1.msra.mxu0 0.0
    %10176 = vmatprep.subr.mxu0 0.0
    %10177 = vmatpush1.msra.mxu0 0.0
    %10178 = vmatprep.subr.mxu0 0.0
    %10179 = vmatpush1.msra.mxu0 0.0
    %10180 = vmatprep.subr.mxu0 0.0
    %10181 = vmatpush1.msra.mxu0 0.0
    %10182 = vmatprep.subr.mxu0 0.0
    %10183 = vmatpush1.msra.mxu0 0.0
    %10184 = vmatprep.subr.mxu0 0.0
    %10185 = vmatpush1.msra.mxu0 0.0
    %10186 = vmatprep.subr.mxu0 0.0
    %10187 = vmatpush1.msra.mxu0 0.0
    %10188 = vmatprep.subr.mxu0 0.0
    %10189 = vmatpush1.msra.mxu0 0.0
    %10190 = vmatprep.subr.mxu0 0.0
    %10191 = vmatpush1.msra.mxu0 0.0
    %10192 = vmatprep.subr.mxu0 0.0
    %10193 = vmatpush1.msra.mxu0 0.0
    %10194 = vmatprep.subr.mxu0 0.0
    %10195 = vmatpush1.msra.mxu0 0.0
    %10196 = vmatprep.subr.mxu0 0.0
    %10197 = vmatpush1.msra.mxu0 0.0
    %10198 = vmatprep.mubr.f32.mxu0 0.0
    %v10199 = vand.u32 %v8922, 4294901760
    %10200 = vmatmul.mubr.f32.gmra.mrb[0].mxu0 %v10199
    %v10201 = vpop.f32.mrb[0].mxu0
    %v10202 = vadd.f32 %v10090, %v10201
    %v10203 = vpop.f32.mrb[0].mxu0
    %v10204 = vadd.f32 %v10092, %v10203
    %10205 = vdwg.mxu0
    %v10206 = vand.u32 %v8883, 4294901760
    %v10207 = vsub.f32 %v8883, %v10206
    %10208 = vmatprep.subr.mxu0 %v10207
    %v10209 = vand.u32 %v8882, 4294901760
    %v10210 = vsub.f32 %v8882, %v10209
    %10211 = vmatpush1.msra.mxu0 %v10210
    %v10212 = vand.u32 %v8891, 4294901760
    %v10213 = vsub.f32 %v8891, %v10212
    %10214 = vmatprep.subr.mxu0 %v10213
    %v10215 = vand.u32 %v8890, 4294901760
    %v10216 = vsub.f32 %v8890, %v10215
    %10217 = vmatpush1.msra.mxu0 %v10216
    %v10218 = vand.u32 %v8899, 4294901760
    %v10219 = vsub.f32 %v8899, %v10218
    %10220 = vmatprep.subr.mxu0 %v10219
    %v10221 = vand.u32 %v8898, 4294901760
    %v10222 = vsub.f32 %v8898, %v10221
    %10223 = vmatpush1.msra.mxu0 %v10222
    %v10224 = vand.u32 %v8907, 4294901760
    %v10225 = vsub.f32 %v8907, %v10224
    %10226 = vmatprep.subr.mxu0 %v10225
    %v10227 = vand.u32 %v8906, 4294901760
    %v10228 = vsub.f32 %v8906, %v10227
    %10229 = vmatpush1.msra.mxu0 %v10228
    %10230 = vmatprep.subr.mxu0 0.0
    %10231 = vmatpush1.msra.mxu0 0.0
    %10232 = vmatprep.subr.mxu0 0.0
    %10233 = vmatpush1.msra.mxu0 0.0
    %10234 = vmatprep.subr.mxu0 0.0
    %10235 = vmatpush1.msra.mxu0 0.0
    %10236 = vmatprep.subr.mxu0 0.0
    %10237 = vmatpush1.msra.mxu0 0.0
    %10238 = vmatprep.subr.mxu0 0.0
    %10239 = vmatpush1.msra.mxu0 0.0
    %10240 = vmatprep.subr.mxu0 0.0
    %10241 = vmatpush1.msra.mxu0 0.0
    %10242 = vmatprep.subr.mxu0 0.0
    %10243 = vmatpush1.msra.mxu0 0.0
    %10244 = vmatprep.subr.mxu0 0.0
    %10245 = vmatpush1.msra.mxu0 0.0
    %10246 = vmatprep.subr.mxu0 0.0
    %10247 = vmatpush1.msra.mxu0 0.0
    %10248 = vmatprep.subr.mxu0 0.0
    %10249 = vmatpush1.msra.mxu0 0.0
    %10250 = vmatprep.subr.mxu0 0.0
    %10251 = vmatpush1.msra.mxu0 0.0
    %10252 = vmatprep.subr.mxu0 0.0
    %10253 = vmatpush1.msra.mxu0 0.0
    %10254 = vmatprep.subr.mxu0 0.0
    %10255 = vmatpush1.msra.mxu0 0.0
    %10256 = vmatprep.subr.mxu0 0.0
    %10257 = vmatpush1.msra.mxu0 0.0
    %10258 = vmatprep.subr.mxu0 0.0
    %10259 = vmatpush1.msra.mxu0 0.0
    %10260 = vmatprep.subr.mxu0 0.0
    %10261 = vmatpush1.msra.mxu0 0.0
    %10262 = vmatprep.subr.mxu0 0.0
    %10263 = vmatpush1.msra.mxu0 0.0
    %10264 = vmatprep.subr.mxu0 0.0
    %10265 = vmatpush1.msra.mxu0 0.0
    %10266 = vmatprep.subr.mxu0 0.0
    %10267 = vmatpush1.msra.mxu0 0.0
    %10268 = vmatprep.subr.mxu0 0.0
    %10269 = vmatpush1.msra.mxu0 0.0
    %10270 = vmatprep.subr.mxu0 0.0
    %10271 = vmatpush1.msra.mxu0 0.0
    %10272 = vmatprep.subr.mxu0 0.0
    %10273 = vmatpush1.msra.mxu0 0.0
    %10274 = vmatprep.subr.mxu0 0.0
    %10275 = vmatpush1.msra.mxu0 0.0
    %10276 = vmatprep.subr.mxu0 0.0
    %10277 = vmatpush1.msra.mxu0 0.0
    %10278 = vmatprep.subr.mxu0 0.0
    %10279 = vmatpush1.msra.mxu0 0.0
    %10280 = vmatprep.subr.mxu0 0.0
    %10281 = vmatpush1.msra.mxu0 0.0
    %10282 = vmatprep.subr.mxu0 0.0
    %10283 = vmatpush1.msra.mxu0 0.0
    %10284 = vmatprep.subr.mxu0 0.0
    %10285 = vmatpush1.msra.mxu0 0.0
    %10286 = vmatprep.mubr.f32.mxu0 0.0
    %v10287 = vand.u32 %v8922, 4294901760
    %v10288 = vsub.f32 %v8922, %v10287
    %10289 = vmatmul.mubr.f32.gmra.mrb[0].mxu0 %v10288
    %v10290 = vpop.f32.mrb[0].mxu0
    %v10291 = vadd.f32 %v10202, %v10290
    %v10292 = vpop.f32.mrb[0].mxu0
    %v10293 = vadd.f32 %v10204, %v10292
    %10294 = vdwg.mxu0
    %v10295 = vand.u32 %v8883, 4294901760
    %10296 = vmatprep.subr.mxu0 %v10295
    %v10297 = vand.u32 %v8882, 4294901760
    %10298 = vmatpush1.msra.mxu0 %v10297
    %v10299 = vand.u32 %v8891, 4294901760
    %10300 = vmatprep.subr.mxu0 %v10299
    %v10301 = vand.u32 %v8890, 4294901760
    %10302 = vmatpush1.msra.mxu0 %v10301
    %v10303 = vand.u32 %v8899, 4294901760
    %10304 = vmatprep.subr.mxu0 %v10303
    %v10305 = vand.u32 %v8898, 4294901760
    %10306 = vmatpush1.msra.mxu0 %v10305
    %v10307 = vand.u32 %v8907, 4294901760
    %10308 = vmatprep.subr.mxu0 %v10307
    %v10309 = vand.u32 %v8906, 4294901760
    %10310 = vmatpush1.msra.mxu0 %v10309
    %10311 = vmatprep.subr.mxu0 0.0
    %10312 = vmatpush1.msra.mxu0 0.0
    %10313 = vmatprep.subr.mxu0 0.0
    %10314 = vmatpush1.msra.mxu0 0.0
    %10315 = vmatprep.subr.mxu0 0.0
    %10316 = vmatpush1.msra.mxu0 0.0
    %10317 = vmatprep.subr.mxu0 0.0
    %10318 = vmatpush1.msra.mxu0 0.0
    %10319 = vmatprep.subr.mxu0 0.0
    %10320 = vmatpush1.msra.mxu0 0.0
    %10321 = vmatprep.subr.mxu0 0.0
    %10322 = vmatpush1.msra.mxu0 0.0
    %10323 = vmatprep.subr.mxu0 0.0
    %10324 = vmatpush1.msra.mxu0 0.0
    %10325 = vmatprep.subr.mxu0 0.0
    %10326 = vmatpush1.msra.mxu0 0.0
    %10327 = vmatprep.subr.mxu0 0.0
    %10328 = vmatpush1.msra.mxu0 0.0
    %10329 = vmatprep.subr.mxu0 0.0
    %10330 = vmatpush1.msra.mxu0 0.0
    %10331 = vmatprep.subr.mxu0 0.0
    %10332 = vmatpush1.msra.mxu0 0.0
    %10333 = vmatprep.subr.mxu0 0.0
    %10334 = vmatpush1.msra.mxu0 0.0
    %10335 = vmatprep.subr.mxu0 0.0
    %10336 = vmatpush1.msra.mxu0 0.0
    %10337 = vmatprep.subr.mxu0 0.0
    %10338 = vmatpush1.msra.mxu0 0.0
    %10339 = vmatprep.subr.mxu0 0.0
    %10340 = vmatpush1.msra.mxu0 0.0
    %10341 = vmatprep.subr.mxu0 0.0
    %10342 = vmatpush1.msra.mxu0 0.0
    %10343 = vmatprep.subr.mxu0 0.0
    %10344 = vmatpush1.msra.mxu0 0.0
    %10345 = vmatprep.subr.mxu0 0.0
    %10346 = vmatpush1.msra.mxu0 0.0
    %10347 = vmatprep.subr.mxu0 0.0
    %10348 = vmatpush1.msra.mxu0 0.0
    %10349 = vmatprep.subr.mxu0 0.0
    %10350 = vmatpush1.msra.mxu0 0.0
    %10351 = vmatprep.subr.mxu0 0.0
    %10352 = vmatpush1.msra.mxu0 0.0
    %10353 = vmatprep.subr.mxu0 0.0
    %10354 = vmatpush1.msra.mxu0 0.0
    %10355 = vmatprep.subr.mxu0 0.0
    %10356 = vmatpush1.msra.mxu0 0.0
    %10357 = vmatprep.subr.mxu0 0.0
    %10358 = vmatpush1.msra.mxu0 0.0
    %10359 = vmatprep.subr.mxu0 0.0
    %10360 = vmatpush1.msra.mxu0 0.0
    %10361 = vmatprep.subr.mxu0 0.0
    %10362 = vmatpush1.msra.mxu0 0.0
    %10363 = vmatprep.subr.mxu0 0.0
    %10364 = vmatpush1.msra.mxu0 0.0
    %10365 = vmatprep.subr.mxu0 0.0
    %10366 = vmatpush1.msra.mxu0 0.0
    %10367 = vmatprep.mubr.f32.mxu0 0.0
    %v10368 = vand.u32 %v8922, 4294901760
    %v10369 = vsub.f32 %v8922, %v10368
    %v10370 = vand.u32 %v10369, 4294901760
    %10371 = vmatmul.mubr.f32.gmra.mrb[0].mxu0 %v10370
    %v10372 = vpop.f32.mrb[0].mxu0
    %v10373 = vadd.f32 %v10291, %v10372
    %v10374 = vpop.f32.mrb[0].mxu0
    %v10375 = vadd.f32 %v10293, %v10374
    %10376 = vdwg.mxu0
    %v10377 = vand.u32 %v8883, 4294901760
    %v10378 = vsub.f32 %v8883, %v10377
    %v10379 = vand.u32 %v10378, 4294901760
    %10380 = vmatprep.subr.mxu0 %v10379
    %v10381 = vand.u32 %v8882, 4294901760
    %v10382 = vsub.f32 %v8882, %v10381
    %v10383 = vand.u32 %v10382, 4294901760
    %10384 = vmatpush1.msra.mxu0 %v10383
    %v10385 = vand.u32 %v8891, 4294901760
    %v10386 = vsub.f32 %v8891, %v10385
    %v10387 = vand.u32 %v10386, 4294901760
    %10388 = vmatprep.subr.mxu0 %v10387
    %v10389 = vand.u32 %v8890, 4294901760
    %v10390 = vsub.f32 %v8890, %v10389
    %v10391 = vand.u32 %v10390, 4294901760
    %10392 = vmatpush1.msra.mxu0 %v10391
    %v10393 = vand.u32 %v8899, 4294901760
    %v10394 = vsub.f32 %v8899, %v10393
    %v10395 = vand.u32 %v10394, 4294901760
    %10396 = vmatprep.subr.mxu0 %v10395
    %v10397 = vand.u32 %v8898, 4294901760
    %v10398 = vsub.f32 %v8898, %v10397
    %v10399 = vand.u32 %v10398, 4294901760
    %10400 = vmatpush1.msra.mxu0 %v10399
    %v10401 = vand.u32 %v8907, 4294901760
    %v10402 = vsub.f32 %v8907, %v10401
    %v10403 = vand.u32 %v10402, 4294901760
    %10404 = vmatprep.subr.mxu0 %v10403
    %v10405 = vand.u32 %v8906, 4294901760
    %v10406 = vsub.f32 %v8906, %v10405
    %v10407 = vand.u32 %v10406, 4294901760
    %10408 = vmatpush1.msra.mxu0 %v10407
    %10409 = vmatprep.subr.mxu0 0.0
    %10410 = vmatpush1.msra.mxu0 0.0
    %10411 = vmatprep.subr.mxu0 0.0
    %10412 = vmatpush1.msra.mxu0 0.0
    %10413 = vmatprep.subr.mxu0 0.0
    %10414 = vmatpush1.msra.mxu0 0.0
    %10415 = vmatprep.subr.mxu0 0.0
    %10416 = vmatpush1.msra.mxu0 0.0
    %10417 = vmatprep.subr.mxu0 0.0
    %10418 = vmatpush1.msra.mxu0 0.0
    %10419 = vmatprep.subr.mxu0 0.0
    %10420 = vmatpush1.msra.mxu0 0.0
    %10421 = vmatprep.subr.mxu0 0.0
    %10422 = vmatpush1.msra.mxu0 0.0
    %10423 = vmatprep.subr.mxu0 0.0
    %10424 = vmatpush1.msra.mxu0 0.0
    %10425 = vmatprep.subr.mxu0 0.0
    %10426 = vmatpush1.msra.mxu0 0.0
    %10427 = vmatprep.subr.mxu0 0.0
    %10428 = vmatpush1.msra.mxu0 0.0
    %10429 = vmatprep.subr.mxu0 0.0
    %10430 = vmatpush1.msra.mxu0 0.0
    %10431 = vmatprep.subr.mxu0 0.0
    %10432 = vmatpush1.msra.mxu0 0.0
    %10433 = vmatprep.subr.mxu0 0.0
    %10434 = vmatpush1.msra.mxu0 0.0
    %10435 = vmatprep.subr.mxu0 0.0
    %10436 = vmatpush1.msra.mxu0 0.0
    %10437 = vmatprep.subr.mxu0 0.0
    %10438 = vmatpush1.msra.mxu0 0.0
    %10439 = vmatprep.subr.mxu0 0.0
    %10440 = vmatpush1.msra.mxu0 0.0
    %10441 = vmatprep.subr.mxu0 0.0
    %10442 = vmatpush1.msra.mxu0 0.0
    %10443 = vmatprep.subr.mxu0 0.0
    %10444 = vmatpush1.msra.mxu0 0.0
    %10445 = vmatprep.subr.mxu0 0.0
    %10446 = vmatpush1.msra.mxu0 0.0
    %10447 = vmatprep.subr.mxu0 0.0
    %10448 = vmatpush1.msra.mxu0 0.0
    %10449 = vmatprep.subr.mxu0 0.0
    %10450 = vmatpush1.msra.mxu0 0.0
    %10451 = vmatprep.subr.mxu0 0.0
    %10452 = vmatpush1.msra.mxu0 0.0
    %10453 = vmatprep.subr.mxu0 0.0
    %10454 = vmatpush1.msra.mxu0 0.0
    %10455 = vmatprep.subr.mxu0 0.0
    %10456 = vmatpush1.msra.mxu0 0.0
    %10457 = vmatprep.subr.mxu0 0.0
    %10458 = vmatpush1.msra.mxu0 0.0
    %10459 = vmatprep.subr.mxu0 0.0
    %10460 = vmatpush1.msra.mxu0 0.0
    %10461 = vmatprep.subr.mxu0 0.0
    %10462 = vmatpush1.msra.mxu0 0.0
    %10463 = vmatprep.subr.mxu0 0.0
    %10464 = vmatpush1.msra.mxu0 0.0
    %10465 = vmatprep.mubr.f32.mxu0 0.0
    %v10466 = vand.u32 %v8922, 4294901760
    %10467 = vmatmul.mubr.f32.gmra.mrb[0].mxu0 %v10466
    %v10468 = vpop.f32.mrb[0].mxu0
    %v10469 = vadd.f32 %v10373, %v10468
    %v10470 = vpop.f32.mrb[0].mxu0
    %v10471 = vadd.f32 %v10375, %v10470
    %10472 = vdwg.mxu0
    %v10473 = vand.u32 %v8883, 4294901760
    %10474 = vmatprep.subr.mxu0 %v10473
    %v10475 = vand.u32 %v8882, 4294901760
    %10476 = vmatpush1.msra.mxu0 %v10475
    %v10477 = vand.u32 %v8891, 4294901760
    %10478 = vmatprep.subr.mxu0 %v10477
    %v10479 = vand.u32 %v8890, 4294901760
    %10480 = vmatpush1.msra.mxu0 %v10479
    %v10481 = vand.u32 %v8899, 4294901760
    %10482 = vmatprep.subr.mxu0 %v10481
    %v10483 = vand.u32 %v8898, 4294901760
    %10484 = vmatpush1.msra.mxu0 %v10483
    %v10485 = vand.u32 %v8907, 4294901760
    %10486 = vmatprep.subr.mxu0 %v10485
    %v10487 = vand.u32 %v8906, 4294901760
    %10488 = vmatpush1.msra.mxu0 %v10487
    %10489 = vmatprep.subr.mxu0 0.0
    %10490 = vmatpush1.msra.mxu0 0.0
    %10491 = vmatprep.subr.mxu0 0.0
    %10492 = vmatpush1.msra.mxu0 0.0
    %10493 = vmatprep.subr.mxu0 0.0
    %10494 = vmatpush1.msra.mxu0 0.0
    %10495 = vmatprep.subr.mxu0 0.0
    %10496 = vmatpush1.msra.mxu0 0.0
    %10497 = vmatprep.subr.mxu0 0.0
    %10498 = vmatpush1.msra.mxu0 0.0
    %10499 = vmatprep.subr.mxu0 0.0
    %10500 = vmatpush1.msra.mxu0 0.0
    %10501 = vmatprep.subr.mxu0 0.0
    %10502 = vmatpush1.msra.mxu0 0.0
    %10503 = vmatprep.subr.mxu0 0.0
    %10504 = vmatpush1.msra.mxu0 0.0
    %10505 = vmatprep.subr.mxu0 0.0
    %10506 = vmatpush1.msra.mxu0 0.0
    %10507 = vmatprep.subr.mxu0 0.0
    %10508 = vmatpush1.msra.mxu0 0.0
    %10509 = vmatprep.subr.mxu0 0.0
    %10510 = vmatpush1.msra.mxu0 0.0
    %10511 = vmatprep.subr.mxu0 0.0
    %10512 = vmatpush1.msra.mxu0 0.0
    %10513 = vmatprep.subr.mxu0 0.0
    %10514 = vmatpush1.msra.mxu0 0.0
    %10515 = vmatprep.subr.mxu0 0.0
    %10516 = vmatpush1.msra.mxu0 0.0
    %10517 = vmatprep.subr.mxu0 0.0
    %10518 = vmatpush1.msra.mxu0 0.0
    %10519 = vmatprep.subr.mxu0 0.0
    %10520 = vmatpush1.msra.mxu0 0.0
    %10521 = vmatprep.subr.mxu0 0.0
    %10522 = vmatpush1.msra.mxu0 0.0
    %10523 = vmatprep.subr.mxu0 0.0
    %10524 = vmatpush1.msra.mxu0 0.0
    %10525 = vmatprep.subr.mxu0 0.0
    %10526 = vmatpush1.msra.mxu0 0.0
    %10527 = vmatprep.subr.mxu0 0.0
    %10528 = vmatpush1.msra.mxu0 0.0
    %10529 = vmatprep.subr.mxu0 0.0
    %10530 = vmatpush1.msra.mxu0 0.0
    %10531 = vmatprep.subr.mxu0 0.0
    %10532 = vmatpush1.msra.mxu0 0.0
    %10533 = vmatprep.subr.mxu0 0.0
    %10534 = vmatpush1.msra.mxu0 0.0
    %10535 = vmatprep.subr.mxu0 0.0
    %10536 = vmatpush1.msra.mxu0 0.0
    %10537 = vmatprep.subr.mxu0 0.0
    %10538 = vmatpush1.msra.mxu0 0.0
    %10539 = vmatprep.subr.mxu0 0.0
    %10540 = vmatpush1.msra.mxu0 0.0
    %10541 = vmatprep.subr.mxu0 0.0
    %10542 = vmatpush1.msra.mxu0 0.0
    %10543 = vmatprep.subr.mxu0 0.0
    %10544 = vmatpush1.msra.mxu0 0.0
    %10545 = vmatprep.mubr.f32.mxu0 0.0
    %v10546 = vand.u32 %v8922, 4294901760
    %10547 = vmatmul.mubr.f32.gmra.mrb[0].mxu0 %v10546
    %v10548 = vpop.f32.mrb[0].mxu0
    %v10549 = vadd.f32 %v10469, %v10548
    %v10550 = vpop.f32.mrb[0].mxu0
    %v10551 = vadd.f32 %v10471, %v10550
    %10552 = vdwg.mxu0
    %v10553 = vand.u32 %v8885, 4294901760
    %10554 = vmatprep.subr.mxu0 %v10553
    %v10555 = vand.u32 %v8884, 4294901760
    %10556 = vmatpush1.msra.mxu0 %v10555
    %v10557 = vand.u32 %v8893, 4294901760
    %10558 = vmatprep.subr.mxu0 %v10557
    %v10559 = vand.u32 %v8892, 4294901760
    %10560 = vmatpush1.msra.mxu0 %v10559
    %v10561 = vand.u32 %v8901, 4294901760
    %10562 = vmatprep.subr.mxu0 %v10561
    %v10563 = vand.u32 %v8900, 4294901760
    %10564 = vmatpush1.msra.mxu0 %v10563
    %v10565 = vand.u32 %v8909, 4294901760
    %10566 = vmatprep.subr.mxu0 %v10565
    %v10567 = vand.u32 %v8908, 4294901760
    %10568 = vmatpush1.msra.mxu0 %v10567
    %10569 = vmatprep.subr.mxu0 0.0
    %10570 = vmatpush1.msra.mxu0 0.0
    %10571 = vmatprep.subr.mxu0 0.0
    %10572 = vmatpush1.msra.mxu0 0.0
    %10573 = vmatprep.subr.mxu0 0.0
    %10574 = vmatpush1.msra.mxu0 0.0
    %10575 = vmatprep.subr.mxu0 0.0
    %10576 = vmatpush1.msra.mxu0 0.0
    %10577 = vmatprep.subr.mxu0 0.0
    %10578 = vmatpush1.msra.mxu0 0.0
    %10579 = vmatprep.subr.mxu0 0.0
    %10580 = vmatpush1.msra.mxu0 0.0
    %10581 = vmatprep.subr.mxu0 0.0
    %10582 = vmatpush1.msra.mxu0 0.0
    %10583 = vmatprep.subr.mxu0 0.0
    %10584 = vmatpush1.msra.mxu0 0.0
    %10585 = vmatprep.subr.mxu0 0.0
    %10586 = vmatpush1.msra.mxu0 0.0
    %10587 = vmatprep.subr.mxu0 0.0
    %10588 = vmatpush1.msra.mxu0 0.0
    %10589 = vmatprep.subr.mxu0 0.0
    %10590 = vmatpush1.msra.mxu0 0.0
    %10591 = vmatprep.subr.mxu0 0.0
    %10592 = vmatpush1.msra.mxu0 0.0
    %10593 = vmatprep.subr.mxu0 0.0
    %10594 = vmatpush1.msra.mxu0 0.0
    %10595 = vmatprep.subr.mxu0 0.0
    %10596 = vmatpush1.msra.mxu0 0.0
    %10597 = vmatprep.subr.mxu0 0.0
    %10598 = vmatpush1.msra.mxu0 0.0
    %10599 = vmatprep.subr.mxu0 0.0
    %10600 = vmatpush1.msra.mxu0 0.0
    %10601 = vmatprep.subr.mxu0 0.0
    %10602 = vmatpush1.msra.mxu0 0.0
    %10603 = vmatprep.subr.mxu0 0.0
    %10604 = vmatpush1.msra.mxu0 0.0
    %10605 = vmatprep.subr.mxu0 0.0
    %10606 = vmatpush1.msra.mxu0 0.0
    %10607 = vmatprep.subr.mxu0 0.0
    %10608 = vmatpush1.msra.mxu0 0.0
    %10609 = vmatprep.subr.mxu0 0.0
    %10610 = vmatpush1.msra.mxu0 0.0
    %10611 = vmatprep.subr.mxu0 0.0
    %10612 = vmatpush1.msra.mxu0 0.0
    %10613 = vmatprep.subr.mxu0 0.0
    %10614 = vmatpush1.msra.mxu0 0.0
    %10615 = vmatprep.subr.mxu0 0.0
    %10616 = vmatpush1.msra.mxu0 0.0
    %10617 = vmatprep.subr.mxu0 0.0
    %10618 = vmatpush1.msra.mxu0 0.0
    %10619 = vmatprep.subr.mxu0 0.0
    %10620 = vmatpush1.msra.mxu0 0.0
    %10621 = vmatprep.subr.mxu0 0.0
    %10622 = vmatpush1.msra.mxu0 0.0
    %10623 = vmatprep.subr.mxu0 0.0
    %10624 = vmatpush1.msra.mxu0 0.0
    %10625 = vmatprep.mubr.f32.mxu0 0.0
    %v10626 = vand.u32 %v8922, 4294901760
    %v10627 = vsub.f32 %v8922, %v10626
    %v10628 = vand.u32 %v10627, 4294901760
    %v10629 = vsub.f32 %v10627, %v10628
    %v10630 = vand.u32 %v10629, 4294901760
    %10631 = vmatmul.mubr.f32.gmra.mrb[0].mxu0 %v10630
    %v10632 = vpop.f32.mrb[0].mxu0
    %v10633 = vadd.f32 %v8920, %v10632
    %v10634 = vpop.f32.mrb[0].mxu0
    %v10635 = vadd.f32 %v8920, %v10634
    %10636 = vdwg.mxu0
    %v10637 = vand.u32 %v8885, 4294901760
    %v10638 = vsub.f32 %v8885, %v10637
    %v10639 = vand.u32 %v10638, 4294901760
    %v10640 = vsub.f32 %v10638, %v10639
    %v10641 = vand.u32 %v10640, 4294901760
    %10642 = vmatprep.subr.mxu0 %v10641
    %v10643 = vand.u32 %v8884, 4294901760
    %v10644 = vsub.f32 %v8884, %v10643
    %v10645 = vand.u32 %v10644, 4294901760
    %v10646 = vsub.f32 %v10644, %v10645
    %v10647 = vand.u32 %v10646, 4294901760
    %10648 = vmatpush1.msra.mxu0 %v10647
    %v10649 = vand.u32 %v8893, 4294901760
    %v10650 = vsub.f32 %v8893, %v10649
    %v10651 = vand.u32 %v10650, 4294901760
    %v10652 = vsub.f32 %v10650, %v10651
    %v10653 = vand.u32 %v10652, 4294901760
    %10654 = vmatprep.subr.mxu0 %v10653
    %v10655 = vand.u32 %v8892, 4294901760
    %v10656 = vsub.f32 %v8892, %v10655
    %v10657 = vand.u32 %v10656, 4294901760
    %v10658 = vsub.f32 %v10656, %v10657
    %v10659 = vand.u32 %v10658, 4294901760
    %10660 = vmatpush1.msra.mxu0 %v10659
    %v10661 = vand.u32 %v8901, 4294901760
    %v10662 = vsub.f32 %v8901, %v10661
    %v10663 = vand.u32 %v10662, 4294901760
    %v10664 = vsub.f32 %v10662, %v10663
    %v10665 = vand.u32 %v10664, 4294901760
    %10666 = vmatprep.subr.mxu0 %v10665
    %v10667 = vand.u32 %v8900, 4294901760
    %v10668 = vsub.f32 %v8900, %v10667
    %v10669 = vand.u32 %v10668, 4294901760
    %v10670 = vsub.f32 %v10668, %v10669
    %v10671 = vand.u32 %v10670, 4294901760
    %10672 = vmatpush1.msra.mxu0 %v10671
    %v10673 = vand.u32 %v8909, 4294901760
    %v10674 = vsub.f32 %v8909, %v10673
    %v10675 = vand.u32 %v10674, 4294901760
    %v10676 = vsub.f32 %v10674, %v10675
    %v10677 = vand.u32 %v10676, 4294901760
    %10678 = vmatprep.subr.mxu0 %v10677
    %v10679 = vand.u32 %v8908, 4294901760
    %v10680 = vsub.f32 %v8908, %v10679
    %v10681 = vand.u32 %v10680, 4294901760
    %v10682 = vsub.f32 %v10680, %v10681
    %v10683 = vand.u32 %v10682, 4294901760
    %10684 = vmatpush1.msra.mxu0 %v10683
    %10685 = vmatprep.subr.mxu0 0.0
    %10686 = vmatpush1.msra.mxu0 0.0
    %10687 = vmatprep.subr.mxu0 0.0
    %10688 = vmatpush1.msra.mxu0 0.0
    %10689 = vmatprep.subr.mxu0 0.0
    %10690 = vmatpush1.msra.mxu0 0.0
    %10691 = vmatprep.subr.mxu0 0.0
    %10692 = vmatpush1.msra.mxu0 0.0
    %10693 = vmatprep.subr.mxu0 0.0
    %10694 = vmatpush1.msra.mxu0 0.0
    %10695 = vmatprep.subr.mxu0 0.0
    %10696 = vmatpush1.msra.mxu0 0.0
    %10697 = vmatprep.subr.mxu0 0.0
    %10698 = vmatpush1.msra.mxu0 0.0
    %10699 = vmatprep.subr.mxu0 0.0
    %10700 = vmatpush1.msra.mxu0 0.0
    %10701 = vmatprep.subr.mxu0 0.0
    %10702 = vmatpush1.msra.mxu0 0.0
    %10703 = vmatprep.subr.mxu0 0.0
    %10704 = vmatpush1.msra.mxu0 0.0
    %10705 = vmatprep.subr.mxu0 0.0
    %10706 = vmatpush1.msra.mxu0 0.0
    %10707 = vmatprep.subr.mxu0 0.0
    %10708 = vmatpush1.msra.mxu0 0.0
    %10709 = vmatprep.subr.mxu0 0.0
    %10710 = vmatpush1.msra.mxu0 0.0
    %10711 = vmatprep.subr.mxu0 0.0
    %10712 = vmatpush1.msra.mxu0 0.0
    %10713 = vmatprep.subr.mxu0 0.0
    %10714 = vmatpush1.msra.mxu0 0.0
    %10715 = vmatprep.subr.mxu0 0.0
    %10716 = vmatpush1.msra.mxu0 0.0
    %10717 = vmatprep.subr.mxu0 0.0
    %10718 = vmatpush1.msra.mxu0 0.0
    %10719 = vmatprep.subr.mxu0 0.0
    %10720 = vmatpush1.msra.mxu0 0.0
    %10721 = vmatprep.subr.mxu0 0.0
    %10722 = vmatpush1.msra.mxu0 0.0
    %10723 = vmatprep.subr.mxu0 0.0
    %10724 = vmatpush1.msra.mxu0 0.0
    %10725 = vmatprep.subr.mxu0 0.0
    %10726 = vmatpush1.msra.mxu0 0.0
    %10727 = vmatprep.subr.mxu0 0.0
    %10728 = vmatpush1.msra.mxu0 0.0
    %10729 = vmatprep.subr.mxu0 0.0
    %10730 = vmatpush1.msra.mxu0 0.0
    %10731 = vmatprep.subr.mxu0 0.0
    %10732 = vmatpush1.msra.mxu0 0.0
    %10733 = vmatprep.subr.mxu0 0.0
    %10734 = vmatpush1.msra.mxu0 0.0
    %10735 = vmatprep.subr.mxu0 0.0
    %10736 = vmatpush1.msra.mxu0 0.0
    %10737 = vmatprep.subr.mxu0 0.0
    %10738 = vmatpush1.msra.mxu0 0.0
    %10739 = vmatprep.subr.mxu0 0.0
    %10740 = vmatpush1.msra.mxu0 0.0
    %10741 = vmatprep.mubr.f32.mxu0 0.0
    %v10742 = vand.u32 %v8922, 4294901760
    %10743 = vmatmul.mubr.f32.gmra.mrb[0].mxu0 %v10742
    %v10744 = vpop.f32.mrb[0].mxu0
    %v10745 = vadd.f32 %v10633, %v10744
    %v10746 = vpop.f32.mrb[0].mxu0
    %v10747 = vadd.f32 %v10635, %v10746
    %10748 = vdwg.mxu0
    %v10749 = vand.u32 %v8885, 4294901760
    %v10750 = vsub.f32 %v8885, %v10749
    %10751 = vmatprep.subr.mxu0 %v10750
    %v10752 = vand.u32 %v8884, 4294901760
    %v10753 = vsub.f32 %v8884, %v10752
    %10754 = vmatpush1.msra.mxu0 %v10753
    %v10755 = vand.u32 %v8893, 4294901760
    %v10756 = vsub.f32 %v8893, %v10755
    %10757 = vmatprep.subr.mxu0 %v10756
    %v10758 = vand.u32 %v8892, 4294901760
    %v10759 = vsub.f32 %v8892, %v10758
    %10760 = vmatpush1.msra.mxu0 %v10759
    %v10761 = vand.u32 %v8901, 4294901760
    %v10762 = vsub.f32 %v8901, %v10761
    %10763 = vmatprep.subr.mxu0 %v10762
    %v10764 = vand.u32 %v8900, 4294901760
    %v10765 = vsub.f32 %v8900, %v10764
    %10766 = vmatpush1.msra.mxu0 %v10765
    %v10767 = vand.u32 %v8909, 4294901760
    %v10768 = vsub.f32 %v8909, %v10767
    %10769 = vmatprep.subr.mxu0 %v10768
    %v10770 = vand.u32 %v8908, 4294901760
    %v10771 = vsub.f32 %v8908, %v10770
    %10772 = vmatpush1.msra.mxu0 %v10771
    %10773 = vmatprep.subr.mxu0 0.0
    %10774 = vmatpush1.msra.mxu0 0.0
    %10775 = vmatprep.subr.mxu0 0.0
    %10776 = vmatpush1.msra.mxu0 0.0
    %10777 = vmatprep.subr.mxu0 0.0
    %10778 = vmatpush1.msra.mxu0 0.0
    %10779 = vmatprep.subr.mxu0 0.0
    %10780 = vmatpush1.msra.mxu0 0.0
    %10781 = vmatprep.subr.mxu0 0.0
    %10782 = vmatpush1.msra.mxu0 0.0
    %10783 = vmatprep.subr.mxu0 0.0
    %10784 = vmatpush1.msra.mxu0 0.0
    %10785 = vmatprep.subr.mxu0 0.0
    %10786 = vmatpush1.msra.mxu0 0.0
    %10787 = vmatprep.subr.mxu0 0.0
    %10788 = vmatpush1.msra.mxu0 0.0
    %10789 = vmatprep.subr.mxu0 0.0
    %10790 = vmatpush1.msra.mxu0 0.0
    %10791 = vmatprep.subr.mxu0 0.0
    %10792 = vmatpush1.msra.mxu0 0.0
    %10793 = vmatprep.subr.mxu0 0.0
    %10794 = vmatpush1.msra.mxu0 0.0
    %10795 = vmatprep.subr.mxu0 0.0
    %10796 = vmatpush1.msra.mxu0 0.0
    %10797 = vmatprep.subr.mxu0 0.0
    %10798 = vmatpush1.msra.mxu0 0.0
    %10799 = vmatprep.subr.mxu0 0.0
    %10800 = vmatpush1.msra.mxu0 0.0
    %10801 = vmatprep.subr.mxu0 0.0
    %10802 = vmatpush1.msra.mxu0 0.0
    %10803 = vmatprep.subr.mxu0 0.0
    %10804 = vmatpush1.msra.mxu0 0.0
    %10805 = vmatprep.subr.mxu0 0.0
    %10806 = vmatpush1.msra.mxu0 0.0
    %10807 = vmatprep.subr.mxu0 0.0
    %10808 = vmatpush1.msra.mxu0 0.0
    %10809 = vmatprep.subr.mxu0 0.0
    %10810 = vmatpush1.msra.mxu0 0.0
    %10811 = vmatprep.subr.mxu0 0.0
    %10812 = vmatpush1.msra.mxu0 0.0
    %10813 = vmatprep.subr.mxu0 0.0
    %10814 = vmatpush1.msra.mxu0 0.0
    %10815 = vmatprep.subr.mxu0 0.0
    %10816 = vmatpush1.msra.mxu0 0.0
    %10817 = vmatprep.subr.mxu0 0.0
    %10818 = vmatpush1.msra.mxu0 0.0
    %10819 = vmatprep.subr.mxu0 0.0
    %10820 = vmatpush1.msra.mxu0 0.0
    %10821 = vmatprep.subr.mxu0 0.0
    %10822 = vmatpush1.msra.mxu0 0.0
    %10823 = vmatprep.subr.mxu0 0.0
    %10824 = vmatpush1.msra.mxu0 0.0
    %10825 = vmatprep.subr.mxu0 0.0
    %10826 = vmatpush1.msra.mxu0 0.0
    %10827 = vmatprep.subr.mxu0 0.0
    %10828 = vmatpush1.msra.mxu0 0.0
    %10829 = vmatprep.mubr.f32.mxu0 0.0
    %v10830 = vand.u32 %v8922, 4294901760
    %v10831 = vsub.f32 %v8922, %v10830
    %10832 = vmatmul.mubr.f32.gmra.mrb[0].mxu0 %v10831
    %v10833 = vpop.f32.mrb[0].mxu0
    %v10834 = vadd.f32 %v10745, %v10833
    %v10835 = vpop.f32.mrb[0].mxu0
    %v10836 = vadd.f32 %v10747, %v10835
    %10837 = vdwg.mxu0
    %v10838 = vand.u32 %v8885, 4294901760
    %10839 = vmatprep.subr.mxu0 %v10838
    %v10840 = vand.u32 %v8884, 4294901760
    %10841 = vmatpush1.msra.mxu0 %v10840
    %v10842 = vand.u32 %v8893, 4294901760
    %10843 = vmatprep.subr.mxu0 %v10842
    %v10844 = vand.u32 %v8892, 4294901760
    %10845 = vmatpush1.msra.mxu0 %v10844
    %v10846 = vand.u32 %v8901, 4294901760
    %10847 = vmatprep.subr.mxu0 %v10846
    %v10848 = vand.u32 %v8900, 4294901760
    %10849 = vmatpush1.msra.mxu0 %v10848
    %v10850 = vand.u32 %v8909, 4294901760
    %10851 = vmatprep.subr.mxu0 %v10850
    %v10852 = vand.u32 %v8908, 4294901760
    %10853 = vmatpush1.msra.mxu0 %v10852
    %10854 = vmatprep.subr.mxu0 0.0
    %10855 = vmatpush1.msra.mxu0 0.0
    %10856 = vmatprep.subr.mxu0 0.0
    %10857 = vmatpush1.msra.mxu0 0.0
    %10858 = vmatprep.subr.mxu0 0.0
    %10859 = vmatpush1.msra.mxu0 0.0
    %10860 = vmatprep.subr.mxu0 0.0
    %10861 = vmatpush1.msra.mxu0 0.0
    %10862 = vmatprep.subr.mxu0 0.0
    %10863 = vmatpush1.msra.mxu0 0.0
    %10864 = vmatprep.subr.mxu0 0.0
    %10865 = vmatpush1.msra.mxu0 0.0
    %10866 = vmatprep.subr.mxu0 0.0
    %10867 = vmatpush1.msra.mxu0 0.0
    %10868 = vmatprep.subr.mxu0 0.0
    %10869 = vmatpush1.msra.mxu0 0.0
    %10870 = vmatprep.subr.mxu0 0.0
    %10871 = vmatpush1.msra.mxu0 0.0
    %10872 = vmatprep.subr.mxu0 0.0
    %10873 = vmatpush1.msra.mxu0 0.0
    %10874 = vmatprep.subr.mxu0 0.0
    %10875 = vmatpush1.msra.mxu0 0.0
    %10876 = vmatprep.subr.mxu0 0.0
    %10877 = vmatpush1.msra.mxu0 0.0
    %10878 = vmatprep.subr.mxu0 0.0
    %10879 = vmatpush1.msra.mxu0 0.0
    %10880 = vmatprep.subr.mxu0 0.0
    %10881 = vmatpush1.msra.mxu0 0.0
    %10882 = vmatprep.subr.mxu0 0.0
    %10883 = vmatpush1.msra.mxu0 0.0
    %10884 = vmatprep.subr.mxu0 0.0
    %10885 = vmatpush1.msra.mxu0 0.0
    %10886 = vmatprep.subr.mxu0 0.0
    %10887 = vmatpush1.msra.mxu0 0.0
    %10888 = vmatprep.subr.mxu0 0.0
    %10889 = vmatpush1.msra.mxu0 0.0
    %10890 = vmatprep.subr.mxu0 0.0
    %10891 = vmatpush1.msra.mxu0 0.0
    %10892 = vmatprep.subr.mxu0 0.0
    %10893 = vmatpush1.msra.mxu0 0.0
    %10894 = vmatprep.subr.mxu0 0.0
    %10895 = vmatpush1.msra.mxu0 0.0
    %10896 = vmatprep.subr.mxu0 0.0
    %10897 = vmatpush1.msra.mxu0 0.0
    %10898 = vmatprep.subr.mxu0 0.0
    %10899 = vmatpush1.msra.mxu0 0.0
    %10900 = vmatprep.subr.mxu0 0.0
    %10901 = vmatpush1.msra.mxu0 0.0
    %10902 = vmatprep.subr.mxu0 0.0
    %10903 = vmatpush1.msra.mxu0 0.0
    %10904 = vmatprep.subr.mxu0 0.0
    %10905 = vmatpush1.msra.mxu0 0.0
    %10906 = vmatprep.subr.mxu0 0.0
    %10907 = vmatpush1.msra.mxu0 0.0
    %10908 = vmatprep.subr.mxu0 0.0
    %10909 = vmatpush1.msra.mxu0 0.0
    %10910 = vmatprep.mubr.f32.mxu0 0.0
    %v10911 = vand.u32 %v8922, 4294901760
    %v10912 = vsub.f32 %v8922, %v10911
    %v10913 = vand.u32 %v10912, 4294901760
    %10914 = vmatmul.mubr.f32.gmra.mrb[0].mxu0 %v10913
    %v10915 = vpop.f32.mrb[0].mxu0
    %v10916 = vadd.f32 %v10834, %v10915
    %v10917 = vpop.f32.mrb[0].mxu0
    %v10918 = vadd.f32 %v10836, %v10917
    %10919 = vdwg.mxu0
    %v10920 = vand.u32 %v8885, 4294901760
    %v10921 = vsub.f32 %v8885, %v10920
    %v10922 = vand.u32 %v10921, 4294901760
    %10923 = vmatprep.subr.mxu0 %v10922
    %v10924 = vand.u32 %v8884, 4294901760
    %v10925 = vsub.f32 %v8884, %v10924
    %v10926 = vand.u32 %v10925, 4294901760
    %10927 = vmatpush1.msra.mxu0 %v10926
    %v10928 = vand.u32 %v8893, 4294901760
    %v10929 = vsub.f32 %v8893, %v10928
    %v10930 = vand.u32 %v10929, 4294901760
    %10931 = vmatprep.subr.mxu0 %v10930
    %v10932 = vand.u32 %v8892, 4294901760
    %v10933 = vsub.f32 %v8892, %v10932
    %v10934 = vand.u32 %v10933, 4294901760
    %10935 = vmatpush1.msra.mxu0 %v10934
    %v10936 = vand.u32 %v8901, 4294901760
    %v10937 = vsub.f32 %v8901, %v10936
    %v10938 = vand.u32 %v10937, 4294901760
    %10939 = vmatprep.subr.mxu0 %v10938
    %v10940 = vand.u32 %v8900, 4294901760
    %v10941 = vsub.f32 %v8900, %v10940
    %v10942 = vand.u32 %v10941, 4294901760
    %10943 = vmatpush1.msra.mxu0 %v10942
    %v10944 = vand.u32 %v8909, 4294901760
    %v10945 = vsub.f32 %v8909, %v10944
    %v10946 = vand.u32 %v10945, 4294901760
    %10947 = vmatprep.subr.mxu0 %v10946
    %v10948 = vand.u32 %v8908, 4294901760
    %v10949 = vsub.f32 %v8908, %v10948
    %v10950 = vand.u32 %v10949, 4294901760
    %10951 = vmatpush1.msra.mxu0 %v10950
    %10952 = vmatprep.subr.mxu0 0.0
    %10953 = vmatpush1.msra.mxu0 0.0
    %10954 = vmatprep.subr.mxu0 0.0
    %10955 = vmatpush1.msra.mxu0 0.0
    %10956 = vmatprep.subr.mxu0 0.0
    %10957 = vmatpush1.msra.mxu0 0.0
    %10958 = vmatprep.subr.mxu0 0.0
    %10959 = vmatpush1.msra.mxu0 0.0
    %10960 = vmatprep.subr.mxu0 0.0
    %10961 = vmatpush1.msra.mxu0 0.0
    %10962 = vmatprep.subr.mxu0 0.0
    %10963 = vmatpush1.msra.mxu0 0.0
    %10964 = vmatprep.subr.mxu0 0.0
    %10965 = vmatpush1.msra.mxu0 0.0
    %10966 = vmatprep.subr.mxu0 0.0
    %10967 = vmatpush1.msra.mxu0 0.0
    %10968 = vmatprep.subr.mxu0 0.0
    %10969 = vmatpush1.msra.mxu0 0.0
    %10970 = vmatprep.subr.mxu0 0.0
    %10971 = vmatpush1.msra.mxu0 0.0
    %10972 = vmatprep.subr.mxu0 0.0
    %10973 = vmatpush1.msra.mxu0 0.0
    %10974 = vmatprep.subr.mxu0 0.0
    %10975 = vmatpush1.msra.mxu0 0.0
    %10976 = vmatprep.subr.mxu0 0.0
    %10977 = vmatpush1.msra.mxu0 0.0
    %10978 = vmatprep.subr.mxu0 0.0
    %10979 = vmatpush1.msra.mxu0 0.0
    %10980 = vmatprep.subr.mxu0 0.0
    %10981 = vmatpush1.msra.mxu0 0.0
    %10982 = vmatprep.subr.mxu0 0.0
    %10983 = vmatpush1.msra.mxu0 0.0
    %10984 = vmatprep.subr.mxu0 0.0
    %10985 = vmatpush1.msra.mxu0 0.0
    %10986 = vmatprep.subr.mxu0 0.0
    %10987 = vmatpush1.msra.mxu0 0.0
    %10988 = vmatprep.subr.mxu0 0.0
    %10989 = vmatpush1.msra.mxu0 0.0
    %10990 = vmatprep.subr.mxu0 0.0
    %10991 = vmatpush1.msra.mxu0 0.0
    %10992 = vmatprep.subr.mxu0 0.0
    %10993 = vmatpush1.msra.mxu0 0.0
    %10994 = vmatprep.subr.mxu0 0.0
    %10995 = vmatpush1.msra.mxu0 0.0
    %10996 = vmatprep.subr.mxu0 0.0
    %10997 = vmatpush1.msra.mxu0 0.0
    %10998 = vmatprep.subr.mxu0 0.0
    %10999 = vmatpush1.msra.mxu0 0.0
    %11000 = vmatprep.subr.mxu0 0.0
    %11001 = vmatpush1.msra.mxu0 0.0
    %11002 = vmatprep.subr.mxu0 0.0
    %11003 = vmatpush1.msra.mxu0 0.0
    %11004 = vmatprep.subr.mxu0 0.0
    %11005 = vmatpush1.msra.mxu0 0.0
    %11006 = vmatprep.subr.mxu0 0.0
    %11007 = vmatpush1.msra.mxu0 0.0
    %11008 = vmatprep.mubr.f32.mxu0 0.0
    %v11009 = vand.u32 %v8922, 4294901760
    %11010 = vmatmul.mubr.f32.gmra.mrb[0].mxu0 %v11009
    %v11011 = vpop.f32.mrb[0].mxu0
    %v11012 = vadd.f32 %v10916, %v11011
    %v11013 = vpop.f32.mrb[0].mxu0
    %v11014 = vadd.f32 %v10918, %v11013
    %11015 = vdwg.mxu0
    %v11016 = vand.u32 %v8885, 4294901760
    %11017 = vmatprep.subr.mxu0 %v11016
    %v11018 = vand.u32 %v8884, 4294901760
    %11019 = vmatpush1.msra.mxu0 %v11018
    %v11020 = vand.u32 %v8893, 4294901760
    %11021 = vmatprep.subr.mxu0 %v11020
    %v11022 = vand.u32 %v8892, 4294901760
    %11023 = vmatpush1.msra.mxu0 %v11022
    %v11024 = vand.u32 %v8901, 4294901760
    %11025 = vmatprep.subr.mxu0 %v11024
    %v11026 = vand.u32 %v8900, 4294901760
    %11027 = vmatpush1.msra.mxu0 %v11026
    %v11028 = vand.u32 %v8909, 4294901760
    %11029 = vmatprep.subr.mxu0 %v11028
    %v11030 = vand.u32 %v8908, 4294901760
    %11031 = vmatpush1.msra.mxu0 %v11030
    %11032 = vmatprep.subr.mxu0 0.0
    %11033 = vmatpush1.msra.mxu0 0.0
    %11034 = vmatprep.subr.mxu0 0.0
    %11035 = vmatpush1.msra.mxu0 0.0
    %11036 = vmatprep.subr.mxu0 0.0
    %11037 = vmatpush1.msra.mxu0 0.0
    %11038 = vmatprep.subr.mxu0 0.0
    %11039 = vmatpush1.msra.mxu0 0.0
    %11040 = vmatprep.subr.mxu0 0.0
    %11041 = vmatpush1.msra.mxu0 0.0
    %11042 = vmatprep.subr.mxu0 0.0
    %11043 = vmatpush1.msra.mxu0 0.0
    %11044 = vmatprep.subr.mxu0 0.0
    %11045 = vmatpush1.msra.mxu0 0.0
    %11046 = vmatprep.subr.mxu0 0.0
    %11047 = vmatpush1.msra.mxu0 0.0
    %11048 = vmatprep.subr.mxu0 0.0
    %11049 = vmatpush1.msra.mxu0 0.0
    %11050 = vmatprep.subr.mxu0 0.0
    %11051 = vmatpush1.msra.mxu0 0.0
    %11052 = vmatprep.subr.mxu0 0.0
    %11053 = vmatpush1.msra.mxu0 0.0
    %11054 = vmatprep.subr.mxu0 0.0
    %11055 = vmatpush1.msra.mxu0 0.0
    %11056 = vmatprep.subr.mxu0 0.0
    %11057 = vmatpush1.msra.mxu0 0.0
    %11058 = vmatprep.subr.mxu0 0.0
    %11059 = vmatpush1.msra.mxu0 0.0
    %11060 = vmatprep.subr.mxu0 0.0
    %11061 = vmatpush1.msra.mxu0 0.0
    %11062 = vmatprep.subr.mxu0 0.0
    %11063 = vmatpush1.msra.mxu0 0.0
    %11064 = vmatprep.subr.mxu0 0.0
    %11065 = vmatpush1.msra.mxu0 0.0
    %11066 = vmatprep.subr.mxu0 0.0
    %11067 = vmatpush1.msra.mxu0 0.0
    %11068 = vmatprep.subr.mxu0 0.0
    %11069 = vmatpush1.msra.mxu0 0.0
    %11070 = vmatprep.subr.mxu0 0.0
    %11071 = vmatpush1.msra.mxu0 0.0
    %11072 = vmatprep.subr.mxu0 0.0
    %11073 = vmatpush1.msra.mxu0 0.0
    %11074 = vmatprep.subr.mxu0 0.0
    %11075 = vmatpush1.msra.mxu0 0.0
    %11076 = vmatprep.subr.mxu0 0.0
    %11077 = vmatpush1.msra.mxu0 0.0
    %11078 = vmatprep.subr.mxu0 0.0
    %11079 = vmatpush1.msra.mxu0 0.0
    %11080 = vmatprep.subr.mxu0 0.0
    %11081 = vmatpush1.msra.mxu0 0.0
    %11082 = vmatprep.subr.mxu0 0.0
    %11083 = vmatpush1.msra.mxu0 0.0
    %11084 = vmatprep.subr.mxu0 0.0
    %11085 = vmatpush1.msra.mxu0 0.0
    %11086 = vmatprep.subr.mxu0 0.0
    %11087 = vmatpush1.msra.mxu0 0.0
    %11088 = vmatprep.mubr.f32.mxu0 0.0
    %v11089 = vand.u32 %v8922, 4294901760
    %11090 = vmatmul.mubr.f32.gmra.mrb[0].mxu0 %v11089
    %v11091 = vpop.f32.mrb[0].mxu0
    %v11092 = vadd.f32 %v11012, %v11091
    %v11093 = vpop.f32.mrb[0].mxu0
    %v11094 = vadd.f32 %v11014, %v11093
    %11095 = vdwg.mxu0
    %v11104 = vcombine.low %v9463, %v9465
    %v11105 = vcombine.low %v10006, %v10008
    %v11106 = vcombine.low %v10549, %v10551
    %v11107 = vcombine.low %v11092, %v11094
    %v11109 = vunpack.c.l.s4 1966171168
    %v11110 = vunpack.c.0.s8 %v11109
    %v11111 = vlaneseq
    %v11112 = vshrl.u32 %v11111, 7
    %v11113 = vsub.s32 %v11110, %v11112
    %v11114 = vrot.slane %v11104, %v11113
    %v11116 = vunpack.c.l.s4 1966171168
    %v11117 = vunpack.c.0.s8 %v11116
    %v11118 = vlaneseq
    %v11119 = vshrl.u32 %v11118, 7
    %v11120 = vsub.s32 %v11117, %v11119
    %v11121 = vrot.slane %v11105, %v11120
    %v11123 = vunpack.c.l.s4 1966171168
    %v11124 = vunpack.c.0.s8 %v11123
    %v11125 = vlaneseq
    %v11126 = vshrl.u32 %v11125, 7
    %v11127 = vsub.s32 %v11124, %v11126
    %v11128 = vrot.slane %v11106, %v11127
    %v11130 = vunpack.c.l.s4 1966171168
    %v11131 = vunpack.c.0.s8 %v11130
    %v11132 = vlaneseq
    %v11133 = vshrl.u32 %v11132, 7
    %v11134 = vsub.s32 %v11131, %v11133
    %v11135 = vrot.slane %v11107, %v11134
    %v11136 = vcombine.low %v11114, %v11121
    %v11137 = vcombine.low %v11128, %v11135
    %v11139 = vunpack.c.l.s4 1966171168
    %v11140 = vunpack.c.0.s8 %v11139
    %v11141 = vlaneseq
    %v11142 = vshrl.u32 %v11141, 7
    %v11143 = vsub.s32 %v11140, %v11142
    %v11144 = vrot.slane %v11136, %v11143
    %v11146 = vunpack.c.l.s4 1966171168
    %v11147 = vunpack.c.0.s8 %v11146
    %v11148 = vlaneseq
    %v11149 = vshrl.u32 %v11148, 7
    %v11150 = vsub.s32 %v11147, %v11149
    %v11151 = vrot.slane %v11137, %v11150
    %v11152 = vcombine.low %v11144, %v11151
    %11154 = vst [vmem:[#allocation3] sm:$0xff] %v11152
    // Predicated region
    $region46: #{core_energy_model_forward.1} parent=1 // pred_check
      _
    $region47: #{core_energy_model_forward.1} parent=1 // pred_check_branch
      %11156 = sbr.rel (0) target = $region49
    $region48: #{core_energy_model_forward.1} parent=1 // pred_region
      %s11158 = ssub.s32 128, 128
      %11159 = vsyncadd [#allocation4], %s11158
      %s11161 = sshll.u32 [#allocation3], 4
      %s11162 = int_to_ptr.vmem [resolvable:$true] %s11161
      %11164 = dma.vmem_to_hbm [thread:$0]  %s11162, 128, %s11, [#allocation4]
    $region49: #{core_energy_model_forward.1} parent=1 // pred_fallthru
      _
    // Predicated region
    $region50: #{core_energy_model_forward.1} parent=1 // pred_check
      _
    $region51: #{core_energy_model_forward.1} parent=1 // pred_check_branch
      %11166 = sbr.rel (0) target = $region53
    $region52: #{core_energy_model_forward.1} parent=1 // pred_region
      %11167 = dma.done [#allocation4], 128
    $region53: #{core_energy_model_forward.1} parent=1 // pred_fallthru
      _
    %11168 = vsyncpa [#allocation4], 1

</llo_original>
